<compile_context>
chip_gen: v6e
topology: v6e:2x2x1
jax: 0.10.0
libtpu: 0.0.40
codegen_flags: <defaults>
</compile_context>

<pallas_src>
import numpy as np
import jax
import jax.numpy as jnp
from jax.experimental import pallas as pl
from jax.experimental.pallas import tpu as pltpu

_EPS = 1e-5


# ---------------------------------------------------------------------------
# Fused Pallas kernel: one batch element per grid step
# ---------------------------------------------------------------------------
def _resnet_block_kernel(x_ref, w1_ref, b1_ref, w2_ref, b2_ref, out_ref, pad_ref):
    H, W, C = x_ref.shape
    HW = H * W
    inv_hw = 1.0 / float(HW)

    def write_reflect_pad(img):
        """ReflectionPad2d(1) of img (H, W, C) into the (H+2, W+2, C) VMEM scratch."""
        pad_ref[1:H + 1, 1:W + 1, :] = img
        pad_ref[0:1, 1:W + 1, :] = img[1:2, :, :]            # top row  <- row 1
        pad_ref[H + 1:H + 2, 1:W + 1, :] = img[H - 2:H - 1, :, :]  # bottom <- row H-2
        pad_ref[:, 0:1, :] = pad_ref[:, 2:3, :]              # left col  <- col 1 (+corners)
        pad_ref[:, W + 1:W + 2, :] = pad_ref[:, W - 1:W, :]  # right col <- col W-2 (+corners)

    def conv3x3(w_ref, b_ref):
        """3x3 conv as 9 shifted (HW, C) @ (C, C) matmuls over the padded scratch."""
        acc = jnp.zeros((HW, C), jnp.float32)
        for ky in range(3):
            for kx in range(3):
                patch = pad_ref[ky:ky + H, kx:kx + W, :].reshape(HW, C)
                acc = acc + jnp.dot(patch, w_ref[ky * 3 + kx],
                                    preferred_element_type=jnp.float32)
        return acc + b_ref[...]

    def instance_norm(y):
        """Single-pass stats: biased var = E[y^2] - mean^2, eps=1e-5, no affine."""
        s = jnp.sum(y, axis=0, keepdims=True)
        ss = jnp.sum(y * y, axis=0, keepdims=True)
        mean = s * inv_hw
        var = ss * inv_hw - mean * mean
        return (y - mean) * jax.lax.rsqrt(var + _EPS)

    x_img = x_ref[...]                                        # (H, W, C)

    # block 1: reflect pad -> conv -> instance norm -> relu
    write_reflect_pad(x_img)
    h = jnp.maximum(instance_norm(conv3x3(w1_ref, b1_ref)), 0.0)   # (HW, C)

    # block 2: reflect pad (in VMEM, scratch reused) -> conv -> instance norm
    write_reflect_pad(h.reshape(H, W, C))
    h = instance_norm(conv3x3(w2_ref, b2_ref))

    # residual add
    out_ref[...] = (x_img.reshape(HW, C) + h).astype(out_ref.dtype)


# ---------------------------------------------------------------------------
# Weight reshape: PyTorch (Cout, Cin, 3, 3) -> (9, Cin, Cout) per-tap matrices
# ---------------------------------------------------------------------------
def _conv_weight_to_taps(w_oihw):
    cout, cin = w_oihw.shape[0], w_oihw.shape[1]
    return jnp.transpose(w_oihw, (2, 3, 1, 0)).reshape(9, cin, cout).astype(jnp.float32)


# ---------------------------------------------------------------------------
# Forward pass (PyTorch semantics: NCHW in / NCHW out)
# ---------------------------------------------------------------------------
def resnet_block_forward(x_nchw, w1, b1, w2, b2):
    N, C, H, W = x_nchw.shape
    HW = H * W
    x_nhwc = jnp.transpose(x_nchw, (0, 2, 3, 1)).astype(jnp.float32)

    w1t = _conv_weight_to_taps(w1)
    w2t = _conv_weight_to_taps(w2)
    b1m = b1.reshape(1, C).astype(jnp.float32)
    b2m = b2.reshape(1, C).astype(jnp.float32)

    out_flat = pl.pallas_call(
        _resnet_block_kernel,
        out_shape=jax.ShapeDtypeStruct((N, HW, C), jnp.float32),
        grid=(N,),
        in_specs=[
            pl.BlockSpec((None, H, W, C), lambda n: (n, 0, 0, 0)),  # x (batch squeezed)
            pl.BlockSpec((9, C, C), lambda n: (0, 0, 0)),           # w1 taps (resident)
            pl.BlockSpec((1, C), lambda n: (0, 0)),                 # b1
            pl.BlockSpec((9, C, C), lambda n: (0, 0, 0)),           # w2 taps (resident)
            pl.BlockSpec((1, C), lambda n: (0, 0)),                 # b2
        ],
        out_specs=pl.BlockSpec((None, HW, C), lambda n: (n, 0, 0)),
        scratch_shapes=[pltpu.VMEM((H + 2, W + 2, C), jnp.float32)],  # padded image (reused)
        compiler_params=pltpu.CompilerParams(
            dimension_semantics=("parallel",),
            vmem_limit_bytes=64 * 1024 * 1024,
        ),
    )(x_nhwc, w1t, b1m, w2t, b2m)

    return jnp.transpose(out_flat.reshape(N, H, W, C), (0, 3, 1, 2))


# ---------------------------------------------------------------------------
# Pure-JAX reference (for a correctness self-check)
# ---------------------------------------------------------------------------
def _ref_resnet_block(x_nchw, w1, b1, w2, b2):
    def conv_in(x, w, b):
        xp = jnp.pad(x, ((0, 0), (0, 0), (1, 1), (1, 1)), mode="reflect")
        y = jax.lax.conv_general_dilated(
            xp, w, window_strides=(1, 1), padding="VALID",
            dimension_numbers=("NCHW", "OIHW", "NCHW"),
        ) + b[None, :, None, None]
        mean = jnp.mean(y, axis=(2, 3), keepdims=True)
        var = jnp.mean((y - mean) ** 2, axis=(2, 3), keepdims=True)
        return (y - mean) * jax.lax.rsqrt(var + _EPS)

    h = jax.nn.relu(conv_in(x_nchw, w1, b1))
    h = conv_in(h, w2, b2)
    return x_nchw + h


# ---------------------------------------------------------------------------
# Main
# ---------------------------------------------------------------------------
if __name__ == "__main__":
    dim = 4
    N, H, W = 2, 16, 16

    key = jax.random.PRNGKey(0)
    kw1, kb1, kw2, kb2, kx = jax.random.split(key, 5)

    # Deterministic init mimicking PyTorch Conv2d default (uniform(-1/sqrt(fan_in), ...)).
    fan_in = dim * 3 * 3
    bound = float(1.0 / np.sqrt(fan_in))
    w1 = jax.random.uniform(kw1, (dim, dim, 3, 3), jnp.float32, -bound, bound)
    b1 = jax.random.uniform(kb1, (dim,), jnp.float32, -bound, bound)
    w2 = jax.random.uniform(kw2, (dim, dim, 3, 3), jnp.float32, -bound, bound)
    b2 = jax.random.uniform(kb2, (dim,), jnp.float32, -bound, bound)

    x = jax.random.normal(kx, (N, dim, H, W), jnp.float32)

    out = jax.jit(resnet_block_forward)(x, w1, b1, w2, b2)
    out = jax.block_until_ready(out)

    ref = _ref_resnet_block(x, w1, b1, w2, b2)
    if not bool(jnp.allclose(out, ref, rtol=1e-3, atol=1e-3)):
        max_err = float(jnp.max(jnp.abs(out - ref)))
        raise AssertionError(f"Pallas output mismatch vs reference, max abs err = {max_err}")

    assert out.shape == (N, dim, H, W) and out.dtype == jnp.float32
    print("KERNEL_OK")
</pallas_src>

<mosaic_0001>
module attributes {stable_mosaic.version = 11 : i64} {
  func.func @_resnet_block_kernel(%arg0: i32, %arg1: memref<1x16x16x4xf32, #tpu.memory_space<vmem>>, %arg2: memref<9x4x4xf32, #tpu.memory_space<vmem>>, %arg3: memref<1x4xf32, #tpu.memory_space<vmem>>, %arg4: memref<9x4x4xf32, #tpu.memory_space<vmem>>, %arg5: memref<1x4xf32, #tpu.memory_space<vmem>>, %arg6: memref<1x256x4xf32, #tpu.memory_space<vmem>>, %arg7: memref<18x18x4xf32, #tpu.memory_space<vmem>>) attributes {dimension_semantics = [#tpu.dimension_semantics<parallel>], iteration_bounds = array<i64: 2>, scalar_prefetch = 0 : i64, scratch_operands = 1 : i64, tpu.core_type = #tpu.core_type<tc>, window_params = [{transform_indices = @transform_0, window_bounds = array<i64: 1, 16, 16, 4>}, {pipeline_mode = #tpu.pipeline_mode<synchronous>, transform_indices = @transform_1, window_bounds = array<i64: 9, 4, 4>}, {pipeline_mode = #tpu.pipeline_mode<synchronous>, transform_indices = @transform_2, window_bounds = array<i64: 1, 4>}, {pipeline_mode = #tpu.pipeline_mode<synchronous>, transform_indices = @transform_3, window_bounds = array<i64: 9, 4, 4>}, {pipeline_mode = #tpu.pipeline_mode<synchronous>, transform_indices = @transform_4, window_bounds = array<i64: 1, 4>}, {transform_indices = @transform_5, window_bounds = array<i64: 1, 256, 4>}]} {
    %c0 = arith.constant 0 : index
    %c0_0 = arith.constant 0 : index
    %c0_1 = arith.constant 0 : index
    %c0_2 = arith.constant 0 : index
    %0 = vector.load %arg1[%c0, %c0_0, %c0_1, %c0_2] : memref<1x16x16x4xf32, #tpu.memory_space<vmem>>, vector<1x16x16x4xf32>
    %1 = vector.shape_cast %0 : vector<1x16x16x4xf32> to vector<16x16x4xf32>
    %c1 = arith.constant 1 : index
    %c1_3 = arith.constant 1 : index
    %c0_4 = arith.constant 0 : index
    %2 = vector.load %arg7[%c1, %c1_3, %c0_4] : memref<18x18x4xf32, #tpu.memory_space<vmem>>, vector<16x16x4xf32>
    tpu.vector_store %arg7[%c1, %c1_3, %c0_4], %1 {strides = array<i32>} : memref<18x18x4xf32, #tpu.memory_space<vmem>>, vector<16x16x4xf32>,
    %3 = vector.extract_strided_slice %1 {offsets = [1, 0, 0], sizes = [1, 16, 4], strides = [1, 1, 1]} : vector<16x16x4xf32> to vector<1x16x4xf32>
    %c0_5 = arith.constant 0 : index
    %c1_6 = arith.constant 1 : index
    %c0_7 = arith.constant 0 : index
    %4 = vector.load %arg7[%c0_5, %c1_6, %c0_7] : memref<18x18x4xf32, #tpu.memory_space<vmem>>, vector<1x16x4xf32>
    tpu.vector_store %arg7[%c0_5, %c1_6, %c0_7], %3 {strides = array<i32>} : memref<18x18x4xf32, #tpu.memory_space<vmem>>, vector<1x16x4xf32>,
    %5 = vector.extract_strided_slice %1 {offsets = [14, 0, 0], sizes = [1, 16, 4], strides = [1, 1, 1]} : vector<16x16x4xf32> to vector<1x16x4xf32>
    %c17 = arith.constant 17 : index
    %c1_8 = arith.constant 1 : index
    %c0_9 = arith.constant 0 : index
    %6 = vector.load %arg7[%c17, %c1_8, %c0_9] : memref<18x18x4xf32, #tpu.memory_space<vmem>>, vector<1x16x4xf32>
    tpu.vector_store %arg7[%c17, %c1_8, %c0_9], %5 {strides = array<i32>} : memref<18x18x4xf32, #tpu.memory_space<vmem>>, vector<1x16x4xf32>,
    %c0_10 = arith.constant 0 : index
    %c2 = arith.constant 2 : index
    %c0_11 = arith.constant 0 : index
    %7 = vector.load %arg7[%c0_10, %c2, %c0_11] : memref<18x18x4xf32, #tpu.memory_space<vmem>>, vector<18x1x4xf32>
    %c0_12 = arith.constant 0 : index
    %c0_13 = arith.constant 0 : index
    %c0_14 = arith.constant 0 : index
    %8 = vector.load %arg7[%c0_12, %c0_13, %c0_14] : memref<18x18x4xf32, #tpu.memory_space<vmem>>, vector<18x1x4xf32>
    tpu.vector_store %arg7[%c0_12, %c0_13, %c0_14], %7 {strides = array<i32>} : memref<18x18x4xf32, #tpu.memory_space<vmem>>, vector<18x1x4xf32>,
    %c0_15 = arith.constant 0 : index
    %c15 = arith.constant 15 : index
    %c0_16 = arith.constant 0 : index
    %9 = vector.load %arg7[%c0_15, %c15, %c0_16] : memref<18x18x4xf32, #tpu.memory_space<vmem>>, vector<18x1x4xf32>
    %c0_17 = arith.constant 0 : index
    %c17_18 = arith.constant 17 : index
    %c0_19 = arith.constant 0 : index
    %10 = vector.load %arg7[%c0_17, %c17_18, %c0_19] : memref<18x18x4xf32, #tpu.memory_space<vmem>>, vector<18x1x4xf32>
    tpu.vector_store %arg7[%c0_17, %c17_18, %c0_19], %9 {strides = array<i32>} : memref<18x18x4xf32, #tpu.memory_space<vmem>>, vector<18x1x4xf32>,
    %cst = arith.constant 0.000000e+00 : f32
    %11 = vector.broadcast %cst : f32 to vector<256x4xf32>
    %c0_20 = arith.constant 0 : index
    %c0_21 = arith.constant 0 : index
    %c0_22 = arith.constant 0 : index
    %12 = vector.load %arg7[%c0_20, %c0_21, %c0_22] : memref<18x18x4xf32, #tpu.memory_space<vmem>>, vector<16x16x4xf32>
    %13 = vector.shape_cast %12 : vector<16x16x4xf32> to vector<256x4xf32>
    %c0_23 = arith.constant 0 : index
    %c0_24 = arith.constant 0 : index
    %c0_25 = arith.constant 0 : index
    %14 = vector.load %arg2[%c0_23, %c0_24, %c0_25] : memref<9x4x4xf32, #tpu.memory_space<vmem>>, vector<1x4x4xf32>
    %15 = vector.shape_cast %14 : vector<1x4x4xf32> to vector<4x4xf32>
    %cst_26 = arith.constant dense<0.000000e+00> : vector<256x4xf32>
    %16 = tpu.matmul %13, %15, %cst_26 {dimension_numbers = #tpu.dot_dimension_numbers<[1], [0], [0], [1], [0, 0, 1, 1], [], []>} : vector<256x4xf32>, vector<4x4xf32>, vector<256x4xf32> -> vector<256x4xf32>
    %17 = arith.addf %11, %16 : vector<256x4xf32>
    %c0_27 = arith.constant 0 : index
    %c1_28 = arith.constant 1 : index
    %c0_29 = arith.constant 0 : index
    %18 = vector.load %arg7[%c0_27, %c1_28, %c0_29] : memref<18x18x4xf32, #tpu.memory_space<vmem>>, vector<16x16x4xf32>
    %19 = vector.shape_cast %18 : vector<16x16x4xf32> to vector<256x4xf32>
    %c1_30 = arith.constant 1 : index
    %c0_31 = arith.constant 0 : index
    %c0_32 = arith.constant 0 : index
    %20 = vector.load %arg2[%c1_30, %c0_31, %c0_32] : memref<9x4x4xf32, #tpu.memory_space<vmem>>, vector<1x4x4xf32>
    %21 = vector.shape_cast %20 : vector<1x4x4xf32> to vector<4x4xf32>
    %cst_33 = arith.constant dense<0.000000e+00> : vector<256x4xf32>
    %22 = tpu.matmul %19, %21, %cst_33 {dimension_numbers = #tpu.dot_dimension_numbers<[1], [0], [0], [1], [0, 0, 1, 1], [], []>} : vector<256x4xf32>, vector<4x4xf32>, vector<256x4xf32> -> vector<256x4xf32>
    %23 = arith.addf %17, %22 : vector<256x4xf32>
    %c0_34 = arith.constant 0 : index
    %c2_35 = arith.constant 2 : index
    %c0_36 = arith.constant 0 : index
    %24 = vector.load %arg7[%c0_34, %c2_35, %c0_36] : memref<18x18x4xf32, #tpu.memory_space<vmem>>, vector<16x16x4xf32>
    %25 = vector.shape_cast %24 : vector<16x16x4xf32> to vector<256x4xf32>
    %c2_37 = arith.constant 2 : index
    %c0_38 = arith.constant 0 : index
    %c0_39 = arith.constant 0 : index
    %26 = vector.load %arg2[%c2_37, %c0_38, %c0_39] : memref<9x4x4xf32, #tpu.memory_space<vmem>>, vector<1x4x4xf32>
    %27 = vector.shape_cast %26 : vector<1x4x4xf32> to vector<4x4xf32>
    %cst_40 = arith.constant dense<0.000000e+00> : vector<256x4xf32>
    %28 = tpu.matmul %25, %27, %cst_40 {dimension_numbers = #tpu.dot_dimension_numbers<[1], [0], [0], [1], [0, 0, 1, 1], [], []>} : vector<256x4xf32>, vector<4x4xf32>, vector<256x4xf32> -> vector<256x4xf32>
    %29 = arith.addf %23, %28 : vector<256x4xf32>
    %c1_41 = arith.constant 1 : index
    %c0_42 = arith.constant 0 : index
    %c0_43 = arith.constant 0 : index
    %30 = vector.load %arg7[%c1_41, %c0_42, %c0_43] : memref<18x18x4xf32, #tpu.memory_space<vmem>>, vector<16x16x4xf32>
    %31 = vector.shape_cast %30 : vector<16x16x4xf32> to vector<256x4xf32>
    %c3 = arith.constant 3 : index
    %c0_44 = arith.constant 0 : index
    %c0_45 = arith.constant 0 : index
    %32 = vector.load %arg2[%c3, %c0_44, %c0_45] : memref<9x4x4xf32, #tpu.memory_space<vmem>>, vector<1x4x4xf32>
    %33 = vector.shape_cast %32 : vector<1x4x4xf32> to vector<4x4xf32>
    %cst_46 = arith.constant dense<0.000000e+00> : vector<256x4xf32>
    %34 = tpu.matmul %31, %33, %cst_46 {dimension_numbers = #tpu.dot_dimension_numbers<[1], [0], [0], [1], [0, 0, 1, 1], [], []>} : vector<256x4xf32>, vector<4x4xf32>, vector<256x4xf32> -> vector<256x4xf32>
    %35 = arith.addf %29, %34 : vector<256x4xf32>
    %c1_47 = arith.constant 1 : index
    %c1_48 = arith.constant 1 : index
    %c0_49 = arith.constant 0 : index
    %36 = vector.load %arg7[%c1_47, %c1_48, %c0_49] : memref<18x18x4xf32, #tpu.memory_space<vmem>>, vector<16x16x4xf32>
    %37 = vector.shape_cast %36 : vector<16x16x4xf32> to vector<256x4xf32>
    %c4 = arith.constant 4 : index
    %c0_50 = arith.constant 0 : index
    %c0_51 = arith.constant 0 : index
    %38 = vector.load %arg2[%c4, %c0_50, %c0_51] : memref<9x4x4xf32, #tpu.memory_space<vmem>>, vector<1x4x4xf32>
    %39 = vector.shape_cast %38 : vector<1x4x4xf32> to vector<4x4xf32>
    %cst_52 = arith.constant dense<0.000000e+00> : vector<256x4xf32>
    %40 = tpu.matmul %37, %39, %cst_52 {dimension_numbers = #tpu.dot_dimension_numbers<[1], [0], [0], [1], [0, 0, 1, 1], [], []>} : vector<256x4xf32>, vector<4x4xf32>, vector<256x4xf32> -> vector<256x4xf32>
    %41 = arith.addf %35, %40 : vector<256x4xf32>
    %c1_53 = arith.constant 1 : index
    %c2_54 = arith.constant 2 : index
    %c0_55 = arith.constant 0 : index
    %42 = vector.load %arg7[%c1_53, %c2_54, %c0_55] : memref<18x18x4xf32, #tpu.memory_space<vmem>>, vector<16x16x4xf32>
    %43 = vector.shape_cast %42 : vector<16x16x4xf32> to vector<256x4xf32>
    %c5 = arith.constant 5 : index
    %c0_56 = arith.constant 0 : index
    %c0_57 = arith.constant 0 : index
    %44 = vector.load %arg2[%c5, %c0_56, %c0_57] : memref<9x4x4xf32, #tpu.memory_space<vmem>>, vector<1x4x4xf32>
    %45 = vector.shape_cast %44 : vector<1x4x4xf32> to vector<4x4xf32>
    %cst_58 = arith.constant dense<0.000000e+00> : vector<256x4xf32>
    %46 = tpu.matmul %43, %45, %cst_58 {dimension_numbers = #tpu.dot_dimension_numbers<[1], [0], [0], [1], [0, 0, 1, 1], [], []>} : vector<256x4xf32>, vector<4x4xf32>, vector<256x4xf32> -> vector<256x4xf32>
    %47 = arith.addf %41, %46 : vector<256x4xf32>
    %c2_59 = arith.constant 2 : index
    %c0_60 = arith.constant 0 : index
    %c0_61 = arith.constant 0 : index
    %48 = vector.load %arg7[%c2_59, %c0_60, %c0_61] : memref<18x18x4xf32, #tpu.memory_space<vmem>>, vector<16x16x4xf32>
    %49 = vector.shape_cast %48 : vector<16x16x4xf32> to vector<256x4xf32>
    %c6 = arith.constant 6 : index
    %c0_62 = arith.constant 0 : index
    %c0_63 = arith.constant 0 : index
    %50 = vector.load %arg2[%c6, %c0_62, %c0_63] : memref<9x4x4xf32, #tpu.memory_space<vmem>>, vector<1x4x4xf32>
    %51 = vector.shape_cast %50 : vector<1x4x4xf32> to vector<4x4xf32>
    %cst_64 = arith.constant dense<0.000000e+00> : vector<256x4xf32>
    %52 = tpu.matmul %49, %51, %cst_64 {dimension_numbers = #tpu.dot_dimension_numbers<[1], [0], [0], [1], [0, 0, 1, 1], [], []>} : vector<256x4xf32>, vector<4x4xf32>, vector<256x4xf32> -> vector<256x4xf32>
    %53 = arith.addf %47, %52 : vector<256x4xf32>
    %c2_65 = arith.constant 2 : index
    %c1_66 = arith.constant 1 : index
    %c0_67 = arith.constant 0 : index
    %54 = vector.load %arg7[%c2_65, %c1_66, %c0_67] : memref<18x18x4xf32, #tpu.memory_space<vmem>>, vector<16x16x4xf32>
    %55 = vector.shape_cast %54 : vector<16x16x4xf32> to vector<256x4xf32>
    %c7 = arith.constant 7 : index
    %c0_68 = arith.constant 0 : index
    %c0_69 = arith.constant 0 : index
    %56 = vector.load %arg2[%c7, %c0_68, %c0_69] : memref<9x4x4xf32, #tpu.memory_space<vmem>>, vector<1x4x4xf32>
    %57 = vector.shape_cast %56 : vector<1x4x4xf32> to vector<4x4xf32>
    %cst_70 = arith.constant dense<0.000000e+00> : vector<256x4xf32>
    %58 = tpu.matmul %55, %57, %cst_70 {dimension_numbers = #tpu.dot_dimension_numbers<[1], [0], [0], [1], [0, 0, 1, 1], [], []>} : vector<256x4xf32>, vector<4x4xf32>, vector<256x4xf32> -> vector<256x4xf32>
    %59 = arith.addf %53, %58 : vector<256x4xf32>
    %c2_71 = arith.constant 2 : index
    %c2_72 = arith.constant 2 : index
    %c0_73 = arith.constant 0 : index
    %60 = vector.load %arg7[%c2_71, %c2_72, %c0_73] : memref<18x18x4xf32, #tpu.memory_space<vmem>>, vector<16x16x4xf32>
    %61 = vector.shape_cast %60 : vector<16x16x4xf32> to vector<256x4xf32>
    %c8 = arith.constant 8 : index
    %c0_74 = arith.constant 0 : index
    %c0_75 = arith.constant 0 : index
    %62 = vector.load %arg2[%c8, %c0_74, %c0_75] : memref<9x4x4xf32, #tpu.memory_space<vmem>>, vector<1x4x4xf32>
    %63 = vector.shape_cast %62 : vector<1x4x4xf32> to vector<4x4xf32>
    %cst_76 = arith.constant dense<0.000000e+00> : vector<256x4xf32>
    %64 = tpu.matmul %61, %63, %cst_76 {dimension_numbers = #tpu.dot_dimension_numbers<[1], [0], [0], [1], [0, 0, 1, 1], [], []>} : vector<256x4xf32>, vector<4x4xf32>, vector<256x4xf32> -> vector<256x4xf32>
    %65 = arith.addf %59, %64 : vector<256x4xf32>
    %c0_77 = arith.constant 0 : index
    %c0_78 = arith.constant 0 : index
    %66 = vector.load %arg3[%c0_77, %c0_78] : memref<1x4xf32, #tpu.memory_space<vmem>>, vector<1x4xf32>
    %67 = vector.broadcast %66 : vector<1x4xf32> to vector<256x4xf32>
    %68 = arith.addf %65, %67 : vector<256x4xf32>
    %cst_79 = arith.constant dense<0.000000e+00> : vector<4xf32>
    %69 = vector.multi_reduction <add>, %68, %cst_79 [0] : vector<256x4xf32> to vector<4xf32>
    %70 = vector.shape_cast %69 : vector<4xf32> to vector<1x4xf32>
    %71 = arith.mulf %68, %68 : vector<256x4xf32>
    %cst_80 = arith.constant dense<0.000000e+00> : vector<4xf32>
    %72 = vector.multi_reduction <add>, %71, %cst_80 [0] : vector<256x4xf32> to vector<4xf32>
    %73 = vector.shape_cast %72 : vector<4xf32> to vector<1x4xf32>
    %cst_81 = arith.constant 3.906250e-03 : f32
    %74 = vector.broadcast %cst_81 : f32 to vector<1x4xf32>
    %75 = arith.mulf %70, %74 : vector<1x4xf32>
    %cst_82 = arith.constant 3.906250e-03 : f32
    %76 = vector.broadcast %cst_82 : f32 to vector<1x4xf32>
    %77 = arith.mulf %73, %76 : vector<1x4xf32>
    %78 = arith.mulf %75, %75 : vector<1x4xf32>
    %79 = arith.subf %77, %78 : vector<1x4xf32>
    %80 = vector.broadcast %75 : vector<1x4xf32> to vector<256x4xf32>
    %81 = arith.subf %68, %80 : vector<256x4xf32>
    %cst_83 = arith.constant 9.99999974E-6 : f32
    %82 = vector.broadcast %cst_83 : f32 to vector<1x4xf32>
    %83 = arith.addf %79, %82 : vector<1x4xf32>
    %84 = math.rsqrt %83 : vector<1x4xf32>
    %85 = vector.broadcast %84 : vector<1x4xf32> to vector<256x4xf32>
    %86 = arith.mulf %81, %85 : vector<256x4xf32>
    %cst_84 = arith.constant 0.000000e+00 : f32
    %87 = vector.broadcast %cst_84 : f32 to vector<256x4xf32>
    %88 = arith.maximumf %86, %87 : vector<256x4xf32>
    %89 = vector.shape_cast %88 : vector<256x4xf32> to vector<16x16x4xf32>
    %c1_85 = arith.constant 1 : index
    %c1_86 = arith.constant 1 : index
    %c0_87 = arith.constant 0 : index
    %90 = vector.load %arg7[%c1_85, %c1_86, %c0_87] : memref<18x18x4xf32, #tpu.memory_space<vmem>>, vector<16x16x4xf32>
    tpu.vector_store %arg7[%c1_85, %c1_86, %c0_87], %89 {strides = array<i32>} : memref<18x18x4xf32, #tpu.memory_space<vmem>>, vector<16x16x4xf32>,
    %91 = vector.extract_strided_slice %89 {offsets = [1, 0, 0], sizes = [1, 16, 4], strides = [1, 1, 1]} : vector<16x16x4xf32> to vector<1x16x4xf32>
    %c0_88 = arith.constant 0 : index
    %c1_89 = arith.constant 1 : index
    %c0_90 = arith.constant 0 : index
    %92 = vector.load %arg7[%c0_88, %c1_89, %c0_90] : memref<18x18x4xf32, #tpu.memory_space<vmem>>, vector<1x16x4xf32>
    tpu.vector_store %arg7[%c0_88, %c1_89, %c0_90], %91 {strides = array<i32>} : memref<18x18x4xf32, #tpu.memory_space<vmem>>, vector<1x16x4xf32>,
    %93 = vector.extract_strided_slice %89 {offsets = [14, 0, 0], sizes = [1, 16, 4], strides = [1, 1, 1]} : vector<16x16x4xf32> to vector<1x16x4xf32>
    %c17_91 = arith.constant 17 : index
    %c1_92 = arith.constant 1 : index
    %c0_93 = arith.constant 0 : index
    %94 = vector.load %arg7[%c17_91, %c1_92, %c0_93] : memref<18x18x4xf32, #tpu.memory_space<vmem>>, vector<1x16x4xf32>
    tpu.vector_store %arg7[%c17_91, %c1_92, %c0_93], %93 {strides = array<i32>} : memref<18x18x4xf32, #tpu.memory_space<vmem>>, vector<1x16x4xf32>,
    %c0_94 = arith.constant 0 : index
    %c2_95 = arith.constant 2 : index
    %c0_96 = arith.constant 0 : index
    %95 = vector.load %arg7[%c0_94, %c2_95, %c0_96] : memref<18x18x4xf32, #tpu.memory_space<vmem>>, vector<18x1x4xf32>
    %c0_97 = arith.constant 0 : index
    %c0_98 = arith.constant 0 : index
    %c0_99 = arith.constant 0 : index
    %96 = vector.load %arg7[%c0_97, %c0_98, %c0_99] : memref<18x18x4xf32, #tpu.memory_space<vmem>>, vector<18x1x4xf32>
    tpu.vector_store %arg7[%c0_97, %c0_98, %c0_99], %95 {strides = array<i32>} : memref<18x18x4xf32, #tpu.memory_space<vmem>>, vector<18x1x4xf32>,
    %c0_100 = arith.constant 0 : index
    %c15_101 = arith.constant 15 : index
    %c0_102 = arith.constant 0 : index
    %97 = vector.load %arg7[%c0_100, %c15_101, %c0_102] : memref<18x18x4xf32, #tpu.memory_space<vmem>>, vector<18x1x4xf32>
    %c0_103 = arith.constant 0 : index
    %c17_104 = arith.constant 17 : index
    %c0_105 = arith.constant 0 : index
    %98 = vector.load %arg7[%c0_103, %c17_104, %c0_105] : memref<18x18x4xf32, #tpu.memory_space<vmem>>, vector<18x1x4xf32>
    tpu.vector_store %arg7[%c0_103, %c17_104, %c0_105], %97 {strides = array<i32>} : memref<18x18x4xf32, #tpu.memory_space<vmem>>, vector<18x1x4xf32>,
    %cst_106 = arith.constant 0.000000e+00 : f32
    %99 = vector.broadcast %cst_106 : f32 to vector<256x4xf32>
    %c0_107 = arith.constant 0 : index
    %c0_108 = arith.constant 0 : index
    %c0_109 = arith.constant 0 : index
    %100 = vector.load %arg7[%c0_107, %c0_108, %c0_109] : memref<18x18x4xf32, #tpu.memory_space<vmem>>, vector<16x16x4xf32>
    %101 = vector.shape_cast %100 : vector<16x16x4xf32> to vector<256x4xf32>
    %c0_110 = arith.constant 0 : index
    %c0_111 = arith.constant 0 : index
    %c0_112 = arith.constant 0 : index
    %102 = vector.load %arg4[%c0_110, %c0_111, %c0_112] : memref<9x4x4xf32, #tpu.memory_space<vmem>>, vector<1x4x4xf32>
    %103 = vector.shape_cast %102 : vector<1x4x4xf32> to vector<4x4xf32>
    %cst_113 = arith.constant dense<0.000000e+00> : vector<256x4xf32>
    %104 = tpu.matmul %101, %103, %cst_113 {dimension_numbers = #tpu.dot_dimension_numbers<[1], [0], [0], [1], [0, 0, 1, 1], [], []>} : vector<256x4xf32>, vector<4x4xf32>, vector<256x4xf32> -> vector<256x4xf32>
    %105 = arith.addf %99, %104 : vector<256x4xf32>
    %c0_114 = arith.constant 0 : index
    %c1_115 = arith.constant 1 : index
    %c0_116 = arith.constant 0 : index
    %106 = vector.load %arg7[%c0_114, %c1_115, %c0_116] : memref<18x18x4xf32, #tpu.memory_space<vmem>>, vector<16x16x4xf32>
    %107 = vector.shape_cast %106 : vector<16x16x4xf32> to vector<256x4xf32>
    %c1_117 = arith.constant 1 : index
    %c0_118 = arith.constant 0 : index
    %c0_119 = arith.constant 0 : index
    %108 = vector.load %arg4[%c1_117, %c0_118, %c0_119] : memref<9x4x4xf32, #tpu.memory_space<vmem>>, vector<1x4x4xf32>
    %109 = vector.shape_cast %108 : vector<1x4x4xf32> to vector<4x4xf32>
    %cst_120 = arith.constant dense<0.000000e+00> : vector<256x4xf32>
    %110 = tpu.matmul %107, %109, %cst_120 {dimension_numbers = #tpu.dot_dimension_numbers<[1], [0], [0], [1], [0, 0, 1, 1], [], []>} : vector<256x4xf32>, vector<4x4xf32>, vector<256x4xf32> -> vector<256x4xf32>
    %111 = arith.addf %105, %110 : vector<256x4xf32>
    %c0_121 = arith.constant 0 : index
    %c2_122 = arith.constant 2 : index
    %c0_123 = arith.constant 0 : index
    %112 = vector.load %arg7[%c0_121, %c2_122, %c0_123] : memref<18x18x4xf32, #tpu.memory_space<vmem>>, vector<16x16x4xf32>
    %113 = vector.shape_cast %112 : vector<16x16x4xf32> to vector<256x4xf32>
    %c2_124 = arith.constant 2 : index
    %c0_125 = arith.constant 0 : index
    %c0_126 = arith.constant 0 : index
    %114 = vector.load %arg4[%c2_124, %c0_125, %c0_126] : memref<9x4x4xf32, #tpu.memory_space<vmem>>, vector<1x4x4xf32>
    %115 = vector.shape_cast %114 : vector<1x4x4xf32> to vector<4x4xf32>
    %cst_127 = arith.constant dense<0.000000e+00> : vector<256x4xf32>
    %116 = tpu.matmul %113, %115, %cst_127 {dimension_numbers = #tpu.dot_dimension_numbers<[1], [0], [0], [1], [0, 0, 1, 1], [], []>} : vector<256x4xf32>, vector<4x4xf32>, vector<256x4xf32> -> vector<256x4xf32>
    %117 = arith.addf %111, %116 : vector<256x4xf32>
    %c1_128 = arith.constant 1 : index
    %c0_129 = arith.constant 0 : index
    %c0_130 = arith.constant 0 : index
    %118 = vector.load %arg7[%c1_128, %c0_129, %c0_130] : memref<18x18x4xf32, #tpu.memory_space<vmem>>, vector<16x16x4xf32>
    %119 = vector.shape_cast %118 : vector<16x16x4xf32> to vector<256x4xf32>
    %c3_131 = arith.constant 3 : index
    %c0_132 = arith.constant 0 : index
    %c0_133 = arith.constant 0 : index
    %120 = vector.load %arg4[%c3_131, %c0_132, %c0_133] : memref<9x4x4xf32, #tpu.memory_space<vmem>>, vector<1x4x4xf32>
    %121 = vector.shape_cast %120 : vector<1x4x4xf32> to vector<4x4xf32>
    %cst_134 = arith.constant dense<0.000000e+00> : vector<256x4xf32>
    %122 = tpu.matmul %119, %121, %cst_134 {dimension_numbers = #tpu.dot_dimension_numbers<[1], [0], [0], [1], [0, 0, 1, 1], [], []>} : vector<256x4xf32>, vector<4x4xf32>, vector<256x4xf32> -> vector<256x4xf32>
    %123 = arith.addf %117, %122 : vector<256x4xf32>
    %c1_135 = arith.constant 1 : index
    %c1_136 = arith.constant 1 : index
    %c0_137 = arith.constant 0 : index
    %124 = vector.load %arg7[%c1_135, %c1_136, %c0_137] : memref<18x18x4xf32, #tpu.memory_space<vmem>>, vector<16x16x4xf32>
    %125 = vector.shape_cast %124 : vector<16x16x4xf32> to vector<256x4xf32>
    %c4_138 = arith.constant 4 : index
    %c0_139 = arith.constant 0 : index
    %c0_140 = arith.constant 0 : index
    %126 = vector.load %arg4[%c4_138, %c0_139, %c0_140] : memref<9x4x4xf32, #tpu.memory_space<vmem>>, vector<1x4x4xf32>
    %127 = vector.shape_cast %126 : vector<1x4x4xf32> to vector<4x4xf32>
    %cst_141 = arith.constant dense<0.000000e+00> : vector<256x4xf32>
    %128 = tpu.matmul %125, %127, %cst_141 {dimension_numbers = #tpu.dot_dimension_numbers<[1], [0], [0], [1], [0, 0, 1, 1], [], []>} : vector<256x4xf32>, vector<4x4xf32>, vector<256x4xf32> -> vector<256x4xf32>
    %129 = arith.addf %123, %128 : vector<256x4xf32>
    %c1_142 = arith.constant 1 : index
    %c2_143 = arith.constant 2 : index
    %c0_144 = arith.constant 0 : index
    %130 = vector.load %arg7[%c1_142, %c2_143, %c0_144] : memref<18x18x4xf32, #tpu.memory_space<vmem>>, vector<16x16x4xf32>
    %131 = vector.shape_cast %130 : vector<16x16x4xf32> to vector<256x4xf32>
    %c5_145 = arith.constant 5 : index
    %c0_146 = arith.constant 0 : index
    %c0_147 = arith.constant 0 : index
    %132 = vector.load %arg4[%c5_145, %c0_146, %c0_147] : memref<9x4x4xf32, #tpu.memory_space<vmem>>, vector<1x4x4xf32>
    %133 = vector.shape_cast %132 : vector<1x4x4xf32> to vector<4x4xf32>
    %cst_148 = arith.constant dense<0.000000e+00> : vector<256x4xf32>
    %134 = tpu.matmul %131, %133, %cst_148 {dimension_numbers = #tpu.dot_dimension_numbers<[1], [0], [0], [1], [0, 0, 1, 1], [], []>} : vector<256x4xf32>, vector<4x4xf32>, vector<256x4xf32> -> vector<256x4xf32>
    %135 = arith.addf %129, %134 : vector<256x4xf32>
    %c2_149 = arith.constant 2 : index
    %c0_150 = arith.constant 0 : index
    %c0_151 = arith.constant 0 : index
    %136 = vector.load %arg7[%c2_149, %c0_150, %c0_151] : memref<18x18x4xf32, #tpu.memory_space<vmem>>, vector<16x16x4xf32>
    %137 = vector.shape_cast %136 : vector<16x16x4xf32> to vector<256x4xf32>
    %c6_152 = arith.constant 6 : index
    %c0_153 = arith.constant 0 : index
    %c0_154 = arith.constant 0 : index
    %138 = vector.load %arg4[%c6_152, %c0_153, %c0_154] : memref<9x4x4xf32, #tpu.memory_space<vmem>>, vector<1x4x4xf32>
    %139 = vector.shape_cast %138 : vector<1x4x4xf32> to vector<4x4xf32>
    %cst_155 = arith.constant dense<0.000000e+00> : vector<256x4xf32>
    %140 = tpu.matmul %137, %139, %cst_155 {dimension_numbers = #tpu.dot_dimension_numbers<[1], [0], [0], [1], [0, 0, 1, 1], [], []>} : vector<256x4xf32>, vector<4x4xf32>, vector<256x4xf32> -> vector<256x4xf32>
    %141 = arith.addf %135, %140 : vector<256x4xf32>
    %c2_156 = arith.constant 2 : index
    %c1_157 = arith.constant 1 : index
    %c0_158 = arith.constant 0 : index
    %142 = vector.load %arg7[%c2_156, %c1_157, %c0_158] : memref<18x18x4xf32, #tpu.memory_space<vmem>>, vector<16x16x4xf32>
    %143 = vector.shape_cast %142 : vector<16x16x4xf32> to vector<256x4xf32>
    %c7_159 = arith.constant 7 : index
    %c0_160 = arith.constant 0 : index
    %c0_161 = arith.constant 0 : index
    %144 = vector.load %arg4[%c7_159, %c0_160, %c0_161] : memref<9x4x4xf32, #tpu.memory_space<vmem>>, vector<1x4x4xf32>
    %145 = vector.shape_cast %144 : vector<1x4x4xf32> to vector<4x4xf32>
    %cst_162 = arith.constant dense<0.000000e+00> : vector<256x4xf32>
    %146 = tpu.matmul %143, %145, %cst_162 {dimension_numbers = #tpu.dot_dimension_numbers<[1], [0], [0], [1], [0, 0, 1, 1], [], []>} : vector<256x4xf32>, vector<4x4xf32>, vector<256x4xf32> -> vector<256x4xf32>
    %147 = arith.addf %141, %146 : vector<256x4xf32>
    %c2_163 = arith.constant 2 : index
    %c2_164 = arith.constant 2 : index
    %c0_165 = arith.constant 0 : index
    %148 = vector.load %arg7[%c2_163, %c2_164, %c0_165] : memref<18x18x4xf32, #tpu.memory_space<vmem>>, vector<16x16x4xf32>
    %149 = vector.shape_cast %148 : vector<16x16x4xf32> to vector<256x4xf32>
    %c8_166 = arith.constant 8 : index
    %c0_167 = arith.constant 0 : index
    %c0_168 = arith.constant 0 : index
    %150 = vector.load %arg4[%c8_166, %c0_167, %c0_168] : memref<9x4x4xf32, #tpu.memory_space<vmem>>, vector<1x4x4xf32>
    %151 = vector.shape_cast %150 : vector<1x4x4xf32> to vector<4x4xf32>
    %cst_169 = arith.constant dense<0.000000e+00> : vector<256x4xf32>
    %152 = tpu.matmul %149, %151, %cst_169 {dimension_numbers = #tpu.dot_dimension_numbers<[1], [0], [0], [1], [0, 0, 1, 1], [], []>} : vector<256x4xf32>, vector<4x4xf32>, vector<256x4xf32> -> vector<256x4xf32>
    %153 = arith.addf %147, %152 : vector<256x4xf32>
    %c0_170 = arith.constant 0 : index
    %c0_171 = arith.constant 0 : index
    %154 = vector.load %arg5[%c0_170, %c0_171] : memref<1x4xf32, #tpu.memory_space<vmem>>, vector<1x4xf32>
    %155 = vector.broadcast %154 : vector<1x4xf32> to vector<256x4xf32>
    %156 = arith.addf %153, %155 : vector<256x4xf32>
    %cst_172 = arith.constant dense<0.000000e+00> : vector<4xf32>
    %157 = vector.multi_reduction <add>, %156, %cst_172 [0] : vector<256x4xf32> to vector<4xf32>
    %158 = vector.shape_cast %157 : vector<4xf32> to vector<1x4xf32>
    %159 = arith.mulf %156, %156 : vector<256x4xf32>
    %cst_173 = arith.constant dense<0.000000e+00> : vector<4xf32>
    %160 = vector.multi_reduction <add>, %159, %cst_173 [0] : vector<256x4xf32> to vector<4xf32>
    %161 = vector.shape_cast %160 : vector<4xf32> to vector<1x4xf32>
    %cst_174 = arith.constant 3.906250e-03 : f32
    %162 = vector.broadcast %cst_174 : f32 to vector<1x4xf32>
    %163 = arith.mulf %158, %162 : vector<1x4xf32>
    %cst_175 = arith.constant 3.906250e-03 : f32
    %164 = vector.broadcast %cst_175 : f32 to vector<1x4xf32>
    %165 = arith.mulf %161, %164 : vector<1x4xf32>
    %166 = arith.mulf %163, %163 : vector<1x4xf32>
    %167 = arith.subf %165, %166 : vector<1x4xf32>
    %168 = vector.broadcast %163 : vector<1x4xf32> to vector<256x4xf32>
    %169 = arith.subf %156, %168 : vector<256x4xf32>
    %cst_176 = arith.constant 9.99999974E-6 : f32
    %170 = vector.broadcast %cst_176 : f32 to vector<1x4xf32>
    %171 = arith.addf %167, %170 : vector<1x4xf32>
    %172 = math.rsqrt %171 : vector<1x4xf32>
    %173 = vector.broadcast %172 : vector<1x4xf32> to vector<256x4xf32>
    %174 = arith.mulf %169, %173 : vector<256x4xf32>
    %175 = vector.shape_cast %1 : vector<16x16x4xf32> to vector<256x4xf32>
    %176 = arith.addf %175, %174 : vector<256x4xf32>
    %c0_177 = arith.constant 0 : index
    %c0_178 = arith.constant 0 : index
    %c0_179 = arith.constant 0 : index
    %177 = vector.load %arg6[%c0_177, %c0_178, %c0_179] : memref<1x256x4xf32, #tpu.memory_space<vmem>>, vector<1x256x4xf32>
    %178 = vector.shape_cast %177 : vector<1x256x4xf32> to vector<256x4xf32>
    %179 = vector.shape_cast %176 : vector<256x4xf32> to vector<1x256x4xf32>
    tpu.vector_store %arg6[%c0_177, %c0_178, %c0_179], %179 {strides = array<i32>} : memref<1x256x4xf32, #tpu.memory_space<vmem>>, vector<1x256x4xf32>,
    return
  }
  func.func @transform_0(%arg0: i32) -> (i32, i32, i32, i32) {
    %c0_i32 = arith.constant 0 : i32
    %c0_i32_0 = arith.constant 0 : i32
    %c0_i32_1 = arith.constant 0 : i32
    %c0_i32_2 = arith.constant 0 : i32
    return %arg0, %c0_i32, %c0_i32_0, %c0_i32_1 : i32, i32, i32, i32
  }
  func.func @transform_1(%arg0: i32) -> (i32, i32, i32) {
    %c0_i32 = arith.constant 0 : i32
    %c0_i32_0 = arith.constant 0 : i32
    %c0_i32_1 = arith.constant 0 : i32
    %c0_i32_2 = arith.constant 0 : i32
    return %c0_i32, %c0_i32_0, %c0_i32_1 : i32, i32, i32
  }
  func.func @transform_2(%arg0: i32) -> (i32, i32) {
    %c0_i32 = arith.constant 0 : i32
    %c0_i32_0 = arith.constant 0 : i32
    %c0_i32_1 = arith.constant 0 : i32
    return %c0_i32, %c0_i32_0 : i32, i32
  }
  func.func @transform_3(%arg0: i32) -> (i32, i32, i32) {
    %c0_i32 = arith.constant 0 : i32
    %c0_i32_0 = arith.constant 0 : i32
    %c0_i32_1 = arith.constant 0 : i32
    %c0_i32_2 = arith.constant 0 : i32
    return %c0_i32, %c0_i32_0, %c0_i32_1 : i32, i32, i32
  }
  func.func @transform_4(%arg0: i32) -> (i32, i32) {
    %c0_i32 = arith.constant 0 : i32
    %c0_i32_0 = arith.constant 0 : i32
    %c0_i32_1 = arith.constant 0 : i32
    return %c0_i32, %c0_i32_0 : i32, i32
  }
  func.func @transform_5(%arg0: i32) -> (i32, i32, i32) {
    %c0_i32 = arith.constant 0 : i32
    %c0_i32_0 = arith.constant 0 : i32
    %c0_i32_1 = arith.constant 0 : i32
    return %arg0, %c0_i32, %c0_i32_0 : i32, i32, i32
  }
}

</mosaic_0001>

<llo_original>
// kernel: resnet_block_forward.1
$region0: #{resnet_block_forward.1}
  #allocation0 [shape = 'u32[]', space=smem, size = 0x4, offset = 0x4, fixed_abs, tag = 'smem constant byte address 0x4 - core index']
  #allocation1 [shape = 'u32[144,128]{1,0:T(1,128)}', space=vmem, size = 0x12000, scoped, tag = 'internal scratch']
  #allocation2 [shape = 'f32[18,18,4]{2,1,0:T(8,128)}', space=vmem, size = 0x36000, scoped, tag = 'scratch operand']
  %s0 = inlined_call_operand.vmem [shape: f32[2,16,16,4], index: 0, kind: input, shape index: {}]
  %s1 = inlined_call_operand.vmem [shape: f32[9,4,4], index: 1, kind: input, shape index: {}]
  %s2 = inlined_call_operand.vmem [shape: f32[1,4], index: 2, kind: input, shape index: {}]
  %s3 = inlined_call_operand.vmem [shape: f32[9,4,4], index: 3, kind: input, shape index: {}]
  %s4 = inlined_call_operand.vmem [shape: f32[1,4], index: 4, kind: input, shape index: {}]
  %s5 = inlined_call_operand.vmem [shape: f32[2,256,4], index: 5, kind: output, shape index: {}]
  %s6 = sld [smem:[#allocation0]]
  $region53: #{resnet_block_forward.1} parent=0
    _
  %s8 = ssub.s32 1, %s6
  %s9 = scalar_select 0, %s8, %s6
  loop: start=0, step=1, limit=4
  $region2: #{resnet_block_forward.1} parent=0 // loop_pre_header
    _
  $region3: #{resnet_block_forward.1} parent=0 // loop_header
    %s11 = sphi 0, %s15
    %p12 = scmp.ge.s32.totalorder %s11, 4
    %s21 = sphi 0, %s23
    %s24 = sphi 0, %s21
    %s25 = sphi 0, %s24
    %s41 = sphi 0, %s25
    %s45 = sphi 0, %s45
    %s47 = sphi 0, %s45
    %s48 = sphi 0, %s47
    %s62 = sphi 0, %s48
    %s66 = sphi 0, %s66
    %s68 = sphi 0, %s66
    %s69 = sphi 0, %s68
    %s83 = sphi 0, %s69
    %s87 = sphi 0, %s87
    %s89 = sphi 0, %s87
    %s90 = sphi 0, %s89
    %s104 = sphi 0, %s90
    %s108 = sphi 0, %s108
    %s110 = sphi 0, %s108
    %s111 = sphi 0, %s110
    %s125 = sphi 0, %s111
    %s131 = sphi 0, %s133
    %s134 = sphi 0, %s131
    %s135 = sphi 0, %s134
    %s151 = sphi 0, %s135
  $region4: #{resnet_block_forward.1} parent=0 // loop_header_branch
    %14 = sbr.rel (%p12) target = $region8
  $region5: #{resnet_block_forward.1} parent=0 // loop_body
    %s16 = ssub.s32 %s11, 1
    %s17 = ssub.s32 %s11, 2
    %s18 = sadd.s32 %s11, 1
    %s19 = ssub.s32 %s11, %s18
    %p20 = scmp.eq.s32.totalorder %s19, 0
    %s22 = sadd.s32 %s21, 1
    %s23 = scalar_select %p20, %s21, %s22
    %p26 = pneg %p20
    %p27 = scmp.eq.s32.totalorder %s11, 1
    %p28 = por %p26, %p27
    %p29 = scmp.ne.s32.totalorder %s21, %s24
    %p30 = scmp.eq.s32.totalorder %s11, 0
    %p31 = por %p29, %p30
    %p32 = scmp.ne.s32.totalorder %s21, %s24
    %p33 = scmp.eq.s32.totalorder %s16, 1
    %p34 = por %p32, %p33
    %p35 = scmp.ne.s32.totalorder %s24, %s25
    %p36 = scmp.eq.s32.totalorder %s16, 0
    %p37 = por %p35, %p36
    %p38 = scmp.ne.s32.totalorder %s24, %s25
    %p39 = scmp.eq.s32.totalorder %s17, 1
    %p40 = por %p38, %p39
    %p42 = scmp.ne.s32.totalorder %s25, %s41
    %p43 = scmp.eq.s32.totalorder %s17, 0
    %p44 = por %p42, %p43
    %s46 = sadd.s32 %s45, 1
    %p49 = scmp.eq.s32.totalorder %s11, 1
    %p50 = scmp.ne.s32.totalorder %s45, %s47
    %p51 = scmp.eq.s32.totalorder %s11, 0
    %p52 = por %p50, %p51
    %p53 = scmp.ne.s32.totalorder %s45, %s47
    %p54 = scmp.eq.s32.totalorder %s16, 1
    %p55 = por %p53, %p54
    %p56 = scmp.ne.s32.totalorder %s47, %s48
    %p57 = scmp.eq.s32.totalorder %s16, 0
    %p58 = por %p56, %p57
    %p59 = scmp.ne.s32.totalorder %s47, %s48
    %p60 = scmp.eq.s32.totalorder %s17, 1
    %p61 = por %p59, %p60
    %p63 = scmp.ne.s32.totalorder %s48, %s62
    %p64 = scmp.eq.s32.totalorder %s17, 0
    %p65 = por %p63, %p64
    %s67 = sadd.s32 %s66, 1
    %p70 = scmp.eq.s32.totalorder %s11, 1
    %p71 = scmp.ne.s32.totalorder %s66, %s68
    %p72 = scmp.eq.s32.totalorder %s11, 0
    %p73 = por %p71, %p72
    %p74 = scmp.ne.s32.totalorder %s66, %s68
    %p75 = scmp.eq.s32.totalorder %s16, 1
    %p76 = por %p74, %p75
    %p77 = scmp.ne.s32.totalorder %s68, %s69
    %p78 = scmp.eq.s32.totalorder %s16, 0
    %p79 = por %p77, %p78
    %p80 = scmp.ne.s32.totalorder %s68, %s69
    %p81 = scmp.eq.s32.totalorder %s17, 1
    %p82 = por %p80, %p81
    %p84 = scmp.ne.s32.totalorder %s69, %s83
    %p85 = scmp.eq.s32.totalorder %s17, 0
    %p86 = por %p84, %p85
    %s88 = sadd.s32 %s87, 1
    %p91 = scmp.eq.s32.totalorder %s11, 1
    %p92 = scmp.ne.s32.totalorder %s87, %s89
    %p93 = scmp.eq.s32.totalorder %s11, 0
    %p94 = por %p92, %p93
    %p95 = scmp.ne.s32.totalorder %s87, %s89
    %p96 = scmp.eq.s32.totalorder %s16, 1
    %p97 = por %p95, %p96
    %p98 = scmp.ne.s32.totalorder %s89, %s90
    %p99 = scmp.eq.s32.totalorder %s16, 0
    %p100 = por %p98, %p99
    %p101 = scmp.ne.s32.totalorder %s89, %s90
    %p102 = scmp.eq.s32.totalorder %s17, 1
    %p103 = por %p101, %p102
    %p105 = scmp.ne.s32.totalorder %s90, %s104
    %p106 = scmp.eq.s32.totalorder %s17, 0
    %p107 = por %p105, %p106
    %s109 = sadd.s32 %s108, 1
    %p112 = scmp.eq.s32.totalorder %s11, 1
    %p113 = scmp.ne.s32.totalorder %s108, %s110
    %p114 = scmp.eq.s32.totalorder %s11, 0
    %p115 = por %p113, %p114
    %p116 = scmp.ne.s32.totalorder %s108, %s110
    %p117 = scmp.eq.s32.totalorder %s16, 1
    %p118 = por %p116, %p117
    %p119 = scmp.ne.s32.totalorder %s110, %s111
    %p120 = scmp.eq.s32.totalorder %s16, 0
    %p121 = por %p119, %p120
    %p122 = scmp.ne.s32.totalorder %s110, %s111
    %p123 = scmp.eq.s32.totalorder %s17, 1
    %p124 = por %p122, %p123
    %p126 = scmp.ne.s32.totalorder %s111, %s125
    %p127 = scmp.eq.s32.totalorder %s17, 0
    %p128 = por %p126, %p127
    %s129 = ssub.s32 %s11, %s18
    %p130 = scmp.eq.s32.totalorder %s129, 0
    %s132 = sadd.s32 %s131, 1
    %s133 = scalar_select %p130, %s131, %s132
    %p136 = pneg %p130
    %p137 = scmp.eq.s32.totalorder %s11, 1
    %p138 = por %p136, %p137
    %p139 = scmp.ne.s32.totalorder %s131, %s134
    %p140 = scmp.eq.s32.totalorder %s11, 0
    %p141 = por %p139, %p140
    %p142 = scmp.ne.s32.totalorder %s131, %s134
    %p143 = scmp.eq.s32.totalorder %s16, 1
    %p144 = por %p142, %p143
    %p145 = scmp.ne.s32.totalorder %s134, %s135
    %p146 = scmp.eq.s32.totalorder %s16, 0
    %p147 = por %p145, %p146
    %p148 = scmp.ne.s32.totalorder %s134, %s135
    %p149 = scmp.eq.s32.totalorder %s17, 1
    %p150 = por %p148, %p149
    %p152 = scmp.ne.s32.totalorder %s135, %s151
    %p153 = scmp.eq.s32.totalorder %s17, 0
    %p154 = por %p152, %p153
    %p155 = scmp.le.s32.totalorder 1, %s11
    %p156 = scmp.lt.s32.totalorder %s11, 3
    %p157 = pnand %p155, %p156
    %p158 = pneg %p157
    // Predicated region
    $region9: #{resnet_block_forward.1} parent=5 // pred_check
      _
    $region10: #{resnet_block_forward.1} parent=5 // pred_check_branch
      %160 = sbr.rel (%p157) target = $region12
    $region11: #{resnet_block_forward.1} parent=5 // pred_region
      %s161 = ssub.s32 %s11, 1
      // Predicated region
      $region13: #{resnet_block_forward.1} parent=11 // pred_check
        %p162 = pneg %p58
      $region14: #{resnet_block_forward.1} parent=11 // pred_check_branch
        %164 = sbr.rel (%p162) target = $region16
      $region15: #{resnet_block_forward.1} parent=11 // pred_region
        _
      $region16: #{resnet_block_forward.1} parent=11 // pred_fallthru
        _
      // Predicated region
      $region17: #{resnet_block_forward.1} parent=11 // pred_check
        %p165 = pneg %p79
      $region18: #{resnet_block_forward.1} parent=11 // pred_check_branch
        %167 = sbr.rel (%p165) target = $region20
      $region19: #{resnet_block_forward.1} parent=11 // pred_region
        _
      $region20: #{resnet_block_forward.1} parent=11 // pred_fallthru
        _
      // Predicated region
      $region21: #{resnet_block_forward.1} parent=11 // pred_check
        %p168 = pneg %p100
      $region22: #{resnet_block_forward.1} parent=11 // pred_check_branch
        %170 = sbr.rel (%p168) target = $region24
      $region23: #{resnet_block_forward.1} parent=11 // pred_region
        _
      $region24: #{resnet_block_forward.1} parent=11 // pred_fallthru
        _
      // Predicated region
      $region25: #{resnet_block_forward.1} parent=11 // pred_check
        %p171 = pneg %p121
      $region26: #{resnet_block_forward.1} parent=11 // pred_check_branch
        %173 = sbr.rel (%p171) target = $region28
      $region27: #{resnet_block_forward.1} parent=11 // pred_region
        _
      $region28: #{resnet_block_forward.1} parent=11 // pred_fallthru
        _
    $region12: #{resnet_block_forward.1} parent=5 // pred_fallthru
      _
    %p174 = scmp.lt.s32.totalorder %s11, 2
    // Predicated region
    $region29: #{resnet_block_forward.1} parent=5 // pred_check
      %p175 = pneg %p174
    $region30: #{resnet_block_forward.1} parent=5 // pred_check_branch
      %177 = sbr.rel (%p175) target = $region32
    $region31: #{resnet_block_forward.1} parent=5 // pred_region
      // Predicated region
      $region33: #{resnet_block_forward.1} parent=31 // pred_check
        %p178 = pneg %p31
      $region34: #{resnet_block_forward.1} parent=31 // pred_check_branch
        %180 = sbr.rel (%p178) target = $region36
      $region35: #{resnet_block_forward.1} parent=31 // pred_region
        %p181 = scmp.lt.s32.totalorder %s11, 1
        %s182 = scalar_select %p181, %s11, 1
        %s183 = smul.addr %s182, 32
        %s184 = smul.addr %s183, 8
        %s185 = scalar_lea.vmem %s0, %s184
      $region36: #{resnet_block_forward.1} parent=31 // pred_fallthru
        _
    $region32: #{resnet_block_forward.1} parent=5 // pred_fallthru
      _
    %p186 = scmp.le.s32.totalorder 1, %s11
    %p187 = scmp.lt.s32.totalorder %s11, 3
    %p188 = pnand %p186, %p187
    %p189 = pneg %p188
    // Predicated region
    $region37: #{resnet_block_forward.1} parent=5 // pred_check
      _
    $region38: #{resnet_block_forward.1} parent=5 // pred_check_branch
      %191 = sbr.rel (%p188) target = $region40
    $region39: #{resnet_block_forward.1} parent=5 // pred_region
      %s192 = ssub.s32 %s11, 1
      %p193 = scmp.lt.s32.totalorder %s16, 1
      %s194 = scalar_select %p193, %s16, 1
      %s195 = smul.addr %s194, 32
      %s196 = smul.addr %s195, 8
      %s197 = scalar_lea.vmem %s0, %s196
      %p198 = pneg %p37
      %p199 = pneg %p34
      %p200 = pneg %p58
      %p201 = pneg %p55
      %p202 = pneg %p79
      %p203 = pneg %p76
      %p204 = pneg %p100
      %p205 = pneg %p97
      %p206 = pneg %p121
      %p207 = pneg %p118
      %p208 = pneg %p147
      %p209 = pneg %p144
      %p210 = scmp.lt.s32.totalorder %s16, 1
      %s211 = scalar_select %p210, %s16, 1
      %s212 = smul.addr %s211, 32
      %s213 = smul.addr %s212, 8
      %s214 = scalar_lea.vmem %s5, %s213
      %p215 = scmp.lt.s32.totalorder %s16, 1
      %s216 = scalar_select %p215, %s16, 1
      %s217 = smul.addr %s216, 32
      %s218 = smul.addr %s217, 8
      %s219 = scalar_lea.vmem %s0, %s218
      %p220 = scmp.lt.s32.totalorder %s16, 1
      %s221 = scalar_select %p220, %s16, 1
      %s222 = smul.addr %s221, 32
      %s223 = smul.addr %s222, 8
      %s224 = scalar_lea.vmem %s5, %s223
      %v225 = vld [vmem:[%s219] sm:$0xff]
      %v226 = vld [vmem:[%s219 + $0x8] sm:$0xff]
      %v227 = vld [vmem:[%s219 + $0x10] sm:$0xff]
      %v228 = vld [vmem:[%s219 + $0x18] sm:$0xff]
      %v229 = vld [vmem:[%s219 + $0x20] sm:$0xff]
      %v230 = vld [vmem:[%s219 + $0x28] sm:$0xff]
      %v231 = vld [vmem:[%s219 + $0x30] sm:$0xff]
      %v232 = vld [vmem:[%s219 + $0x38] sm:$0xff]
      %v233 = vld [vmem:[%s219 + $0x40] sm:$0xff]
      %v234 = vld [vmem:[%s219 + $0x48] sm:$0xff]
      %v235 = vld [vmem:[%s219 + $0x50] sm:$0xff]
      %v236 = vld [vmem:[%s219 + $0x58] sm:$0xff]
      %v237 = vld [vmem:[%s219 + $0x60] sm:$0xff]
      %v238 = vld [vmem:[%s219 + $0x68] sm:$0xff]
      %v239 = vld [vmem:[%s219 + $0x70] sm:$0xff]
      %v240 = vld [vmem:[%s219 + $0x78] sm:$0xff]
      %v241 = vld [vmem:[%s219 + $0x80] sm:$0xff]
      %v242 = vld [vmem:[%s219 + $0x88] sm:$0xff]
      %v243 = vld [vmem:[%s219 + $0x90] sm:$0xff]
      %v244 = vld [vmem:[%s219 + $0x98] sm:$0xff]
      %v245 = vld [vmem:[%s219 + $0xa0] sm:$0xff]
      %v246 = vld [vmem:[%s219 + $0xa8] sm:$0xff]
      %v247 = vld [vmem:[%s219 + $0xb0] sm:$0xff]
      %v248 = vld [vmem:[%s219 + $0xb8] sm:$0xff]
      %v249 = vld [vmem:[%s219 + $0xc0] sm:$0xff]
      %v250 = vld [vmem:[%s219 + $0xc8] sm:$0xff]
      %v251 = vld [vmem:[%s219 + $0xd0] sm:$0xff]
      %v252 = vld [vmem:[%s219 + $0xd8] sm:$0xff]
      %v253 = vld [vmem:[%s219 + $0xe0] sm:$0xff]
      %v254 = vld [vmem:[%s219 + $0xe8] sm:$0xff]
      %v255 = vld [vmem:[%s219 + $0xf0] sm:$0xff]
      %v256 = vld [vmem:[%s219 + $0xf8] sm:$0xff]
      %s257 = scalar_lea.vmem [#allocation2], 24
      %vm258 = vcmask 31744
      %259 = vst.msk [vmem:[%s257 + $0x1] sm:$0xff] %vm258, %v225
      %260 = vst.msk [vmem:[%s257 + $0x9] sm:$0xff] %vm258, %v226
      %261 = vst.msk [vmem:[%s257 + $0x19] sm:$0xff] %vm258, %v227
      %262 = vst.msk [vmem:[%s257 + $0x21] sm:$0xff] %vm258, %v228
      %263 = vst.msk [vmem:[%s257 + $0x31] sm:$0xff] %vm258, %v229
      %264 = vst.msk [vmem:[%s257 + $0x39] sm:$0xff] %vm258, %v230
      %265 = vst.msk [vmem:[%s257 + $0x49] sm:$0xff] %vm258, %v231
      %266 = vst.msk [vmem:[%s257 + $0x51] sm:$0xff] %vm258, %v232
      %267 = vst.msk [vmem:[%s257 + $0x61] sm:$0xff] %vm258, %v233
      %268 = vst.msk [vmem:[%s257 + $0x69] sm:$0xff] %vm258, %v234
      %269 = vst.msk [vmem:[%s257 + $0x79] sm:$0xff] %vm258, %v235
      %270 = vst.msk [vmem:[%s257 + $0x81] sm:$0xff] %vm258, %v236
      %271 = vst.msk [vmem:[%s257 + $0x91] sm:$0xff] %vm258, %v237
      %272 = vst.msk [vmem:[%s257 + $0x99] sm:$0xff] %vm258, %v238
      %273 = vst.msk [vmem:[%s257 + $0xa9] sm:$0xff] %vm258, %v239
      %274 = vst.msk [vmem:[%s257 + $0xb1] sm:$0xff] %vm258, %v240
      %275 = vst.msk [vmem:[%s257 + $0xc1] sm:$0xff] %vm258, %v241
      %276 = vst.msk [vmem:[%s257 + $0xc9] sm:$0xff] %vm258, %v242
      %277 = vst.msk [vmem:[%s257 + $0xd9] sm:$0xff] %vm258, %v243
      %278 = vst.msk [vmem:[%s257 + $0xe1] sm:$0xff] %vm258, %v244
      %279 = vst.msk [vmem:[%s257 + $0xf1] sm:$0xff] %vm258, %v245
      %280 = vst.msk [vmem:[%s257 + $0xf9] sm:$0xff] %vm258, %v246
      %281 = vst.msk [vmem:[%s257 + $0x109] sm:$0xff] %vm258, %v247
      %282 = vst.msk [vmem:[%s257 + $0x111] sm:$0xff] %vm258, %v248
      %283 = vst.msk [vmem:[%s257 + $0x121] sm:$0xff] %vm258, %v249
      %284 = vst.msk [vmem:[%s257 + $0x129] sm:$0xff] %vm258, %v250
      %285 = vst.msk [vmem:[%s257 + $0x139] sm:$0xff] %vm258, %v251
      %286 = vst.msk [vmem:[%s257 + $0x141] sm:$0xff] %vm258, %v252
      %287 = vst.msk [vmem:[%s257 + $0x151] sm:$0xff] %vm258, %v253
      %288 = vst.msk [vmem:[%s257 + $0x159] sm:$0xff] %vm258, %v254
      %289 = vst.msk [vmem:[%s257 + $0x169] sm:$0xff] %vm258, %v255
      %290 = vst.msk [vmem:[%s257 + $0x171] sm:$0xff] %vm258, %v256
      %291 = vst.msk [vmem:[#allocation2 + $0x1] sm:$0xff] %vm258, %v227
      %292 = vst.msk [vmem:[#allocation2 + $0x9] sm:$0xff] %vm258, %v228
      %s293 = scalar_lea.vmem [#allocation2], 408
      %294 = vst.msk [vmem:[%s293 + $0x1] sm:$0xff] %vm258, %v253
      %295 = vst.msk [vmem:[%s293 + $0x9] sm:$0xff] %vm258, %v254
      %v296 = vld [vmem:[#allocation2 + $0x2] sm:$0x1]
      %v297 = vld [vmem:[#allocation2 + $0x1a] sm:$0x1]
      %v298 = vld [vmem:[#allocation2 + $0x32] sm:$0x1]
      %v299 = vld [vmem:[#allocation2 + $0x4a] sm:$0x1]
      %v300 = vld [vmem:[#allocation2 + $0x62] sm:$0x1]
      %v301 = vld [vmem:[#allocation2 + $0x7a] sm:$0x1]
      %v302 = vld [vmem:[#allocation2 + $0x92] sm:$0x1]
      %v303 = vld [vmem:[#allocation2 + $0xaa] sm:$0x1]
      %v304 = vld [vmem:[#allocation2 + $0xc2] sm:$0x1]
      %v305 = vld [vmem:[#allocation2 + $0xda] sm:$0x1]
      %v306 = vld [vmem:[#allocation2 + $0xf2] sm:$0x1]
      %v307 = vld [vmem:[#allocation2 + $0x10a] sm:$0x1]
      %v308 = vld [vmem:[#allocation2 + $0x122] sm:$0x1]
      %v309 = vld [vmem:[#allocation2 + $0x13a] sm:$0x1]
      %v310 = vld [vmem:[#allocation2 + $0x152] sm:$0x1]
      %v311 = vld [vmem:[#allocation2 + $0x16a] sm:$0x1]
      %v312 = vld [vmem:[#allocation2 + $0x182] sm:$0x1]
      %v313 = vld [vmem:[#allocation2 + $0x19a] sm:$0x1]
      %vm314 = vcmask 24576
      %315 = vst.msk [vmem:[#allocation2] sm:$0x1] %vm314, %v296
      %316 = vst.msk [vmem:[#allocation2 + $0x18] sm:$0x1] %vm314, %v297
      %317 = vst.msk [vmem:[#allocation2 + $0x30] sm:$0x1] %vm314, %v298
      %318 = vst.msk [vmem:[#allocation2 + $0x48] sm:$0x1] %vm314, %v299
      %319 = vst.msk [vmem:[#allocation2 + $0x60] sm:$0x1] %vm314, %v300
      %320 = vst.msk [vmem:[#allocation2 + $0x78] sm:$0x1] %vm314, %v301
      %321 = vst.msk [vmem:[#allocation2 + $0x90] sm:$0x1] %vm314, %v302
      %322 = vst.msk [vmem:[#allocation2 + $0xa8] sm:$0x1] %vm314, %v303
      %323 = vst.msk [vmem:[#allocation2 + $0xc0] sm:$0x1] %vm314, %v304
      %324 = vst.msk [vmem:[#allocation2 + $0xd8] sm:$0x1] %vm314, %v305
      %325 = vst.msk [vmem:[#allocation2 + $0xf0] sm:$0x1] %vm314, %v306
      %326 = vst.msk [vmem:[#allocation2 + $0x108] sm:$0x1] %vm314, %v307
      %327 = vst.msk [vmem:[#allocation2 + $0x120] sm:$0x1] %vm314, %v308
      %328 = vst.msk [vmem:[#allocation2 + $0x138] sm:$0x1] %vm314, %v309
      %329 = vst.msk [vmem:[#allocation2 + $0x150] sm:$0x1] %vm314, %v310
      %330 = vst.msk [vmem:[#allocation2 + $0x168] sm:$0x1] %vm314, %v311
      %331 = vst.msk [vmem:[#allocation2 + $0x180] sm:$0x1] %vm314, %v312
      %332 = vst.msk [vmem:[#allocation2 + $0x198] sm:$0x1] %vm314, %v313
      %v333 = vld [vmem:[#allocation2 + $0xf] sm:$0x1]
      %v334 = vld [vmem:[#allocation2 + $0x27] sm:$0x1]
      %v335 = vld [vmem:[#allocation2 + $0x3f] sm:$0x1]
      %v336 = vld [vmem:[#allocation2 + $0x57] sm:$0x1]
      %v337 = vld [vmem:[#allocation2 + $0x6f] sm:$0x1]
      %v338 = vld [vmem:[#allocation2 + $0x87] sm:$0x1]
      %v339 = vld [vmem:[#allocation2 + $0x9f] sm:$0x1]
      %v340 = vld [vmem:[#allocation2 + $0xb7] sm:$0x1]
      %v341 = vld [vmem:[#allocation2 + $0xcf] sm:$0x1]
      %v342 = vld [vmem:[#allocation2 + $0xe7] sm:$0x1]
      %v343 = vld [vmem:[#allocation2 + $0xff] sm:$0x1]
      %v344 = vld [vmem:[#allocation2 + $0x117] sm:$0x1]
      %v345 = vld [vmem:[#allocation2 + $0x12f] sm:$0x1]
      %v346 = vld [vmem:[#allocation2 + $0x147] sm:$0x1]
      %v347 = vld [vmem:[#allocation2 + $0x15f] sm:$0x1]
      %v348 = vld [vmem:[#allocation2 + $0x177] sm:$0x1]
      %v349 = vld [vmem:[#allocation2 + $0x18f] sm:$0x1]
      %v350 = vld [vmem:[#allocation2 + $0x1a7] sm:$0x1]
      %351 = vst.msk [vmem:[#allocation2 + $0x11] sm:$0x1] %vm314, %v333
      %352 = vst.msk [vmem:[#allocation2 + $0x29] sm:$0x1] %vm314, %v334
      %353 = vst.msk [vmem:[#allocation2 + $0x41] sm:$0x1] %vm314, %v335
      %354 = vst.msk [vmem:[#allocation2 + $0x59] sm:$0x1] %vm314, %v336
      %355 = vst.msk [vmem:[#allocation2 + $0x71] sm:$0x1] %vm314, %v337
      %356 = vst.msk [vmem:[#allocation2 + $0x89] sm:$0x1] %vm314, %v338
      %357 = vst.msk [vmem:[#allocation2 + $0xa1] sm:$0x1] %vm314, %v339
      %358 = vst.msk [vmem:[#allocation2 + $0xb9] sm:$0x1] %vm314, %v340
      %359 = vst.msk [vmem:[#allocation2 + $0xd1] sm:$0x1] %vm314, %v341
      %360 = vst.msk [vmem:[#allocation2 + $0xe9] sm:$0x1] %vm314, %v342
      %361 = vst.msk [vmem:[#allocation2 + $0x101] sm:$0x1] %vm314, %v343
      %362 = vst.msk [vmem:[#allocation2 + $0x119] sm:$0x1] %vm314, %v344
      %363 = vst.msk [vmem:[#allocation2 + $0x131] sm:$0x1] %vm314, %v345
      %364 = vst.msk [vmem:[#allocation2 + $0x149] sm:$0x1] %vm314, %v346
      %365 = vst.msk [vmem:[#allocation2 + $0x161] sm:$0x1] %vm314, %v347
      %366 = vst.msk [vmem:[#allocation2 + $0x179] sm:$0x1] %vm314, %v348
      %367 = vst.msk [vmem:[#allocation2 + $0x191] sm:$0x1] %vm314, %v349
      %368 = vst.msk [vmem:[#allocation2 + $0x1a9] sm:$0x1] %vm314, %v350
      %v369 = vld [vmem:[#allocation2] sm:$0xff]
      %v370 = vld [vmem:[#allocation2 + $0x8] sm:$0xff]
      %v371 = vld [vmem:[#allocation2 + $0x18] sm:$0xff]
      %v372 = vld [vmem:[#allocation2 + $0x20] sm:$0xff]
      %v373 = vld [vmem:[#allocation2 + $0x30] sm:$0xff]
      %v374 = vld [vmem:[#allocation2 + $0x38] sm:$0xff]
      %v375 = vld [vmem:[#allocation2 + $0x48] sm:$0xff]
      %v376 = vld [vmem:[#allocation2 + $0x50] sm:$0xff]
      %v377 = vld [vmem:[#allocation2 + $0x60] sm:$0xff]
      %v378 = vld [vmem:[#allocation2 + $0x68] sm:$0xff]
      %v379 = vld [vmem:[#allocation2 + $0x78] sm:$0xff]
      %v380 = vld [vmem:[#allocation2 + $0x80] sm:$0xff]
      %v381 = vld [vmem:[#allocation2 + $0x90] sm:$0xff]
      %v382 = vld [vmem:[#allocation2 + $0x98] sm:$0xff]
      %v383 = vld [vmem:[#allocation2 + $0xa8] sm:$0xff]
      %v384 = vld [vmem:[#allocation2 + $0xb0] sm:$0xff]
      %v385 = vld [vmem:[#allocation2 + $0xc0] sm:$0xff]
      %v386 = vld [vmem:[#allocation2 + $0xc8] sm:$0xff]
      %v387 = vld [vmem:[#allocation2 + $0xd8] sm:$0xff]
      %v388 = vld [vmem:[#allocation2 + $0xe0] sm:$0xff]
      %v389 = vld [vmem:[#allocation2 + $0xf0] sm:$0xff]
      %v390 = vld [vmem:[#allocation2 + $0xf8] sm:$0xff]
      %v391 = vld [vmem:[#allocation2 + $0x108] sm:$0xff]
      %v392 = vld [vmem:[#allocation2 + $0x110] sm:$0xff]
      %v393 = vld [vmem:[#allocation2 + $0x120] sm:$0xff]
      %v394 = vld [vmem:[#allocation2 + $0x128] sm:$0xff]
      %v395 = vld [vmem:[#allocation2 + $0x138] sm:$0xff]
      %v396 = vld [vmem:[#allocation2 + $0x140] sm:$0xff]
      %v397 = vld [vmem:[#allocation2 + $0x150] sm:$0xff]
      %v398 = vld [vmem:[#allocation2 + $0x158] sm:$0xff]
      %v399 = vld [vmem:[#allocation2 + $0x168] sm:$0xff]
      %v400 = vld [vmem:[#allocation2 + $0x170] sm:$0xff]
      %v401 = vld [vmem:[%s1] sm:$0xf]
      %v402 = vld [vmem:[#allocation2 + $0x1] sm:$0xff]
      %v403 = vld [vmem:[#allocation2 + $0x9] sm:$0xff]
      %v404 = vld [vmem:[#allocation2 + $0x19] sm:$0xff]
      %v405 = vld [vmem:[#allocation2 + $0x21] sm:$0xff]
      %v406 = vld [vmem:[#allocation2 + $0x31] sm:$0xff]
      %v407 = vld [vmem:[#allocation2 + $0x39] sm:$0xff]
      %v408 = vld [vmem:[#allocation2 + $0x49] sm:$0xff]
      %v409 = vld [vmem:[#allocation2 + $0x51] sm:$0xff]
      %v410 = vld [vmem:[#allocation2 + $0x61] sm:$0xff]
      %v411 = vld [vmem:[#allocation2 + $0x69] sm:$0xff]
      %v412 = vld [vmem:[#allocation2 + $0x79] sm:$0xff]
      %v413 = vld [vmem:[#allocation2 + $0x81] sm:$0xff]
      %v414 = vld [vmem:[#allocation2 + $0x91] sm:$0xff]
      %v415 = vld [vmem:[#allocation2 + $0x99] sm:$0xff]
      %v416 = vld [vmem:[#allocation2 + $0xa9] sm:$0xff]
      %v417 = vld [vmem:[#allocation2 + $0xb1] sm:$0xff]
      %v418 = vld [vmem:[#allocation2 + $0xc1] sm:$0xff]
      %v419 = vld [vmem:[#allocation2 + $0xc9] sm:$0xff]
      %v420 = vld [vmem:[#allocation2 + $0xd9] sm:$0xff]
      %v421 = vld [vmem:[#allocation2 + $0xe1] sm:$0xff]
      %v422 = vld [vmem:[#allocation2 + $0xf1] sm:$0xff]
      %v423 = vld [vmem:[#allocation2 + $0xf9] sm:$0xff]
      %v424 = vld [vmem:[#allocation2 + $0x109] sm:$0xff]
      %v425 = vld [vmem:[#allocation2 + $0x111] sm:$0xff]
      %v426 = vld [vmem:[#allocation2 + $0x121] sm:$0xff]
      %v427 = vld [vmem:[#allocation2 + $0x129] sm:$0xff]
      %v428 = vld [vmem:[#allocation2 + $0x139] sm:$0xff]
      %v429 = vld [vmem:[#allocation2 + $0x141] sm:$0xff]
      %v430 = vld [vmem:[#allocation2 + $0x151] sm:$0xff]
      %v431 = vld [vmem:[#allocation2 + $0x159] sm:$0xff]
      %v432 = vld [vmem:[#allocation2 + $0x169] sm:$0xff]
      %v433 = vld [vmem:[#allocation2 + $0x171] sm:$0xff]
      %s434 = scalar_lea.vmem %s1, 4
      %v435 = vld [vmem:[%s434] sm:$0xf]
      %v437 = vsel %vm258, %v402, 0
      %v440 = vsel %vm258, %v403, 0
      %v443 = vsel %vm258, %v404, 0
      %v446 = vsel %vm258, %v405, 0
      %v449 = vsel %vm258, %v406, 0
      %v452 = vsel %vm258, %v407, 0
      %v455 = vsel %vm258, %v408, 0
      %v458 = vsel %vm258, %v409, 0
      %v461 = vsel %vm258, %v410, 0
      %v464 = vsel %vm258, %v411, 0
      %v467 = vsel %vm258, %v412, 0
      %v470 = vsel %vm258, %v413, 0
      %v473 = vsel %vm258, %v414, 0
      %v476 = vsel %vm258, %v415, 0
      %v479 = vsel %vm258, %v416, 0
      %v482 = vsel %vm258, %v417, 0
      %v485 = vsel %vm258, %v418, 0
      %v488 = vsel %vm258, %v419, 0
      %v491 = vsel %vm258, %v420, 0
      %v494 = vsel %vm258, %v421, 0
      %v497 = vsel %vm258, %v422, 0
      %v500 = vsel %vm258, %v423, 0
      %v503 = vsel %vm258, %v424, 0
      %v506 = vsel %vm258, %v425, 0
      %v509 = vsel %vm258, %v426, 0
      %v512 = vsel %vm258, %v427, 0
      %v515 = vsel %vm258, %v428, 0
      %v518 = vsel %vm258, %v429, 0
      %v521 = vsel %vm258, %v430, 0
      %v524 = vsel %vm258, %v431, 0
      %v527 = vsel %vm258, %v432, 0
      %v530 = vsel %vm258, %v433, 0
      %vm532 = vcmask 1043456
      %v534 = vsel %vm532, %v435, 0
      %536 = vmatprep.subr.mxu0 0.0
      %537 = vmatpush1.msra.mxu0 0.0
      %538 = vmatprep.subr.mxu0 0.0
      %539 = vmatpush1.msra.mxu0 0.0
      %540 = vmatprep.subr.mxu0 0.0
      %541 = vmatpush1.msra.mxu0 0.0
      %542 = vmatprep.subr.mxu0 0.0
      %543 = vmatpush1.msra.mxu0 0.0
      %544 = vmatprep.subr.mxu0 0.0
      %545 = vmatpush1.msra.mxu0 0.0
      %546 = vmatprep.subr.mxu0 0.0
      %547 = vmatpush1.msra.mxu0 0.0
      %548 = vmatprep.subr.mxu0 0.0
      %549 = vmatpush1.msra.mxu0 0.0
      %550 = vmatprep.subr.mxu0 0.0
      %551 = vmatpush1.msra.mxu0 0.0
      %552 = vmatprep.subr.mxu0 0.0
      %553 = vmatpush1.msra.mxu0 0.0
      %554 = vmatprep.subr.mxu0 0.0
      %555 = vmatpush1.msra.mxu0 0.0
      %556 = vmatprep.subr.mxu0 0.0
      %557 = vmatpush1.msra.mxu0 0.0
      %558 = vmatprep.subr.mxu0 0.0
      %559 = vmatpush1.msra.mxu0 0.0
      %560 = vmatprep.subr.mxu0 0.0
      %561 = vmatpush1.msra.mxu0 0.0
      %562 = vmatprep.subr.mxu0 0.0
      %563 = vmatpush1.msra.mxu0 0.0
      %564 = vmatprep.subr.mxu0 0.0
      %565 = vmatpush1.msra.mxu0 0.0
      %566 = vmatprep.subr.mxu0 0.0
      %567 = vmatpush1.msra.mxu0 %v534
      %568 = vmatprep.subr.mxu0 0.0
      %569 = vmatpush2.msra.mxu0 0.0
      %570 = vmatprep.subr.mxu0 0.0
      %571 = vmatpush2.msra.mxu0 0.0
      %572 = vmatprep.subr.mxu0 0.0
      %573 = vmatpush2.msra.mxu0 0.0
      %574 = vmatprep.subr.mxu0 0.0
      %575 = vmatpush2.msra.mxu0 0.0
      %576 = vmatprep.subr.mxu0 0.0
      %577 = vmatpush2.msra.mxu0 0.0
      %578 = vmatprep.subr.mxu0 0.0
      %579 = vmatpush2.msra.mxu0 0.0
      %580 = vmatprep.subr.mxu0 0.0
      %581 = vmatpush2.msra.mxu0 0.0
      %582 = vmatprep.subr.mxu0 0.0
      %583 = vmatpush2.msra.mxu0 0.0
      %584 = vmatprep.subr.mxu0 0.0
      %585 = vmatpush2.msra.mxu0 0.0
      %586 = vmatprep.subr.mxu0 0.0
      %587 = vmatpush2.msra.mxu0 0.0
      %588 = vmatprep.subr.mxu0 0.0
      %589 = vmatpush2.msra.mxu0 0.0
      %590 = vmatprep.subr.mxu0 0.0
      %591 = vmatpush2.msra.mxu0 0.0
      %592 = vmatprep.subr.mxu0 0.0
      %593 = vmatpush2.msra.mxu0 0.0
      %594 = vmatprep.subr.mxu0 0.0
      %595 = vmatpush2.msra.mxu0 0.0
      %596 = vmatprep.subr.mxu0 0.0
      %597 = vmatpush2.msra.mxu0 0.0
      %598 = vmatprep.subr.mxu0 0.0
      %599 = vmatpush2.msra.mxu0 0.0
      %600 = vmatprep.mubr.f32.mxu0 0.0
      %601 = vmatmul.mubr.f32.gmra.mxu0 %v437
      %v602 = vpop.f32.mrf.mxu0
      %v603 = vadd.f32 0.0, %v602
      %v604 = vpop.f32.mrf.mxu0
      %605 = vmatprep.mubr.f32.mxu0 0.0
      %606 = vmatmul.mubr.f32.gmra.mxu0 %v440
      %v607 = vpop.f32.mrf.mxu0
      %v608 = vadd.f32 0.0, %v607
      %v609 = vpop.f32.mrf.mxu0
      %610 = vmatprep.mubr.f32.mxu0 0.0
      %611 = vmatmul.mubr.f32.gmra.mxu0 %v443
      %v612 = vpop.f32.mrf.mxu0
      %v613 = vadd.f32 0.0, %v612
      %v614 = vpop.f32.mrf.mxu0
      %615 = vmatprep.mubr.f32.mxu0 0.0
      %616 = vmatmul.mubr.f32.gmra.mxu0 %v446
      %v617 = vpop.f32.mrf.mxu0
      %v618 = vadd.f32 0.0, %v617
      %v619 = vpop.f32.mrf.mxu0
      %620 = vmatprep.mubr.f32.mxu0 0.0
      %621 = vmatmul.mubr.f32.gmra.mxu0 %v449
      %v622 = vpop.f32.mrf.mxu0
      %v623 = vadd.f32 0.0, %v622
      %v624 = vpop.f32.mrf.mxu0
      %625 = vmatprep.mubr.f32.mxu0 0.0
      %626 = vmatmul.mubr.f32.gmra.mxu0 %v452
      %v627 = vpop.f32.mrf.mxu0
      %v628 = vadd.f32 0.0, %v627
      %v629 = vpop.f32.mrf.mxu0
      %630 = vmatprep.mubr.f32.mxu0 0.0
      %631 = vmatmul.mubr.f32.gmra.mxu0 %v455
      %v632 = vpop.f32.mrf.mxu0
      %v633 = vadd.f32 0.0, %v632
      %v634 = vpop.f32.mrf.mxu0
      %635 = vmatprep.mubr.f32.mxu0 0.0
      %636 = vmatmul.mubr.f32.gmra.mxu0 %v458
      %v637 = vpop.f32.mrf.mxu0
      %v638 = vadd.f32 0.0, %v637
      %v639 = vpop.f32.mrf.mxu0
      %640 = vmatprep.mubr.f32.mxu0 0.0
      %641 = vmatmul.mubr.f32.gmra.mxu0 %v461
      %v642 = vpop.f32.mrf.mxu0
      %v643 = vadd.f32 0.0, %v642
      %v644 = vpop.f32.mrf.mxu0
      %645 = vmatprep.mubr.f32.mxu0 0.0
      %646 = vmatmul.mubr.f32.gmra.mxu0 %v464
      %v647 = vpop.f32.mrf.mxu0
      %v648 = vadd.f32 0.0, %v647
      %v649 = vpop.f32.mrf.mxu0
      %650 = vmatprep.mubr.f32.mxu0 0.0
      %651 = vmatmul.mubr.f32.gmra.mxu0 %v467
      %v652 = vpop.f32.mrf.mxu0
      %v653 = vadd.f32 0.0, %v652
      %v654 = vpop.f32.mrf.mxu0
      %655 = vmatprep.mubr.f32.mxu0 0.0
      %656 = vmatmul.mubr.f32.gmra.mxu0 %v470
      %v657 = vpop.f32.mrf.mxu0
      %v658 = vadd.f32 0.0, %v657
      %v659 = vpop.f32.mrf.mxu0
      %660 = vmatprep.mubr.f32.mxu0 0.0
      %661 = vmatmul.mubr.f32.gmra.mxu0 %v473
      %v662 = vpop.f32.mrf.mxu0
      %v663 = vadd.f32 0.0, %v662
      %v664 = vpop.f32.mrf.mxu0
      %665 = vmatprep.mubr.f32.mxu0 0.0
      %666 = vmatmul.mubr.f32.gmra.mxu0 %v476
      %v667 = vpop.f32.mrf.mxu0
      %v668 = vadd.f32 0.0, %v667
      %v669 = vpop.f32.mrf.mxu0
      %670 = vmatprep.mubr.f32.mxu0 0.0
      %671 = vmatmul.mubr.f32.gmra.mxu0 %v479
      %v672 = vpop.f32.mrf.mxu0
      %v673 = vadd.f32 0.0, %v672
      %v674 = vpop.f32.mrf.mxu0
      %675 = vmatprep.mubr.f32.mxu0 0.0
      %676 = vmatmul.mubr.f32.gmra.mxu0 %v482
      %v677 = vpop.f32.mrf.mxu0
      %v678 = vadd.f32 0.0, %v677
      %v679 = vpop.f32.mrf.mxu0
      %680 = vmatprep.mubr.f32.mxu0 0.0
      %681 = vmatmul.mubr.f32.gmra.mxu0 %v485
      %v682 = vpop.f32.mrf.mxu0
      %v683 = vadd.f32 0.0, %v682
      %v684 = vpop.f32.mrf.mxu0
      %685 = vmatprep.mubr.f32.mxu0 0.0
      %686 = vmatmul.mubr.f32.gmra.mxu0 %v488
      %v687 = vpop.f32.mrf.mxu0
      %v688 = vadd.f32 0.0, %v687
      %v689 = vpop.f32.mrf.mxu0
      %690 = vmatprep.mubr.f32.mxu0 0.0
      %691 = vmatmul.mubr.f32.gmra.mxu0 %v491
      %v692 = vpop.f32.mrf.mxu0
      %v693 = vadd.f32 0.0, %v692
      %v694 = vpop.f32.mrf.mxu0
      %695 = vmatprep.mubr.f32.mxu0 0.0
      %696 = vmatmul.mubr.f32.gmra.mxu0 %v494
      %v697 = vpop.f32.mrf.mxu0
      %v698 = vadd.f32 0.0, %v697
      %v699 = vpop.f32.mrf.mxu0
      %700 = vmatprep.mubr.f32.mxu0 0.0
      %701 = vmatmul.mubr.f32.gmra.mxu0 %v497
      %v702 = vpop.f32.mrf.mxu0
      %v703 = vadd.f32 0.0, %v702
      %v704 = vpop.f32.mrf.mxu0
      %705 = vmatprep.mubr.f32.mxu0 0.0
      %706 = vmatmul.mubr.f32.gmra.mxu0 %v500
      %v707 = vpop.f32.mrf.mxu0
      %v708 = vadd.f32 0.0, %v707
      %v709 = vpop.f32.mrf.mxu0
      %710 = vmatprep.mubr.f32.mxu0 0.0
      %711 = vmatmul.mubr.f32.gmra.mxu0 %v503
      %v712 = vpop.f32.mrf.mxu0
      %v713 = vadd.f32 0.0, %v712
      %v714 = vpop.f32.mrf.mxu0
      %715 = vmatprep.mubr.f32.mxu0 0.0
      %716 = vmatmul.mubr.f32.gmra.mxu0 %v506
      %v717 = vpop.f32.mrf.mxu0
      %v718 = vadd.f32 0.0, %v717
      %v719 = vpop.f32.mrf.mxu0
      %720 = vmatprep.mubr.f32.mxu0 0.0
      %721 = vmatmul.mubr.f32.gmra.mxu0 %v509
      %v722 = vpop.f32.mrf.mxu0
      %v723 = vadd.f32 0.0, %v722
      %v724 = vpop.f32.mrf.mxu0
      %725 = vmatprep.mubr.f32.mxu0 0.0
      %726 = vmatmul.mubr.f32.gmra.mxu0 %v512
      %v727 = vpop.f32.mrf.mxu0
      %v728 = vadd.f32 0.0, %v727
      %v729 = vpop.f32.mrf.mxu0
      %730 = vmatprep.mubr.f32.mxu0 0.0
      %731 = vmatmul.mubr.f32.gmra.mxu0 %v515
      %v732 = vpop.f32.mrf.mxu0
      %v733 = vadd.f32 0.0, %v732
      %v734 = vpop.f32.mrf.mxu0
      %735 = vmatprep.mubr.f32.mxu0 0.0
      %736 = vmatmul.mubr.f32.gmra.mxu0 %v518
      %v737 = vpop.f32.mrf.mxu0
      %v738 = vadd.f32 0.0, %v737
      %v739 = vpop.f32.mrf.mxu0
      %740 = vmatprep.mubr.f32.mxu0 0.0
      %741 = vmatmul.mubr.f32.gmra.mxu0 %v521
      %v742 = vpop.f32.mrf.mxu0
      %v743 = vadd.f32 0.0, %v742
      %v744 = vpop.f32.mrf.mxu0
      %745 = vmatprep.mubr.f32.mxu0 0.0
      %746 = vmatmul.mubr.f32.gmra.mxu0 %v524
      %v747 = vpop.f32.mrf.mxu0
      %v748 = vadd.f32 0.0, %v747
      %v749 = vpop.f32.mrf.mxu0
      %750 = vmatprep.mubr.f32.mxu0 0.0
      %751 = vmatmul.mubr.f32.gmra.mxu0 %v527
      %v752 = vpop.f32.mrf.mxu0
      %v753 = vadd.f32 0.0, %v752
      %v754 = vpop.f32.mrf.mxu0
      %755 = vmatprep.mubr.f32.mxu0 0.0
      %756 = vmatmul.mubr.f32.gmra.mxu0 %v530
      %v757 = vpop.f32.mrf.mxu0
      %v758 = vadd.f32 0.0, %v757
      %v759 = vpop.f32.mrf.mxu0
      %760 = vdwg.mxu0
      %v762 = vsel %vm258, %v369, 0
      %v765 = vsel %vm258, %v370, 0
      %v768 = vsel %vm258, %v371, 0
      %v771 = vsel %vm258, %v372, 0
      %v774 = vsel %vm258, %v373, 0
      %v777 = vsel %vm258, %v374, 0
      %v780 = vsel %vm258, %v375, 0
      %v783 = vsel %vm258, %v376, 0
      %v786 = vsel %vm258, %v377, 0
      %v789 = vsel %vm258, %v378, 0
      %v792 = vsel %vm258, %v379, 0
      %v795 = vsel %vm258, %v380, 0
      %v798 = vsel %vm258, %v381, 0
      %v801 = vsel %vm258, %v382, 0
      %v804 = vsel %vm258, %v383, 0
      %v807 = vsel %vm258, %v384, 0
      %v810 = vsel %vm258, %v385, 0
      %v813 = vsel %vm258, %v386, 0
      %v816 = vsel %vm258, %v387, 0
      %v819 = vsel %vm258, %v388, 0
      %v822 = vsel %vm258, %v389, 0
      %v825 = vsel %vm258, %v390, 0
      %v828 = vsel %vm258, %v391, 0
      %v831 = vsel %vm258, %v392, 0
      %v834 = vsel %vm258, %v393, 0
      %v837 = vsel %vm258, %v394, 0
      %v840 = vsel %vm258, %v395, 0
      %v843 = vsel %vm258, %v396, 0
      %v846 = vsel %vm258, %v397, 0
      %v849 = vsel %vm258, %v398, 0
      %v852 = vsel %vm258, %v399, 0
      %v855 = vsel %vm258, %v400, 0
      %v858 = vsel %vm532, %v401, 0
      %860 = vmatprep.subr.mxu0 0.0
      %861 = vmatpush1.msra.mxu0 0.0
      %862 = vmatprep.subr.mxu0 0.0
      %863 = vmatpush1.msra.mxu0 0.0
      %864 = vmatprep.subr.mxu0 0.0
      %865 = vmatpush1.msra.mxu0 0.0
      %866 = vmatprep.subr.mxu0 0.0
      %867 = vmatpush1.msra.mxu0 0.0
      %868 = vmatprep.subr.mxu0 0.0
      %869 = vmatpush1.msra.mxu0 0.0
      %870 = vmatprep.subr.mxu0 0.0
      %871 = vmatpush1.msra.mxu0 0.0
      %872 = vmatprep.subr.mxu0 0.0
      %873 = vmatpush1.msra.mxu0 0.0
      %874 = vmatprep.subr.mxu0 0.0
      %875 = vmatpush1.msra.mxu0 0.0
      %876 = vmatprep.subr.mxu0 0.0
      %877 = vmatpush1.msra.mxu0 0.0
      %878 = vmatprep.subr.mxu0 0.0
      %879 = vmatpush1.msra.mxu0 0.0
      %880 = vmatprep.subr.mxu0 0.0
      %881 = vmatpush1.msra.mxu0 0.0
      %882 = vmatprep.subr.mxu0 0.0
      %883 = vmatpush1.msra.mxu0 0.0
      %884 = vmatprep.subr.mxu0 0.0
      %885 = vmatpush1.msra.mxu0 0.0
      %886 = vmatprep.subr.mxu0 0.0
      %887 = vmatpush1.msra.mxu0 0.0
      %888 = vmatprep.subr.mxu0 0.0
      %889 = vmatpush1.msra.mxu0 0.0
      %890 = vmatprep.subr.mxu0 0.0
      %891 = vmatpush1.msra.mxu0 %v858
      %892 = vmatprep.subr.mxu0 0.0
      %893 = vmatpush2.msra.mxu0 0.0
      %894 = vmatprep.subr.mxu0 0.0
      %895 = vmatpush2.msra.mxu0 0.0
      %896 = vmatprep.subr.mxu0 0.0
      %897 = vmatpush2.msra.mxu0 0.0
      %898 = vmatprep.subr.mxu0 0.0
      %899 = vmatpush2.msra.mxu0 0.0
      %900 = vmatprep.subr.mxu0 0.0
      %901 = vmatpush2.msra.mxu0 0.0
      %902 = vmatprep.subr.mxu0 0.0
      %903 = vmatpush2.msra.mxu0 0.0
      %904 = vmatprep.subr.mxu0 0.0
      %905 = vmatpush2.msra.mxu0 0.0
      %906 = vmatprep.subr.mxu0 0.0
      %907 = vmatpush2.msra.mxu0 0.0
      %908 = vmatprep.subr.mxu0 0.0
      %909 = vmatpush2.msra.mxu0 0.0
      %910 = vmatprep.subr.mxu0 0.0
      %911 = vmatpush2.msra.mxu0 0.0
      %912 = vmatprep.subr.mxu0 0.0
      %913 = vmatpush2.msra.mxu0 0.0
      %914 = vmatprep.subr.mxu0 0.0
      %915 = vmatpush2.msra.mxu0 0.0
      %916 = vmatprep.subr.mxu0 0.0
      %917 = vmatpush2.msra.mxu0 0.0
      %918 = vmatprep.subr.mxu0 0.0
      %919 = vmatpush2.msra.mxu0 0.0
      %920 = vmatprep.subr.mxu0 0.0
      %921 = vmatpush2.msra.mxu0 0.0
      %922 = vmatprep.subr.mxu0 0.0
      %923 = vmatpush2.msra.mxu0 0.0
      %924 = vmatprep.mubr.f32.mxu0 0.0
      %925 = vmatmul.mubr.f32.gmra.mxu0 %v762
      %v926 = vpop.f32.mrf.mxu0
      %v927 = vadd.f32 %v603, %v926
      %v928 = vpop.f32.mrf.mxu0
      %929 = vmatprep.mubr.f32.mxu0 0.0
      %930 = vmatmul.mubr.f32.gmra.mxu0 %v765
      %v931 = vpop.f32.mrf.mxu0
      %v932 = vadd.f32 %v608, %v931
      %v933 = vpop.f32.mrf.mxu0
      %934 = vmatprep.mubr.f32.mxu0 0.0
      %935 = vmatmul.mubr.f32.gmra.mxu0 %v768
      %v936 = vpop.f32.mrf.mxu0
      %v937 = vadd.f32 %v613, %v936
      %v938 = vpop.f32.mrf.mxu0
      %939 = vmatprep.mubr.f32.mxu0 0.0
      %940 = vmatmul.mubr.f32.gmra.mxu0 %v771
      %v941 = vpop.f32.mrf.mxu0
      %v942 = vadd.f32 %v618, %v941
      %v943 = vpop.f32.mrf.mxu0
      %944 = vmatprep.mubr.f32.mxu0 0.0
      %945 = vmatmul.mubr.f32.gmra.mxu0 %v774
      %v946 = vpop.f32.mrf.mxu0
      %v947 = vadd.f32 %v623, %v946
      %v948 = vpop.f32.mrf.mxu0
      %949 = vmatprep.mubr.f32.mxu0 0.0
      %950 = vmatmul.mubr.f32.gmra.mxu0 %v777
      %v951 = vpop.f32.mrf.mxu0
      %v952 = vadd.f32 %v628, %v951
      %v953 = vpop.f32.mrf.mxu0
      %954 = vmatprep.mubr.f32.mxu0 0.0
      %955 = vmatmul.mubr.f32.gmra.mxu0 %v780
      %v956 = vpop.f32.mrf.mxu0
      %v957 = vadd.f32 %v633, %v956
      %v958 = vpop.f32.mrf.mxu0
      %959 = vmatprep.mubr.f32.mxu0 0.0
      %960 = vmatmul.mubr.f32.gmra.mxu0 %v783
      %v961 = vpop.f32.mrf.mxu0
      %v962 = vadd.f32 %v638, %v961
      %v963 = vpop.f32.mrf.mxu0
      %964 = vmatprep.mubr.f32.mxu0 0.0
      %965 = vmatmul.mubr.f32.gmra.mxu0 %v786
      %v966 = vpop.f32.mrf.mxu0
      %v967 = vadd.f32 %v643, %v966
      %v968 = vpop.f32.mrf.mxu0
      %969 = vmatprep.mubr.f32.mxu0 0.0
      %970 = vmatmul.mubr.f32.gmra.mxu0 %v789
      %v971 = vpop.f32.mrf.mxu0
      %v972 = vadd.f32 %v648, %v971
      %v973 = vpop.f32.mrf.mxu0
      %974 = vmatprep.mubr.f32.mxu0 0.0
      %975 = vmatmul.mubr.f32.gmra.mxu0 %v792
      %v976 = vpop.f32.mrf.mxu0
      %v977 = vadd.f32 %v653, %v976
      %v978 = vpop.f32.mrf.mxu0
      %979 = vmatprep.mubr.f32.mxu0 0.0
      %980 = vmatmul.mubr.f32.gmra.mxu0 %v795
      %v981 = vpop.f32.mrf.mxu0
      %v982 = vadd.f32 %v658, %v981
      %v983 = vpop.f32.mrf.mxu0
      %984 = vmatprep.mubr.f32.mxu0 0.0
      %985 = vmatmul.mubr.f32.gmra.mxu0 %v798
      %v986 = vpop.f32.mrf.mxu0
      %v987 = vadd.f32 %v663, %v986
      %v988 = vpop.f32.mrf.mxu0
      %989 = vmatprep.mubr.f32.mxu0 0.0
      %990 = vmatmul.mubr.f32.gmra.mxu0 %v801
      %v991 = vpop.f32.mrf.mxu0
      %v992 = vadd.f32 %v668, %v991
      %v993 = vpop.f32.mrf.mxu0
      %994 = vmatprep.mubr.f32.mxu0 0.0
      %995 = vmatmul.mubr.f32.gmra.mxu0 %v804
      %v996 = vpop.f32.mrf.mxu0
      %v997 = vadd.f32 %v673, %v996
      %v998 = vpop.f32.mrf.mxu0
      %999 = vmatprep.mubr.f32.mxu0 0.0
      %1000 = vmatmul.mubr.f32.gmra.mxu0 %v807
      %v1001 = vpop.f32.mrf.mxu0
      %v1002 = vadd.f32 %v678, %v1001
      %v1003 = vpop.f32.mrf.mxu0
      %1004 = vmatprep.mubr.f32.mxu0 0.0
      %1005 = vmatmul.mubr.f32.gmra.mxu0 %v810
      %v1006 = vpop.f32.mrf.mxu0
      %v1007 = vadd.f32 %v683, %v1006
      %v1008 = vpop.f32.mrf.mxu0
      %1009 = vmatprep.mubr.f32.mxu0 0.0
      %1010 = vmatmul.mubr.f32.gmra.mxu0 %v813
      %v1011 = vpop.f32.mrf.mxu0
      %v1012 = vadd.f32 %v688, %v1011
      %v1013 = vpop.f32.mrf.mxu0
      %1014 = vmatprep.mubr.f32.mxu0 0.0
      %1015 = vmatmul.mubr.f32.gmra.mxu0 %v816
      %v1016 = vpop.f32.mrf.mxu0
      %v1017 = vadd.f32 %v693, %v1016
      %v1018 = vpop.f32.mrf.mxu0
      %1019 = vmatprep.mubr.f32.mxu0 0.0
      %1020 = vmatmul.mubr.f32.gmra.mxu0 %v819
      %v1021 = vpop.f32.mrf.mxu0
      %v1022 = vadd.f32 %v698, %v1021
      %v1023 = vpop.f32.mrf.mxu0
      %1024 = vmatprep.mubr.f32.mxu0 0.0
      %1025 = vmatmul.mubr.f32.gmra.mxu0 %v822
      %v1026 = vpop.f32.mrf.mxu0
      %v1027 = vadd.f32 %v703, %v1026
      %v1028 = vpop.f32.mrf.mxu0
      %1029 = vmatprep.mubr.f32.mxu0 0.0
      %1030 = vmatmul.mubr.f32.gmra.mxu0 %v825
      %v1031 = vpop.f32.mrf.mxu0
      %v1032 = vadd.f32 %v708, %v1031
      %v1033 = vpop.f32.mrf.mxu0
      %1034 = vmatprep.mubr.f32.mxu0 0.0
      %1035 = vmatmul.mubr.f32.gmra.mxu0 %v828
      %v1036 = vpop.f32.mrf.mxu0
      %v1037 = vadd.f32 %v713, %v1036
      %v1038 = vpop.f32.mrf.mxu0
      %1039 = vmatprep.mubr.f32.mxu0 0.0
      %1040 = vmatmul.mubr.f32.gmra.mxu0 %v831
      %v1041 = vpop.f32.mrf.mxu0
      %v1042 = vadd.f32 %v718, %v1041
      %v1043 = vpop.f32.mrf.mxu0
      %1044 = vmatprep.mubr.f32.mxu0 0.0
      %1045 = vmatmul.mubr.f32.gmra.mxu0 %v834
      %v1046 = vpop.f32.mrf.mxu0
      %v1047 = vadd.f32 %v723, %v1046
      %v1048 = vpop.f32.mrf.mxu0
      %1049 = vmatprep.mubr.f32.mxu0 0.0
      %1050 = vmatmul.mubr.f32.gmra.mxu0 %v837
      %v1051 = vpop.f32.mrf.mxu0
      %v1052 = vadd.f32 %v728, %v1051
      %v1053 = vpop.f32.mrf.mxu0
      %1054 = vmatprep.mubr.f32.mxu0 0.0
      %1055 = vmatmul.mubr.f32.gmra.mxu0 %v840
      %v1056 = vpop.f32.mrf.mxu0
      %v1057 = vadd.f32 %v733, %v1056
      %v1058 = vpop.f32.mrf.mxu0
      %1059 = vmatprep.mubr.f32.mxu0 0.0
      %1060 = vmatmul.mubr.f32.gmra.mxu0 %v843
      %v1061 = vpop.f32.mrf.mxu0
      %v1062 = vadd.f32 %v738, %v1061
      %v1063 = vpop.f32.mrf.mxu0
      %1064 = vmatprep.mubr.f32.mxu0 0.0
      %1065 = vmatmul.mubr.f32.gmra.mxu0 %v846
      %v1066 = vpop.f32.mrf.mxu0
      %v1067 = vadd.f32 %v743, %v1066
      %v1068 = vpop.f32.mrf.mxu0
      %1069 = vmatprep.mubr.f32.mxu0 0.0
      %1070 = vmatmul.mubr.f32.gmra.mxu0 %v849
      %v1071 = vpop.f32.mrf.mxu0
      %v1072 = vadd.f32 %v748, %v1071
      %v1073 = vpop.f32.mrf.mxu0
      %1074 = vmatprep.mubr.f32.mxu0 0.0
      %1075 = vmatmul.mubr.f32.gmra.mxu0 %v852
      %v1076 = vpop.f32.mrf.mxu0
      %v1077 = vadd.f32 %v753, %v1076
      %v1078 = vpop.f32.mrf.mxu0
      %1079 = vmatprep.mubr.f32.mxu0 0.0
      %1080 = vmatmul.mubr.f32.gmra.mxu0 %v855
      %v1081 = vpop.f32.mrf.mxu0
      %v1082 = vadd.f32 %v758, %v1081
      %v1083 = vpop.f32.mrf.mxu0
      %1084 = vdwg.mxu0
      %v1085 = vld [vmem:[#allocation2 + $0x2] sm:$0xff]
      %v1086 = vld [vmem:[#allocation2 + $0xa] sm:$0xff]
      %v1087 = vld [vmem:[#allocation2 + $0x1a] sm:$0xff]
      %v1088 = vld [vmem:[#allocation2 + $0x22] sm:$0xff]
      %v1089 = vld [vmem:[#allocation2 + $0x32] sm:$0xff]
      %v1090 = vld [vmem:[#allocation2 + $0x3a] sm:$0xff]
      %v1091 = vld [vmem:[#allocation2 + $0x4a] sm:$0xff]
      %v1092 = vld [vmem:[#allocation2 + $0x52] sm:$0xff]
      %v1093 = vld [vmem:[#allocation2 + $0x62] sm:$0xff]
      %v1094 = vld [vmem:[#allocation2 + $0x6a] sm:$0xff]
      %v1095 = vld [vmem:[#allocation2 + $0x7a] sm:$0xff]
      %v1096 = vld [vmem:[#allocation2 + $0x82] sm:$0xff]
      %v1097 = vld [vmem:[#allocation2 + $0x92] sm:$0xff]
      %v1098 = vld [vmem:[#allocation2 + $0x9a] sm:$0xff]
      %v1099 = vld [vmem:[#allocation2 + $0xaa] sm:$0xff]
      %v1100 = vld [vmem:[#allocation2 + $0xb2] sm:$0xff]
      %v1101 = vld [vmem:[#allocation2 + $0xc2] sm:$0xff]
      %v1102 = vld [vmem:[#allocation2 + $0xca] sm:$0xff]
      %v1103 = vld [vmem:[#allocation2 + $0xda] sm:$0xff]
      %v1104 = vld [vmem:[#allocation2 + $0xe2] sm:$0xff]
      %v1105 = vld [vmem:[#allocation2 + $0xf2] sm:$0xff]
      %v1106 = vld [vmem:[#allocation2 + $0xfa] sm:$0xff]
      %v1107 = vld [vmem:[#allocation2 + $0x10a] sm:$0xff]
      %v1108 = vld [vmem:[#allocation2 + $0x112] sm:$0xff]
      %v1109 = vld [vmem:[#allocation2 + $0x122] sm:$0xff]
      %v1110 = vld [vmem:[#allocation2 + $0x12a] sm:$0xff]
      %v1111 = vld [vmem:[#allocation2 + $0x13a] sm:$0xff]
      %v1112 = vld [vmem:[#allocation2 + $0x142] sm:$0xff]
      %v1113 = vld [vmem:[#allocation2 + $0x152] sm:$0xff]
      %v1114 = vld [vmem:[#allocation2 + $0x15a] sm:$0xff]
      %v1115 = vld [vmem:[#allocation2 + $0x16a] sm:$0xff]
      %v1116 = vld [vmem:[#allocation2 + $0x172] sm:$0xff]
      %s1117 = scalar_lea.vmem %s1, 8
      %v1118 = vld [vmem:[%s1117] sm:$0xf]
      %v1120 = vsel %vm258, %v1085, 0
      %v1123 = vsel %vm258, %v1086, 0
      %v1126 = vsel %vm258, %v1087, 0
      %v1129 = vsel %vm258, %v1088, 0
      %v1132 = vsel %vm258, %v1089, 0
      %v1135 = vsel %vm258, %v1090, 0
      %v1138 = vsel %vm258, %v1091, 0
      %v1141 = vsel %vm258, %v1092, 0
      %v1144 = vsel %vm258, %v1093, 0
      %v1147 = vsel %vm258, %v1094, 0
      %v1150 = vsel %vm258, %v1095, 0
      %v1153 = vsel %vm258, %v1096, 0
      %v1156 = vsel %vm258, %v1097, 0
      %v1159 = vsel %vm258, %v1098, 0
      %v1162 = vsel %vm258, %v1099, 0
      %v1165 = vsel %vm258, %v1100, 0
      %v1168 = vsel %vm258, %v1101, 0
      %v1171 = vsel %vm258, %v1102, 0
      %v1174 = vsel %vm258, %v1103, 0
      %v1177 = vsel %vm258, %v1104, 0
      %v1180 = vsel %vm258, %v1105, 0
      %v1183 = vsel %vm258, %v1106, 0
      %v1186 = vsel %vm258, %v1107, 0
      %v1189 = vsel %vm258, %v1108, 0
      %v1192 = vsel %vm258, %v1109, 0
      %v1195 = vsel %vm258, %v1110, 0
      %v1198 = vsel %vm258, %v1111, 0
      %v1201 = vsel %vm258, %v1112, 0
      %v1204 = vsel %vm258, %v1113, 0
      %v1207 = vsel %vm258, %v1114, 0
      %v1210 = vsel %vm258, %v1115, 0
      %v1213 = vsel %vm258, %v1116, 0
      %v1216 = vsel %vm532, %v1118, 0
      %1218 = vmatprep.subr.mxu0 0.0
      %1219 = vmatpush1.msra.mxu0 0.0
      %1220 = vmatprep.subr.mxu0 0.0
      %1221 = vmatpush1.msra.mxu0 0.0
      %1222 = vmatprep.subr.mxu0 0.0
      %1223 = vmatpush1.msra.mxu0 0.0
      %1224 = vmatprep.subr.mxu0 0.0
      %1225 = vmatpush1.msra.mxu0 0.0
      %1226 = vmatprep.subr.mxu0 0.0
      %1227 = vmatpush1.msra.mxu0 0.0
      %1228 = vmatprep.subr.mxu0 0.0
      %1229 = vmatpush1.msra.mxu0 0.0
      %1230 = vmatprep.subr.mxu0 0.0
      %1231 = vmatpush1.msra.mxu0 0.0
      %1232 = vmatprep.subr.mxu0 0.0
      %1233 = vmatpush1.msra.mxu0 0.0
      %1234 = vmatprep.subr.mxu0 0.0
      %1235 = vmatpush1.msra.mxu0 0.0
      %1236 = vmatprep.subr.mxu0 0.0
      %1237 = vmatpush1.msra.mxu0 0.0
      %1238 = vmatprep.subr.mxu0 0.0
      %1239 = vmatpush1.msra.mxu0 0.0
      %1240 = vmatprep.subr.mxu0 0.0
      %1241 = vmatpush1.msra.mxu0 0.0
      %1242 = vmatprep.subr.mxu0 0.0
      %1243 = vmatpush1.msra.mxu0 0.0
      %1244 = vmatprep.subr.mxu0 0.0
      %1245 = vmatpush1.msra.mxu0 0.0
      %1246 = vmatprep.subr.mxu0 0.0
      %1247 = vmatpush1.msra.mxu0 0.0
      %1248 = vmatprep.subr.mxu0 0.0
      %1249 = vmatpush1.msra.mxu0 %v1216
      %1250 = vmatprep.subr.mxu0 0.0
      %1251 = vmatpush2.msra.mxu0 0.0
      %1252 = vmatprep.subr.mxu0 0.0
      %1253 = vmatpush2.msra.mxu0 0.0
      %1254 = vmatprep.subr.mxu0 0.0
      %1255 = vmatpush2.msra.mxu0 0.0
      %1256 = vmatprep.subr.mxu0 0.0
      %1257 = vmatpush2.msra.mxu0 0.0
      %1258 = vmatprep.subr.mxu0 0.0
      %1259 = vmatpush2.msra.mxu0 0.0
      %1260 = vmatprep.subr.mxu0 0.0
      %1261 = vmatpush2.msra.mxu0 0.0
      %1262 = vmatprep.subr.mxu0 0.0
      %1263 = vmatpush2.msra.mxu0 0.0
      %1264 = vmatprep.subr.mxu0 0.0
      %1265 = vmatpush2.msra.mxu0 0.0
      %1266 = vmatprep.subr.mxu0 0.0
      %1267 = vmatpush2.msra.mxu0 0.0
      %1268 = vmatprep.subr.mxu0 0.0
      %1269 = vmatpush2.msra.mxu0 0.0
      %1270 = vmatprep.subr.mxu0 0.0
      %1271 = vmatpush2.msra.mxu0 0.0
      %1272 = vmatprep.subr.mxu0 0.0
      %1273 = vmatpush2.msra.mxu0 0.0
      %1274 = vmatprep.subr.mxu0 0.0
      %1275 = vmatpush2.msra.mxu0 0.0
      %1276 = vmatprep.subr.mxu0 0.0
      %1277 = vmatpush2.msra.mxu0 0.0
      %1278 = vmatprep.subr.mxu0 0.0
      %1279 = vmatpush2.msra.mxu0 0.0
      %1280 = vmatprep.subr.mxu0 0.0
      %1281 = vmatpush2.msra.mxu0 0.0
      %1282 = vmatprep.mubr.f32.mxu0 0.0
      %1283 = vmatmul.mubr.f32.gmra.mxu0 %v1120
      %v1284 = vpop.f32.mrf.mxu0
      %v1285 = vadd.f32 0.0, %v1284
      %v1286 = vpop.f32.mrf.mxu0
      %1287 = vmatprep.mubr.f32.mxu0 0.0
      %1288 = vmatmul.mubr.f32.gmra.mxu0 %v1123
      %v1289 = vpop.f32.mrf.mxu0
      %v1290 = vadd.f32 0.0, %v1289
      %v1291 = vpop.f32.mrf.mxu0
      %1292 = vmatprep.mubr.f32.mxu0 0.0
      %1293 = vmatmul.mubr.f32.gmra.mxu0 %v1126
      %v1294 = vpop.f32.mrf.mxu0
      %v1295 = vadd.f32 0.0, %v1294
      %v1296 = vpop.f32.mrf.mxu0
      %1297 = vmatprep.mubr.f32.mxu0 0.0
      %1298 = vmatmul.mubr.f32.gmra.mxu0 %v1129
      %v1299 = vpop.f32.mrf.mxu0
      %v1300 = vadd.f32 0.0, %v1299
      %v1301 = vpop.f32.mrf.mxu0
      %1302 = vmatprep.mubr.f32.mxu0 0.0
      %1303 = vmatmul.mubr.f32.gmra.mxu0 %v1132
      %v1304 = vpop.f32.mrf.mxu0
      %v1305 = vadd.f32 0.0, %v1304
      %v1306 = vpop.f32.mrf.mxu0
      %1307 = vmatprep.mubr.f32.mxu0 0.0
      %1308 = vmatmul.mubr.f32.gmra.mxu0 %v1135
      %v1309 = vpop.f32.mrf.mxu0
      %v1310 = vadd.f32 0.0, %v1309
      %v1311 = vpop.f32.mrf.mxu0
      %1312 = vmatprep.mubr.f32.mxu0 0.0
      %1313 = vmatmul.mubr.f32.gmra.mxu0 %v1138
      %v1314 = vpop.f32.mrf.mxu0
      %v1315 = vadd.f32 0.0, %v1314
      %v1316 = vpop.f32.mrf.mxu0
      %1317 = vmatprep.mubr.f32.mxu0 0.0
      %1318 = vmatmul.mubr.f32.gmra.mxu0 %v1141
      %v1319 = vpop.f32.mrf.mxu0
      %v1320 = vadd.f32 0.0, %v1319
      %v1321 = vpop.f32.mrf.mxu0
      %1322 = vmatprep.mubr.f32.mxu0 0.0
      %1323 = vmatmul.mubr.f32.gmra.mxu0 %v1144
      %v1324 = vpop.f32.mrf.mxu0
      %v1325 = vadd.f32 0.0, %v1324
      %v1326 = vpop.f32.mrf.mxu0
      %1327 = vmatprep.mubr.f32.mxu0 0.0
      %1328 = vmatmul.mubr.f32.gmra.mxu0 %v1147
      %v1329 = vpop.f32.mrf.mxu0
      %v1330 = vadd.f32 0.0, %v1329
      %v1331 = vpop.f32.mrf.mxu0
      %1332 = vmatprep.mubr.f32.mxu0 0.0
      %1333 = vmatmul.mubr.f32.gmra.mxu0 %v1150
      %v1334 = vpop.f32.mrf.mxu0
      %v1335 = vadd.f32 0.0, %v1334
      %v1336 = vpop.f32.mrf.mxu0
      %1337 = vmatprep.mubr.f32.mxu0 0.0
      %1338 = vmatmul.mubr.f32.gmra.mxu0 %v1153
      %v1339 = vpop.f32.mrf.mxu0
      %v1340 = vadd.f32 0.0, %v1339
      %v1341 = vpop.f32.mrf.mxu0
      %1342 = vmatprep.mubr.f32.mxu0 0.0
      %1343 = vmatmul.mubr.f32.gmra.mxu0 %v1156
      %v1344 = vpop.f32.mrf.mxu0
      %v1345 = vadd.f32 0.0, %v1344
      %v1346 = vpop.f32.mrf.mxu0
      %1347 = vmatprep.mubr.f32.mxu0 0.0
      %1348 = vmatmul.mubr.f32.gmra.mxu0 %v1159
      %v1349 = vpop.f32.mrf.mxu0
      %v1350 = vadd.f32 0.0, %v1349
      %v1351 = vpop.f32.mrf.mxu0
      %1352 = vmatprep.mubr.f32.mxu0 0.0
      %1353 = vmatmul.mubr.f32.gmra.mxu0 %v1162
      %v1354 = vpop.f32.mrf.mxu0
      %v1355 = vadd.f32 0.0, %v1354
      %v1356 = vpop.f32.mrf.mxu0
      %1357 = vmatprep.mubr.f32.mxu0 0.0
      %1358 = vmatmul.mubr.f32.gmra.mxu0 %v1165
      %v1359 = vpop.f32.mrf.mxu0
      %v1360 = vadd.f32 0.0, %v1359
      %v1361 = vpop.f32.mrf.mxu0
      %1362 = vmatprep.mubr.f32.mxu0 0.0
      %1363 = vmatmul.mubr.f32.gmra.mxu0 %v1168
      %v1364 = vpop.f32.mrf.mxu0
      %v1365 = vadd.f32 0.0, %v1364
      %v1366 = vpop.f32.mrf.mxu0
      %1367 = vmatprep.mubr.f32.mxu0 0.0
      %1368 = vmatmul.mubr.f32.gmra.mxu0 %v1171
      %v1369 = vpop.f32.mrf.mxu0
      %v1370 = vadd.f32 0.0, %v1369
      %v1371 = vpop.f32.mrf.mxu0
      %1372 = vmatprep.mubr.f32.mxu0 0.0
      %1373 = vmatmul.mubr.f32.gmra.mxu0 %v1174
      %v1374 = vpop.f32.mrf.mxu0
      %v1375 = vadd.f32 0.0, %v1374
      %v1376 = vpop.f32.mrf.mxu0
      %1377 = vmatprep.mubr.f32.mxu0 0.0
      %1378 = vmatmul.mubr.f32.gmra.mxu0 %v1177
      %v1379 = vpop.f32.mrf.mxu0
      %v1380 = vadd.f32 0.0, %v1379
      %v1381 = vpop.f32.mrf.mxu0
      %1382 = vmatprep.mubr.f32.mxu0 0.0
      %1383 = vmatmul.mubr.f32.gmra.mxu0 %v1180
      %v1384 = vpop.f32.mrf.mxu0
      %v1385 = vadd.f32 0.0, %v1384
      %v1386 = vpop.f32.mrf.mxu0
      %1387 = vmatprep.mubr.f32.mxu0 0.0
      %1388 = vmatmul.mubr.f32.gmra.mxu0 %v1183
      %v1389 = vpop.f32.mrf.mxu0
      %v1390 = vadd.f32 0.0, %v1389
      %v1391 = vpop.f32.mrf.mxu0
      %1392 = vmatprep.mubr.f32.mxu0 0.0
      %1393 = vmatmul.mubr.f32.gmra.mxu0 %v1186
      %v1394 = vpop.f32.mrf.mxu0
      %v1395 = vadd.f32 0.0, %v1394
      %v1396 = vpop.f32.mrf.mxu0
      %1397 = vmatprep.mubr.f32.mxu0 0.0
      %1398 = vmatmul.mubr.f32.gmra.mxu0 %v1189
      %v1399 = vpop.f32.mrf.mxu0
      %v1400 = vadd.f32 0.0, %v1399
      %v1401 = vpop.f32.mrf.mxu0
      %1402 = vmatprep.mubr.f32.mxu0 0.0
      %1403 = vmatmul.mubr.f32.gmra.mxu0 %v1192
      %v1404 = vpop.f32.mrf.mxu0
      %v1405 = vadd.f32 0.0, %v1404
      %v1406 = vpop.f32.mrf.mxu0
      %1407 = vmatprep.mubr.f32.mxu0 0.0
      %1408 = vmatmul.mubr.f32.gmra.mxu0 %v1195
      %v1409 = vpop.f32.mrf.mxu0
      %v1410 = vadd.f32 0.0, %v1409
      %v1411 = vpop.f32.mrf.mxu0
      %1412 = vmatprep.mubr.f32.mxu0 0.0
      %1413 = vmatmul.mubr.f32.gmra.mxu0 %v1198
      %v1414 = vpop.f32.mrf.mxu0
      %v1415 = vadd.f32 0.0, %v1414
      %v1416 = vpop.f32.mrf.mxu0
      %1417 = vmatprep.mubr.f32.mxu0 0.0
      %1418 = vmatmul.mubr.f32.gmra.mxu0 %v1201
      %v1419 = vpop.f32.mrf.mxu0
      %v1420 = vadd.f32 0.0, %v1419
      %v1421 = vpop.f32.mrf.mxu0
      %1422 = vmatprep.mubr.f32.mxu0 0.0
      %1423 = vmatmul.mubr.f32.gmra.mxu0 %v1204
      %v1424 = vpop.f32.mrf.mxu0
      %v1425 = vadd.f32 0.0, %v1424
      %v1426 = vpop.f32.mrf.mxu0
      %1427 = vmatprep.mubr.f32.mxu0 0.0
      %1428 = vmatmul.mubr.f32.gmra.mxu0 %v1207
      %v1429 = vpop.f32.mrf.mxu0
      %v1430 = vadd.f32 0.0, %v1429
      %v1431 = vpop.f32.mrf.mxu0
      %1432 = vmatprep.mubr.f32.mxu0 0.0
      %1433 = vmatmul.mubr.f32.gmra.mxu0 %v1210
      %v1434 = vpop.f32.mrf.mxu0
      %v1435 = vadd.f32 0.0, %v1434
      %v1436 = vpop.f32.mrf.mxu0
      %1437 = vmatprep.mubr.f32.mxu0 0.0
      %1438 = vmatmul.mubr.f32.gmra.mxu0 %v1213
      %v1439 = vpop.f32.mrf.mxu0
      %v1440 = vadd.f32 0.0, %v1439
      %v1441 = vpop.f32.mrf.mxu0
      %1442 = vdwg.mxu0
      %v1443 = vadd.f32 %v927, %v1285
      %v1444 = vadd.f32 %v932, %v1290
      %v1445 = vadd.f32 %v937, %v1295
      %v1446 = vadd.f32 %v942, %v1300
      %v1447 = vadd.f32 %v947, %v1305
      %v1448 = vadd.f32 %v952, %v1310
      %v1449 = vadd.f32 %v957, %v1315
      %v1450 = vadd.f32 %v962, %v1320
      %v1451 = vadd.f32 %v967, %v1325
      %v1452 = vadd.f32 %v972, %v1330
      %v1453 = vadd.f32 %v977, %v1335
      %v1454 = vadd.f32 %v982, %v1340
      %v1455 = vadd.f32 %v987, %v1345
      %v1456 = vadd.f32 %v992, %v1350
      %v1457 = vadd.f32 %v997, %v1355
      %v1458 = vadd.f32 %v1002, %v1360
      %v1459 = vadd.f32 %v1007, %v1365
      %v1460 = vadd.f32 %v1012, %v1370
      %v1461 = vadd.f32 %v1017, %v1375
      %v1462 = vadd.f32 %v1022, %v1380
      %v1463 = vadd.f32 %v1027, %v1385
      %v1464 = vadd.f32 %v1032, %v1390
      %v1465 = vadd.f32 %v1037, %v1395
      %v1466 = vadd.f32 %v1042, %v1400
      %v1467 = vadd.f32 %v1047, %v1405
      %v1468 = vadd.f32 %v1052, %v1410
      %v1469 = vadd.f32 %v1057, %v1415
      %v1470 = vadd.f32 %v1062, %v1420
      %v1471 = vadd.f32 %v1067, %v1425
      %v1472 = vadd.f32 %v1072, %v1430
      %v1473 = vadd.f32 %v1077, %v1435
      %v1474 = vadd.f32 %v1082, %v1440
      %v1475 = vld [vmem:[%s257] sm:$0xff]
      %v1476 = vld [vmem:[%s257 + $0x8] sm:$0xff]
      %v1477 = vld [vmem:[%s257 + $0x18] sm:$0xff]
      %v1478 = vld [vmem:[%s257 + $0x20] sm:$0xff]
      %v1479 = vld [vmem:[%s257 + $0x30] sm:$0xff]
      %v1480 = vld [vmem:[%s257 + $0x38] sm:$0xff]
      %v1481 = vld [vmem:[%s257 + $0x48] sm:$0xff]
      %v1482 = vld [vmem:[%s257 + $0x50] sm:$0xff]
      %v1483 = vld [vmem:[%s257 + $0x60] sm:$0xff]
      %v1484 = vld [vmem:[%s257 + $0x68] sm:$0xff]
      %v1485 = vld [vmem:[%s257 + $0x78] sm:$0xff]
      %v1486 = vld [vmem:[%s257 + $0x80] sm:$0xff]
      %v1487 = vld [vmem:[%s257 + $0x90] sm:$0xff]
      %v1488 = vld [vmem:[%s257 + $0x98] sm:$0xff]
      %v1489 = vld [vmem:[%s257 + $0xa8] sm:$0xff]
      %v1490 = vld [vmem:[%s257 + $0xb0] sm:$0xff]
      %v1491 = vld [vmem:[%s257 + $0xc0] sm:$0xff]
      %v1492 = vld [vmem:[%s257 + $0xc8] sm:$0xff]
      %v1493 = vld [vmem:[%s257 + $0xd8] sm:$0xff]
      %v1494 = vld [vmem:[%s257 + $0xe0] sm:$0xff]
      %v1495 = vld [vmem:[%s257 + $0xf0] sm:$0xff]
      %v1496 = vld [vmem:[%s257 + $0xf8] sm:$0xff]
      %v1497 = vld [vmem:[%s257 + $0x108] sm:$0xff]
      %v1498 = vld [vmem:[%s257 + $0x110] sm:$0xff]
      %v1499 = vld [vmem:[%s257 + $0x120] sm:$0xff]
      %v1500 = vld [vmem:[%s257 + $0x128] sm:$0xff]
      %v1501 = vld [vmem:[%s257 + $0x138] sm:$0xff]
      %v1502 = vld [vmem:[%s257 + $0x140] sm:$0xff]
      %v1503 = vld [vmem:[%s257 + $0x150] sm:$0xff]
      %v1504 = vld [vmem:[%s257 + $0x158] sm:$0xff]
      %v1505 = vld [vmem:[%s257 + $0x168] sm:$0xff]
      %v1506 = vld [vmem:[%s257 + $0x170] sm:$0xff]
      %s1507 = scalar_lea.vmem %s1, 12
      %v1508 = vld [vmem:[%s1507] sm:$0xf]
      %v1510 = vsel %vm258, %v1475, 0
      %v1513 = vsel %vm258, %v1476, 0
      %v1516 = vsel %vm258, %v1477, 0
      %v1519 = vsel %vm258, %v1478, 0
      %v1522 = vsel %vm258, %v1479, 0
      %v1525 = vsel %vm258, %v1480, 0
      %v1528 = vsel %vm258, %v1481, 0
      %v1531 = vsel %vm258, %v1482, 0
      %v1534 = vsel %vm258, %v1483, 0
      %v1537 = vsel %vm258, %v1484, 0
      %v1540 = vsel %vm258, %v1485, 0
      %v1543 = vsel %vm258, %v1486, 0
      %v1546 = vsel %vm258, %v1487, 0
      %v1549 = vsel %vm258, %v1488, 0
      %v1552 = vsel %vm258, %v1489, 0
      %v1555 = vsel %vm258, %v1490, 0
      %v1558 = vsel %vm258, %v1491, 0
      %v1561 = vsel %vm258, %v1492, 0
      %v1564 = vsel %vm258, %v1493, 0
      %v1567 = vsel %vm258, %v1494, 0
      %v1570 = vsel %vm258, %v1495, 0
      %v1573 = vsel %vm258, %v1496, 0
      %v1576 = vsel %vm258, %v1497, 0
      %v1579 = vsel %vm258, %v1498, 0
      %v1582 = vsel %vm258, %v1499, 0
      %v1585 = vsel %vm258, %v1500, 0
      %v1588 = vsel %vm258, %v1501, 0
      %v1591 = vsel %vm258, %v1502, 0
      %v1594 = vsel %vm258, %v1503, 0
      %v1597 = vsel %vm258, %v1504, 0
      %v1600 = vsel %vm258, %v1505, 0
      %v1603 = vsel %vm258, %v1506, 0
      %v1606 = vsel %vm532, %v1508, 0
      %1608 = vmatprep.subr.mxu0 0.0
      %1609 = vmatpush1.msra.mxu0 0.0
      %1610 = vmatprep.subr.mxu0 0.0
      %1611 = vmatpush1.msra.mxu0 0.0
      %1612 = vmatprep.subr.mxu0 0.0
      %1613 = vmatpush1.msra.mxu0 0.0
      %1614 = vmatprep.subr.mxu0 0.0
      %1615 = vmatpush1.msra.mxu0 0.0
      %1616 = vmatprep.subr.mxu0 0.0
      %1617 = vmatpush1.msra.mxu0 0.0
      %1618 = vmatprep.subr.mxu0 0.0
      %1619 = vmatpush1.msra.mxu0 0.0
      %1620 = vmatprep.subr.mxu0 0.0
      %1621 = vmatpush1.msra.mxu0 0.0
      %1622 = vmatprep.subr.mxu0 0.0
      %1623 = vmatpush1.msra.mxu0 0.0
      %1624 = vmatprep.subr.mxu0 0.0
      %1625 = vmatpush1.msra.mxu0 0.0
      %1626 = vmatprep.subr.mxu0 0.0
      %1627 = vmatpush1.msra.mxu0 0.0
      %1628 = vmatprep.subr.mxu0 0.0
      %1629 = vmatpush1.msra.mxu0 0.0
      %1630 = vmatprep.subr.mxu0 0.0
      %1631 = vmatpush1.msra.mxu0 0.0
      %1632 = vmatprep.subr.mxu0 0.0
      %1633 = vmatpush1.msra.mxu0 0.0
      %1634 = vmatprep.subr.mxu0 0.0
      %1635 = vmatpush1.msra.mxu0 0.0
      %1636 = vmatprep.subr.mxu0 0.0
      %1637 = vmatpush1.msra.mxu0 0.0
      %1638 = vmatprep.subr.mxu0 0.0
      %1639 = vmatpush1.msra.mxu0 %v1606
      %1640 = vmatprep.subr.mxu0 0.0
      %1641 = vmatpush2.msra.mxu0 0.0
      %1642 = vmatprep.subr.mxu0 0.0
      %1643 = vmatpush2.msra.mxu0 0.0
      %1644 = vmatprep.subr.mxu0 0.0
      %1645 = vmatpush2.msra.mxu0 0.0
      %1646 = vmatprep.subr.mxu0 0.0
      %1647 = vmatpush2.msra.mxu0 0.0
      %1648 = vmatprep.subr.mxu0 0.0
      %1649 = vmatpush2.msra.mxu0 0.0
      %1650 = vmatprep.subr.mxu0 0.0
      %1651 = vmatpush2.msra.mxu0 0.0
      %1652 = vmatprep.subr.mxu0 0.0
      %1653 = vmatpush2.msra.mxu0 0.0
      %1654 = vmatprep.subr.mxu0 0.0
      %1655 = vmatpush2.msra.mxu0 0.0
      %1656 = vmatprep.subr.mxu0 0.0
      %1657 = vmatpush2.msra.mxu0 0.0
      %1658 = vmatprep.subr.mxu0 0.0
      %1659 = vmatpush2.msra.mxu0 0.0
      %1660 = vmatprep.subr.mxu0 0.0
      %1661 = vmatpush2.msra.mxu0 0.0
      %1662 = vmatprep.subr.mxu0 0.0
      %1663 = vmatpush2.msra.mxu0 0.0
      %1664 = vmatprep.subr.mxu0 0.0
      %1665 = vmatpush2.msra.mxu0 0.0
      %1666 = vmatprep.subr.mxu0 0.0
      %1667 = vmatpush2.msra.mxu0 0.0
      %1668 = vmatprep.subr.mxu0 0.0
      %1669 = vmatpush2.msra.mxu0 0.0
      %1670 = vmatprep.subr.mxu0 0.0
      %1671 = vmatpush2.msra.mxu0 0.0
      %1672 = vmatprep.mubr.f32.mxu0 0.0
      %1673 = vmatmul.mubr.f32.gmra.mxu0 %v1510
      %v1674 = vpop.f32.mrf.mxu0
      %v1675 = vadd.f32 0.0, %v1674
      %v1676 = vpop.f32.mrf.mxu0
      %1677 = vmatprep.mubr.f32.mxu0 0.0
      %1678 = vmatmul.mubr.f32.gmra.mxu0 %v1513
      %v1679 = vpop.f32.mrf.mxu0
      %v1680 = vadd.f32 0.0, %v1679
      %v1681 = vpop.f32.mrf.mxu0
      %1682 = vmatprep.mubr.f32.mxu0 0.0
      %1683 = vmatmul.mubr.f32.gmra.mxu0 %v1516
      %v1684 = vpop.f32.mrf.mxu0
      %v1685 = vadd.f32 0.0, %v1684
      %v1686 = vpop.f32.mrf.mxu0
      %1687 = vmatprep.mubr.f32.mxu0 0.0
      %1688 = vmatmul.mubr.f32.gmra.mxu0 %v1519
      %v1689 = vpop.f32.mrf.mxu0
      %v1690 = vadd.f32 0.0, %v1689
      %v1691 = vpop.f32.mrf.mxu0
      %1692 = vmatprep.mubr.f32.mxu0 0.0
      %1693 = vmatmul.mubr.f32.gmra.mxu0 %v1522
      %v1694 = vpop.f32.mrf.mxu0
      %v1695 = vadd.f32 0.0, %v1694
      %v1696 = vpop.f32.mrf.mxu0
      %1697 = vmatprep.mubr.f32.mxu0 0.0
      %1698 = vmatmul.mubr.f32.gmra.mxu0 %v1525
      %v1699 = vpop.f32.mrf.mxu0
      %v1700 = vadd.f32 0.0, %v1699
      %v1701 = vpop.f32.mrf.mxu0
      %1702 = vmatprep.mubr.f32.mxu0 0.0
      %1703 = vmatmul.mubr.f32.gmra.mxu0 %v1528
      %v1704 = vpop.f32.mrf.mxu0
      %v1705 = vadd.f32 0.0, %v1704
      %v1706 = vpop.f32.mrf.mxu0
      %1707 = vmatprep.mubr.f32.mxu0 0.0
      %1708 = vmatmul.mubr.f32.gmra.mxu0 %v1531
      %v1709 = vpop.f32.mrf.mxu0
      %v1710 = vadd.f32 0.0, %v1709
      %v1711 = vpop.f32.mrf.mxu0
      %1712 = vmatprep.mubr.f32.mxu0 0.0
      %1713 = vmatmul.mubr.f32.gmra.mxu0 %v1534
      %v1714 = vpop.f32.mrf.mxu0
      %v1715 = vadd.f32 0.0, %v1714
      %v1716 = vpop.f32.mrf.mxu0
      %1717 = vmatprep.mubr.f32.mxu0 0.0
      %1718 = vmatmul.mubr.f32.gmra.mxu0 %v1537
      %v1719 = vpop.f32.mrf.mxu0
      %v1720 = vadd.f32 0.0, %v1719
      %v1721 = vpop.f32.mrf.mxu0
      %1722 = vmatprep.mubr.f32.mxu0 0.0
      %1723 = vmatmul.mubr.f32.gmra.mxu0 %v1540
      %v1724 = vpop.f32.mrf.mxu0
      %v1725 = vadd.f32 0.0, %v1724
      %v1726 = vpop.f32.mrf.mxu0
      %1727 = vmatprep.mubr.f32.mxu0 0.0
      %1728 = vmatmul.mubr.f32.gmra.mxu0 %v1543
      %v1729 = vpop.f32.mrf.mxu0
      %v1730 = vadd.f32 0.0, %v1729
      %v1731 = vpop.f32.mrf.mxu0
      %1732 = vmatprep.mubr.f32.mxu0 0.0
      %1733 = vmatmul.mubr.f32.gmra.mxu0 %v1546
      %v1734 = vpop.f32.mrf.mxu0
      %v1735 = vadd.f32 0.0, %v1734
      %v1736 = vpop.f32.mrf.mxu0
      %1737 = vmatprep.mubr.f32.mxu0 0.0
      %1738 = vmatmul.mubr.f32.gmra.mxu0 %v1549
      %v1739 = vpop.f32.mrf.mxu0
      %v1740 = vadd.f32 0.0, %v1739
      %v1741 = vpop.f32.mrf.mxu0
      %1742 = vmatprep.mubr.f32.mxu0 0.0
      %1743 = vmatmul.mubr.f32.gmra.mxu0 %v1552
      %v1744 = vpop.f32.mrf.mxu0
      %v1745 = vadd.f32 0.0, %v1744
      %v1746 = vpop.f32.mrf.mxu0
      %1747 = vmatprep.mubr.f32.mxu0 0.0
      %1748 = vmatmul.mubr.f32.gmra.mxu0 %v1555
      %v1749 = vpop.f32.mrf.mxu0
      %v1750 = vadd.f32 0.0, %v1749
      %v1751 = vpop.f32.mrf.mxu0
      %1752 = vmatprep.mubr.f32.mxu0 0.0
      %1753 = vmatmul.mubr.f32.gmra.mxu0 %v1558
      %v1754 = vpop.f32.mrf.mxu0
      %v1755 = vadd.f32 0.0, %v1754
      %v1756 = vpop.f32.mrf.mxu0
      %1757 = vmatprep.mubr.f32.mxu0 0.0
      %1758 = vmatmul.mubr.f32.gmra.mxu0 %v1561
      %v1759 = vpop.f32.mrf.mxu0
      %v1760 = vadd.f32 0.0, %v1759
      %v1761 = vpop.f32.mrf.mxu0
      %1762 = vmatprep.mubr.f32.mxu0 0.0
      %1763 = vmatmul.mubr.f32.gmra.mxu0 %v1564
      %v1764 = vpop.f32.mrf.mxu0
      %v1765 = vadd.f32 0.0, %v1764
      %v1766 = vpop.f32.mrf.mxu0
      %1767 = vmatprep.mubr.f32.mxu0 0.0
      %1768 = vmatmul.mubr.f32.gmra.mxu0 %v1567
      %v1769 = vpop.f32.mrf.mxu0
      %v1770 = vadd.f32 0.0, %v1769
      %v1771 = vpop.f32.mrf.mxu0
      %1772 = vmatprep.mubr.f32.mxu0 0.0
      %1773 = vmatmul.mubr.f32.gmra.mxu0 %v1570
      %v1774 = vpop.f32.mrf.mxu0
      %v1775 = vadd.f32 0.0, %v1774
      %v1776 = vpop.f32.mrf.mxu0
      %1777 = vmatprep.mubr.f32.mxu0 0.0
      %1778 = vmatmul.mubr.f32.gmra.mxu0 %v1573
      %v1779 = vpop.f32.mrf.mxu0
      %v1780 = vadd.f32 0.0, %v1779
      %v1781 = vpop.f32.mrf.mxu0
      %1782 = vmatprep.mubr.f32.mxu0 0.0
      %1783 = vmatmul.mubr.f32.gmra.mxu0 %v1576
      %v1784 = vpop.f32.mrf.mxu0
      %v1785 = vadd.f32 0.0, %v1784
      %v1786 = vpop.f32.mrf.mxu0
      %1787 = vmatprep.mubr.f32.mxu0 0.0
      %1788 = vmatmul.mubr.f32.gmra.mxu0 %v1579
      %v1789 = vpop.f32.mrf.mxu0
      %v1790 = vadd.f32 0.0, %v1789
      %v1791 = vpop.f32.mrf.mxu0
      %1792 = vmatprep.mubr.f32.mxu0 0.0
      %1793 = vmatmul.mubr.f32.gmra.mxu0 %v1582
      %v1794 = vpop.f32.mrf.mxu0
      %v1795 = vadd.f32 0.0, %v1794
      %v1796 = vpop.f32.mrf.mxu0
      %1797 = vmatprep.mubr.f32.mxu0 0.0
      %1798 = vmatmul.mubr.f32.gmra.mxu0 %v1585
      %v1799 = vpop.f32.mrf.mxu0
      %v1800 = vadd.f32 0.0, %v1799
      %v1801 = vpop.f32.mrf.mxu0
      %1802 = vmatprep.mubr.f32.mxu0 0.0
      %1803 = vmatmul.mubr.f32.gmra.mxu0 %v1588
      %v1804 = vpop.f32.mrf.mxu0
      %v1805 = vadd.f32 0.0, %v1804
      %v1806 = vpop.f32.mrf.mxu0
      %1807 = vmatprep.mubr.f32.mxu0 0.0
      %1808 = vmatmul.mubr.f32.gmra.mxu0 %v1591
      %v1809 = vpop.f32.mrf.mxu0
      %v1810 = vadd.f32 0.0, %v1809
      %v1811 = vpop.f32.mrf.mxu0
      %1812 = vmatprep.mubr.f32.mxu0 0.0
      %1813 = vmatmul.mubr.f32.gmra.mxu0 %v1594
      %v1814 = vpop.f32.mrf.mxu0
      %v1815 = vadd.f32 0.0, %v1814
      %v1816 = vpop.f32.mrf.mxu0
      %1817 = vmatprep.mubr.f32.mxu0 0.0
      %1818 = vmatmul.mubr.f32.gmra.mxu0 %v1597
      %v1819 = vpop.f32.mrf.mxu0
      %v1820 = vadd.f32 0.0, %v1819
      %v1821 = vpop.f32.mrf.mxu0
      %1822 = vmatprep.mubr.f32.mxu0 0.0
      %1823 = vmatmul.mubr.f32.gmra.mxu0 %v1600
      %v1824 = vpop.f32.mrf.mxu0
      %v1825 = vadd.f32 0.0, %v1824
      %v1826 = vpop.f32.mrf.mxu0
      %1827 = vmatprep.mubr.f32.mxu0 0.0
      %1828 = vmatmul.mubr.f32.gmra.mxu0 %v1603
      %v1829 = vpop.f32.mrf.mxu0
      %v1830 = vadd.f32 0.0, %v1829
      %v1831 = vpop.f32.mrf.mxu0
      %1832 = vdwg.mxu0
      %v1833 = vadd.f32 %v1443, %v1675
      %v1834 = vadd.f32 %v1444, %v1680
      %v1835 = vadd.f32 %v1445, %v1685
      %v1836 = vadd.f32 %v1446, %v1690
      %v1837 = vadd.f32 %v1447, %v1695
      %v1838 = vadd.f32 %v1448, %v1700
      %v1839 = vadd.f32 %v1449, %v1705
      %v1840 = vadd.f32 %v1450, %v1710
      %v1841 = vadd.f32 %v1451, %v1715
      %v1842 = vadd.f32 %v1452, %v1720
      %v1843 = vadd.f32 %v1453, %v1725
      %v1844 = vadd.f32 %v1454, %v1730
      %v1845 = vadd.f32 %v1455, %v1735
      %v1846 = vadd.f32 %v1456, %v1740
      %v1847 = vadd.f32 %v1457, %v1745
      %v1848 = vadd.f32 %v1458, %v1750
      %v1849 = vadd.f32 %v1459, %v1755
      %v1850 = vadd.f32 %v1460, %v1760
      %v1851 = vadd.f32 %v1461, %v1765
      %v1852 = vadd.f32 %v1462, %v1770
      %v1853 = vadd.f32 %v1463, %v1775
      %v1854 = vadd.f32 %v1464, %v1780
      %v1855 = vadd.f32 %v1465, %v1785
      %v1856 = vadd.f32 %v1466, %v1790
      %v1857 = vadd.f32 %v1467, %v1795
      %v1858 = vadd.f32 %v1468, %v1800
      %v1859 = vadd.f32 %v1469, %v1805
      %v1860 = vadd.f32 %v1470, %v1810
      %v1861 = vadd.f32 %v1471, %v1815
      %v1862 = vadd.f32 %v1472, %v1820
      %v1863 = vadd.f32 %v1473, %v1825
      %v1864 = vadd.f32 %v1474, %v1830
      %v1865 = vld [vmem:[%s257 + $0x1] sm:$0xff]
      %v1866 = vld [vmem:[%s257 + $0x9] sm:$0xff]
      %v1867 = vld [vmem:[%s257 + $0x19] sm:$0xff]
      %v1868 = vld [vmem:[%s257 + $0x21] sm:$0xff]
      %v1869 = vld [vmem:[%s257 + $0x31] sm:$0xff]
      %v1870 = vld [vmem:[%s257 + $0x39] sm:$0xff]
      %v1871 = vld [vmem:[%s257 + $0x49] sm:$0xff]
      %v1872 = vld [vmem:[%s257 + $0x51] sm:$0xff]
      %v1873 = vld [vmem:[%s257 + $0x61] sm:$0xff]
      %v1874 = vld [vmem:[%s257 + $0x69] sm:$0xff]
      %v1875 = vld [vmem:[%s257 + $0x79] sm:$0xff]
      %v1876 = vld [vmem:[%s257 + $0x81] sm:$0xff]
      %v1877 = vld [vmem:[%s257 + $0x91] sm:$0xff]
      %v1878 = vld [vmem:[%s257 + $0x99] sm:$0xff]
      %v1879 = vld [vmem:[%s257 + $0xa9] sm:$0xff]
      %v1880 = vld [vmem:[%s257 + $0xb1] sm:$0xff]
      %v1881 = vld [vmem:[%s257 + $0xc1] sm:$0xff]
      %v1882 = vld [vmem:[%s257 + $0xc9] sm:$0xff]
      %v1883 = vld [vmem:[%s257 + $0xd9] sm:$0xff]
      %v1884 = vld [vmem:[%s257 + $0xe1] sm:$0xff]
      %v1885 = vld [vmem:[%s257 + $0xf1] sm:$0xff]
      %v1886 = vld [vmem:[%s257 + $0xf9] sm:$0xff]
      %v1887 = vld [vmem:[%s257 + $0x109] sm:$0xff]
      %v1888 = vld [vmem:[%s257 + $0x111] sm:$0xff]
      %v1889 = vld [vmem:[%s257 + $0x121] sm:$0xff]
      %v1890 = vld [vmem:[%s257 + $0x129] sm:$0xff]
      %v1891 = vld [vmem:[%s257 + $0x139] sm:$0xff]
      %v1892 = vld [vmem:[%s257 + $0x141] sm:$0xff]
      %v1893 = vld [vmem:[%s257 + $0x151] sm:$0xff]
      %v1894 = vld [vmem:[%s257 + $0x159] sm:$0xff]
      %v1895 = vld [vmem:[%s257 + $0x169] sm:$0xff]
      %v1896 = vld [vmem:[%s257 + $0x171] sm:$0xff]
      %s1897 = scalar_lea.vmem %s1, 16
      %v1898 = vld [vmem:[%s1897] sm:$0xf]
      %v1900 = vsel %vm258, %v1865, 0
      %v1903 = vsel %vm258, %v1866, 0
      %v1906 = vsel %vm258, %v1867, 0
      %v1909 = vsel %vm258, %v1868, 0
      %v1912 = vsel %vm258, %v1869, 0
      %v1915 = vsel %vm258, %v1870, 0
      %v1918 = vsel %vm258, %v1871, 0
      %v1921 = vsel %vm258, %v1872, 0
      %v1924 = vsel %vm258, %v1873, 0
      %v1927 = vsel %vm258, %v1874, 0
      %v1930 = vsel %vm258, %v1875, 0
      %v1933 = vsel %vm258, %v1876, 0
      %v1936 = vsel %vm258, %v1877, 0
      %v1939 = vsel %vm258, %v1878, 0
      %v1942 = vsel %vm258, %v1879, 0
      %v1945 = vsel %vm258, %v1880, 0
      %v1948 = vsel %vm258, %v1881, 0
      %v1951 = vsel %vm258, %v1882, 0
      %v1954 = vsel %vm258, %v1883, 0
      %v1957 = vsel %vm258, %v1884, 0
      %v1960 = vsel %vm258, %v1885, 0
      %v1963 = vsel %vm258, %v1886, 0
      %v1966 = vsel %vm258, %v1887, 0
      %v1969 = vsel %vm258, %v1888, 0
      %v1972 = vsel %vm258, %v1889, 0
      %v1975 = vsel %vm258, %v1890, 0
      %v1978 = vsel %vm258, %v1891, 0
      %v1981 = vsel %vm258, %v1892, 0
      %v1984 = vsel %vm258, %v1893, 0
      %v1987 = vsel %vm258, %v1894, 0
      %v1990 = vsel %vm258, %v1895, 0
      %v1993 = vsel %vm258, %v1896, 0
      %v1996 = vsel %vm532, %v1898, 0
      %1998 = vmatprep.subr.mxu0 0.0
      %1999 = vmatpush1.msra.mxu0 0.0
      %2000 = vmatprep.subr.mxu0 0.0
      %2001 = vmatpush1.msra.mxu0 0.0
      %2002 = vmatprep.subr.mxu0 0.0
      %2003 = vmatpush1.msra.mxu0 0.0
      %2004 = vmatprep.subr.mxu0 0.0
      %2005 = vmatpush1.msra.mxu0 0.0
      %2006 = vmatprep.subr.mxu0 0.0
      %2007 = vmatpush1.msra.mxu0 0.0
      %2008 = vmatprep.subr.mxu0 0.0
      %2009 = vmatpush1.msra.mxu0 0.0
      %2010 = vmatprep.subr.mxu0 0.0
      %2011 = vmatpush1.msra.mxu0 0.0
      %2012 = vmatprep.subr.mxu0 0.0
      %2013 = vmatpush1.msra.mxu0 0.0
      %2014 = vmatprep.subr.mxu0 0.0
      %2015 = vmatpush1.msra.mxu0 0.0
      %2016 = vmatprep.subr.mxu0 0.0
      %2017 = vmatpush1.msra.mxu0 0.0
      %2018 = vmatprep.subr.mxu0 0.0
      %2019 = vmatpush1.msra.mxu0 0.0
      %2020 = vmatprep.subr.mxu0 0.0
      %2021 = vmatpush1.msra.mxu0 0.0
      %2022 = vmatprep.subr.mxu0 0.0
      %2023 = vmatpush1.msra.mxu0 0.0
      %2024 = vmatprep.subr.mxu0 0.0
      %2025 = vmatpush1.msra.mxu0 0.0
      %2026 = vmatprep.subr.mxu0 0.0
      %2027 = vmatpush1.msra.mxu0 0.0
      %2028 = vmatprep.subr.mxu0 0.0
      %2029 = vmatpush1.msra.mxu0 %v1996
      %2030 = vmatprep.subr.mxu0 0.0
      %2031 = vmatpush2.msra.mxu0 0.0
      %2032 = vmatprep.subr.mxu0 0.0
      %2033 = vmatpush2.msra.mxu0 0.0
      %2034 = vmatprep.subr.mxu0 0.0
      %2035 = vmatpush2.msra.mxu0 0.0
      %2036 = vmatprep.subr.mxu0 0.0
      %2037 = vmatpush2.msra.mxu0 0.0
      %2038 = vmatprep.subr.mxu0 0.0
      %2039 = vmatpush2.msra.mxu0 0.0
      %2040 = vmatprep.subr.mxu0 0.0
      %2041 = vmatpush2.msra.mxu0 0.0
      %2042 = vmatprep.subr.mxu0 0.0
      %2043 = vmatpush2.msra.mxu0 0.0
      %2044 = vmatprep.subr.mxu0 0.0
      %2045 = vmatpush2.msra.mxu0 0.0
      %2046 = vmatprep.subr.mxu0 0.0
      %2047 = vmatpush2.msra.mxu0 0.0
      %2048 = vmatprep.subr.mxu0 0.0
      %2049 = vmatpush2.msra.mxu0 0.0
      %2050 = vmatprep.subr.mxu0 0.0
      %2051 = vmatpush2.msra.mxu0 0.0
      %2052 = vmatprep.subr.mxu0 0.0
      %2053 = vmatpush2.msra.mxu0 0.0
      %2054 = vmatprep.subr.mxu0 0.0
      %2055 = vmatpush2.msra.mxu0 0.0
      %2056 = vmatprep.subr.mxu0 0.0
      %2057 = vmatpush2.msra.mxu0 0.0
      %2058 = vmatprep.subr.mxu0 0.0
      %2059 = vmatpush2.msra.mxu0 0.0
      %2060 = vmatprep.subr.mxu0 0.0
      %2061 = vmatpush2.msra.mxu0 0.0
      %2062 = vmatprep.mubr.f32.mxu0 0.0
      %2063 = vmatmul.mubr.f32.gmra.mxu0 %v1900
      %v2064 = vpop.f32.mrf.mxu0
      %v2065 = vadd.f32 0.0, %v2064
      %v2066 = vpop.f32.mrf.mxu0
      %2067 = vmatprep.mubr.f32.mxu0 0.0
      %2068 = vmatmul.mubr.f32.gmra.mxu0 %v1903
      %v2069 = vpop.f32.mrf.mxu0
      %v2070 = vadd.f32 0.0, %v2069
      %v2071 = vpop.f32.mrf.mxu0
      %2072 = vmatprep.mubr.f32.mxu0 0.0
      %2073 = vmatmul.mubr.f32.gmra.mxu0 %v1906
      %v2074 = vpop.f32.mrf.mxu0
      %v2075 = vadd.f32 0.0, %v2074
      %v2076 = vpop.f32.mrf.mxu0
      %2077 = vmatprep.mubr.f32.mxu0 0.0
      %2078 = vmatmul.mubr.f32.gmra.mxu0 %v1909
      %v2079 = vpop.f32.mrf.mxu0
      %v2080 = vadd.f32 0.0, %v2079
      %v2081 = vpop.f32.mrf.mxu0
      %2082 = vmatprep.mubr.f32.mxu0 0.0
      %2083 = vmatmul.mubr.f32.gmra.mxu0 %v1912
      %v2084 = vpop.f32.mrf.mxu0
      %v2085 = vadd.f32 0.0, %v2084
      %v2086 = vpop.f32.mrf.mxu0
      %2087 = vmatprep.mubr.f32.mxu0 0.0
      %2088 = vmatmul.mubr.f32.gmra.mxu0 %v1915
      %v2089 = vpop.f32.mrf.mxu0
      %v2090 = vadd.f32 0.0, %v2089
      %v2091 = vpop.f32.mrf.mxu0
      %2092 = vmatprep.mubr.f32.mxu0 0.0
      %2093 = vmatmul.mubr.f32.gmra.mxu0 %v1918
      %v2094 = vpop.f32.mrf.mxu0
      %v2095 = vadd.f32 0.0, %v2094
      %v2096 = vpop.f32.mrf.mxu0
      %2097 = vmatprep.mubr.f32.mxu0 0.0
      %2098 = vmatmul.mubr.f32.gmra.mxu0 %v1921
      %v2099 = vpop.f32.mrf.mxu0
      %v2100 = vadd.f32 0.0, %v2099
      %v2101 = vpop.f32.mrf.mxu0
      %2102 = vmatprep.mubr.f32.mxu0 0.0
      %2103 = vmatmul.mubr.f32.gmra.mxu0 %v1924
      %v2104 = vpop.f32.mrf.mxu0
      %v2105 = vadd.f32 0.0, %v2104
      %v2106 = vpop.f32.mrf.mxu0
      %2107 = vmatprep.mubr.f32.mxu0 0.0
      %2108 = vmatmul.mubr.f32.gmra.mxu0 %v1927
      %v2109 = vpop.f32.mrf.mxu0
      %v2110 = vadd.f32 0.0, %v2109
      %v2111 = vpop.f32.mrf.mxu0
      %2112 = vmatprep.mubr.f32.mxu0 0.0
      %2113 = vmatmul.mubr.f32.gmra.mxu0 %v1930
      %v2114 = vpop.f32.mrf.mxu0
      %v2115 = vadd.f32 0.0, %v2114
      %v2116 = vpop.f32.mrf.mxu0
      %2117 = vmatprep.mubr.f32.mxu0 0.0
      %2118 = vmatmul.mubr.f32.gmra.mxu0 %v1933
      %v2119 = vpop.f32.mrf.mxu0
      %v2120 = vadd.f32 0.0, %v2119
      %v2121 = vpop.f32.mrf.mxu0
      %2122 = vmatprep.mubr.f32.mxu0 0.0
      %2123 = vmatmul.mubr.f32.gmra.mxu0 %v1936
      %v2124 = vpop.f32.mrf.mxu0
      %v2125 = vadd.f32 0.0, %v2124
      %v2126 = vpop.f32.mrf.mxu0
      %2127 = vmatprep.mubr.f32.mxu0 0.0
      %2128 = vmatmul.mubr.f32.gmra.mxu0 %v1939
      %v2129 = vpop.f32.mrf.mxu0
      %v2130 = vadd.f32 0.0, %v2129
      %v2131 = vpop.f32.mrf.mxu0
      %2132 = vmatprep.mubr.f32.mxu0 0.0
      %2133 = vmatmul.mubr.f32.gmra.mxu0 %v1942
      %v2134 = vpop.f32.mrf.mxu0
      %v2135 = vadd.f32 0.0, %v2134
      %v2136 = vpop.f32.mrf.mxu0
      %2137 = vmatprep.mubr.f32.mxu0 0.0
      %2138 = vmatmul.mubr.f32.gmra.mxu0 %v1945
      %v2139 = vpop.f32.mrf.mxu0
      %v2140 = vadd.f32 0.0, %v2139
      %v2141 = vpop.f32.mrf.mxu0
      %2142 = vmatprep.mubr.f32.mxu0 0.0
      %2143 = vmatmul.mubr.f32.gmra.mxu0 %v1948
      %v2144 = vpop.f32.mrf.mxu0
      %v2145 = vadd.f32 0.0, %v2144
      %v2146 = vpop.f32.mrf.mxu0
      %2147 = vmatprep.mubr.f32.mxu0 0.0
      %2148 = vmatmul.mubr.f32.gmra.mxu0 %v1951
      %v2149 = vpop.f32.mrf.mxu0
      %v2150 = vadd.f32 0.0, %v2149
      %v2151 = vpop.f32.mrf.mxu0
      %2152 = vmatprep.mubr.f32.mxu0 0.0
      %2153 = vmatmul.mubr.f32.gmra.mxu0 %v1954
      %v2154 = vpop.f32.mrf.mxu0
      %v2155 = vadd.f32 0.0, %v2154
      %v2156 = vpop.f32.mrf.mxu0
      %2157 = vmatprep.mubr.f32.mxu0 0.0
      %2158 = vmatmul.mubr.f32.gmra.mxu0 %v1957
      %v2159 = vpop.f32.mrf.mxu0
      %v2160 = vadd.f32 0.0, %v2159
      %v2161 = vpop.f32.mrf.mxu0
      %2162 = vmatprep.mubr.f32.mxu0 0.0
      %2163 = vmatmul.mubr.f32.gmra.mxu0 %v1960
      %v2164 = vpop.f32.mrf.mxu0
      %v2165 = vadd.f32 0.0, %v2164
      %v2166 = vpop.f32.mrf.mxu0
      %2167 = vmatprep.mubr.f32.mxu0 0.0
      %2168 = vmatmul.mubr.f32.gmra.mxu0 %v1963
      %v2169 = vpop.f32.mrf.mxu0
      %v2170 = vadd.f32 0.0, %v2169
      %v2171 = vpop.f32.mrf.mxu0
      %2172 = vmatprep.mubr.f32.mxu0 0.0
      %2173 = vmatmul.mubr.f32.gmra.mxu0 %v1966
      %v2174 = vpop.f32.mrf.mxu0
      %v2175 = vadd.f32 0.0, %v2174
      %v2176 = vpop.f32.mrf.mxu0
      %2177 = vmatprep.mubr.f32.mxu0 0.0
      %2178 = vmatmul.mubr.f32.gmra.mxu0 %v1969
      %v2179 = vpop.f32.mrf.mxu0
      %v2180 = vadd.f32 0.0, %v2179
      %v2181 = vpop.f32.mrf.mxu0
      %2182 = vmatprep.mubr.f32.mxu0 0.0
      %2183 = vmatmul.mubr.f32.gmra.mxu0 %v1972
      %v2184 = vpop.f32.mrf.mxu0
      %v2185 = vadd.f32 0.0, %v2184
      %v2186 = vpop.f32.mrf.mxu0
      %2187 = vmatprep.mubr.f32.mxu0 0.0
      %2188 = vmatmul.mubr.f32.gmra.mxu0 %v1975
      %v2189 = vpop.f32.mrf.mxu0
      %v2190 = vadd.f32 0.0, %v2189
      %v2191 = vpop.f32.mrf.mxu0
      %2192 = vmatprep.mubr.f32.mxu0 0.0
      %2193 = vmatmul.mubr.f32.gmra.mxu0 %v1978
      %v2194 = vpop.f32.mrf.mxu0
      %v2195 = vadd.f32 0.0, %v2194
      %v2196 = vpop.f32.mrf.mxu0
      %2197 = vmatprep.mubr.f32.mxu0 0.0
      %2198 = vmatmul.mubr.f32.gmra.mxu0 %v1981
      %v2199 = vpop.f32.mrf.mxu0
      %v2200 = vadd.f32 0.0, %v2199
      %v2201 = vpop.f32.mrf.mxu0
      %2202 = vmatprep.mubr.f32.mxu0 0.0
      %2203 = vmatmul.mubr.f32.gmra.mxu0 %v1984
      %v2204 = vpop.f32.mrf.mxu0
      %v2205 = vadd.f32 0.0, %v2204
      %v2206 = vpop.f32.mrf.mxu0
      %2207 = vmatprep.mubr.f32.mxu0 0.0
      %2208 = vmatmul.mubr.f32.gmra.mxu0 %v1987
      %v2209 = vpop.f32.mrf.mxu0
      %v2210 = vadd.f32 0.0, %v2209
      %v2211 = vpop.f32.mrf.mxu0
      %2212 = vmatprep.mubr.f32.mxu0 0.0
      %2213 = vmatmul.mubr.f32.gmra.mxu0 %v1990
      %v2214 = vpop.f32.mrf.mxu0
      %v2215 = vadd.f32 0.0, %v2214
      %v2216 = vpop.f32.mrf.mxu0
      %2217 = vmatprep.mubr.f32.mxu0 0.0
      %2218 = vmatmul.mubr.f32.gmra.mxu0 %v1993
      %v2219 = vpop.f32.mrf.mxu0
      %v2220 = vadd.f32 0.0, %v2219
      %v2221 = vpop.f32.mrf.mxu0
      %2222 = vdwg.mxu0
      %v2223 = vadd.f32 %v1833, %v2065
      %v2224 = vadd.f32 %v1834, %v2070
      %v2225 = vadd.f32 %v1835, %v2075
      %v2226 = vadd.f32 %v1836, %v2080
      %v2227 = vadd.f32 %v1837, %v2085
      %v2228 = vadd.f32 %v1838, %v2090
      %v2229 = vadd.f32 %v1839, %v2095
      %v2230 = vadd.f32 %v1840, %v2100
      %v2231 = vadd.f32 %v1841, %v2105
      %v2232 = vadd.f32 %v1842, %v2110
      %v2233 = vadd.f32 %v1843, %v2115
      %v2234 = vadd.f32 %v1844, %v2120
      %v2235 = vadd.f32 %v1845, %v2125
      %v2236 = vadd.f32 %v1846, %v2130
      %v2237 = vadd.f32 %v1847, %v2135
      %v2238 = vadd.f32 %v1848, %v2140
      %v2239 = vadd.f32 %v1849, %v2145
      %v2240 = vadd.f32 %v1850, %v2150
      %v2241 = vadd.f32 %v1851, %v2155
      %v2242 = vadd.f32 %v1852, %v2160
      %v2243 = vadd.f32 %v1853, %v2165
      %v2244 = vadd.f32 %v1854, %v2170
      %v2245 = vadd.f32 %v1855, %v2175
      %v2246 = vadd.f32 %v1856, %v2180
      %v2247 = vadd.f32 %v1857, %v2185
      %v2248 = vadd.f32 %v1858, %v2190
      %v2249 = vadd.f32 %v1859, %v2195
      %v2250 = vadd.f32 %v1860, %v2200
      %v2251 = vadd.f32 %v1861, %v2205
      %v2252 = vadd.f32 %v1862, %v2210
      %v2253 = vadd.f32 %v1863, %v2215
      %v2254 = vadd.f32 %v1864, %v2220
      %v2255 = vld [vmem:[%s257 + $0x2] sm:$0xff]
      %v2256 = vld [vmem:[%s257 + $0xa] sm:$0xff]
      %v2257 = vld [vmem:[%s257 + $0x1a] sm:$0xff]
      %v2258 = vld [vmem:[%s257 + $0x22] sm:$0xff]
      %v2259 = vld [vmem:[%s257 + $0x32] sm:$0xff]
      %v2260 = vld [vmem:[%s257 + $0x3a] sm:$0xff]
      %v2261 = vld [vmem:[%s257 + $0x4a] sm:$0xff]
      %v2262 = vld [vmem:[%s257 + $0x52] sm:$0xff]
      %v2263 = vld [vmem:[%s257 + $0x62] sm:$0xff]
      %v2264 = vld [vmem:[%s257 + $0x6a] sm:$0xff]
      %v2265 = vld [vmem:[%s257 + $0x7a] sm:$0xff]
      %v2266 = vld [vmem:[%s257 + $0x82] sm:$0xff]
      %v2267 = vld [vmem:[%s257 + $0x92] sm:$0xff]
      %v2268 = vld [vmem:[%s257 + $0x9a] sm:$0xff]
      %v2269 = vld [vmem:[%s257 + $0xaa] sm:$0xff]
      %v2270 = vld [vmem:[%s257 + $0xb2] sm:$0xff]
      %v2271 = vld [vmem:[%s257 + $0xc2] sm:$0xff]
      %v2272 = vld [vmem:[%s257 + $0xca] sm:$0xff]
      %v2273 = vld [vmem:[%s257 + $0xda] sm:$0xff]
      %v2274 = vld [vmem:[%s257 + $0xe2] sm:$0xff]
      %v2275 = vld [vmem:[%s257 + $0xf2] sm:$0xff]
      %v2276 = vld [vmem:[%s257 + $0xfa] sm:$0xff]
      %v2277 = vld [vmem:[%s257 + $0x10a] sm:$0xff]
      %v2278 = vld [vmem:[%s257 + $0x112] sm:$0xff]
      %v2279 = vld [vmem:[%s257 + $0x122] sm:$0xff]
      %v2280 = vld [vmem:[%s257 + $0x12a] sm:$0xff]
      %v2281 = vld [vmem:[%s257 + $0x13a] sm:$0xff]
      %v2282 = vld [vmem:[%s257 + $0x142] sm:$0xff]
      %v2283 = vld [vmem:[%s257 + $0x152] sm:$0xff]
      %v2284 = vld [vmem:[%s257 + $0x15a] sm:$0xff]
      %v2285 = vld [vmem:[%s257 + $0x16a] sm:$0xff]
      %v2286 = vld [vmem:[%s257 + $0x172] sm:$0xff]
      %s2287 = scalar_lea.vmem %s1, 20
      %v2288 = vld [vmem:[%s2287] sm:$0xf]
      %v2290 = vsel %vm258, %v2255, 0
      %v2293 = vsel %vm258, %v2256, 0
      %v2296 = vsel %vm258, %v2257, 0
      %v2299 = vsel %vm258, %v2258, 0
      %v2302 = vsel %vm258, %v2259, 0
      %v2305 = vsel %vm258, %v2260, 0
      %v2308 = vsel %vm258, %v2261, 0
      %v2311 = vsel %vm258, %v2262, 0
      %v2314 = vsel %vm258, %v2263, 0
      %v2317 = vsel %vm258, %v2264, 0
      %v2320 = vsel %vm258, %v2265, 0
      %v2323 = vsel %vm258, %v2266, 0
      %v2326 = vsel %vm258, %v2267, 0
      %v2329 = vsel %vm258, %v2268, 0
      %v2332 = vsel %vm258, %v2269, 0
      %v2335 = vsel %vm258, %v2270, 0
      %v2338 = vsel %vm258, %v2271, 0
      %v2341 = vsel %vm258, %v2272, 0
      %v2344 = vsel %vm258, %v2273, 0
      %v2347 = vsel %vm258, %v2274, 0
      %v2350 = vsel %vm258, %v2275, 0
      %v2353 = vsel %vm258, %v2276, 0
      %v2356 = vsel %vm258, %v2277, 0
      %v2359 = vsel %vm258, %v2278, 0
      %v2362 = vsel %vm258, %v2279, 0
      %v2365 = vsel %vm258, %v2280, 0
      %v2368 = vsel %vm258, %v2281, 0
      %v2371 = vsel %vm258, %v2282, 0
      %v2374 = vsel %vm258, %v2283, 0
      %v2377 = vsel %vm258, %v2284, 0
      %v2380 = vsel %vm258, %v2285, 0
      %v2383 = vsel %vm258, %v2286, 0
      %v2386 = vsel %vm532, %v2288, 0
      %2388 = vmatprep.subr.mxu0 0.0
      %2389 = vmatpush1.msra.mxu0 0.0
      %2390 = vmatprep.subr.mxu0 0.0
      %2391 = vmatpush1.msra.mxu0 0.0
      %2392 = vmatprep.subr.mxu0 0.0
      %2393 = vmatpush1.msra.mxu0 0.0
      %2394 = vmatprep.subr.mxu0 0.0
      %2395 = vmatpush1.msra.mxu0 0.0
      %2396 = vmatprep.subr.mxu0 0.0
      %2397 = vmatpush1.msra.mxu0 0.0
      %2398 = vmatprep.subr.mxu0 0.0
      %2399 = vmatpush1.msra.mxu0 0.0
      %2400 = vmatprep.subr.mxu0 0.0
      %2401 = vmatpush1.msra.mxu0 0.0
      %2402 = vmatprep.subr.mxu0 0.0
      %2403 = vmatpush1.msra.mxu0 0.0
      %2404 = vmatprep.subr.mxu0 0.0
      %2405 = vmatpush1.msra.mxu0 0.0
      %2406 = vmatprep.subr.mxu0 0.0
      %2407 = vmatpush1.msra.mxu0 0.0
      %2408 = vmatprep.subr.mxu0 0.0
      %2409 = vmatpush1.msra.mxu0 0.0
      %2410 = vmatprep.subr.mxu0 0.0
      %2411 = vmatpush1.msra.mxu0 0.0
      %2412 = vmatprep.subr.mxu0 0.0
      %2413 = vmatpush1.msra.mxu0 0.0
      %2414 = vmatprep.subr.mxu0 0.0
      %2415 = vmatpush1.msra.mxu0 0.0
      %2416 = vmatprep.subr.mxu0 0.0
      %2417 = vmatpush1.msra.mxu0 0.0
      %2418 = vmatprep.subr.mxu0 0.0
      %2419 = vmatpush1.msra.mxu0 %v2386
      %2420 = vmatprep.subr.mxu0 0.0
      %2421 = vmatpush2.msra.mxu0 0.0
      %2422 = vmatprep.subr.mxu0 0.0
      %2423 = vmatpush2.msra.mxu0 0.0
      %2424 = vmatprep.subr.mxu0 0.0
      %2425 = vmatpush2.msra.mxu0 0.0
      %2426 = vmatprep.subr.mxu0 0.0
      %2427 = vmatpush2.msra.mxu0 0.0
      %2428 = vmatprep.subr.mxu0 0.0
      %2429 = vmatpush2.msra.mxu0 0.0
      %2430 = vmatprep.subr.mxu0 0.0
      %2431 = vmatpush2.msra.mxu0 0.0
      %2432 = vmatprep.subr.mxu0 0.0
      %2433 = vmatpush2.msra.mxu0 0.0
      %2434 = vmatprep.subr.mxu0 0.0
      %2435 = vmatpush2.msra.mxu0 0.0
      %2436 = vmatprep.subr.mxu0 0.0
      %2437 = vmatpush2.msra.mxu0 0.0
      %2438 = vmatprep.subr.mxu0 0.0
      %2439 = vmatpush2.msra.mxu0 0.0
      %2440 = vmatprep.subr.mxu0 0.0
      %2441 = vmatpush2.msra.mxu0 0.0
      %2442 = vmatprep.subr.mxu0 0.0
      %2443 = vmatpush2.msra.mxu0 0.0
      %2444 = vmatprep.subr.mxu0 0.0
      %2445 = vmatpush2.msra.mxu0 0.0
      %2446 = vmatprep.subr.mxu0 0.0
      %2447 = vmatpush2.msra.mxu0 0.0
      %2448 = vmatprep.subr.mxu0 0.0
      %2449 = vmatpush2.msra.mxu0 0.0
      %2450 = vmatprep.subr.mxu0 0.0
      %2451 = vmatpush2.msra.mxu0 0.0
      %2452 = vmatprep.mubr.f32.mxu0 0.0
      %2453 = vmatmul.mubr.f32.gmra.mxu0 %v2290
      %v2454 = vpop.f32.mrf.mxu0
      %v2455 = vadd.f32 0.0, %v2454
      %v2456 = vpop.f32.mrf.mxu0
      %2457 = vmatprep.mubr.f32.mxu0 0.0
      %2458 = vmatmul.mubr.f32.gmra.mxu0 %v2293
      %v2459 = vpop.f32.mrf.mxu0
      %v2460 = vadd.f32 0.0, %v2459
      %v2461 = vpop.f32.mrf.mxu0
      %2462 = vmatprep.mubr.f32.mxu0 0.0
      %2463 = vmatmul.mubr.f32.gmra.mxu0 %v2296
      %v2464 = vpop.f32.mrf.mxu0
      %v2465 = vadd.f32 0.0, %v2464
      %v2466 = vpop.f32.mrf.mxu0
      %2467 = vmatprep.mubr.f32.mxu0 0.0
      %2468 = vmatmul.mubr.f32.gmra.mxu0 %v2299
      %v2469 = vpop.f32.mrf.mxu0
      %v2470 = vadd.f32 0.0, %v2469
      %v2471 = vpop.f32.mrf.mxu0
      %2472 = vmatprep.mubr.f32.mxu0 0.0
      %2473 = vmatmul.mubr.f32.gmra.mxu0 %v2302
      %v2474 = vpop.f32.mrf.mxu0
      %v2475 = vadd.f32 0.0, %v2474
      %v2476 = vpop.f32.mrf.mxu0
      %2477 = vmatprep.mubr.f32.mxu0 0.0
      %2478 = vmatmul.mubr.f32.gmra.mxu0 %v2305
      %v2479 = vpop.f32.mrf.mxu0
      %v2480 = vadd.f32 0.0, %v2479
      %v2481 = vpop.f32.mrf.mxu0
      %2482 = vmatprep.mubr.f32.mxu0 0.0
      %2483 = vmatmul.mubr.f32.gmra.mxu0 %v2308
      %v2484 = vpop.f32.mrf.mxu0
      %v2485 = vadd.f32 0.0, %v2484
      %v2486 = vpop.f32.mrf.mxu0
      %2487 = vmatprep.mubr.f32.mxu0 0.0
      %2488 = vmatmul.mubr.f32.gmra.mxu0 %v2311
      %v2489 = vpop.f32.mrf.mxu0
      %v2490 = vadd.f32 0.0, %v2489
      %v2491 = vpop.f32.mrf.mxu0
      %2492 = vmatprep.mubr.f32.mxu0 0.0
      %2493 = vmatmul.mubr.f32.gmra.mxu0 %v2314
      %v2494 = vpop.f32.mrf.mxu0
      %v2495 = vadd.f32 0.0, %v2494
      %v2496 = vpop.f32.mrf.mxu0
      %2497 = vmatprep.mubr.f32.mxu0 0.0
      %2498 = vmatmul.mubr.f32.gmra.mxu0 %v2317
      %v2499 = vpop.f32.mrf.mxu0
      %v2500 = vadd.f32 0.0, %v2499
      %v2501 = vpop.f32.mrf.mxu0
      %2502 = vmatprep.mubr.f32.mxu0 0.0
      %2503 = vmatmul.mubr.f32.gmra.mxu0 %v2320
      %v2504 = vpop.f32.mrf.mxu0
      %v2505 = vadd.f32 0.0, %v2504
      %v2506 = vpop.f32.mrf.mxu0
      %2507 = vmatprep.mubr.f32.mxu0 0.0
      %2508 = vmatmul.mubr.f32.gmra.mxu0 %v2323
      %v2509 = vpop.f32.mrf.mxu0
      %v2510 = vadd.f32 0.0, %v2509
      %v2511 = vpop.f32.mrf.mxu0
      %2512 = vmatprep.mubr.f32.mxu0 0.0
      %2513 = vmatmul.mubr.f32.gmra.mxu0 %v2326
      %v2514 = vpop.f32.mrf.mxu0
      %v2515 = vadd.f32 0.0, %v2514
      %v2516 = vpop.f32.mrf.mxu0
      %2517 = vmatprep.mubr.f32.mxu0 0.0
      %2518 = vmatmul.mubr.f32.gmra.mxu0 %v2329
      %v2519 = vpop.f32.mrf.mxu0
      %v2520 = vadd.f32 0.0, %v2519
      %v2521 = vpop.f32.mrf.mxu0
      %2522 = vmatprep.mubr.f32.mxu0 0.0
      %2523 = vmatmul.mubr.f32.gmra.mxu0 %v2332
      %v2524 = vpop.f32.mrf.mxu0
      %v2525 = vadd.f32 0.0, %v2524
      %v2526 = vpop.f32.mrf.mxu0
      %2527 = vmatprep.mubr.f32.mxu0 0.0
      %2528 = vmatmul.mubr.f32.gmra.mxu0 %v2335
      %v2529 = vpop.f32.mrf.mxu0
      %v2530 = vadd.f32 0.0, %v2529
      %v2531 = vpop.f32.mrf.mxu0
      %2532 = vmatprep.mubr.f32.mxu0 0.0
      %2533 = vmatmul.mubr.f32.gmra.mxu0 %v2338
      %v2534 = vpop.f32.mrf.mxu0
      %v2535 = vadd.f32 0.0, %v2534
      %v2536 = vpop.f32.mrf.mxu0
      %2537 = vmatprep.mubr.f32.mxu0 0.0
      %2538 = vmatmul.mubr.f32.gmra.mxu0 %v2341
      %v2539 = vpop.f32.mrf.mxu0
      %v2540 = vadd.f32 0.0, %v2539
      %v2541 = vpop.f32.mrf.mxu0
      %2542 = vmatprep.mubr.f32.mxu0 0.0
      %2543 = vmatmul.mubr.f32.gmra.mxu0 %v2344
      %v2544 = vpop.f32.mrf.mxu0
      %v2545 = vadd.f32 0.0, %v2544
      %v2546 = vpop.f32.mrf.mxu0
      %2547 = vmatprep.mubr.f32.mxu0 0.0
      %2548 = vmatmul.mubr.f32.gmra.mxu0 %v2347
      %v2549 = vpop.f32.mrf.mxu0
      %v2550 = vadd.f32 0.0, %v2549
      %v2551 = vpop.f32.mrf.mxu0
      %2552 = vmatprep.mubr.f32.mxu0 0.0
      %2553 = vmatmul.mubr.f32.gmra.mxu0 %v2350
      %v2554 = vpop.f32.mrf.mxu0
      %v2555 = vadd.f32 0.0, %v2554
      %v2556 = vpop.f32.mrf.mxu0
      %2557 = vmatprep.mubr.f32.mxu0 0.0
      %2558 = vmatmul.mubr.f32.gmra.mxu0 %v2353
      %v2559 = vpop.f32.mrf.mxu0
      %v2560 = vadd.f32 0.0, %v2559
      %v2561 = vpop.f32.mrf.mxu0
      %2562 = vmatprep.mubr.f32.mxu0 0.0
      %2563 = vmatmul.mubr.f32.gmra.mxu0 %v2356
      %v2564 = vpop.f32.mrf.mxu0
      %v2565 = vadd.f32 0.0, %v2564
      %v2566 = vpop.f32.mrf.mxu0
      %2567 = vmatprep.mubr.f32.mxu0 0.0
      %2568 = vmatmul.mubr.f32.gmra.mxu0 %v2359
      %v2569 = vpop.f32.mrf.mxu0
      %v2570 = vadd.f32 0.0, %v2569
      %v2571 = vpop.f32.mrf.mxu0
      %2572 = vmatprep.mubr.f32.mxu0 0.0
      %2573 = vmatmul.mubr.f32.gmra.mxu0 %v2362
      %v2574 = vpop.f32.mrf.mxu0
      %v2575 = vadd.f32 0.0, %v2574
      %v2576 = vpop.f32.mrf.mxu0
      %2577 = vmatprep.mubr.f32.mxu0 0.0
      %2578 = vmatmul.mubr.f32.gmra.mxu0 %v2365
      %v2579 = vpop.f32.mrf.mxu0
      %v2580 = vadd.f32 0.0, %v2579
      %v2581 = vpop.f32.mrf.mxu0
      %2582 = vmatprep.mubr.f32.mxu0 0.0
      %2583 = vmatmul.mubr.f32.gmra.mxu0 %v2368
      %v2584 = vpop.f32.mrf.mxu0
      %v2585 = vadd.f32 0.0, %v2584
      %v2586 = vpop.f32.mrf.mxu0
      %2587 = vmatprep.mubr.f32.mxu0 0.0
      %2588 = vmatmul.mubr.f32.gmra.mxu0 %v2371
      %v2589 = vpop.f32.mrf.mxu0
      %v2590 = vadd.f32 0.0, %v2589
      %v2591 = vpop.f32.mrf.mxu0
      %2592 = vmatprep.mubr.f32.mxu0 0.0
      %2593 = vmatmul.mubr.f32.gmra.mxu0 %v2374
      %v2594 = vpop.f32.mrf.mxu0
      %v2595 = vadd.f32 0.0, %v2594
      %v2596 = vpop.f32.mrf.mxu0
      %2597 = vmatprep.mubr.f32.mxu0 0.0
      %2598 = vmatmul.mubr.f32.gmra.mxu0 %v2377
      %v2599 = vpop.f32.mrf.mxu0
      %v2600 = vadd.f32 0.0, %v2599
      %v2601 = vpop.f32.mrf.mxu0
      %2602 = vmatprep.mubr.f32.mxu0 0.0
      %2603 = vmatmul.mubr.f32.gmra.mxu0 %v2380
      %v2604 = vpop.f32.mrf.mxu0
      %v2605 = vadd.f32 0.0, %v2604
      %v2606 = vpop.f32.mrf.mxu0
      %2607 = vmatprep.mubr.f32.mxu0 0.0
      %2608 = vmatmul.mubr.f32.gmra.mxu0 %v2383
      %v2609 = vpop.f32.mrf.mxu0
      %v2610 = vadd.f32 0.0, %v2609
      %v2611 = vpop.f32.mrf.mxu0
      %2612 = vdwg.mxu0
      %v2613 = vadd.f32 %v2223, %v2455
      %v2614 = vadd.f32 %v2224, %v2460
      %v2615 = vadd.f32 %v2225, %v2465
      %v2616 = vadd.f32 %v2226, %v2470
      %v2617 = vadd.f32 %v2227, %v2475
      %v2618 = vadd.f32 %v2228, %v2480
      %v2619 = vadd.f32 %v2229, %v2485
      %v2620 = vadd.f32 %v2230, %v2490
      %v2621 = vadd.f32 %v2231, %v2495
      %v2622 = vadd.f32 %v2232, %v2500
      %v2623 = vadd.f32 %v2233, %v2505
      %v2624 = vadd.f32 %v2234, %v2510
      %v2625 = vadd.f32 %v2235, %v2515
      %v2626 = vadd.f32 %v2236, %v2520
      %v2627 = vadd.f32 %v2237, %v2525
      %v2628 = vadd.f32 %v2238, %v2530
      %v2629 = vadd.f32 %v2239, %v2535
      %v2630 = vadd.f32 %v2240, %v2540
      %v2631 = vadd.f32 %v2241, %v2545
      %v2632 = vadd.f32 %v2242, %v2550
      %v2633 = vadd.f32 %v2243, %v2555
      %v2634 = vadd.f32 %v2244, %v2560
      %v2635 = vadd.f32 %v2245, %v2565
      %v2636 = vadd.f32 %v2246, %v2570
      %v2637 = vadd.f32 %v2247, %v2575
      %v2638 = vadd.f32 %v2248, %v2580
      %v2639 = vadd.f32 %v2249, %v2585
      %v2640 = vadd.f32 %v2250, %v2590
      %v2641 = vadd.f32 %v2251, %v2595
      %v2642 = vadd.f32 %v2252, %v2600
      %v2643 = vadd.f32 %v2253, %v2605
      %v2644 = vadd.f32 %v2254, %v2610
      %s2645 = scalar_lea.vmem [#allocation2], 48
      %v2646 = vld [vmem:[%s2645] sm:$0xff]
      %v2647 = vld [vmem:[%s2645 + $0x8] sm:$0xff]
      %v2648 = vld [vmem:[%s2645 + $0x18] sm:$0xff]
      %v2649 = vld [vmem:[%s2645 + $0x20] sm:$0xff]
      %v2650 = vld [vmem:[%s2645 + $0x30] sm:$0xff]
      %v2651 = vld [vmem:[%s2645 + $0x38] sm:$0xff]
      %v2652 = vld [vmem:[%s2645 + $0x48] sm:$0xff]
      %v2653 = vld [vmem:[%s2645 + $0x50] sm:$0xff]
      %v2654 = vld [vmem:[%s2645 + $0x60] sm:$0xff]
      %v2655 = vld [vmem:[%s2645 + $0x68] sm:$0xff]
      %v2656 = vld [vmem:[%s2645 + $0x78] sm:$0xff]
      %v2657 = vld [vmem:[%s2645 + $0x80] sm:$0xff]
      %v2658 = vld [vmem:[%s2645 + $0x90] sm:$0xff]
      %v2659 = vld [vmem:[%s2645 + $0x98] sm:$0xff]
      %v2660 = vld [vmem:[%s2645 + $0xa8] sm:$0xff]
      %v2661 = vld [vmem:[%s2645 + $0xb0] sm:$0xff]
      %v2662 = vld [vmem:[%s2645 + $0xc0] sm:$0xff]
      %v2663 = vld [vmem:[%s2645 + $0xc8] sm:$0xff]
      %v2664 = vld [vmem:[%s2645 + $0xd8] sm:$0xff]
      %v2665 = vld [vmem:[%s2645 + $0xe0] sm:$0xff]
      %v2666 = vld [vmem:[%s2645 + $0xf0] sm:$0xff]
      %v2667 = vld [vmem:[%s2645 + $0xf8] sm:$0xff]
      %v2668 = vld [vmem:[%s2645 + $0x108] sm:$0xff]
      %v2669 = vld [vmem:[%s2645 + $0x110] sm:$0xff]
      %v2670 = vld [vmem:[%s2645 + $0x120] sm:$0xff]
      %v2671 = vld [vmem:[%s2645 + $0x128] sm:$0xff]
      %v2672 = vld [vmem:[%s2645 + $0x138] sm:$0xff]
      %v2673 = vld [vmem:[%s2645 + $0x140] sm:$0xff]
      %v2674 = vld [vmem:[%s2645 + $0x150] sm:$0xff]
      %v2675 = vld [vmem:[%s2645 + $0x158] sm:$0xff]
      %v2676 = vld [vmem:[%s2645 + $0x168] sm:$0xff]
      %v2677 = vld [vmem:[%s2645 + $0x170] sm:$0xff]
      %s2678 = scalar_lea.vmem %s1, 24
      %v2679 = vld [vmem:[%s2678] sm:$0xf]
      %v2681 = vsel %vm258, %v2646, 0
      %v2684 = vsel %vm258, %v2647, 0
      %v2687 = vsel %vm258, %v2648, 0
      %v2690 = vsel %vm258, %v2649, 0
      %v2693 = vsel %vm258, %v2650, 0
      %v2696 = vsel %vm258, %v2651, 0
      %v2699 = vsel %vm258, %v2652, 0
      %v2702 = vsel %vm258, %v2653, 0
      %v2705 = vsel %vm258, %v2654, 0
      %v2708 = vsel %vm258, %v2655, 0
      %v2711 = vsel %vm258, %v2656, 0
      %v2714 = vsel %vm258, %v2657, 0
      %v2717 = vsel %vm258, %v2658, 0
      %v2720 = vsel %vm258, %v2659, 0
      %v2723 = vsel %vm258, %v2660, 0
      %v2726 = vsel %vm258, %v2661, 0
      %v2729 = vsel %vm258, %v2662, 0
      %v2732 = vsel %vm258, %v2663, 0
      %v2735 = vsel %vm258, %v2664, 0
      %v2738 = vsel %vm258, %v2665, 0
      %v2741 = vsel %vm258, %v2666, 0
      %v2744 = vsel %vm258, %v2667, 0
      %v2747 = vsel %vm258, %v2668, 0
      %v2750 = vsel %vm258, %v2669, 0
      %v2753 = vsel %vm258, %v2670, 0
      %v2756 = vsel %vm258, %v2671, 0
      %v2759 = vsel %vm258, %v2672, 0
      %v2762 = vsel %vm258, %v2673, 0
      %v2765 = vsel %vm258, %v2674, 0
      %v2768 = vsel %vm258, %v2675, 0
      %v2771 = vsel %vm258, %v2676, 0
      %v2774 = vsel %vm258, %v2677, 0
      %v2777 = vsel %vm532, %v2679, 0
      %2779 = vmatprep.subr.mxu0 0.0
      %2780 = vmatpush1.msra.mxu0 0.0
      %2781 = vmatprep.subr.mxu0 0.0
      %2782 = vmatpush1.msra.mxu0 0.0
      %2783 = vmatprep.subr.mxu0 0.0
      %2784 = vmatpush1.msra.mxu0 0.0
      %2785 = vmatprep.subr.mxu0 0.0
      %2786 = vmatpush1.msra.mxu0 0.0
      %2787 = vmatprep.subr.mxu0 0.0
      %2788 = vmatpush1.msra.mxu0 0.0
      %2789 = vmatprep.subr.mxu0 0.0
      %2790 = vmatpush1.msra.mxu0 0.0
      %2791 = vmatprep.subr.mxu0 0.0
      %2792 = vmatpush1.msra.mxu0 0.0
      %2793 = vmatprep.subr.mxu0 0.0
      %2794 = vmatpush1.msra.mxu0 0.0
      %2795 = vmatprep.subr.mxu0 0.0
      %2796 = vmatpush1.msra.mxu0 0.0
      %2797 = vmatprep.subr.mxu0 0.0
      %2798 = vmatpush1.msra.mxu0 0.0
      %2799 = vmatprep.subr.mxu0 0.0
      %2800 = vmatpush1.msra.mxu0 0.0
      %2801 = vmatprep.subr.mxu0 0.0
      %2802 = vmatpush1.msra.mxu0 0.0
      %2803 = vmatprep.subr.mxu0 0.0
      %2804 = vmatpush1.msra.mxu0 0.0
      %2805 = vmatprep.subr.mxu0 0.0
      %2806 = vmatpush1.msra.mxu0 0.0
      %2807 = vmatprep.subr.mxu0 0.0
      %2808 = vmatpush1.msra.mxu0 0.0
      %2809 = vmatprep.subr.mxu0 0.0
      %2810 = vmatpush1.msra.mxu0 %v2777
      %2811 = vmatprep.subr.mxu0 0.0
      %2812 = vmatpush2.msra.mxu0 0.0
      %2813 = vmatprep.subr.mxu0 0.0
      %2814 = vmatpush2.msra.mxu0 0.0
      %2815 = vmatprep.subr.mxu0 0.0
      %2816 = vmatpush2.msra.mxu0 0.0
      %2817 = vmatprep.subr.mxu0 0.0
      %2818 = vmatpush2.msra.mxu0 0.0
      %2819 = vmatprep.subr.mxu0 0.0
      %2820 = vmatpush2.msra.mxu0 0.0
      %2821 = vmatprep.subr.mxu0 0.0
      %2822 = vmatpush2.msra.mxu0 0.0
      %2823 = vmatprep.subr.mxu0 0.0
      %2824 = vmatpush2.msra.mxu0 0.0
      %2825 = vmatprep.subr.mxu0 0.0
      %2826 = vmatpush2.msra.mxu0 0.0
      %2827 = vmatprep.subr.mxu0 0.0
      %2828 = vmatpush2.msra.mxu0 0.0
      %2829 = vmatprep.subr.mxu0 0.0
      %2830 = vmatpush2.msra.mxu0 0.0
      %2831 = vmatprep.subr.mxu0 0.0
      %2832 = vmatpush2.msra.mxu0 0.0
      %2833 = vmatprep.subr.mxu0 0.0
      %2834 = vmatpush2.msra.mxu0 0.0
      %2835 = vmatprep.subr.mxu0 0.0
      %2836 = vmatpush2.msra.mxu0 0.0
      %2837 = vmatprep.subr.mxu0 0.0
      %2838 = vmatpush2.msra.mxu0 0.0
      %2839 = vmatprep.subr.mxu0 0.0
      %2840 = vmatpush2.msra.mxu0 0.0
      %2841 = vmatprep.subr.mxu0 0.0
      %2842 = vmatpush2.msra.mxu0 0.0
      %2843 = vmatprep.mubr.f32.mxu0 0.0
      %2844 = vmatmul.mubr.f32.gmra.mxu0 %v2681
      %v2845 = vpop.f32.mrf.mxu0
      %v2846 = vadd.f32 0.0, %v2845
      %v2847 = vpop.f32.mrf.mxu0
      %2848 = vmatprep.mubr.f32.mxu0 0.0
      %2849 = vmatmul.mubr.f32.gmra.mxu0 %v2684
      %v2850 = vpop.f32.mrf.mxu0
      %v2851 = vadd.f32 0.0, %v2850
      %v2852 = vpop.f32.mrf.mxu0
      %2853 = vmatprep.mubr.f32.mxu0 0.0
      %2854 = vmatmul.mubr.f32.gmra.mxu0 %v2687
      %v2855 = vpop.f32.mrf.mxu0
      %v2856 = vadd.f32 0.0, %v2855
      %v2857 = vpop.f32.mrf.mxu0
      %2858 = vmatprep.mubr.f32.mxu0 0.0
      %2859 = vmatmul.mubr.f32.gmra.mxu0 %v2690
      %v2860 = vpop.f32.mrf.mxu0
      %v2861 = vadd.f32 0.0, %v2860
      %v2862 = vpop.f32.mrf.mxu0
      %2863 = vmatprep.mubr.f32.mxu0 0.0
      %2864 = vmatmul.mubr.f32.gmra.mxu0 %v2693
      %v2865 = vpop.f32.mrf.mxu0
      %v2866 = vadd.f32 0.0, %v2865
      %v2867 = vpop.f32.mrf.mxu0
      %2868 = vmatprep.mubr.f32.mxu0 0.0
      %2869 = vmatmul.mubr.f32.gmra.mxu0 %v2696
      %v2870 = vpop.f32.mrf.mxu0
      %v2871 = vadd.f32 0.0, %v2870
      %v2872 = vpop.f32.mrf.mxu0
      %2873 = vmatprep.mubr.f32.mxu0 0.0
      %2874 = vmatmul.mubr.f32.gmra.mxu0 %v2699
      %v2875 = vpop.f32.mrf.mxu0
      %v2876 = vadd.f32 0.0, %v2875
      %v2877 = vpop.f32.mrf.mxu0
      %2878 = vmatprep.mubr.f32.mxu0 0.0
      %2879 = vmatmul.mubr.f32.gmra.mxu0 %v2702
      %v2880 = vpop.f32.mrf.mxu0
      %v2881 = vadd.f32 0.0, %v2880
      %v2882 = vpop.f32.mrf.mxu0
      %2883 = vmatprep.mubr.f32.mxu0 0.0
      %2884 = vmatmul.mubr.f32.gmra.mxu0 %v2705
      %v2885 = vpop.f32.mrf.mxu0
      %v2886 = vadd.f32 0.0, %v2885
      %v2887 = vpop.f32.mrf.mxu0
      %2888 = vmatprep.mubr.f32.mxu0 0.0
      %2889 = vmatmul.mubr.f32.gmra.mxu0 %v2708
      %v2890 = vpop.f32.mrf.mxu0
      %v2891 = vadd.f32 0.0, %v2890
      %v2892 = vpop.f32.mrf.mxu0
      %2893 = vmatprep.mubr.f32.mxu0 0.0
      %2894 = vmatmul.mubr.f32.gmra.mxu0 %v2711
      %v2895 = vpop.f32.mrf.mxu0
      %v2896 = vadd.f32 0.0, %v2895
      %v2897 = vpop.f32.mrf.mxu0
      %2898 = vmatprep.mubr.f32.mxu0 0.0
      %2899 = vmatmul.mubr.f32.gmra.mxu0 %v2714
      %v2900 = vpop.f32.mrf.mxu0
      %v2901 = vadd.f32 0.0, %v2900
      %v2902 = vpop.f32.mrf.mxu0
      %2903 = vmatprep.mubr.f32.mxu0 0.0
      %2904 = vmatmul.mubr.f32.gmra.mxu0 %v2717
      %v2905 = vpop.f32.mrf.mxu0
      %v2906 = vadd.f32 0.0, %v2905
      %v2907 = vpop.f32.mrf.mxu0
      %2908 = vmatprep.mubr.f32.mxu0 0.0
      %2909 = vmatmul.mubr.f32.gmra.mxu0 %v2720
      %v2910 = vpop.f32.mrf.mxu0
      %v2911 = vadd.f32 0.0, %v2910
      %v2912 = vpop.f32.mrf.mxu0
      %2913 = vmatprep.mubr.f32.mxu0 0.0
      %2914 = vmatmul.mubr.f32.gmra.mxu0 %v2723
      %v2915 = vpop.f32.mrf.mxu0
      %v2916 = vadd.f32 0.0, %v2915
      %v2917 = vpop.f32.mrf.mxu0
      %2918 = vmatprep.mubr.f32.mxu0 0.0
      %2919 = vmatmul.mubr.f32.gmra.mxu0 %v2726
      %v2920 = vpop.f32.mrf.mxu0
      %v2921 = vadd.f32 0.0, %v2920
      %v2922 = vpop.f32.mrf.mxu0
      %2923 = vmatprep.mubr.f32.mxu0 0.0
      %2924 = vmatmul.mubr.f32.gmra.mxu0 %v2729
      %v2925 = vpop.f32.mrf.mxu0
      %v2926 = vadd.f32 0.0, %v2925
      %v2927 = vpop.f32.mrf.mxu0
      %2928 = vmatprep.mubr.f32.mxu0 0.0
      %2929 = vmatmul.mubr.f32.gmra.mxu0 %v2732
      %v2930 = vpop.f32.mrf.mxu0
      %v2931 = vadd.f32 0.0, %v2930
      %v2932 = vpop.f32.mrf.mxu0
      %2933 = vmatprep.mubr.f32.mxu0 0.0
      %2934 = vmatmul.mubr.f32.gmra.mxu0 %v2735
      %v2935 = vpop.f32.mrf.mxu0
      %v2936 = vadd.f32 0.0, %v2935
      %v2937 = vpop.f32.mrf.mxu0
      %2938 = vmatprep.mubr.f32.mxu0 0.0
      %2939 = vmatmul.mubr.f32.gmra.mxu0 %v2738
      %v2940 = vpop.f32.mrf.mxu0
      %v2941 = vadd.f32 0.0, %v2940
      %v2942 = vpop.f32.mrf.mxu0
      %2943 = vmatprep.mubr.f32.mxu0 0.0
      %2944 = vmatmul.mubr.f32.gmra.mxu0 %v2741
      %v2945 = vpop.f32.mrf.mxu0
      %v2946 = vadd.f32 0.0, %v2945
      %v2947 = vpop.f32.mrf.mxu0
      %2948 = vmatprep.mubr.f32.mxu0 0.0
      %2949 = vmatmul.mubr.f32.gmra.mxu0 %v2744
      %v2950 = vpop.f32.mrf.mxu0
      %v2951 = vadd.f32 0.0, %v2950
      %v2952 = vpop.f32.mrf.mxu0
      %2953 = vmatprep.mubr.f32.mxu0 0.0
      %2954 = vmatmul.mubr.f32.gmra.mxu0 %v2747
      %v2955 = vpop.f32.mrf.mxu0
      %v2956 = vadd.f32 0.0, %v2955
      %v2957 = vpop.f32.mrf.mxu0
      %2958 = vmatprep.mubr.f32.mxu0 0.0
      %2959 = vmatmul.mubr.f32.gmra.mxu0 %v2750
      %v2960 = vpop.f32.mrf.mxu0
      %v2961 = vadd.f32 0.0, %v2960
      %v2962 = vpop.f32.mrf.mxu0
      %2963 = vmatprep.mubr.f32.mxu0 0.0
      %2964 = vmatmul.mubr.f32.gmra.mxu0 %v2753
      %v2965 = vpop.f32.mrf.mxu0
      %v2966 = vadd.f32 0.0, %v2965
      %v2967 = vpop.f32.mrf.mxu0
      %2968 = vmatprep.mubr.f32.mxu0 0.0
      %2969 = vmatmul.mubr.f32.gmra.mxu0 %v2756
      %v2970 = vpop.f32.mrf.mxu0
      %v2971 = vadd.f32 0.0, %v2970
      %v2972 = vpop.f32.mrf.mxu0
      %2973 = vmatprep.mubr.f32.mxu0 0.0
      %2974 = vmatmul.mubr.f32.gmra.mxu0 %v2759
      %v2975 = vpop.f32.mrf.mxu0
      %v2976 = vadd.f32 0.0, %v2975
      %v2977 = vpop.f32.mrf.mxu0
      %2978 = vmatprep.mubr.f32.mxu0 0.0
      %2979 = vmatmul.mubr.f32.gmra.mxu0 %v2762
      %v2980 = vpop.f32.mrf.mxu0
      %v2981 = vadd.f32 0.0, %v2980
      %v2982 = vpop.f32.mrf.mxu0
      %2983 = vmatprep.mubr.f32.mxu0 0.0
      %2984 = vmatmul.mubr.f32.gmra.mxu0 %v2765
      %v2985 = vpop.f32.mrf.mxu0
      %v2986 = vadd.f32 0.0, %v2985
      %v2987 = vpop.f32.mrf.mxu0
      %2988 = vmatprep.mubr.f32.mxu0 0.0
      %2989 = vmatmul.mubr.f32.gmra.mxu0 %v2768
      %v2990 = vpop.f32.mrf.mxu0
      %v2991 = vadd.f32 0.0, %v2990
      %v2992 = vpop.f32.mrf.mxu0
      %2993 = vmatprep.mubr.f32.mxu0 0.0
      %2994 = vmatmul.mubr.f32.gmra.mxu0 %v2771
      %v2995 = vpop.f32.mrf.mxu0
      %v2996 = vadd.f32 0.0, %v2995
      %v2997 = vpop.f32.mrf.mxu0
      %2998 = vmatprep.mubr.f32.mxu0 0.0
      %2999 = vmatmul.mubr.f32.gmra.mxu0 %v2774
      %v3000 = vpop.f32.mrf.mxu0
      %v3001 = vadd.f32 0.0, %v3000
      %v3002 = vpop.f32.mrf.mxu0
      %3003 = vdwg.mxu0
      %v3004 = vadd.f32 %v2613, %v2846
      %v3005 = vadd.f32 %v2614, %v2851
      %v3006 = vadd.f32 %v2615, %v2856
      %v3007 = vadd.f32 %v2616, %v2861
      %v3008 = vadd.f32 %v2617, %v2866
      %v3009 = vadd.f32 %v2618, %v2871
      %v3010 = vadd.f32 %v2619, %v2876
      %v3011 = vadd.f32 %v2620, %v2881
      %v3012 = vadd.f32 %v2621, %v2886
      %v3013 = vadd.f32 %v2622, %v2891
      %v3014 = vadd.f32 %v2623, %v2896
      %v3015 = vadd.f32 %v2624, %v2901
      %v3016 = vadd.f32 %v2625, %v2906
      %v3017 = vadd.f32 %v2626, %v2911
      %v3018 = vadd.f32 %v2627, %v2916
      %v3019 = vadd.f32 %v2628, %v2921
      %v3020 = vadd.f32 %v2629, %v2926
      %v3021 = vadd.f32 %v2630, %v2931
      %v3022 = vadd.f32 %v2631, %v2936
      %v3023 = vadd.f32 %v2632, %v2941
      %v3024 = vadd.f32 %v2633, %v2946
      %v3025 = vadd.f32 %v2634, %v2951
      %v3026 = vadd.f32 %v2635, %v2956
      %v3027 = vadd.f32 %v2636, %v2961
      %v3028 = vadd.f32 %v2637, %v2966
      %v3029 = vadd.f32 %v2638, %v2971
      %v3030 = vadd.f32 %v2639, %v2976
      %v3031 = vadd.f32 %v2640, %v2981
      %v3032 = vadd.f32 %v2641, %v2986
      %v3033 = vadd.f32 %v2642, %v2991
      %v3034 = vadd.f32 %v2643, %v2996
      %v3035 = vadd.f32 %v2644, %v3001
      %v3036 = vld [vmem:[%s2645 + $0x1] sm:$0xff]
      %v3037 = vld [vmem:[%s2645 + $0x9] sm:$0xff]
      %v3038 = vld [vmem:[%s2645 + $0x19] sm:$0xff]
      %v3039 = vld [vmem:[%s2645 + $0x21] sm:$0xff]
      %v3040 = vld [vmem:[%s2645 + $0x31] sm:$0xff]
      %v3041 = vld [vmem:[%s2645 + $0x39] sm:$0xff]
      %v3042 = vld [vmem:[%s2645 + $0x49] sm:$0xff]
      %v3043 = vld [vmem:[%s2645 + $0x51] sm:$0xff]
      %v3044 = vld [vmem:[%s2645 + $0x61] sm:$0xff]
      %v3045 = vld [vmem:[%s2645 + $0x69] sm:$0xff]
      %v3046 = vld [vmem:[%s2645 + $0x79] sm:$0xff]
      %v3047 = vld [vmem:[%s2645 + $0x81] sm:$0xff]
      %v3048 = vld [vmem:[%s2645 + $0x91] sm:$0xff]
      %v3049 = vld [vmem:[%s2645 + $0x99] sm:$0xff]
      %v3050 = vld [vmem:[%s2645 + $0xa9] sm:$0xff]
      %v3051 = vld [vmem:[%s2645 + $0xb1] sm:$0xff]
      %v3052 = vld [vmem:[%s2645 + $0xc1] sm:$0xff]
      %v3053 = vld [vmem:[%s2645 + $0xc9] sm:$0xff]
      %v3054 = vld [vmem:[%s2645 + $0xd9] sm:$0xff]
      %v3055 = vld [vmem:[%s2645 + $0xe1] sm:$0xff]
      %v3056 = vld [vmem:[%s2645 + $0xf1] sm:$0xff]
      %v3057 = vld [vmem:[%s2645 + $0xf9] sm:$0xff]
      %v3058 = vld [vmem:[%s2645 + $0x109] sm:$0xff]
      %v3059 = vld [vmem:[%s2645 + $0x111] sm:$0xff]
      %v3060 = vld [vmem:[%s2645 + $0x121] sm:$0xff]
      %v3061 = vld [vmem:[%s2645 + $0x129] sm:$0xff]
      %v3062 = vld [vmem:[%s2645 + $0x139] sm:$0xff]
      %v3063 = vld [vmem:[%s2645 + $0x141] sm:$0xff]
      %v3064 = vld [vmem:[%s2645 + $0x151] sm:$0xff]
      %v3065 = vld [vmem:[%s2645 + $0x159] sm:$0xff]
      %v3066 = vld [vmem:[%s2645 + $0x169] sm:$0xff]
      %v3067 = vld [vmem:[%s2645 + $0x171] sm:$0xff]
      %s3068 = scalar_lea.vmem %s1, 28
      %v3069 = vld [vmem:[%s3068] sm:$0xf]
      %v3071 = vsel %vm258, %v3036, 0
      %v3074 = vsel %vm258, %v3037, 0
      %v3077 = vsel %vm258, %v3038, 0
      %v3080 = vsel %vm258, %v3039, 0
      %v3083 = vsel %vm258, %v3040, 0
      %v3086 = vsel %vm258, %v3041, 0
      %v3089 = vsel %vm258, %v3042, 0
      %v3092 = vsel %vm258, %v3043, 0
      %v3095 = vsel %vm258, %v3044, 0
      %v3098 = vsel %vm258, %v3045, 0
      %v3101 = vsel %vm258, %v3046, 0
      %v3104 = vsel %vm258, %v3047, 0
      %v3107 = vsel %vm258, %v3048, 0
      %v3110 = vsel %vm258, %v3049, 0
      %v3113 = vsel %vm258, %v3050, 0
      %v3116 = vsel %vm258, %v3051, 0
      %v3119 = vsel %vm258, %v3052, 0
      %v3122 = vsel %vm258, %v3053, 0
      %v3125 = vsel %vm258, %v3054, 0
      %v3128 = vsel %vm258, %v3055, 0
      %v3131 = vsel %vm258, %v3056, 0
      %v3134 = vsel %vm258, %v3057, 0
      %v3137 = vsel %vm258, %v3058, 0
      %v3140 = vsel %vm258, %v3059, 0
      %v3143 = vsel %vm258, %v3060, 0
      %v3146 = vsel %vm258, %v3061, 0
      %v3149 = vsel %vm258, %v3062, 0
      %v3152 = vsel %vm258, %v3063, 0
      %v3155 = vsel %vm258, %v3064, 0
      %v3158 = vsel %vm258, %v3065, 0
      %v3161 = vsel %vm258, %v3066, 0
      %v3164 = vsel %vm258, %v3067, 0
      %v3167 = vsel %vm532, %v3069, 0
      %3169 = vmatprep.subr.mxu0 0.0
      %3170 = vmatpush1.msra.mxu0 0.0
      %3171 = vmatprep.subr.mxu0 0.0
      %3172 = vmatpush1.msra.mxu0 0.0
      %3173 = vmatprep.subr.mxu0 0.0
      %3174 = vmatpush1.msra.mxu0 0.0
      %3175 = vmatprep.subr.mxu0 0.0
      %3176 = vmatpush1.msra.mxu0 0.0
      %3177 = vmatprep.subr.mxu0 0.0
      %3178 = vmatpush1.msra.mxu0 0.0
      %3179 = vmatprep.subr.mxu0 0.0
      %3180 = vmatpush1.msra.mxu0 0.0
      %3181 = vmatprep.subr.mxu0 0.0
      %3182 = vmatpush1.msra.mxu0 0.0
      %3183 = vmatprep.subr.mxu0 0.0
      %3184 = vmatpush1.msra.mxu0 0.0
      %3185 = vmatprep.subr.mxu0 0.0
      %3186 = vmatpush1.msra.mxu0 0.0
      %3187 = vmatprep.subr.mxu0 0.0
      %3188 = vmatpush1.msra.mxu0 0.0
      %3189 = vmatprep.subr.mxu0 0.0
      %3190 = vmatpush1.msra.mxu0 0.0
      %3191 = vmatprep.subr.mxu0 0.0
      %3192 = vmatpush1.msra.mxu0 0.0
      %3193 = vmatprep.subr.mxu0 0.0
      %3194 = vmatpush1.msra.mxu0 0.0
      %3195 = vmatprep.subr.mxu0 0.0
      %3196 = vmatpush1.msra.mxu0 0.0
      %3197 = vmatprep.subr.mxu0 0.0
      %3198 = vmatpush1.msra.mxu0 0.0
      %3199 = vmatprep.subr.mxu0 0.0
      %3200 = vmatpush1.msra.mxu0 %v3167
      %3201 = vmatprep.subr.mxu0 0.0
      %3202 = vmatpush2.msra.mxu0 0.0
      %3203 = vmatprep.subr.mxu0 0.0
      %3204 = vmatpush2.msra.mxu0 0.0
      %3205 = vmatprep.subr.mxu0 0.0
      %3206 = vmatpush2.msra.mxu0 0.0
      %3207 = vmatprep.subr.mxu0 0.0
      %3208 = vmatpush2.msra.mxu0 0.0
      %3209 = vmatprep.subr.mxu0 0.0
      %3210 = vmatpush2.msra.mxu0 0.0
      %3211 = vmatprep.subr.mxu0 0.0
      %3212 = vmatpush2.msra.mxu0 0.0
      %3213 = vmatprep.subr.mxu0 0.0
      %3214 = vmatpush2.msra.mxu0 0.0
      %3215 = vmatprep.subr.mxu0 0.0
      %3216 = vmatpush2.msra.mxu0 0.0
      %3217 = vmatprep.subr.mxu0 0.0
      %3218 = vmatpush2.msra.mxu0 0.0
      %3219 = vmatprep.subr.mxu0 0.0
      %3220 = vmatpush2.msra.mxu0 0.0
      %3221 = vmatprep.subr.mxu0 0.0
      %3222 = vmatpush2.msra.mxu0 0.0
      %3223 = vmatprep.subr.mxu0 0.0
      %3224 = vmatpush2.msra.mxu0 0.0
      %3225 = vmatprep.subr.mxu0 0.0
      %3226 = vmatpush2.msra.mxu0 0.0
      %3227 = vmatprep.subr.mxu0 0.0
      %3228 = vmatpush2.msra.mxu0 0.0
      %3229 = vmatprep.subr.mxu0 0.0
      %3230 = vmatpush2.msra.mxu0 0.0
      %3231 = vmatprep.subr.mxu0 0.0
      %3232 = vmatpush2.msra.mxu0 0.0
      %3233 = vmatprep.mubr.f32.mxu0 0.0
      %3234 = vmatmul.mubr.f32.gmra.mxu0 %v3071
      %v3235 = vpop.f32.mrf.mxu0
      %v3236 = vadd.f32 0.0, %v3235
      %v3237 = vpop.f32.mrf.mxu0
      %3238 = vmatprep.mubr.f32.mxu0 0.0
      %3239 = vmatmul.mubr.f32.gmra.mxu0 %v3074
      %v3240 = vpop.f32.mrf.mxu0
      %v3241 = vadd.f32 0.0, %v3240
      %v3242 = vpop.f32.mrf.mxu0
      %3243 = vmatprep.mubr.f32.mxu0 0.0
      %3244 = vmatmul.mubr.f32.gmra.mxu0 %v3077
      %v3245 = vpop.f32.mrf.mxu0
      %v3246 = vadd.f32 0.0, %v3245
      %v3247 = vpop.f32.mrf.mxu0
      %3248 = vmatprep.mubr.f32.mxu0 0.0
      %3249 = vmatmul.mubr.f32.gmra.mxu0 %v3080
      %v3250 = vpop.f32.mrf.mxu0
      %v3251 = vadd.f32 0.0, %v3250
      %v3252 = vpop.f32.mrf.mxu0
      %3253 = vmatprep.mubr.f32.mxu0 0.0
      %3254 = vmatmul.mubr.f32.gmra.mxu0 %v3083
      %v3255 = vpop.f32.mrf.mxu0
      %v3256 = vadd.f32 0.0, %v3255
      %v3257 = vpop.f32.mrf.mxu0
      %3258 = vmatprep.mubr.f32.mxu0 0.0
      %3259 = vmatmul.mubr.f32.gmra.mxu0 %v3086
      %v3260 = vpop.f32.mrf.mxu0
      %v3261 = vadd.f32 0.0, %v3260
      %v3262 = vpop.f32.mrf.mxu0
      %3263 = vmatprep.mubr.f32.mxu0 0.0
      %3264 = vmatmul.mubr.f32.gmra.mxu0 %v3089
      %v3265 = vpop.f32.mrf.mxu0
      %v3266 = vadd.f32 0.0, %v3265
      %v3267 = vpop.f32.mrf.mxu0
      %3268 = vmatprep.mubr.f32.mxu0 0.0
      %3269 = vmatmul.mubr.f32.gmra.mxu0 %v3092
      %v3270 = vpop.f32.mrf.mxu0
      %v3271 = vadd.f32 0.0, %v3270
      %v3272 = vpop.f32.mrf.mxu0
      %3273 = vmatprep.mubr.f32.mxu0 0.0
      %3274 = vmatmul.mubr.f32.gmra.mxu0 %v3095
      %v3275 = vpop.f32.mrf.mxu0
      %v3276 = vadd.f32 0.0, %v3275
      %v3277 = vpop.f32.mrf.mxu0
      %3278 = vmatprep.mubr.f32.mxu0 0.0
      %3279 = vmatmul.mubr.f32.gmra.mxu0 %v3098
      %v3280 = vpop.f32.mrf.mxu0
      %v3281 = vadd.f32 0.0, %v3280
      %v3282 = vpop.f32.mrf.mxu0
      %3283 = vmatprep.mubr.f32.mxu0 0.0
      %3284 = vmatmul.mubr.f32.gmra.mxu0 %v3101
      %v3285 = vpop.f32.mrf.mxu0
      %v3286 = vadd.f32 0.0, %v3285
      %v3287 = vpop.f32.mrf.mxu0
      %3288 = vmatprep.mubr.f32.mxu0 0.0
      %3289 = vmatmul.mubr.f32.gmra.mxu0 %v3104
      %v3290 = vpop.f32.mrf.mxu0
      %v3291 = vadd.f32 0.0, %v3290
      %v3292 = vpop.f32.mrf.mxu0
      %3293 = vmatprep.mubr.f32.mxu0 0.0
      %3294 = vmatmul.mubr.f32.gmra.mxu0 %v3107
      %v3295 = vpop.f32.mrf.mxu0
      %v3296 = vadd.f32 0.0, %v3295
      %v3297 = vpop.f32.mrf.mxu0
      %3298 = vmatprep.mubr.f32.mxu0 0.0
      %3299 = vmatmul.mubr.f32.gmra.mxu0 %v3110
      %v3300 = vpop.f32.mrf.mxu0
      %v3301 = vadd.f32 0.0, %v3300
      %v3302 = vpop.f32.mrf.mxu0
      %3303 = vmatprep.mubr.f32.mxu0 0.0
      %3304 = vmatmul.mubr.f32.gmra.mxu0 %v3113
      %v3305 = vpop.f32.mrf.mxu0
      %v3306 = vadd.f32 0.0, %v3305
      %v3307 = vpop.f32.mrf.mxu0
      %3308 = vmatprep.mubr.f32.mxu0 0.0
      %3309 = vmatmul.mubr.f32.gmra.mxu0 %v3116
      %v3310 = vpop.f32.mrf.mxu0
      %v3311 = vadd.f32 0.0, %v3310
      %v3312 = vpop.f32.mrf.mxu0
      %3313 = vmatprep.mubr.f32.mxu0 0.0
      %3314 = vmatmul.mubr.f32.gmra.mxu0 %v3119
      %v3315 = vpop.f32.mrf.mxu0
      %v3316 = vadd.f32 0.0, %v3315
      %v3317 = vpop.f32.mrf.mxu0
      %3318 = vmatprep.mubr.f32.mxu0 0.0
      %3319 = vmatmul.mubr.f32.gmra.mxu0 %v3122
      %v3320 = vpop.f32.mrf.mxu0
      %v3321 = vadd.f32 0.0, %v3320
      %v3322 = vpop.f32.mrf.mxu0
      %3323 = vmatprep.mubr.f32.mxu0 0.0
      %3324 = vmatmul.mubr.f32.gmra.mxu0 %v3125
      %v3325 = vpop.f32.mrf.mxu0
      %v3326 = vadd.f32 0.0, %v3325
      %v3327 = vpop.f32.mrf.mxu0
      %3328 = vmatprep.mubr.f32.mxu0 0.0
      %3329 = vmatmul.mubr.f32.gmra.mxu0 %v3128
      %v3330 = vpop.f32.mrf.mxu0
      %v3331 = vadd.f32 0.0, %v3330
      %v3332 = vpop.f32.mrf.mxu0
      %3333 = vmatprep.mubr.f32.mxu0 0.0
      %3334 = vmatmul.mubr.f32.gmra.mxu0 %v3131
      %v3335 = vpop.f32.mrf.mxu0
      %v3336 = vadd.f32 0.0, %v3335
      %v3337 = vpop.f32.mrf.mxu0
      %3338 = vmatprep.mubr.f32.mxu0 0.0
      %3339 = vmatmul.mubr.f32.gmra.mxu0 %v3134
      %v3340 = vpop.f32.mrf.mxu0
      %v3341 = vadd.f32 0.0, %v3340
      %v3342 = vpop.f32.mrf.mxu0
      %3343 = vmatprep.mubr.f32.mxu0 0.0
      %3344 = vmatmul.mubr.f32.gmra.mxu0 %v3137
      %v3345 = vpop.f32.mrf.mxu0
      %v3346 = vadd.f32 0.0, %v3345
      %v3347 = vpop.f32.mrf.mxu0
      %3348 = vmatprep.mubr.f32.mxu0 0.0
      %3349 = vmatmul.mubr.f32.gmra.mxu0 %v3140
      %v3350 = vpop.f32.mrf.mxu0
      %v3351 = vadd.f32 0.0, %v3350
      %v3352 = vpop.f32.mrf.mxu0
      %3353 = vmatprep.mubr.f32.mxu0 0.0
      %3354 = vmatmul.mubr.f32.gmra.mxu0 %v3143
      %v3355 = vpop.f32.mrf.mxu0
      %v3356 = vadd.f32 0.0, %v3355
      %v3357 = vpop.f32.mrf.mxu0
      %3358 = vmatprep.mubr.f32.mxu0 0.0
      %3359 = vmatmul.mubr.f32.gmra.mxu0 %v3146
      %v3360 = vpop.f32.mrf.mxu0
      %v3361 = vadd.f32 0.0, %v3360
      %v3362 = vpop.f32.mrf.mxu0
      %3363 = vmatprep.mubr.f32.mxu0 0.0
      %3364 = vmatmul.mubr.f32.gmra.mxu0 %v3149
      %v3365 = vpop.f32.mrf.mxu0
      %v3366 = vadd.f32 0.0, %v3365
      %v3367 = vpop.f32.mrf.mxu0
      %3368 = vmatprep.mubr.f32.mxu0 0.0
      %3369 = vmatmul.mubr.f32.gmra.mxu0 %v3152
      %v3370 = vpop.f32.mrf.mxu0
      %v3371 = vadd.f32 0.0, %v3370
      %v3372 = vpop.f32.mrf.mxu0
      %3373 = vmatprep.mubr.f32.mxu0 0.0
      %3374 = vmatmul.mubr.f32.gmra.mxu0 %v3155
      %v3375 = vpop.f32.mrf.mxu0
      %v3376 = vadd.f32 0.0, %v3375
      %v3377 = vpop.f32.mrf.mxu0
      %3378 = vmatprep.mubr.f32.mxu0 0.0
      %3379 = vmatmul.mubr.f32.gmra.mxu0 %v3158
      %v3380 = vpop.f32.mrf.mxu0
      %v3381 = vadd.f32 0.0, %v3380
      %v3382 = vpop.f32.mrf.mxu0
      %3383 = vmatprep.mubr.f32.mxu0 0.0
      %3384 = vmatmul.mubr.f32.gmra.mxu0 %v3161
      %v3385 = vpop.f32.mrf.mxu0
      %v3386 = vadd.f32 0.0, %v3385
      %v3387 = vpop.f32.mrf.mxu0
      %3388 = vmatprep.mubr.f32.mxu0 0.0
      %3389 = vmatmul.mubr.f32.gmra.mxu0 %v3164
      %v3390 = vpop.f32.mrf.mxu0
      %v3391 = vadd.f32 0.0, %v3390
      %v3392 = vpop.f32.mrf.mxu0
      %3393 = vdwg.mxu0
      %v3394 = vadd.f32 %v3004, %v3236
      %v3395 = vadd.f32 %v3005, %v3241
      %v3396 = vadd.f32 %v3006, %v3246
      %v3397 = vadd.f32 %v3007, %v3251
      %v3398 = vadd.f32 %v3008, %v3256
      %v3399 = vadd.f32 %v3009, %v3261
      %v3400 = vadd.f32 %v3010, %v3266
      %v3401 = vadd.f32 %v3011, %v3271
      %v3402 = vadd.f32 %v3012, %v3276
      %v3403 = vadd.f32 %v3013, %v3281
      %v3404 = vadd.f32 %v3014, %v3286
      %v3405 = vadd.f32 %v3015, %v3291
      %v3406 = vadd.f32 %v3016, %v3296
      %v3407 = vadd.f32 %v3017, %v3301
      %v3408 = vadd.f32 %v3018, %v3306
      %v3409 = vadd.f32 %v3019, %v3311
      %v3410 = vadd.f32 %v3020, %v3316
      %v3411 = vadd.f32 %v3021, %v3321
      %v3412 = vadd.f32 %v3022, %v3326
      %v3413 = vadd.f32 %v3023, %v3331
      %v3414 = vadd.f32 %v3024, %v3336
      %v3415 = vadd.f32 %v3025, %v3341
      %v3416 = vadd.f32 %v3026, %v3346
      %v3417 = vadd.f32 %v3027, %v3351
      %v3418 = vadd.f32 %v3028, %v3356
      %v3419 = vadd.f32 %v3029, %v3361
      %v3420 = vadd.f32 %v3030, %v3366
      %v3421 = vadd.f32 %v3031, %v3371
      %v3422 = vadd.f32 %v3032, %v3376
      %v3423 = vadd.f32 %v3033, %v3381
      %v3424 = vadd.f32 %v3034, %v3386
      %v3425 = vadd.f32 %v3035, %v3391
      %v3426 = vld [vmem:[%s2645 + $0x2] sm:$0xff]
      %v3427 = vld [vmem:[%s2645 + $0xa] sm:$0xff]
      %v3428 = vld [vmem:[%s2645 + $0x1a] sm:$0xff]
      %v3429 = vld [vmem:[%s2645 + $0x22] sm:$0xff]
      %v3430 = vld [vmem:[%s2645 + $0x32] sm:$0xff]
      %v3431 = vld [vmem:[%s2645 + $0x3a] sm:$0xff]
      %v3432 = vld [vmem:[%s2645 + $0x4a] sm:$0xff]
      %v3433 = vld [vmem:[%s2645 + $0x52] sm:$0xff]
      %v3434 = vld [vmem:[%s2645 + $0x62] sm:$0xff]
      %v3435 = vld [vmem:[%s2645 + $0x6a] sm:$0xff]
      %v3436 = vld [vmem:[%s2645 + $0x7a] sm:$0xff]
      %v3437 = vld [vmem:[%s2645 + $0x82] sm:$0xff]
      %v3438 = vld [vmem:[%s2645 + $0x92] sm:$0xff]
      %v3439 = vld [vmem:[%s2645 + $0x9a] sm:$0xff]
      %v3440 = vld [vmem:[%s2645 + $0xaa] sm:$0xff]
      %v3441 = vld [vmem:[%s2645 + $0xb2] sm:$0xff]
      %v3442 = vld [vmem:[%s2645 + $0xc2] sm:$0xff]
      %v3443 = vld [vmem:[%s2645 + $0xca] sm:$0xff]
      %v3444 = vld [vmem:[%s2645 + $0xda] sm:$0xff]
      %v3445 = vld [vmem:[%s2645 + $0xe2] sm:$0xff]
      %v3446 = vld [vmem:[%s2645 + $0xf2] sm:$0xff]
      %v3447 = vld [vmem:[%s2645 + $0xfa] sm:$0xff]
      %v3448 = vld [vmem:[%s2645 + $0x10a] sm:$0xff]
      %v3449 = vld [vmem:[%s2645 + $0x112] sm:$0xff]
      %v3450 = vld [vmem:[%s2645 + $0x122] sm:$0xff]
      %v3451 = vld [vmem:[%s2645 + $0x12a] sm:$0xff]
      %v3452 = vld [vmem:[%s2645 + $0x13a] sm:$0xff]
      %v3453 = vld [vmem:[%s2645 + $0x142] sm:$0xff]
      %v3454 = vld [vmem:[%s2645 + $0x152] sm:$0xff]
      %v3455 = vld [vmem:[%s2645 + $0x15a] sm:$0xff]
      %v3456 = vld [vmem:[%s2645 + $0x16a] sm:$0xff]
      %v3457 = vld [vmem:[%s2645 + $0x172] sm:$0xff]
      %s3458 = scalar_lea.vmem %s1, 32
      %v3459 = vld [vmem:[%s3458] sm:$0xf]
      %v3461 = vsel %vm258, %v3426, 0
      %v3464 = vsel %vm258, %v3427, 0
      %v3467 = vsel %vm258, %v3428, 0
      %v3470 = vsel %vm258, %v3429, 0
      %v3473 = vsel %vm258, %v3430, 0
      %v3476 = vsel %vm258, %v3431, 0
      %v3479 = vsel %vm258, %v3432, 0
      %v3482 = vsel %vm258, %v3433, 0
      %v3485 = vsel %vm258, %v3434, 0
      %v3488 = vsel %vm258, %v3435, 0
      %v3491 = vsel %vm258, %v3436, 0
      %v3494 = vsel %vm258, %v3437, 0
      %v3497 = vsel %vm258, %v3438, 0
      %v3500 = vsel %vm258, %v3439, 0
      %v3503 = vsel %vm258, %v3440, 0
      %v3506 = vsel %vm258, %v3441, 0
      %v3509 = vsel %vm258, %v3442, 0
      %v3512 = vsel %vm258, %v3443, 0
      %v3515 = vsel %vm258, %v3444, 0
      %v3518 = vsel %vm258, %v3445, 0
      %v3521 = vsel %vm258, %v3446, 0
      %v3524 = vsel %vm258, %v3447, 0
      %v3527 = vsel %vm258, %v3448, 0
      %v3530 = vsel %vm258, %v3449, 0
      %v3533 = vsel %vm258, %v3450, 0
      %v3536 = vsel %vm258, %v3451, 0
      %v3539 = vsel %vm258, %v3452, 0
      %v3542 = vsel %vm258, %v3453, 0
      %v3545 = vsel %vm258, %v3454, 0
      %v3548 = vsel %vm258, %v3455, 0
      %v3551 = vsel %vm258, %v3456, 0
      %v3554 = vsel %vm258, %v3457, 0
      %v3557 = vsel %vm532, %v3459, 0
      %3559 = vmatprep.subr.mxu0 0.0
      %3560 = vmatpush1.msra.mxu0 0.0
      %3561 = vmatprep.subr.mxu0 0.0
      %3562 = vmatpush1.msra.mxu0 0.0
      %3563 = vmatprep.subr.mxu0 0.0
      %3564 = vmatpush1.msra.mxu0 0.0
      %3565 = vmatprep.subr.mxu0 0.0
      %3566 = vmatpush1.msra.mxu0 0.0
      %3567 = vmatprep.subr.mxu0 0.0
      %3568 = vmatpush1.msra.mxu0 0.0
      %3569 = vmatprep.subr.mxu0 0.0
      %3570 = vmatpush1.msra.mxu0 0.0
      %3571 = vmatprep.subr.mxu0 0.0
      %3572 = vmatpush1.msra.mxu0 0.0
      %3573 = vmatprep.subr.mxu0 0.0
      %3574 = vmatpush1.msra.mxu0 0.0
      %3575 = vmatprep.subr.mxu0 0.0
      %3576 = vmatpush1.msra.mxu0 0.0
      %3577 = vmatprep.subr.mxu0 0.0
      %3578 = vmatpush1.msra.mxu0 0.0
      %3579 = vmatprep.subr.mxu0 0.0
      %3580 = vmatpush1.msra.mxu0 0.0
      %3581 = vmatprep.subr.mxu0 0.0
      %3582 = vmatpush1.msra.mxu0 0.0
      %3583 = vmatprep.subr.mxu0 0.0
      %3584 = vmatpush1.msra.mxu0 0.0
      %3585 = vmatprep.subr.mxu0 0.0
      %3586 = vmatpush1.msra.mxu0 0.0
      %3587 = vmatprep.subr.mxu0 0.0
      %3588 = vmatpush1.msra.mxu0 0.0
      %3589 = vmatprep.subr.mxu0 0.0
      %3590 = vmatpush1.msra.mxu0 %v3557
      %3591 = vmatprep.subr.mxu0 0.0
      %3592 = vmatpush2.msra.mxu0 0.0
      %3593 = vmatprep.subr.mxu0 0.0
      %3594 = vmatpush2.msra.mxu0 0.0
      %3595 = vmatprep.subr.mxu0 0.0
      %3596 = vmatpush2.msra.mxu0 0.0
      %3597 = vmatprep.subr.mxu0 0.0
      %3598 = vmatpush2.msra.mxu0 0.0
      %3599 = vmatprep.subr.mxu0 0.0
      %3600 = vmatpush2.msra.mxu0 0.0
      %3601 = vmatprep.subr.mxu0 0.0
      %3602 = vmatpush2.msra.mxu0 0.0
      %3603 = vmatprep.subr.mxu0 0.0
      %3604 = vmatpush2.msra.mxu0 0.0
      %3605 = vmatprep.subr.mxu0 0.0
      %3606 = vmatpush2.msra.mxu0 0.0
      %3607 = vmatprep.subr.mxu0 0.0
      %3608 = vmatpush2.msra.mxu0 0.0
      %3609 = vmatprep.subr.mxu0 0.0
      %3610 = vmatpush2.msra.mxu0 0.0
      %3611 = vmatprep.subr.mxu0 0.0
      %3612 = vmatpush2.msra.mxu0 0.0
      %3613 = vmatprep.subr.mxu0 0.0
      %3614 = vmatpush2.msra.mxu0 0.0
      %3615 = vmatprep.subr.mxu0 0.0
      %3616 = vmatpush2.msra.mxu0 0.0
      %3617 = vmatprep.subr.mxu0 0.0
      %3618 = vmatpush2.msra.mxu0 0.0
      %3619 = vmatprep.subr.mxu0 0.0
      %3620 = vmatpush2.msra.mxu0 0.0
      %3621 = vmatprep.subr.mxu0 0.0
      %3622 = vmatpush2.msra.mxu0 0.0
      %3623 = vmatprep.mubr.f32.mxu0 0.0
      %3624 = vmatmul.mubr.f32.gmra.mxu0 %v3461
      %v3625 = vpop.f32.mrf.mxu0
      %v3626 = vadd.f32 0.0, %v3625
      %v3627 = vpop.f32.mrf.mxu0
      %3628 = vmatprep.mubr.f32.mxu0 0.0
      %3629 = vmatmul.mubr.f32.gmra.mxu0 %v3464
      %v3630 = vpop.f32.mrf.mxu0
      %v3631 = vadd.f32 0.0, %v3630
      %v3632 = vpop.f32.mrf.mxu0
      %3633 = vmatprep.mubr.f32.mxu0 0.0
      %3634 = vmatmul.mubr.f32.gmra.mxu0 %v3467
      %v3635 = vpop.f32.mrf.mxu0
      %v3636 = vadd.f32 0.0, %v3635
      %v3637 = vpop.f32.mrf.mxu0
      %3638 = vmatprep.mubr.f32.mxu0 0.0
      %3639 = vmatmul.mubr.f32.gmra.mxu0 %v3470
      %v3640 = vpop.f32.mrf.mxu0
      %v3641 = vadd.f32 0.0, %v3640
      %v3642 = vpop.f32.mrf.mxu0
      %3643 = vmatprep.mubr.f32.mxu0 0.0
      %3644 = vmatmul.mubr.f32.gmra.mxu0 %v3473
      %v3645 = vpop.f32.mrf.mxu0
      %v3646 = vadd.f32 0.0, %v3645
      %v3647 = vpop.f32.mrf.mxu0
      %3648 = vmatprep.mubr.f32.mxu0 0.0
      %3649 = vmatmul.mubr.f32.gmra.mxu0 %v3476
      %v3650 = vpop.f32.mrf.mxu0
      %v3651 = vadd.f32 0.0, %v3650
      %v3652 = vpop.f32.mrf.mxu0
      %3653 = vmatprep.mubr.f32.mxu0 0.0
      %3654 = vmatmul.mubr.f32.gmra.mxu0 %v3479
      %v3655 = vpop.f32.mrf.mxu0
      %v3656 = vadd.f32 0.0, %v3655
      %v3657 = vpop.f32.mrf.mxu0
      %3658 = vmatprep.mubr.f32.mxu0 0.0
      %3659 = vmatmul.mubr.f32.gmra.mxu0 %v3482
      %v3660 = vpop.f32.mrf.mxu0
      %v3661 = vadd.f32 0.0, %v3660
      %v3662 = vpop.f32.mrf.mxu0
      %3663 = vmatprep.mubr.f32.mxu0 0.0
      %3664 = vmatmul.mubr.f32.gmra.mxu0 %v3485
      %v3665 = vpop.f32.mrf.mxu0
      %v3666 = vadd.f32 0.0, %v3665
      %v3667 = vpop.f32.mrf.mxu0
      %3668 = vmatprep.mubr.f32.mxu0 0.0
      %3669 = vmatmul.mubr.f32.gmra.mxu0 %v3488
      %v3670 = vpop.f32.mrf.mxu0
      %v3671 = vadd.f32 0.0, %v3670
      %v3672 = vpop.f32.mrf.mxu0
      %3673 = vmatprep.mubr.f32.mxu0 0.0
      %3674 = vmatmul.mubr.f32.gmra.mxu0 %v3491
      %v3675 = vpop.f32.mrf.mxu0
      %v3676 = vadd.f32 0.0, %v3675
      %v3677 = vpop.f32.mrf.mxu0
      %3678 = vmatprep.mubr.f32.mxu0 0.0
      %3679 = vmatmul.mubr.f32.gmra.mxu0 %v3494
      %v3680 = vpop.f32.mrf.mxu0
      %v3681 = vadd.f32 0.0, %v3680
      %v3682 = vpop.f32.mrf.mxu0
      %3683 = vmatprep.mubr.f32.mxu0 0.0
      %3684 = vmatmul.mubr.f32.gmra.mxu0 %v3497
      %v3685 = vpop.f32.mrf.mxu0
      %v3686 = vadd.f32 0.0, %v3685
      %v3687 = vpop.f32.mrf.mxu0
      %3688 = vmatprep.mubr.f32.mxu0 0.0
      %3689 = vmatmul.mubr.f32.gmra.mxu0 %v3500
      %v3690 = vpop.f32.mrf.mxu0
      %v3691 = vadd.f32 0.0, %v3690
      %v3692 = vpop.f32.mrf.mxu0
      %3693 = vmatprep.mubr.f32.mxu0 0.0
      %3694 = vmatmul.mubr.f32.gmra.mxu0 %v3503
      %v3695 = vpop.f32.mrf.mxu0
      %v3696 = vadd.f32 0.0, %v3695
      %v3697 = vpop.f32.mrf.mxu0
      %3698 = vmatprep.mubr.f32.mxu0 0.0
      %3699 = vmatmul.mubr.f32.gmra.mxu0 %v3506
      %v3700 = vpop.f32.mrf.mxu0
      %v3701 = vadd.f32 0.0, %v3700
      %v3702 = vpop.f32.mrf.mxu0
      %3703 = vmatprep.mubr.f32.mxu0 0.0
      %3704 = vmatmul.mubr.f32.gmra.mxu0 %v3509
      %v3705 = vpop.f32.mrf.mxu0
      %v3706 = vadd.f32 0.0, %v3705
      %v3707 = vpop.f32.mrf.mxu0
      %3708 = vmatprep.mubr.f32.mxu0 0.0
      %3709 = vmatmul.mubr.f32.gmra.mxu0 %v3512
      %v3710 = vpop.f32.mrf.mxu0
      %v3711 = vadd.f32 0.0, %v3710
      %v3712 = vpop.f32.mrf.mxu0
      %3713 = vmatprep.mubr.f32.mxu0 0.0
      %3714 = vmatmul.mubr.f32.gmra.mxu0 %v3515
      %v3715 = vpop.f32.mrf.mxu0
      %v3716 = vadd.f32 0.0, %v3715
      %v3717 = vpop.f32.mrf.mxu0
      %3718 = vmatprep.mubr.f32.mxu0 0.0
      %3719 = vmatmul.mubr.f32.gmra.mxu0 %v3518
      %v3720 = vpop.f32.mrf.mxu0
      %v3721 = vadd.f32 0.0, %v3720
      %v3722 = vpop.f32.mrf.mxu0
      %3723 = vmatprep.mubr.f32.mxu0 0.0
      %3724 = vmatmul.mubr.f32.gmra.mxu0 %v3521
      %v3725 = vpop.f32.mrf.mxu0
      %v3726 = vadd.f32 0.0, %v3725
      %v3727 = vpop.f32.mrf.mxu0
      %3728 = vmatprep.mubr.f32.mxu0 0.0
      %3729 = vmatmul.mubr.f32.gmra.mxu0 %v3524
      %v3730 = vpop.f32.mrf.mxu0
      %v3731 = vadd.f32 0.0, %v3730
      %v3732 = vpop.f32.mrf.mxu0
      %3733 = vmatprep.mubr.f32.mxu0 0.0
      %3734 = vmatmul.mubr.f32.gmra.mxu0 %v3527
      %v3735 = vpop.f32.mrf.mxu0
      %v3736 = vadd.f32 0.0, %v3735
      %v3737 = vpop.f32.mrf.mxu0
      %3738 = vmatprep.mubr.f32.mxu0 0.0
      %3739 = vmatmul.mubr.f32.gmra.mxu0 %v3530
      %v3740 = vpop.f32.mrf.mxu0
      %v3741 = vadd.f32 0.0, %v3740
      %v3742 = vpop.f32.mrf.mxu0
      %3743 = vmatprep.mubr.f32.mxu0 0.0
      %3744 = vmatmul.mubr.f32.gmra.mxu0 %v3533
      %v3745 = vpop.f32.mrf.mxu0
      %v3746 = vadd.f32 0.0, %v3745
      %v3747 = vpop.f32.mrf.mxu0
      %3748 = vmatprep.mubr.f32.mxu0 0.0
      %3749 = vmatmul.mubr.f32.gmra.mxu0 %v3536
      %v3750 = vpop.f32.mrf.mxu0
      %v3751 = vadd.f32 0.0, %v3750
      %v3752 = vpop.f32.mrf.mxu0
      %3753 = vmatprep.mubr.f32.mxu0 0.0
      %3754 = vmatmul.mubr.f32.gmra.mxu0 %v3539
      %v3755 = vpop.f32.mrf.mxu0
      %v3756 = vadd.f32 0.0, %v3755
      %v3757 = vpop.f32.mrf.mxu0
      %3758 = vmatprep.mubr.f32.mxu0 0.0
      %3759 = vmatmul.mubr.f32.gmra.mxu0 %v3542
      %v3760 = vpop.f32.mrf.mxu0
      %v3761 = vadd.f32 0.0, %v3760
      %v3762 = vpop.f32.mrf.mxu0
      %3763 = vmatprep.mubr.f32.mxu0 0.0
      %3764 = vmatmul.mubr.f32.gmra.mxu0 %v3545
      %v3765 = vpop.f32.mrf.mxu0
      %v3766 = vadd.f32 0.0, %v3765
      %v3767 = vpop.f32.mrf.mxu0
      %3768 = vmatprep.mubr.f32.mxu0 0.0
      %3769 = vmatmul.mubr.f32.gmra.mxu0 %v3548
      %v3770 = vpop.f32.mrf.mxu0
      %v3771 = vadd.f32 0.0, %v3770
      %v3772 = vpop.f32.mrf.mxu0
      %3773 = vmatprep.mubr.f32.mxu0 0.0
      %3774 = vmatmul.mubr.f32.gmra.mxu0 %v3551
      %v3775 = vpop.f32.mrf.mxu0
      %v3776 = vadd.f32 0.0, %v3775
      %v3777 = vpop.f32.mrf.mxu0
      %3778 = vmatprep.mubr.f32.mxu0 0.0
      %3779 = vmatmul.mubr.f32.gmra.mxu0 %v3554
      %v3780 = vpop.f32.mrf.mxu0
      %v3781 = vadd.f32 0.0, %v3780
      %v3782 = vpop.f32.mrf.mxu0
      %3783 = vdwg.mxu0
      %v3784 = vadd.f32 %v3394, %v3626
      %v3785 = vadd.f32 %v3395, %v3631
      %v3786 = vadd.f32 %v3396, %v3636
      %v3787 = vadd.f32 %v3397, %v3641
      %v3788 = vadd.f32 %v3398, %v3646
      %v3789 = vadd.f32 %v3399, %v3651
      %v3790 = vadd.f32 %v3400, %v3656
      %v3791 = vadd.f32 %v3401, %v3661
      %v3792 = vadd.f32 %v3402, %v3666
      %v3793 = vadd.f32 %v3403, %v3671
      %v3794 = vadd.f32 %v3404, %v3676
      %v3795 = vadd.f32 %v3405, %v3681
      %v3796 = vadd.f32 %v3406, %v3686
      %v3797 = vadd.f32 %v3407, %v3691
      %v3798 = vadd.f32 %v3408, %v3696
      %v3799 = vadd.f32 %v3409, %v3701
      %v3800 = vadd.f32 %v3410, %v3706
      %v3801 = vadd.f32 %v3411, %v3711
      %v3802 = vadd.f32 %v3412, %v3716
      %v3803 = vadd.f32 %v3413, %v3721
      %v3804 = vadd.f32 %v3414, %v3726
      %v3805 = vadd.f32 %v3415, %v3731
      %v3806 = vadd.f32 %v3416, %v3736
      %v3807 = vadd.f32 %v3417, %v3741
      %v3808 = vadd.f32 %v3418, %v3746
      %v3809 = vadd.f32 %v3419, %v3751
      %v3810 = vadd.f32 %v3420, %v3756
      %v3811 = vadd.f32 %v3421, %v3761
      %v3812 = vadd.f32 %v3422, %v3766
      %v3813 = vadd.f32 %v3423, %v3771
      %v3814 = vadd.f32 %v3424, %v3776
      %v3815 = vadd.f32 %v3425, %v3781
      %v3816 = vld [vmem:[%s2] sm:$0x1]
      %v3818 = vlaneseq
      %v3819 = vshrl.u32 %v3818, 7
      %v3820 = vsub.s32 0, %v3819
      %v3821 = vrot.slane %v3816, %v3820
      %v3823 = vadd.f32 %v3784, %v3821
      %v3824 = vadd.f32 %v3785, %v3821
      %v3825 = vadd.f32 %v3786, %v3821
      %v3826 = vadd.f32 %v3787, %v3821
      %v3827 = vadd.f32 %v3788, %v3821
      %v3828 = vadd.f32 %v3789, %v3821
      %v3829 = vadd.f32 %v3790, %v3821
      %v3830 = vadd.f32 %v3791, %v3821
      %v3831 = vadd.f32 %v3792, %v3821
      %v3832 = vadd.f32 %v3793, %v3821
      %v3833 = vadd.f32 %v3794, %v3821
      %v3834 = vadd.f32 %v3795, %v3821
      %v3835 = vadd.f32 %v3796, %v3821
      %v3836 = vadd.f32 %v3797, %v3821
      %v3837 = vadd.f32 %v3798, %v3821
      %v3838 = vadd.f32 %v3799, %v3821
      %v3839 = vadd.f32 %v3800, %v3821
      %v3840 = vadd.f32 %v3801, %v3821
      %v3841 = vadd.f32 %v3802, %v3821
      %v3842 = vadd.f32 %v3803, %v3821
      %v3843 = vadd.f32 %v3804, %v3821
      %v3844 = vadd.f32 %v3805, %v3821
      %v3845 = vadd.f32 %v3806, %v3821
      %v3846 = vadd.f32 %v3807, %v3821
      %v3847 = vadd.f32 %v3808, %v3821
      %v3848 = vadd.f32 %v3809, %v3821
      %v3849 = vadd.f32 %v3810, %v3821
      %v3850 = vadd.f32 %v3811, %v3821
      %v3851 = vadd.f32 %v3812, %v3821
      %v3852 = vadd.f32 %v3813, %v3821
      %v3853 = vadd.f32 %v3814, %v3821
      %v3854 = vadd.f32 %v3815, %v3821
      %v3855 = vsel %vm258, %v3823, 0.0
      %v3856 = vsel %vm258, %v3824, 0.0
      %v3857 = vadd.f32 %v3855, %v3856
      %v3858 = vsel %vm258, %v3825, 0.0
      %v3859 = vadd.f32 %v3857, %v3858
      %v3860 = vsel %vm258, %v3826, 0.0
      %v3861 = vadd.f32 %v3859, %v3860
      %v3862 = vsel %vm258, %v3827, 0.0
      %v3863 = vadd.f32 %v3861, %v3862
      %v3864 = vsel %vm258, %v3828, 0.0
      %v3865 = vadd.f32 %v3863, %v3864
      %v3866 = vsel %vm258, %v3829, 0.0
      %v3867 = vadd.f32 %v3865, %v3866
      %v3868 = vsel %vm258, %v3830, 0.0
      %v3869 = vadd.f32 %v3867, %v3868
      %v3870 = vsel %vm258, %v3831, 0.0
      %v3871 = vadd.f32 %v3869, %v3870
      %v3872 = vsel %vm258, %v3832, 0.0
      %v3873 = vadd.f32 %v3871, %v3872
      %v3874 = vsel %vm258, %v3833, 0.0
      %v3875 = vadd.f32 %v3873, %v3874
      %v3876 = vsel %vm258, %v3834, 0.0
      %v3877 = vadd.f32 %v3875, %v3876
      %v3878 = vsel %vm258, %v3835, 0.0
      %v3879 = vadd.f32 %v3877, %v3878
      %v3880 = vsel %vm258, %v3836, 0.0
      %v3881 = vadd.f32 %v3879, %v3880
      %v3882 = vsel %vm258, %v3837, 0.0
      %v3883 = vadd.f32 %v3881, %v3882
      %v3884 = vsel %vm258, %v3838, 0.0
      %v3885 = vadd.f32 %v3883, %v3884
      %v3886 = vsel %vm258, %v3839, 0.0
      %v3887 = vadd.f32 %v3885, %v3886
      %v3888 = vsel %vm258, %v3840, 0.0
      %v3889 = vadd.f32 %v3887, %v3888
      %v3890 = vsel %vm258, %v3841, 0.0
      %v3891 = vadd.f32 %v3889, %v3890
      %v3892 = vsel %vm258, %v3842, 0.0
      %v3893 = vadd.f32 %v3891, %v3892
      %v3894 = vsel %vm258, %v3843, 0.0
      %v3895 = vadd.f32 %v3893, %v3894
      %v3896 = vsel %vm258, %v3844, 0.0
      %v3897 = vadd.f32 %v3895, %v3896
      %v3898 = vsel %vm258, %v3845, 0.0
      %v3899 = vadd.f32 %v3897, %v3898
      %v3900 = vsel %vm258, %v3846, 0.0
      %v3901 = vadd.f32 %v3899, %v3900
      %v3902 = vsel %vm258, %v3847, 0.0
      %v3903 = vadd.f32 %v3901, %v3902
      %v3904 = vsel %vm258, %v3848, 0.0
      %v3905 = vadd.f32 %v3903, %v3904
      %v3906 = vsel %vm258, %v3849, 0.0
      %v3907 = vadd.f32 %v3905, %v3906
      %v3908 = vsel %vm258, %v3850, 0.0
      %v3909 = vadd.f32 %v3907, %v3908
      %v3910 = vsel %vm258, %v3851, 0.0
      %v3911 = vadd.f32 %v3909, %v3910
      %v3912 = vsel %vm258, %v3852, 0.0
      %v3913 = vadd.f32 %v3911, %v3912
      %v3914 = vsel %vm258, %v3853, 0.0
      %v3915 = vadd.f32 %v3913, %v3914
      %v3916 = vsel %vm258, %v3854, 0.0
      %v3917 = vadd.f32 %v3915, %v3916
      %v3918 = vrot.slane %v3917, 4
      %v3919 = vadd.f32 %v3917, %v3918
      %v3920 = vrot.slane %v3919, 2
      %v3921 = vadd.f32 %v3919, %v3920
      %v3922 = vrot.slane %v3921, 1
      %v3923 = vadd.f32 %v3921, %v3922
      %v3924 = vmul.f32 %v3823, %v3823
      %v3925 = vmul.f32 %v3824, %v3824
      %v3926 = vmul.f32 %v3825, %v3825
      %v3927 = vmul.f32 %v3826, %v3826
      %v3928 = vmul.f32 %v3827, %v3827
      %v3929 = vmul.f32 %v3828, %v3828
      %v3930 = vmul.f32 %v3829, %v3829
      %v3931 = vmul.f32 %v3830, %v3830
      %v3932 = vmul.f32 %v3831, %v3831
      %v3933 = vmul.f32 %v3832, %v3832
      %v3934 = vmul.f32 %v3833, %v3833
      %v3935 = vmul.f32 %v3834, %v3834
      %v3936 = vmul.f32 %v3835, %v3835
      %v3937 = vmul.f32 %v3836, %v3836
      %v3938 = vmul.f32 %v3837, %v3837
      %v3939 = vmul.f32 %v3838, %v3838
      %v3940 = vmul.f32 %v3839, %v3839
      %v3941 = vmul.f32 %v3840, %v3840
      %v3942 = vmul.f32 %v3841, %v3841
      %v3943 = vmul.f32 %v3842, %v3842
      %v3944 = vmul.f32 %v3843, %v3843
      %v3945 = vmul.f32 %v3844, %v3844
      %v3946 = vmul.f32 %v3845, %v3845
      %v3947 = vmul.f32 %v3846, %v3846
      %v3948 = vmul.f32 %v3847, %v3847
      %v3949 = vmul.f32 %v3848, %v3848
      %v3950 = vmul.f32 %v3849, %v3849
      %v3951 = vmul.f32 %v3850, %v3850
      %v3952 = vmul.f32 %v3851, %v3851
      %v3953 = vmul.f32 %v3852, %v3852
      %v3954 = vmul.f32 %v3853, %v3853
      %v3955 = vmul.f32 %v3854, %v3854
      %v3956 = vsel %vm258, %v3924, 0.0
      %v3957 = vsel %vm258, %v3925, 0.0
      %v3958 = vadd.f32 %v3956, %v3957
      %v3959 = vsel %vm258, %v3926, 0.0
      %v3960 = vadd.f32 %v3958, %v3959
      %v3961 = vsel %vm258, %v3927, 0.0
      %v3962 = vadd.f32 %v3960, %v3961
      %v3963 = vsel %vm258, %v3928, 0.0
      %v3964 = vadd.f32 %v3962, %v3963
      %v3965 = vsel %vm258, %v3929, 0.0
      %v3966 = vadd.f32 %v3964, %v3965
      %v3967 = vsel %vm258, %v3930, 0.0
      %v3968 = vadd.f32 %v3966, %v3967
      %v3969 = vsel %vm258, %v3931, 0.0
      %v3970 = vadd.f32 %v3968, %v3969
      %v3971 = vsel %vm258, %v3932, 0.0
      %v3972 = vadd.f32 %v3970, %v3971
      %v3973 = vsel %vm258, %v3933, 0.0
      %v3974 = vadd.f32 %v3972, %v3973
      %v3975 = vsel %vm258, %v3934, 0.0
      %v3976 = vadd.f32 %v3974, %v3975
      %v3977 = vsel %vm258, %v3935, 0.0
      %v3978 = vadd.f32 %v3976, %v3977
      %v3979 = vsel %vm258, %v3936, 0.0
      %v3980 = vadd.f32 %v3978, %v3979
      %v3981 = vsel %vm258, %v3937, 0.0
      %v3982 = vadd.f32 %v3980, %v3981
      %v3983 = vsel %vm258, %v3938, 0.0
      %v3984 = vadd.f32 %v3982, %v3983
      %v3985 = vsel %vm258, %v3939, 0.0
      %v3986 = vadd.f32 %v3984, %v3985
      %v3987 = vsel %vm258, %v3940, 0.0
      %v3988 = vadd.f32 %v3986, %v3987
      %v3989 = vsel %vm258, %v3941, 0.0
      %v3990 = vadd.f32 %v3988, %v3989
      %v3991 = vsel %vm258, %v3942, 0.0
      %v3992 = vadd.f32 %v3990, %v3991
      %v3993 = vsel %vm258, %v3943, 0.0
      %v3994 = vadd.f32 %v3992, %v3993
      %v3995 = vsel %vm258, %v3944, 0.0
      %v3996 = vadd.f32 %v3994, %v3995
      %v3997 = vsel %vm258, %v3945, 0.0
      %v3998 = vadd.f32 %v3996, %v3997
      %v3999 = vsel %vm258, %v3946, 0.0
      %v4000 = vadd.f32 %v3998, %v3999
      %v4001 = vsel %vm258, %v3947, 0.0
      %v4002 = vadd.f32 %v4000, %v4001
      %v4003 = vsel %vm258, %v3948, 0.0
      %v4004 = vadd.f32 %v4002, %v4003
      %v4005 = vsel %vm258, %v3949, 0.0
      %v4006 = vadd.f32 %v4004, %v4005
      %v4007 = vsel %vm258, %v3950, 0.0
      %v4008 = vadd.f32 %v4006, %v4007
      %v4009 = vsel %vm258, %v3951, 0.0
      %v4010 = vadd.f32 %v4008, %v4009
      %v4011 = vsel %vm258, %v3952, 0.0
      %v4012 = vadd.f32 %v4010, %v4011
      %v4013 = vsel %vm258, %v3953, 0.0
      %v4014 = vadd.f32 %v4012, %v4013
      %v4015 = vsel %vm258, %v3954, 0.0
      %v4016 = vadd.f32 %v4014, %v4015
      %v4017 = vsel %vm258, %v3955, 0.0
      %v4018 = vadd.f32 %v4016, %v4017
      %v4019 = vrot.slane %v4018, 4
      %v4020 = vadd.f32 %v4018, %v4019
      %v4021 = vrot.slane %v4020, 2
      %v4022 = vadd.f32 %v4020, %v4021
      %v4023 = vrot.slane %v4022, 1
      %v4024 = vadd.f32 %v4022, %v4023
      %v4025 = vmul.f32 %v3923, 0.00390625
      %v4026 = vmul.f32 %v4024, 0.00390625
      %v4027 = vmul.f32 %v4025, %v4025
      %v4028 = vsub.f32 %v4026, %v4027
      %v4029 = vsub.f32 %v3823, %v4025
      %v4030 = vsub.f32 %v3824, %v4025
      %v4031 = vsub.f32 %v3825, %v4025
      %v4032 = vsub.f32 %v3826, %v4025
      %v4033 = vsub.f32 %v3827, %v4025
      %v4034 = vsub.f32 %v3828, %v4025
      %v4035 = vsub.f32 %v3829, %v4025
      %v4036 = vsub.f32 %v3830, %v4025
      %v4037 = vsub.f32 %v3831, %v4025
      %v4038 = vsub.f32 %v3832, %v4025
      %v4039 = vsub.f32 %v3833, %v4025
      %v4040 = vsub.f32 %v3834, %v4025
      %v4041 = vsub.f32 %v3835, %v4025
      %v4042 = vsub.f32 %v3836, %v4025
      %v4043 = vsub.f32 %v3837, %v4025
      %v4044 = vsub.f32 %v3838, %v4025
      %v4045 = vsub.f32 %v3839, %v4025
      %v4046 = vsub.f32 %v3840, %v4025
      %v4047 = vsub.f32 %v3841, %v4025
      %v4048 = vsub.f32 %v3842, %v4025
      %v4049 = vsub.f32 %v3843, %v4025
      %v4050 = vsub.f32 %v3844, %v4025
      %v4051 = vsub.f32 %v3845, %v4025
      %v4052 = vsub.f32 %v3846, %v4025
      %v4053 = vsub.f32 %v3847, %v4025
      %v4054 = vsub.f32 %v3848, %v4025
      %v4055 = vsub.f32 %v3849, %v4025
      %v4056 = vsub.f32 %v3850, %v4025
      %v4057 = vsub.f32 %v3851, %v4025
      %v4058 = vsub.f32 %v3852, %v4025
      %v4059 = vsub.f32 %v3853, %v4025
      %v4060 = vsub.f32 %v3854, %v4025
      %v4061 = vadd.f32 %v4028, 1e-05
      %v4062 = vrsqrt.pop %v4061
      %v4063 = vmul.f32 %v4029, %v4062
      %v4064 = vmul.f32 %v4030, %v4062
      %v4065 = vmul.f32 %v4031, %v4062
      %v4066 = vmul.f32 %v4032, %v4062
      %v4067 = vmul.f32 %v4033, %v4062
      %v4068 = vmul.f32 %v4034, %v4062
      %v4069 = vmul.f32 %v4035, %v4062
      %v4070 = vmul.f32 %v4036, %v4062
      %v4071 = vmul.f32 %v4037, %v4062
      %v4072 = vmul.f32 %v4038, %v4062
      %v4073 = vmul.f32 %v4039, %v4062
      %v4074 = vmul.f32 %v4040, %v4062
      %v4075 = vmul.f32 %v4041, %v4062
      %v4076 = vmul.f32 %v4042, %v4062
      %v4077 = vmul.f32 %v4043, %v4062
      %v4078 = vmul.f32 %v4044, %v4062
      %v4079 = vmul.f32 %v4045, %v4062
      %v4080 = vmul.f32 %v4046, %v4062
      %v4081 = vmul.f32 %v4047, %v4062
      %v4082 = vmul.f32 %v4048, %v4062
      %v4083 = vmul.f32 %v4049, %v4062
      %v4084 = vmul.f32 %v4050, %v4062
      %v4085 = vmul.f32 %v4051, %v4062
      %v4086 = vmul.f32 %v4052, %v4062
      %v4087 = vmul.f32 %v4053, %v4062
      %v4088 = vmul.f32 %v4054, %v4062
      %v4089 = vmul.f32 %v4055, %v4062
      %v4090 = vmul.f32 %v4056, %v4062
      %v4091 = vmul.f32 %v4057, %v4062
      %v4092 = vmul.f32 %v4058, %v4062
      %v4093 = vmul.f32 %v4059, %v4062
      %v4094 = vmul.f32 %v4060, %v4062
      %v4095 = vmax.f32 %v4063, 0.0
      %v4096 = vmax.f32 %v4064, 0.0
      %v4097 = vmax.f32 %v4065, 0.0
      %v4098 = vmax.f32 %v4066, 0.0
      %v4099 = vmax.f32 %v4067, 0.0
      %v4100 = vmax.f32 %v4068, 0.0
      %v4101 = vmax.f32 %v4069, 0.0
      %v4102 = vmax.f32 %v4070, 0.0
      %v4103 = vmax.f32 %v4071, 0.0
      %v4104 = vmax.f32 %v4072, 0.0
      %v4105 = vmax.f32 %v4073, 0.0
      %v4106 = vmax.f32 %v4074, 0.0
      %v4107 = vmax.f32 %v4075, 0.0
      %v4108 = vmax.f32 %v4076, 0.0
      %v4109 = vmax.f32 %v4077, 0.0
      %v4110 = vmax.f32 %v4078, 0.0
      %v4111 = vmax.f32 %v4079, 0.0
      %v4112 = vmax.f32 %v4080, 0.0
      %v4113 = vmax.f32 %v4081, 0.0
      %v4114 = vmax.f32 %v4082, 0.0
      %v4115 = vmax.f32 %v4083, 0.0
      %v4116 = vmax.f32 %v4084, 0.0
      %v4117 = vmax.f32 %v4085, 0.0
      %v4118 = vmax.f32 %v4086, 0.0
      %v4119 = vmax.f32 %v4087, 0.0
      %v4120 = vmax.f32 %v4088, 0.0
      %v4121 = vmax.f32 %v4089, 0.0
      %v4122 = vmax.f32 %v4090, 0.0
      %v4123 = vmax.f32 %v4091, 0.0
      %v4124 = vmax.f32 %v4092, 0.0
      %v4125 = vmax.f32 %v4093, 0.0
      %v4126 = vmax.f32 %v4094, 0.0
      %4127 = vst.msk [vmem:[%s257 + $0x1] sm:$0xff] %vm258, %v4095
      %4128 = vst.msk [vmem:[%s257 + $0x9] sm:$0xff] %vm258, %v4096
      %4129 = vst.msk [vmem:[%s257 + $0x19] sm:$0xff] %vm258, %v4097
      %4130 = vst.msk [vmem:[%s257 + $0x21] sm:$0xff] %vm258, %v4098
      %4131 = vst.msk [vmem:[%s257 + $0x31] sm:$0xff] %vm258, %v4099
      %4132 = vst.msk [vmem:[%s257 + $0x39] sm:$0xff] %vm258, %v4100
      %4133 = vst.msk [vmem:[%s257 + $0x49] sm:$0xff] %vm258, %v4101
      %4134 = vst.msk [vmem:[%s257 + $0x51] sm:$0xff] %vm258, %v4102
      %4135 = vst.msk [vmem:[%s257 + $0x61] sm:$0xff] %vm258, %v4103
      %4136 = vst.msk [vmem:[%s257 + $0x69] sm:$0xff] %vm258, %v4104
      %4137 = vst.msk [vmem:[%s257 + $0x79] sm:$0xff] %vm258, %v4105
      %4138 = vst.msk [vmem:[%s257 + $0x81] sm:$0xff] %vm258, %v4106
      %4139 = vst.msk [vmem:[%s257 + $0x91] sm:$0xff] %vm258, %v4107
      %4140 = vst.msk [vmem:[%s257 + $0x99] sm:$0xff] %vm258, %v4108
      %4141 = vst.msk [vmem:[%s257 + $0xa9] sm:$0xff] %vm258, %v4109
      %4142 = vst.msk [vmem:[%s257 + $0xb1] sm:$0xff] %vm258, %v4110
      %4143 = vst.msk [vmem:[%s257 + $0xc1] sm:$0xff] %vm258, %v4111
      %4144 = vst.msk [vmem:[%s257 + $0xc9] sm:$0xff] %vm258, %v4112
      %4145 = vst.msk [vmem:[%s257 + $0xd9] sm:$0xff] %vm258, %v4113
      %4146 = vst.msk [vmem:[%s257 + $0xe1] sm:$0xff] %vm258, %v4114
      %4147 = vst.msk [vmem:[%s257 + $0xf1] sm:$0xff] %vm258, %v4115
      %4148 = vst.msk [vmem:[%s257 + $0xf9] sm:$0xff] %vm258, %v4116
      %4149 = vst.msk [vmem:[%s257 + $0x109] sm:$0xff] %vm258, %v4117
      %4150 = vst.msk [vmem:[%s257 + $0x111] sm:$0xff] %vm258, %v4118
      %4151 = vst.msk [vmem:[%s257 + $0x121] sm:$0xff] %vm258, %v4119
      %4152 = vst.msk [vmem:[%s257 + $0x129] sm:$0xff] %vm258, %v4120
      %4153 = vst.msk [vmem:[%s257 + $0x139] sm:$0xff] %vm258, %v4121
      %4154 = vst.msk [vmem:[%s257 + $0x141] sm:$0xff] %vm258, %v4122
      %4155 = vst.msk [vmem:[%s257 + $0x151] sm:$0xff] %vm258, %v4123
      %4156 = vst.msk [vmem:[%s257 + $0x159] sm:$0xff] %vm258, %v4124
      %4157 = vst.msk [vmem:[%s257 + $0x169] sm:$0xff] %vm258, %v4125
      %4158 = vst.msk [vmem:[%s257 + $0x171] sm:$0xff] %vm258, %v4126
      %4159 = vst.msk [vmem:[#allocation2 + $0x1] sm:$0xff] %vm258, %v4097
      %4160 = vst.msk [vmem:[#allocation2 + $0x9] sm:$0xff] %vm258, %v4098
      %4161 = vst.msk [vmem:[%s293 + $0x1] sm:$0xff] %vm258, %v4123
      %4162 = vst.msk [vmem:[%s293 + $0x9] sm:$0xff] %vm258, %v4124
      %v4163 = vld [vmem:[#allocation2 + $0x2] sm:$0x1]
      %v4164 = vld [vmem:[#allocation2 + $0x1a] sm:$0x1]
      %v4165 = vld [vmem:[#allocation2 + $0x32] sm:$0x1]
      %v4166 = vld [vmem:[#allocation2 + $0x4a] sm:$0x1]
      %v4167 = vld [vmem:[#allocation2 + $0x62] sm:$0x1]
      %v4168 = vld [vmem:[#allocation2 + $0x7a] sm:$0x1]
      %v4169 = vld [vmem:[#allocation2 + $0x92] sm:$0x1]
      %v4170 = vld [vmem:[#allocation2 + $0xaa] sm:$0x1]
      %v4171 = vld [vmem:[#allocation2 + $0xc2] sm:$0x1]
      %v4172 = vld [vmem:[#allocation2 + $0xda] sm:$0x1]
      %v4173 = vld [vmem:[#allocation2 + $0xf2] sm:$0x1]
      %v4174 = vld [vmem:[#allocation2 + $0x10a] sm:$0x1]
      %v4175 = vld [vmem:[#allocation2 + $0x122] sm:$0x1]
      %v4176 = vld [vmem:[#allocation2 + $0x13a] sm:$0x1]
      %v4177 = vld [vmem:[#allocation2 + $0x152] sm:$0x1]
      %v4178 = vld [vmem:[#allocation2 + $0x16a] sm:$0x1]
      %v4179 = vld [vmem:[#allocation2 + $0x182] sm:$0x1]
      %v4180 = vld [vmem:[#allocation2 + $0x19a] sm:$0x1]
      %4181 = vst.msk [vmem:[#allocation2] sm:$0x1] %vm314, %v4163
      %4182 = vst.msk [vmem:[#allocation2 + $0x18] sm:$0x1] %vm314, %v4164
      %4183 = vst.msk [vmem:[#allocation2 + $0x30] sm:$0x1] %vm314, %v4165
      %4184 = vst.msk [vmem:[#allocation2 + $0x48] sm:$0x1] %vm314, %v4166
      %4185 = vst.msk [vmem:[#allocation2 + $0x60] sm:$0x1] %vm314, %v4167
      %4186 = vst.msk [vmem:[#allocation2 + $0x78] sm:$0x1] %vm314, %v4168
      %4187 = vst.msk [vmem:[#allocation2 + $0x90] sm:$0x1] %vm314, %v4169
      %4188 = vst.msk [vmem:[#allocation2 + $0xa8] sm:$0x1] %vm314, %v4170
      %4189 = vst.msk [vmem:[#allocation2 + $0xc0] sm:$0x1] %vm314, %v4171
      %4190 = vst.msk [vmem:[#allocation2 + $0xd8] sm:$0x1] %vm314, %v4172
      %4191 = vst.msk [vmem:[#allocation2 + $0xf0] sm:$0x1] %vm314, %v4173
      %4192 = vst.msk [vmem:[#allocation2 + $0x108] sm:$0x1] %vm314, %v4174
      %4193 = vst.msk [vmem:[#allocation2 + $0x120] sm:$0x1] %vm314, %v4175
      %4194 = vst.msk [vmem:[#allocation2 + $0x138] sm:$0x1] %vm314, %v4176
      %4195 = vst.msk [vmem:[#allocation2 + $0x150] sm:$0x1] %vm314, %v4177
      %4196 = vst.msk [vmem:[#allocation2 + $0x168] sm:$0x1] %vm314, %v4178
      %4197 = vst.msk [vmem:[#allocation2 + $0x180] sm:$0x1] %vm314, %v4179
      %4198 = vst.msk [vmem:[#allocation2 + $0x198] sm:$0x1] %vm314, %v4180
      %v4199 = vld [vmem:[#allocation2 + $0xf] sm:$0x1]
      %v4200 = vld [vmem:[#allocation2 + $0x27] sm:$0x1]
      %v4201 = vld [vmem:[#allocation2 + $0x3f] sm:$0x1]
      %v4202 = vld [vmem:[#allocation2 + $0x57] sm:$0x1]
      %v4203 = vld [vmem:[#allocation2 + $0x6f] sm:$0x1]
      %v4204 = vld [vmem:[#allocation2 + $0x87] sm:$0x1]
      %v4205 = vld [vmem:[#allocation2 + $0x9f] sm:$0x1]
      %v4206 = vld [vmem:[#allocation2 + $0xb7] sm:$0x1]
      %v4207 = vld [vmem:[#allocation2 + $0xcf] sm:$0x1]
      %v4208 = vld [vmem:[#allocation2 + $0xe7] sm:$0x1]
      %v4209 = vld [vmem:[#allocation2 + $0xff] sm:$0x1]
      %v4210 = vld [vmem:[#allocation2 + $0x117] sm:$0x1]
      %v4211 = vld [vmem:[#allocation2 + $0x12f] sm:$0x1]
      %v4212 = vld [vmem:[#allocation2 + $0x147] sm:$0x1]
      %v4213 = vld [vmem:[#allocation2 + $0x15f] sm:$0x1]
      %v4214 = vld [vmem:[#allocation2 + $0x177] sm:$0x1]
      %v4215 = vld [vmem:[#allocation2 + $0x18f] sm:$0x1]
      %v4216 = vld [vmem:[#allocation2 + $0x1a7] sm:$0x1]
      %4217 = vst.msk [vmem:[#allocation2 + $0x11] sm:$0x1] %vm314, %v4199
      %4218 = vst.msk [vmem:[#allocation2 + $0x29] sm:$0x1] %vm314, %v4200
      %4219 = vst.msk [vmem:[#allocation2 + $0x41] sm:$0x1] %vm314, %v4201
      %4220 = vst.msk [vmem:[#allocation2 + $0x59] sm:$0x1] %vm314, %v4202
      %4221 = vst.msk [vmem:[#allocation2 + $0x71] sm:$0x1] %vm314, %v4203
      %4222 = vst.msk [vmem:[#allocation2 + $0x89] sm:$0x1] %vm314, %v4204
      %4223 = vst.msk [vmem:[#allocation2 + $0xa1] sm:$0x1] %vm314, %v4205
      %4224 = vst.msk [vmem:[#allocation2 + $0xb9] sm:$0x1] %vm314, %v4206
      %4225 = vst.msk [vmem:[#allocation2 + $0xd1] sm:$0x1] %vm314, %v4207
      %4226 = vst.msk [vmem:[#allocation2 + $0xe9] sm:$0x1] %vm314, %v4208
      %4227 = vst.msk [vmem:[#allocation2 + $0x101] sm:$0x1] %vm314, %v4209
      %4228 = vst.msk [vmem:[#allocation2 + $0x119] sm:$0x1] %vm314, %v4210
      %4229 = vst.msk [vmem:[#allocation2 + $0x131] sm:$0x1] %vm314, %v4211
      %4230 = vst.msk [vmem:[#allocation2 + $0x149] sm:$0x1] %vm314, %v4212
      %4231 = vst.msk [vmem:[#allocation2 + $0x161] sm:$0x1] %vm314, %v4213
      %4232 = vst.msk [vmem:[#allocation2 + $0x179] sm:$0x1] %vm314, %v4214
      %4233 = vst.msk [vmem:[#allocation2 + $0x191] sm:$0x1] %vm314, %v4215
      %4234 = vst.msk [vmem:[#allocation2 + $0x1a9] sm:$0x1] %vm314, %v4216
      %v4235 = vld [vmem:[#allocation2] sm:$0xff]
      %v4236 = vld [vmem:[#allocation2 + $0x8] sm:$0xff]
      %v4237 = vld [vmem:[#allocation2 + $0x18] sm:$0xff]
      %v4238 = vld [vmem:[#allocation2 + $0x20] sm:$0xff]
      %v4239 = vld [vmem:[#allocation2 + $0x30] sm:$0xff]
      %v4240 = vld [vmem:[#allocation2 + $0x38] sm:$0xff]
      %v4241 = vld [vmem:[#allocation2 + $0x48] sm:$0xff]
      %v4242 = vld [vmem:[#allocation2 + $0x50] sm:$0xff]
      %v4243 = vld [vmem:[#allocation2 + $0x60] sm:$0xff]
      %v4244 = vld [vmem:[#allocation2 + $0x68] sm:$0xff]
      %v4245 = vld [vmem:[#allocation2 + $0x78] sm:$0xff]
      %v4246 = vld [vmem:[#allocation2 + $0x80] sm:$0xff]
      %v4247 = vld [vmem:[#allocation2 + $0x90] sm:$0xff]
      %v4248 = vld [vmem:[#allocation2 + $0x98] sm:$0xff]
      %v4249 = vld [vmem:[#allocation2 + $0xa8] sm:$0xff]
      %v4250 = vld [vmem:[#allocation2 + $0xb0] sm:$0xff]
      %v4251 = vld [vmem:[#allocation2 + $0xc0] sm:$0xff]
      %v4252 = vld [vmem:[#allocation2 + $0xc8] sm:$0xff]
      %v4253 = vld [vmem:[#allocation2 + $0xd8] sm:$0xff]
      %v4254 = vld [vmem:[#allocation2 + $0xe0] sm:$0xff]
      %v4255 = vld [vmem:[#allocation2 + $0xf0] sm:$0xff]
      %v4256 = vld [vmem:[#allocation2 + $0xf8] sm:$0xff]
      %v4257 = vld [vmem:[#allocation2 + $0x108] sm:$0xff]
      %v4258 = vld [vmem:[#allocation2 + $0x110] sm:$0xff]
      %v4259 = vld [vmem:[#allocation2 + $0x120] sm:$0xff]
      %v4260 = vld [vmem:[#allocation2 + $0x128] sm:$0xff]
      %v4261 = vld [vmem:[#allocation2 + $0x138] sm:$0xff]
      %v4262 = vld [vmem:[#allocation2 + $0x140] sm:$0xff]
      %v4263 = vld [vmem:[#allocation2 + $0x150] sm:$0xff]
      %v4264 = vld [vmem:[#allocation2 + $0x158] sm:$0xff]
      %v4265 = vld [vmem:[#allocation2 + $0x168] sm:$0xff]
      %v4266 = vld [vmem:[#allocation2 + $0x170] sm:$0xff]
      %v4267 = vld [vmem:[%s3] sm:$0xf]
      %v4268 = vld [vmem:[#allocation2 + $0x1] sm:$0xff]
      %v4269 = vld [vmem:[#allocation2 + $0x9] sm:$0xff]
      %v4270 = vld [vmem:[#allocation2 + $0x19] sm:$0xff]
      %v4271 = vld [vmem:[#allocation2 + $0x21] sm:$0xff]
      %v4272 = vld [vmem:[#allocation2 + $0x31] sm:$0xff]
      %v4273 = vld [vmem:[#allocation2 + $0x39] sm:$0xff]
      %v4274 = vld [vmem:[#allocation2 + $0x49] sm:$0xff]
      %v4275 = vld [vmem:[#allocation2 + $0x51] sm:$0xff]
      %v4276 = vld [vmem:[#allocation2 + $0x61] sm:$0xff]
      %v4277 = vld [vmem:[#allocation2 + $0x69] sm:$0xff]
      %v4278 = vld [vmem:[#allocation2 + $0x79] sm:$0xff]
      %v4279 = vld [vmem:[#allocation2 + $0x81] sm:$0xff]
      %v4280 = vld [vmem:[#allocation2 + $0x91] sm:$0xff]
      %v4281 = vld [vmem:[#allocation2 + $0x99] sm:$0xff]
      %v4282 = vld [vmem:[#allocation2 + $0xa9] sm:$0xff]
      %v4283 = vld [vmem:[#allocation2 + $0xb1] sm:$0xff]
      %v4284 = vld [vmem:[#allocation2 + $0xc1] sm:$0xff]
      %v4285 = vld [vmem:[#allocation2 + $0xc9] sm:$0xff]
      %v4286 = vld [vmem:[#allocation2 + $0xd9] sm:$0xff]
      %v4287 = vld [vmem:[#allocation2 + $0xe1] sm:$0xff]
      %v4288 = vld [vmem:[#allocation2 + $0xf1] sm:$0xff]
      %v4289 = vld [vmem:[#allocation2 + $0xf9] sm:$0xff]
      %v4290 = vld [vmem:[#allocation2 + $0x109] sm:$0xff]
      %v4291 = vld [vmem:[#allocation2 + $0x111] sm:$0xff]
      %v4292 = vld [vmem:[#allocation2 + $0x121] sm:$0xff]
      %v4293 = vld [vmem:[#allocation2 + $0x129] sm:$0xff]
      %v4294 = vld [vmem:[#allocation2 + $0x139] sm:$0xff]
      %v4295 = vld [vmem:[#allocation2 + $0x141] sm:$0xff]
      %v4296 = vld [vmem:[#allocation2 + $0x151] sm:$0xff]
      %v4297 = vld [vmem:[#allocation2 + $0x159] sm:$0xff]
      %v4298 = vld [vmem:[#allocation2 + $0x169] sm:$0xff]
      %v4299 = vld [vmem:[#allocation2 + $0x171] sm:$0xff]
      %s4300 = scalar_lea.vmem %s3, 4
      %v4301 = vld [vmem:[%s4300] sm:$0xf]
      %v4303 = vsel %vm258, %v4268, 0
      %v4306 = vsel %vm258, %v4269, 0
      %v4309 = vsel %vm258, %v4270, 0
      %v4312 = vsel %vm258, %v4271, 0
      %v4315 = vsel %vm258, %v4272, 0
      %v4318 = vsel %vm258, %v4273, 0
      %v4321 = vsel %vm258, %v4274, 0
      %v4324 = vsel %vm258, %v4275, 0
      %v4327 = vsel %vm258, %v4276, 0
      %v4330 = vsel %vm258, %v4277, 0
      %v4333 = vsel %vm258, %v4278, 0
      %v4336 = vsel %vm258, %v4279, 0
      %v4339 = vsel %vm258, %v4280, 0
      %v4342 = vsel %vm258, %v4281, 0
      %v4345 = vsel %vm258, %v4282, 0
      %v4348 = vsel %vm258, %v4283, 0
      %v4351 = vsel %vm258, %v4284, 0
      %v4354 = vsel %vm258, %v4285, 0
      %v4357 = vsel %vm258, %v4286, 0
      %v4360 = vsel %vm258, %v4287, 0
      %v4363 = vsel %vm258, %v4288, 0
      %v4366 = vsel %vm258, %v4289, 0
      %v4369 = vsel %vm258, %v4290, 0
      %v4372 = vsel %vm258, %v4291, 0
      %v4375 = vsel %vm258, %v4292, 0
      %v4378 = vsel %vm258, %v4293, 0
      %v4381 = vsel %vm258, %v4294, 0
      %v4384 = vsel %vm258, %v4295, 0
      %v4387 = vsel %vm258, %v4296, 0
      %v4390 = vsel %vm258, %v4297, 0
      %v4393 = vsel %vm258, %v4298, 0
      %v4396 = vsel %vm258, %v4299, 0
      %v4399 = vsel %vm532, %v4301, 0
      %4401 = vmatprep.subr.mxu0 0.0
      %4402 = vmatpush1.msra.mxu0 0.0
      %4403 = vmatprep.subr.mxu0 0.0
      %4404 = vmatpush1.msra.mxu0 0.0
      %4405 = vmatprep.subr.mxu0 0.0
      %4406 = vmatpush1.msra.mxu0 0.0
      %4407 = vmatprep.subr.mxu0 0.0
      %4408 = vmatpush1.msra.mxu0 0.0
      %4409 = vmatprep.subr.mxu0 0.0
      %4410 = vmatpush1.msra.mxu0 0.0
      %4411 = vmatprep.subr.mxu0 0.0
      %4412 = vmatpush1.msra.mxu0 0.0
      %4413 = vmatprep.subr.mxu0 0.0
      %4414 = vmatpush1.msra.mxu0 0.0
      %4415 = vmatprep.subr.mxu0 0.0
      %4416 = vmatpush1.msra.mxu0 0.0
      %4417 = vmatprep.subr.mxu0 0.0
      %4418 = vmatpush1.msra.mxu0 0.0
      %4419 = vmatprep.subr.mxu0 0.0
      %4420 = vmatpush1.msra.mxu0 0.0
      %4421 = vmatprep.subr.mxu0 0.0
      %4422 = vmatpush1.msra.mxu0 0.0
      %4423 = vmatprep.subr.mxu0 0.0
      %4424 = vmatpush1.msra.mxu0 0.0
      %4425 = vmatprep.subr.mxu0 0.0
      %4426 = vmatpush1.msra.mxu0 0.0
      %4427 = vmatprep.subr.mxu0 0.0
      %4428 = vmatpush1.msra.mxu0 0.0
      %4429 = vmatprep.subr.mxu0 0.0
      %4430 = vmatpush1.msra.mxu0 0.0
      %4431 = vmatprep.subr.mxu0 0.0
      %4432 = vmatpush1.msra.mxu0 %v4399
      %4433 = vmatprep.subr.mxu0 0.0
      %4434 = vmatpush2.msra.mxu0 0.0
      %4435 = vmatprep.subr.mxu0 0.0
      %4436 = vmatpush2.msra.mxu0 0.0
      %4437 = vmatprep.subr.mxu0 0.0
      %4438 = vmatpush2.msra.mxu0 0.0
      %4439 = vmatprep.subr.mxu0 0.0
      %4440 = vmatpush2.msra.mxu0 0.0
      %4441 = vmatprep.subr.mxu0 0.0
      %4442 = vmatpush2.msra.mxu0 0.0
      %4443 = vmatprep.subr.mxu0 0.0
      %4444 = vmatpush2.msra.mxu0 0.0
      %4445 = vmatprep.subr.mxu0 0.0
      %4446 = vmatpush2.msra.mxu0 0.0
      %4447 = vmatprep.subr.mxu0 0.0
      %4448 = vmatpush2.msra.mxu0 0.0
      %4449 = vmatprep.subr.mxu0 0.0
      %4450 = vmatpush2.msra.mxu0 0.0
      %4451 = vmatprep.subr.mxu0 0.0
      %4452 = vmatpush2.msra.mxu0 0.0
      %4453 = vmatprep.subr.mxu0 0.0
      %4454 = vmatpush2.msra.mxu0 0.0
      %4455 = vmatprep.subr.mxu0 0.0
      %4456 = vmatpush2.msra.mxu0 0.0
      %4457 = vmatprep.subr.mxu0 0.0
      %4458 = vmatpush2.msra.mxu0 0.0
      %4459 = vmatprep.subr.mxu0 0.0
      %4460 = vmatpush2.msra.mxu0 0.0
      %4461 = vmatprep.subr.mxu0 0.0
      %4462 = vmatpush2.msra.mxu0 0.0
      %4463 = vmatprep.subr.mxu0 0.0
      %4464 = vmatpush2.msra.mxu0 0.0
      %4465 = vmatprep.mubr.f32.mxu0 0.0
      %4466 = vmatmul.mubr.f32.gmra.mxu0 %v4303
      %v4467 = vpop.f32.mrf.mxu0
      %v4468 = vadd.f32 0.0, %v4467
      %v4469 = vpop.f32.mrf.mxu0
      %4470 = vmatprep.mubr.f32.mxu0 0.0
      %4471 = vmatmul.mubr.f32.gmra.mxu0 %v4306
      %v4472 = vpop.f32.mrf.mxu0
      %v4473 = vadd.f32 0.0, %v4472
      %v4474 = vpop.f32.mrf.mxu0
      %4475 = vmatprep.mubr.f32.mxu0 0.0
      %4476 = vmatmul.mubr.f32.gmra.mxu0 %v4309
      %v4477 = vpop.f32.mrf.mxu0
      %v4478 = vadd.f32 0.0, %v4477
      %v4479 = vpop.f32.mrf.mxu0
      %4480 = vmatprep.mubr.f32.mxu0 0.0
      %4481 = vmatmul.mubr.f32.gmra.mxu0 %v4312
      %v4482 = vpop.f32.mrf.mxu0
      %v4483 = vadd.f32 0.0, %v4482
      %v4484 = vpop.f32.mrf.mxu0
      %4485 = vmatprep.mubr.f32.mxu0 0.0
      %4486 = vmatmul.mubr.f32.gmra.mxu0 %v4315
      %v4487 = vpop.f32.mrf.mxu0
      %v4488 = vadd.f32 0.0, %v4487
      %v4489 = vpop.f32.mrf.mxu0
      %4490 = vmatprep.mubr.f32.mxu0 0.0
      %4491 = vmatmul.mubr.f32.gmra.mxu0 %v4318
      %v4492 = vpop.f32.mrf.mxu0
      %v4493 = vadd.f32 0.0, %v4492
      %v4494 = vpop.f32.mrf.mxu0
      %4495 = vmatprep.mubr.f32.mxu0 0.0
      %4496 = vmatmul.mubr.f32.gmra.mxu0 %v4321
      %v4497 = vpop.f32.mrf.mxu0
      %v4498 = vadd.f32 0.0, %v4497
      %v4499 = vpop.f32.mrf.mxu0
      %4500 = vmatprep.mubr.f32.mxu0 0.0
      %4501 = vmatmul.mubr.f32.gmra.mxu0 %v4324
      %v4502 = vpop.f32.mrf.mxu0
      %v4503 = vadd.f32 0.0, %v4502
      %v4504 = vpop.f32.mrf.mxu0
      %4505 = vmatprep.mubr.f32.mxu0 0.0
      %4506 = vmatmul.mubr.f32.gmra.mxu0 %v4327
      %v4507 = vpop.f32.mrf.mxu0
      %v4508 = vadd.f32 0.0, %v4507
      %v4509 = vpop.f32.mrf.mxu0
      %4510 = vmatprep.mubr.f32.mxu0 0.0
      %4511 = vmatmul.mubr.f32.gmra.mxu0 %v4330
      %v4512 = vpop.f32.mrf.mxu0
      %v4513 = vadd.f32 0.0, %v4512
      %v4514 = vpop.f32.mrf.mxu0
      %4515 = vmatprep.mubr.f32.mxu0 0.0
      %4516 = vmatmul.mubr.f32.gmra.mxu0 %v4333
      %v4517 = vpop.f32.mrf.mxu0
      %v4518 = vadd.f32 0.0, %v4517
      %v4519 = vpop.f32.mrf.mxu0
      %4520 = vmatprep.mubr.f32.mxu0 0.0
      %4521 = vmatmul.mubr.f32.gmra.mxu0 %v4336
      %v4522 = vpop.f32.mrf.mxu0
      %v4523 = vadd.f32 0.0, %v4522
      %v4524 = vpop.f32.mrf.mxu0
      %4525 = vmatprep.mubr.f32.mxu0 0.0
      %4526 = vmatmul.mubr.f32.gmra.mxu0 %v4339
      %v4527 = vpop.f32.mrf.mxu0
      %v4528 = vadd.f32 0.0, %v4527
      %v4529 = vpop.f32.mrf.mxu0
      %4530 = vmatprep.mubr.f32.mxu0 0.0
      %4531 = vmatmul.mubr.f32.gmra.mxu0 %v4342
      %v4532 = vpop.f32.mrf.mxu0
      %v4533 = vadd.f32 0.0, %v4532
      %v4534 = vpop.f32.mrf.mxu0
      %4535 = vmatprep.mubr.f32.mxu0 0.0
      %4536 = vmatmul.mubr.f32.gmra.mxu0 %v4345
      %v4537 = vpop.f32.mrf.mxu0
      %v4538 = vadd.f32 0.0, %v4537
      %v4539 = vpop.f32.mrf.mxu0
      %4540 = vmatprep.mubr.f32.mxu0 0.0
      %4541 = vmatmul.mubr.f32.gmra.mxu0 %v4348
      %v4542 = vpop.f32.mrf.mxu0
      %v4543 = vadd.f32 0.0, %v4542
      %v4544 = vpop.f32.mrf.mxu0
      %4545 = vmatprep.mubr.f32.mxu0 0.0
      %4546 = vmatmul.mubr.f32.gmra.mxu0 %v4351
      %v4547 = vpop.f32.mrf.mxu0
      %v4548 = vadd.f32 0.0, %v4547
      %v4549 = vpop.f32.mrf.mxu0
      %4550 = vmatprep.mubr.f32.mxu0 0.0
      %4551 = vmatmul.mubr.f32.gmra.mxu0 %v4354
      %v4552 = vpop.f32.mrf.mxu0
      %v4553 = vadd.f32 0.0, %v4552
      %v4554 = vpop.f32.mrf.mxu0
      %4555 = vmatprep.mubr.f32.mxu0 0.0
      %4556 = vmatmul.mubr.f32.gmra.mxu0 %v4357
      %v4557 = vpop.f32.mrf.mxu0
      %v4558 = vadd.f32 0.0, %v4557
      %v4559 = vpop.f32.mrf.mxu0
      %4560 = vmatprep.mubr.f32.mxu0 0.0
      %4561 = vmatmul.mubr.f32.gmra.mxu0 %v4360
      %v4562 = vpop.f32.mrf.mxu0
      %v4563 = vadd.f32 0.0, %v4562
      %v4564 = vpop.f32.mrf.mxu0
      %4565 = vmatprep.mubr.f32.mxu0 0.0
      %4566 = vmatmul.mubr.f32.gmra.mxu0 %v4363
      %v4567 = vpop.f32.mrf.mxu0
      %v4568 = vadd.f32 0.0, %v4567
      %v4569 = vpop.f32.mrf.mxu0
      %4570 = vmatprep.mubr.f32.mxu0 0.0
      %4571 = vmatmul.mubr.f32.gmra.mxu0 %v4366
      %v4572 = vpop.f32.mrf.mxu0
      %v4573 = vadd.f32 0.0, %v4572
      %v4574 = vpop.f32.mrf.mxu0
      %4575 = vmatprep.mubr.f32.mxu0 0.0
      %4576 = vmatmul.mubr.f32.gmra.mxu0 %v4369
      %v4577 = vpop.f32.mrf.mxu0
      %v4578 = vadd.f32 0.0, %v4577
      %v4579 = vpop.f32.mrf.mxu0
      %4580 = vmatprep.mubr.f32.mxu0 0.0
      %4581 = vmatmul.mubr.f32.gmra.mxu0 %v4372
      %v4582 = vpop.f32.mrf.mxu0
      %v4583 = vadd.f32 0.0, %v4582
      %v4584 = vpop.f32.mrf.mxu0
      %4585 = vmatprep.mubr.f32.mxu0 0.0
      %4586 = vmatmul.mubr.f32.gmra.mxu0 %v4375
      %v4587 = vpop.f32.mrf.mxu0
      %v4588 = vadd.f32 0.0, %v4587
      %v4589 = vpop.f32.mrf.mxu0
      %4590 = vmatprep.mubr.f32.mxu0 0.0
      %4591 = vmatmul.mubr.f32.gmra.mxu0 %v4378
      %v4592 = vpop.f32.mrf.mxu0
      %v4593 = vadd.f32 0.0, %v4592
      %v4594 = vpop.f32.mrf.mxu0
      %4595 = vmatprep.mubr.f32.mxu0 0.0
      %4596 = vmatmul.mubr.f32.gmra.mxu0 %v4381
      %v4597 = vpop.f32.mrf.mxu0
      %v4598 = vadd.f32 0.0, %v4597
      %v4599 = vpop.f32.mrf.mxu0
      %4600 = vmatprep.mubr.f32.mxu0 0.0
      %4601 = vmatmul.mubr.f32.gmra.mxu0 %v4384
      %v4602 = vpop.f32.mrf.mxu0
      %v4603 = vadd.f32 0.0, %v4602
      %v4604 = vpop.f32.mrf.mxu0
      %4605 = vmatprep.mubr.f32.mxu0 0.0
      %4606 = vmatmul.mubr.f32.gmra.mxu0 %v4387
      %v4607 = vpop.f32.mrf.mxu0
      %v4608 = vadd.f32 0.0, %v4607
      %v4609 = vpop.f32.mrf.mxu0
      %4610 = vmatprep.mubr.f32.mxu0 0.0
      %4611 = vmatmul.mubr.f32.gmra.mxu0 %v4390
      %v4612 = vpop.f32.mrf.mxu0
      %v4613 = vadd.f32 0.0, %v4612
      %v4614 = vpop.f32.mrf.mxu0
      %4615 = vmatprep.mubr.f32.mxu0 0.0
      %4616 = vmatmul.mubr.f32.gmra.mxu0 %v4393
      %v4617 = vpop.f32.mrf.mxu0
      %v4618 = vadd.f32 0.0, %v4617
      %v4619 = vpop.f32.mrf.mxu0
      %4620 = vmatprep.mubr.f32.mxu0 0.0
      %4621 = vmatmul.mubr.f32.gmra.mxu0 %v4396
      %v4622 = vpop.f32.mrf.mxu0
      %v4623 = vadd.f32 0.0, %v4622
      %v4624 = vpop.f32.mrf.mxu0
      %4625 = vdwg.mxu0
      %v4627 = vsel %vm258, %v4235, 0
      %v4630 = vsel %vm258, %v4236, 0
      %v4633 = vsel %vm258, %v4237, 0
      %v4636 = vsel %vm258, %v4238, 0
      %v4639 = vsel %vm258, %v4239, 0
      %v4642 = vsel %vm258, %v4240, 0
      %v4645 = vsel %vm258, %v4241, 0
      %v4648 = vsel %vm258, %v4242, 0
      %v4651 = vsel %vm258, %v4243, 0
      %v4654 = vsel %vm258, %v4244, 0
      %v4657 = vsel %vm258, %v4245, 0
      %v4660 = vsel %vm258, %v4246, 0
      %v4663 = vsel %vm258, %v4247, 0
      %v4666 = vsel %vm258, %v4248, 0
      %v4669 = vsel %vm258, %v4249, 0
      %v4672 = vsel %vm258, %v4250, 0
      %v4675 = vsel %vm258, %v4251, 0
      %v4678 = vsel %vm258, %v4252, 0
      %v4681 = vsel %vm258, %v4253, 0
      %v4684 = vsel %vm258, %v4254, 0
      %v4687 = vsel %vm258, %v4255, 0
      %v4690 = vsel %vm258, %v4256, 0
      %v4693 = vsel %vm258, %v4257, 0
      %v4696 = vsel %vm258, %v4258, 0
      %v4699 = vsel %vm258, %v4259, 0
      %v4702 = vsel %vm258, %v4260, 0
      %v4705 = vsel %vm258, %v4261, 0
      %v4708 = vsel %vm258, %v4262, 0
      %v4711 = vsel %vm258, %v4263, 0
      %v4714 = vsel %vm258, %v4264, 0
      %v4717 = vsel %vm258, %v4265, 0
      %v4720 = vsel %vm258, %v4266, 0
      %v4723 = vsel %vm532, %v4267, 0
      %4725 = vmatprep.subr.mxu0 0.0
      %4726 = vmatpush1.msra.mxu0 0.0
      %4727 = vmatprep.subr.mxu0 0.0
      %4728 = vmatpush1.msra.mxu0 0.0
      %4729 = vmatprep.subr.mxu0 0.0
      %4730 = vmatpush1.msra.mxu0 0.0
      %4731 = vmatprep.subr.mxu0 0.0
      %4732 = vmatpush1.msra.mxu0 0.0
      %4733 = vmatprep.subr.mxu0 0.0
      %4734 = vmatpush1.msra.mxu0 0.0
      %4735 = vmatprep.subr.mxu0 0.0
      %4736 = vmatpush1.msra.mxu0 0.0
      %4737 = vmatprep.subr.mxu0 0.0
      %4738 = vmatpush1.msra.mxu0 0.0
      %4739 = vmatprep.subr.mxu0 0.0
      %4740 = vmatpush1.msra.mxu0 0.0
      %4741 = vmatprep.subr.mxu0 0.0
      %4742 = vmatpush1.msra.mxu0 0.0
      %4743 = vmatprep.subr.mxu0 0.0
      %4744 = vmatpush1.msra.mxu0 0.0
      %4745 = vmatprep.subr.mxu0 0.0
      %4746 = vmatpush1.msra.mxu0 0.0
      %4747 = vmatprep.subr.mxu0 0.0
      %4748 = vmatpush1.msra.mxu0 0.0
      %4749 = vmatprep.subr.mxu0 0.0
      %4750 = vmatpush1.msra.mxu0 0.0
      %4751 = vmatprep.subr.mxu0 0.0
      %4752 = vmatpush1.msra.mxu0 0.0
      %4753 = vmatprep.subr.mxu0 0.0
      %4754 = vmatpush1.msra.mxu0 0.0
      %4755 = vmatprep.subr.mxu0 0.0
      %4756 = vmatpush1.msra.mxu0 %v4723
      %4757 = vmatprep.subr.mxu0 0.0
      %4758 = vmatpush2.msra.mxu0 0.0
      %4759 = vmatprep.subr.mxu0 0.0
      %4760 = vmatpush2.msra.mxu0 0.0
      %4761 = vmatprep.subr.mxu0 0.0
      %4762 = vmatpush2.msra.mxu0 0.0
      %4763 = vmatprep.subr.mxu0 0.0
      %4764 = vmatpush2.msra.mxu0 0.0
      %4765 = vmatprep.subr.mxu0 0.0
      %4766 = vmatpush2.msra.mxu0 0.0
      %4767 = vmatprep.subr.mxu0 0.0
      %4768 = vmatpush2.msra.mxu0 0.0
      %4769 = vmatprep.subr.mxu0 0.0
      %4770 = vmatpush2.msra.mxu0 0.0
      %4771 = vmatprep.subr.mxu0 0.0
      %4772 = vmatpush2.msra.mxu0 0.0
      %4773 = vmatprep.subr.mxu0 0.0
      %4774 = vmatpush2.msra.mxu0 0.0
      %4775 = vmatprep.subr.mxu0 0.0
      %4776 = vmatpush2.msra.mxu0 0.0
      %4777 = vmatprep.subr.mxu0 0.0
      %4778 = vmatpush2.msra.mxu0 0.0
      %4779 = vmatprep.subr.mxu0 0.0
      %4780 = vmatpush2.msra.mxu0 0.0
      %4781 = vmatprep.subr.mxu0 0.0
      %4782 = vmatpush2.msra.mxu0 0.0
      %4783 = vmatprep.subr.mxu0 0.0
      %4784 = vmatpush2.msra.mxu0 0.0
      %4785 = vmatprep.subr.mxu0 0.0
      %4786 = vmatpush2.msra.mxu0 0.0
      %4787 = vmatprep.subr.mxu0 0.0
      %4788 = vmatpush2.msra.mxu0 0.0
      %4789 = vmatprep.mubr.f32.mxu0 0.0
      %4790 = vmatmul.mubr.f32.gmra.mxu0 %v4627
      %v4791 = vpop.f32.mrf.mxu0
      %v4792 = vadd.f32 %v4468, %v4791
      %v4793 = vpop.f32.mrf.mxu0
      %4794 = vmatprep.mubr.f32.mxu0 0.0
      %4795 = vmatmul.mubr.f32.gmra.mxu0 %v4630
      %v4796 = vpop.f32.mrf.mxu0
      %v4797 = vadd.f32 %v4473, %v4796
      %v4798 = vpop.f32.mrf.mxu0
      %4799 = vmatprep.mubr.f32.mxu0 0.0
      %4800 = vmatmul.mubr.f32.gmra.mxu0 %v4633
      %v4801 = vpop.f32.mrf.mxu0
      %v4802 = vadd.f32 %v4478, %v4801
      %v4803 = vpop.f32.mrf.mxu0
      %4804 = vmatprep.mubr.f32.mxu0 0.0
      %4805 = vmatmul.mubr.f32.gmra.mxu0 %v4636
      %v4806 = vpop.f32.mrf.mxu0
      %v4807 = vadd.f32 %v4483, %v4806
      %v4808 = vpop.f32.mrf.mxu0
      %4809 = vmatprep.mubr.f32.mxu0 0.0
      %4810 = vmatmul.mubr.f32.gmra.mxu0 %v4639
      %v4811 = vpop.f32.mrf.mxu0
      %v4812 = vadd.f32 %v4488, %v4811
      %v4813 = vpop.f32.mrf.mxu0
      %4814 = vmatprep.mubr.f32.mxu0 0.0
      %4815 = vmatmul.mubr.f32.gmra.mxu0 %v4642
      %v4816 = vpop.f32.mrf.mxu0
      %v4817 = vadd.f32 %v4493, %v4816
      %v4818 = vpop.f32.mrf.mxu0
      %4819 = vmatprep.mubr.f32.mxu0 0.0
      %4820 = vmatmul.mubr.f32.gmra.mxu0 %v4645
      %v4821 = vpop.f32.mrf.mxu0
      %v4822 = vadd.f32 %v4498, %v4821
      %v4823 = vpop.f32.mrf.mxu0
      %4824 = vmatprep.mubr.f32.mxu0 0.0
      %4825 = vmatmul.mubr.f32.gmra.mxu0 %v4648
      %v4826 = vpop.f32.mrf.mxu0
      %v4827 = vadd.f32 %v4503, %v4826
      %v4828 = vpop.f32.mrf.mxu0
      %4829 = vmatprep.mubr.f32.mxu0 0.0
      %4830 = vmatmul.mubr.f32.gmra.mxu0 %v4651
      %v4831 = vpop.f32.mrf.mxu0
      %v4832 = vadd.f32 %v4508, %v4831
      %v4833 = vpop.f32.mrf.mxu0
      %4834 = vmatprep.mubr.f32.mxu0 0.0
      %4835 = vmatmul.mubr.f32.gmra.mxu0 %v4654
      %v4836 = vpop.f32.mrf.mxu0
      %v4837 = vadd.f32 %v4513, %v4836
      %v4838 = vpop.f32.mrf.mxu0
      %4839 = vmatprep.mubr.f32.mxu0 0.0
      %4840 = vmatmul.mubr.f32.gmra.mxu0 %v4657
      %v4841 = vpop.f32.mrf.mxu0
      %v4842 = vadd.f32 %v4518, %v4841
      %v4843 = vpop.f32.mrf.mxu0
      %4844 = vmatprep.mubr.f32.mxu0 0.0
      %4845 = vmatmul.mubr.f32.gmra.mxu0 %v4660
      %v4846 = vpop.f32.mrf.mxu0
      %v4847 = vadd.f32 %v4523, %v4846
      %v4848 = vpop.f32.mrf.mxu0
      %4849 = vmatprep.mubr.f32.mxu0 0.0
      %4850 = vmatmul.mubr.f32.gmra.mxu0 %v4663
      %v4851 = vpop.f32.mrf.mxu0
      %v4852 = vadd.f32 %v4528, %v4851
      %v4853 = vpop.f32.mrf.mxu0
      %4854 = vmatprep.mubr.f32.mxu0 0.0
      %4855 = vmatmul.mubr.f32.gmra.mxu0 %v4666
      %v4856 = vpop.f32.mrf.mxu0
      %v4857 = vadd.f32 %v4533, %v4856
      %v4858 = vpop.f32.mrf.mxu0
      %4859 = vmatprep.mubr.f32.mxu0 0.0
      %4860 = vmatmul.mubr.f32.gmra.mxu0 %v4669
      %v4861 = vpop.f32.mrf.mxu0
      %v4862 = vadd.f32 %v4538, %v4861
      %v4863 = vpop.f32.mrf.mxu0
      %4864 = vmatprep.mubr.f32.mxu0 0.0
      %4865 = vmatmul.mubr.f32.gmra.mxu0 %v4672
      %v4866 = vpop.f32.mrf.mxu0
      %v4867 = vadd.f32 %v4543, %v4866
      %v4868 = vpop.f32.mrf.mxu0
      %4869 = vmatprep.mubr.f32.mxu0 0.0
      %4870 = vmatmul.mubr.f32.gmra.mxu0 %v4675
      %v4871 = vpop.f32.mrf.mxu0
      %v4872 = vadd.f32 %v4548, %v4871
      %v4873 = vpop.f32.mrf.mxu0
      %4874 = vmatprep.mubr.f32.mxu0 0.0
      %4875 = vmatmul.mubr.f32.gmra.mxu0 %v4678
      %v4876 = vpop.f32.mrf.mxu0
      %v4877 = vadd.f32 %v4553, %v4876
      %v4878 = vpop.f32.mrf.mxu0
      %4879 = vmatprep.mubr.f32.mxu0 0.0
      %4880 = vmatmul.mubr.f32.gmra.mxu0 %v4681
      %v4881 = vpop.f32.mrf.mxu0
      %v4882 = vadd.f32 %v4558, %v4881
      %v4883 = vpop.f32.mrf.mxu0
      %4884 = vmatprep.mubr.f32.mxu0 0.0
      %4885 = vmatmul.mubr.f32.gmra.mxu0 %v4684
      %v4886 = vpop.f32.mrf.mxu0
      %v4887 = vadd.f32 %v4563, %v4886
      %v4888 = vpop.f32.mrf.mxu0
      %4889 = vmatprep.mubr.f32.mxu0 0.0
      %4890 = vmatmul.mubr.f32.gmra.mxu0 %v4687
      %v4891 = vpop.f32.mrf.mxu0
      %v4892 = vadd.f32 %v4568, %v4891
      %v4893 = vpop.f32.mrf.mxu0
      %4894 = vmatprep.mubr.f32.mxu0 0.0
      %4895 = vmatmul.mubr.f32.gmra.mxu0 %v4690
      %v4896 = vpop.f32.mrf.mxu0
      %v4897 = vadd.f32 %v4573, %v4896
      %v4898 = vpop.f32.mrf.mxu0
      %4899 = vmatprep.mubr.f32.mxu0 0.0
      %4900 = vmatmul.mubr.f32.gmra.mxu0 %v4693
      %v4901 = vpop.f32.mrf.mxu0
      %v4902 = vadd.f32 %v4578, %v4901
      %v4903 = vpop.f32.mrf.mxu0
      %4904 = vmatprep.mubr.f32.mxu0 0.0
      %4905 = vmatmul.mubr.f32.gmra.mxu0 %v4696
      %v4906 = vpop.f32.mrf.mxu0
      %v4907 = vadd.f32 %v4583, %v4906
      %v4908 = vpop.f32.mrf.mxu0
      %4909 = vmatprep.mubr.f32.mxu0 0.0
      %4910 = vmatmul.mubr.f32.gmra.mxu0 %v4699
      %v4911 = vpop.f32.mrf.mxu0
      %v4912 = vadd.f32 %v4588, %v4911
      %v4913 = vpop.f32.mrf.mxu0
      %4914 = vmatprep.mubr.f32.mxu0 0.0
      %4915 = vmatmul.mubr.f32.gmra.mxu0 %v4702
      %v4916 = vpop.f32.mrf.mxu0
      %v4917 = vadd.f32 %v4593, %v4916
      %v4918 = vpop.f32.mrf.mxu0
      %4919 = vmatprep.mubr.f32.mxu0 0.0
      %4920 = vmatmul.mubr.f32.gmra.mxu0 %v4705
      %v4921 = vpop.f32.mrf.mxu0
      %v4922 = vadd.f32 %v4598, %v4921
      %v4923 = vpop.f32.mrf.mxu0
      %4924 = vmatprep.mubr.f32.mxu0 0.0
      %4925 = vmatmul.mubr.f32.gmra.mxu0 %v4708
      %v4926 = vpop.f32.mrf.mxu0
      %v4927 = vadd.f32 %v4603, %v4926
      %v4928 = vpop.f32.mrf.mxu0
      %4929 = vmatprep.mubr.f32.mxu0 0.0
      %4930 = vmatmul.mubr.f32.gmra.mxu0 %v4711
      %v4931 = vpop.f32.mrf.mxu0
      %v4932 = vadd.f32 %v4608, %v4931
      %v4933 = vpop.f32.mrf.mxu0
      %4934 = vmatprep.mubr.f32.mxu0 0.0
      %4935 = vmatmul.mubr.f32.gmra.mxu0 %v4714
      %v4936 = vpop.f32.mrf.mxu0
      %v4937 = vadd.f32 %v4613, %v4936
      %v4938 = vpop.f32.mrf.mxu0
      %4939 = vmatprep.mubr.f32.mxu0 0.0
      %4940 = vmatmul.mubr.f32.gmra.mxu0 %v4717
      %v4941 = vpop.f32.mrf.mxu0
      %v4942 = vadd.f32 %v4618, %v4941
      %v4943 = vpop.f32.mrf.mxu0
      %4944 = vmatprep.mubr.f32.mxu0 0.0
      %4945 = vmatmul.mubr.f32.gmra.mxu0 %v4720
      %v4946 = vpop.f32.mrf.mxu0
      %v4947 = vadd.f32 %v4623, %v4946
      %v4948 = vpop.f32.mrf.mxu0
      %4949 = vdwg.mxu0
      %v4950 = vld [vmem:[#allocation2 + $0x2] sm:$0xff]
      %v4951 = vld [vmem:[#allocation2 + $0xa] sm:$0xff]
      %v4952 = vld [vmem:[#allocation2 + $0x1a] sm:$0xff]
      %v4953 = vld [vmem:[#allocation2 + $0x22] sm:$0xff]
      %v4954 = vld [vmem:[#allocation2 + $0x32] sm:$0xff]
      %v4955 = vld [vmem:[#allocation2 + $0x3a] sm:$0xff]
      %v4956 = vld [vmem:[#allocation2 + $0x4a] sm:$0xff]
      %v4957 = vld [vmem:[#allocation2 + $0x52] sm:$0xff]
      %v4958 = vld [vmem:[#allocation2 + $0x62] sm:$0xff]
      %v4959 = vld [vmem:[#allocation2 + $0x6a] sm:$0xff]
      %v4960 = vld [vmem:[#allocation2 + $0x7a] sm:$0xff]
      %v4961 = vld [vmem:[#allocation2 + $0x82] sm:$0xff]
      %v4962 = vld [vmem:[#allocation2 + $0x92] sm:$0xff]
      %v4963 = vld [vmem:[#allocation2 + $0x9a] sm:$0xff]
      %v4964 = vld [vmem:[#allocation2 + $0xaa] sm:$0xff]
      %v4965 = vld [vmem:[#allocation2 + $0xb2] sm:$0xff]
      %v4966 = vld [vmem:[#allocation2 + $0xc2] sm:$0xff]
      %v4967 = vld [vmem:[#allocation2 + $0xca] sm:$0xff]
      %v4968 = vld [vmem:[#allocation2 + $0xda] sm:$0xff]
      %v4969 = vld [vmem:[#allocation2 + $0xe2] sm:$0xff]
      %v4970 = vld [vmem:[#allocation2 + $0xf2] sm:$0xff]
      %v4971 = vld [vmem:[#allocation2 + $0xfa] sm:$0xff]
      %v4972 = vld [vmem:[#allocation2 + $0x10a] sm:$0xff]
      %v4973 = vld [vmem:[#allocation2 + $0x112] sm:$0xff]
      %v4974 = vld [vmem:[#allocation2 + $0x122] sm:$0xff]
      %v4975 = vld [vmem:[#allocation2 + $0x12a] sm:$0xff]
      %v4976 = vld [vmem:[#allocation2 + $0x13a] sm:$0xff]
      %v4977 = vld [vmem:[#allocation2 + $0x142] sm:$0xff]
      %v4978 = vld [vmem:[#allocation2 + $0x152] sm:$0xff]
      %v4979 = vld [vmem:[#allocation2 + $0x15a] sm:$0xff]
      %v4980 = vld [vmem:[#allocation2 + $0x16a] sm:$0xff]
      %v4981 = vld [vmem:[#allocation2 + $0x172] sm:$0xff]
      %s4982 = scalar_lea.vmem %s3, 8
      %v4983 = vld [vmem:[%s4982] sm:$0xf]
      %v4985 = vsel %vm258, %v4950, 0
      %v4988 = vsel %vm258, %v4951, 0
      %v4991 = vsel %vm258, %v4952, 0
      %v4994 = vsel %vm258, %v4953, 0
      %v4997 = vsel %vm258, %v4954, 0
      %v5000 = vsel %vm258, %v4955, 0
      %v5003 = vsel %vm258, %v4956, 0
      %v5006 = vsel %vm258, %v4957, 0
      %v5009 = vsel %vm258, %v4958, 0
      %v5012 = vsel %vm258, %v4959, 0
      %v5015 = vsel %vm258, %v4960, 0
      %v5018 = vsel %vm258, %v4961, 0
      %v5021 = vsel %vm258, %v4962, 0
      %v5024 = vsel %vm258, %v4963, 0
      %v5027 = vsel %vm258, %v4964, 0
      %v5030 = vsel %vm258, %v4965, 0
      %v5033 = vsel %vm258, %v4966, 0
      %v5036 = vsel %vm258, %v4967, 0
      %v5039 = vsel %vm258, %v4968, 0
      %v5042 = vsel %vm258, %v4969, 0
      %v5045 = vsel %vm258, %v4970, 0
      %v5048 = vsel %vm258, %v4971, 0
      %v5051 = vsel %vm258, %v4972, 0
      %v5054 = vsel %vm258, %v4973, 0
      %v5057 = vsel %vm258, %v4974, 0
      %v5060 = vsel %vm258, %v4975, 0
      %v5063 = vsel %vm258, %v4976, 0
      %v5066 = vsel %vm258, %v4977, 0
      %v5069 = vsel %vm258, %v4978, 0
      %v5072 = vsel %vm258, %v4979, 0
      %v5075 = vsel %vm258, %v4980, 0
      %v5078 = vsel %vm258, %v4981, 0
      %v5081 = vsel %vm532, %v4983, 0
      %5083 = vmatprep.subr.mxu0 0.0
      %5084 = vmatpush1.msra.mxu0 0.0
      %5085 = vmatprep.subr.mxu0 0.0
      %5086 = vmatpush1.msra.mxu0 0.0
      %5087 = vmatprep.subr.mxu0 0.0
      %5088 = vmatpush1.msra.mxu0 0.0
      %5089 = vmatprep.subr.mxu0 0.0
      %5090 = vmatpush1.msra.mxu0 0.0
      %5091 = vmatprep.subr.mxu0 0.0
      %5092 = vmatpush1.msra.mxu0 0.0
      %5093 = vmatprep.subr.mxu0 0.0
      %5094 = vmatpush1.msra.mxu0 0.0
      %5095 = vmatprep.subr.mxu0 0.0
      %5096 = vmatpush1.msra.mxu0 0.0
      %5097 = vmatprep.subr.mxu0 0.0
      %5098 = vmatpush1.msra.mxu0 0.0
      %5099 = vmatprep.subr.mxu0 0.0
      %5100 = vmatpush1.msra.mxu0 0.0
      %5101 = vmatprep.subr.mxu0 0.0
      %5102 = vmatpush1.msra.mxu0 0.0
      %5103 = vmatprep.subr.mxu0 0.0
      %5104 = vmatpush1.msra.mxu0 0.0
      %5105 = vmatprep.subr.mxu0 0.0
      %5106 = vmatpush1.msra.mxu0 0.0
      %5107 = vmatprep.subr.mxu0 0.0
      %5108 = vmatpush1.msra.mxu0 0.0
      %5109 = vmatprep.subr.mxu0 0.0
      %5110 = vmatpush1.msra.mxu0 0.0
      %5111 = vmatprep.subr.mxu0 0.0
      %5112 = vmatpush1.msra.mxu0 0.0
      %5113 = vmatprep.subr.mxu0 0.0
      %5114 = vmatpush1.msra.mxu0 %v5081
      %5115 = vmatprep.subr.mxu0 0.0
      %5116 = vmatpush2.msra.mxu0 0.0
      %5117 = vmatprep.subr.mxu0 0.0
      %5118 = vmatpush2.msra.mxu0 0.0
      %5119 = vmatprep.subr.mxu0 0.0
      %5120 = vmatpush2.msra.mxu0 0.0
      %5121 = vmatprep.subr.mxu0 0.0
      %5122 = vmatpush2.msra.mxu0 0.0
      %5123 = vmatprep.subr.mxu0 0.0
      %5124 = vmatpush2.msra.mxu0 0.0
      %5125 = vmatprep.subr.mxu0 0.0
      %5126 = vmatpush2.msra.mxu0 0.0
      %5127 = vmatprep.subr.mxu0 0.0
      %5128 = vmatpush2.msra.mxu0 0.0
      %5129 = vmatprep.subr.mxu0 0.0
      %5130 = vmatpush2.msra.mxu0 0.0
      %5131 = vmatprep.subr.mxu0 0.0
      %5132 = vmatpush2.msra.mxu0 0.0
      %5133 = vmatprep.subr.mxu0 0.0
      %5134 = vmatpush2.msra.mxu0 0.0
      %5135 = vmatprep.subr.mxu0 0.0
      %5136 = vmatpush2.msra.mxu0 0.0
      %5137 = vmatprep.subr.mxu0 0.0
      %5138 = vmatpush2.msra.mxu0 0.0
      %5139 = vmatprep.subr.mxu0 0.0
      %5140 = vmatpush2.msra.mxu0 0.0
      %5141 = vmatprep.subr.mxu0 0.0
      %5142 = vmatpush2.msra.mxu0 0.0
      %5143 = vmatprep.subr.mxu0 0.0
      %5144 = vmatpush2.msra.mxu0 0.0
      %5145 = vmatprep.subr.mxu0 0.0
      %5146 = vmatpush2.msra.mxu0 0.0
      %5147 = vmatprep.mubr.f32.mxu0 0.0
      %5148 = vmatmul.mubr.f32.gmra.mxu0 %v4985
      %v5149 = vpop.f32.mrf.mxu0
      %v5150 = vadd.f32 0.0, %v5149
      %v5151 = vpop.f32.mrf.mxu0
      %5152 = vmatprep.mubr.f32.mxu0 0.0
      %5153 = vmatmul.mubr.f32.gmra.mxu0 %v4988
      %v5154 = vpop.f32.mrf.mxu0
      %v5155 = vadd.f32 0.0, %v5154
      %v5156 = vpop.f32.mrf.mxu0
      %5157 = vmatprep.mubr.f32.mxu0 0.0
      %5158 = vmatmul.mubr.f32.gmra.mxu0 %v4991
      %v5159 = vpop.f32.mrf.mxu0
      %v5160 = vadd.f32 0.0, %v5159
      %v5161 = vpop.f32.mrf.mxu0
      %5162 = vmatprep.mubr.f32.mxu0 0.0
      %5163 = vmatmul.mubr.f32.gmra.mxu0 %v4994
      %v5164 = vpop.f32.mrf.mxu0
      %v5165 = vadd.f32 0.0, %v5164
      %v5166 = vpop.f32.mrf.mxu0
      %5167 = vmatprep.mubr.f32.mxu0 0.0
      %5168 = vmatmul.mubr.f32.gmra.mxu0 %v4997
      %v5169 = vpop.f32.mrf.mxu0
      %v5170 = vadd.f32 0.0, %v5169
      %v5171 = vpop.f32.mrf.mxu0
      %5172 = vmatprep.mubr.f32.mxu0 0.0
      %5173 = vmatmul.mubr.f32.gmra.mxu0 %v5000
      %v5174 = vpop.f32.mrf.mxu0
      %v5175 = vadd.f32 0.0, %v5174
      %v5176 = vpop.f32.mrf.mxu0
      %5177 = vmatprep.mubr.f32.mxu0 0.0
      %5178 = vmatmul.mubr.f32.gmra.mxu0 %v5003
      %v5179 = vpop.f32.mrf.mxu0
      %v5180 = vadd.f32 0.0, %v5179
      %v5181 = vpop.f32.mrf.mxu0
      %5182 = vmatprep.mubr.f32.mxu0 0.0
      %5183 = vmatmul.mubr.f32.gmra.mxu0 %v5006
      %v5184 = vpop.f32.mrf.mxu0
      %v5185 = vadd.f32 0.0, %v5184
      %v5186 = vpop.f32.mrf.mxu0
      %5187 = vmatprep.mubr.f32.mxu0 0.0
      %5188 = vmatmul.mubr.f32.gmra.mxu0 %v5009
      %v5189 = vpop.f32.mrf.mxu0
      %v5190 = vadd.f32 0.0, %v5189
      %v5191 = vpop.f32.mrf.mxu0
      %5192 = vmatprep.mubr.f32.mxu0 0.0
      %5193 = vmatmul.mubr.f32.gmra.mxu0 %v5012
      %v5194 = vpop.f32.mrf.mxu0
      %v5195 = vadd.f32 0.0, %v5194
      %v5196 = vpop.f32.mrf.mxu0
      %5197 = vmatprep.mubr.f32.mxu0 0.0
      %5198 = vmatmul.mubr.f32.gmra.mxu0 %v5015
      %v5199 = vpop.f32.mrf.mxu0
      %v5200 = vadd.f32 0.0, %v5199
      %v5201 = vpop.f32.mrf.mxu0
      %5202 = vmatprep.mubr.f32.mxu0 0.0
      %5203 = vmatmul.mubr.f32.gmra.mxu0 %v5018
      %v5204 = vpop.f32.mrf.mxu0
      %v5205 = vadd.f32 0.0, %v5204
      %v5206 = vpop.f32.mrf.mxu0
      %5207 = vmatprep.mubr.f32.mxu0 0.0
      %5208 = vmatmul.mubr.f32.gmra.mxu0 %v5021
      %v5209 = vpop.f32.mrf.mxu0
      %v5210 = vadd.f32 0.0, %v5209
      %v5211 = vpop.f32.mrf.mxu0
      %5212 = vmatprep.mubr.f32.mxu0 0.0
      %5213 = vmatmul.mubr.f32.gmra.mxu0 %v5024
      %v5214 = vpop.f32.mrf.mxu0
      %v5215 = vadd.f32 0.0, %v5214
      %v5216 = vpop.f32.mrf.mxu0
      %5217 = vmatprep.mubr.f32.mxu0 0.0
      %5218 = vmatmul.mubr.f32.gmra.mxu0 %v5027
      %v5219 = vpop.f32.mrf.mxu0
      %v5220 = vadd.f32 0.0, %v5219
      %v5221 = vpop.f32.mrf.mxu0
      %5222 = vmatprep.mubr.f32.mxu0 0.0
      %5223 = vmatmul.mubr.f32.gmra.mxu0 %v5030
      %v5224 = vpop.f32.mrf.mxu0
      %v5225 = vadd.f32 0.0, %v5224
      %v5226 = vpop.f32.mrf.mxu0
      %5227 = vmatprep.mubr.f32.mxu0 0.0
      %5228 = vmatmul.mubr.f32.gmra.mxu0 %v5033
      %v5229 = vpop.f32.mrf.mxu0
      %v5230 = vadd.f32 0.0, %v5229
      %v5231 = vpop.f32.mrf.mxu0
      %5232 = vmatprep.mubr.f32.mxu0 0.0
      %5233 = vmatmul.mubr.f32.gmra.mxu0 %v5036
      %v5234 = vpop.f32.mrf.mxu0
      %v5235 = vadd.f32 0.0, %v5234
      %v5236 = vpop.f32.mrf.mxu0
      %5237 = vmatprep.mubr.f32.mxu0 0.0
      %5238 = vmatmul.mubr.f32.gmra.mxu0 %v5039
      %v5239 = vpop.f32.mrf.mxu0
      %v5240 = vadd.f32 0.0, %v5239
      %v5241 = vpop.f32.mrf.mxu0
      %5242 = vmatprep.mubr.f32.mxu0 0.0
      %5243 = vmatmul.mubr.f32.gmra.mxu0 %v5042
      %v5244 = vpop.f32.mrf.mxu0
      %v5245 = vadd.f32 0.0, %v5244
      %v5246 = vpop.f32.mrf.mxu0
      %5247 = vmatprep.mubr.f32.mxu0 0.0
      %5248 = vmatmul.mubr.f32.gmra.mxu0 %v5045
      %v5249 = vpop.f32.mrf.mxu0
      %v5250 = vadd.f32 0.0, %v5249
      %v5251 = vpop.f32.mrf.mxu0
      %5252 = vmatprep.mubr.f32.mxu0 0.0
      %5253 = vmatmul.mubr.f32.gmra.mxu0 %v5048
      %v5254 = vpop.f32.mrf.mxu0
      %v5255 = vadd.f32 0.0, %v5254
      %v5256 = vpop.f32.mrf.mxu0
      %5257 = vmatprep.mubr.f32.mxu0 0.0
      %5258 = vmatmul.mubr.f32.gmra.mxu0 %v5051
      %v5259 = vpop.f32.mrf.mxu0
      %v5260 = vadd.f32 0.0, %v5259
      %v5261 = vpop.f32.mrf.mxu0
      %5262 = vmatprep.mubr.f32.mxu0 0.0
      %5263 = vmatmul.mubr.f32.gmra.mxu0 %v5054
      %v5264 = vpop.f32.mrf.mxu0
      %v5265 = vadd.f32 0.0, %v5264
      %v5266 = vpop.f32.mrf.mxu0
      %5267 = vmatprep.mubr.f32.mxu0 0.0
      %5268 = vmatmul.mubr.f32.gmra.mxu0 %v5057
      %v5269 = vpop.f32.mrf.mxu0
      %v5270 = vadd.f32 0.0, %v5269
      %v5271 = vpop.f32.mrf.mxu0
      %5272 = vmatprep.mubr.f32.mxu0 0.0
      %5273 = vmatmul.mubr.f32.gmra.mxu0 %v5060
      %v5274 = vpop.f32.mrf.mxu0
      %v5275 = vadd.f32 0.0, %v5274
      %v5276 = vpop.f32.mrf.mxu0
      %5277 = vmatprep.mubr.f32.mxu0 0.0
      %5278 = vmatmul.mubr.f32.gmra.mxu0 %v5063
      %v5279 = vpop.f32.mrf.mxu0
      %v5280 = vadd.f32 0.0, %v5279
      %v5281 = vpop.f32.mrf.mxu0
      %5282 = vmatprep.mubr.f32.mxu0 0.0
      %5283 = vmatmul.mubr.f32.gmra.mxu0 %v5066
      %v5284 = vpop.f32.mrf.mxu0
      %v5285 = vadd.f32 0.0, %v5284
      %v5286 = vpop.f32.mrf.mxu0
      %5287 = vmatprep.mubr.f32.mxu0 0.0
      %5288 = vmatmul.mubr.f32.gmra.mxu0 %v5069
      %v5289 = vpop.f32.mrf.mxu0
      %v5290 = vadd.f32 0.0, %v5289
      %v5291 = vpop.f32.mrf.mxu0
      %5292 = vmatprep.mubr.f32.mxu0 0.0
      %5293 = vmatmul.mubr.f32.gmra.mxu0 %v5072
      %v5294 = vpop.f32.mrf.mxu0
      %v5295 = vadd.f32 0.0, %v5294
      %v5296 = vpop.f32.mrf.mxu0
      %5297 = vmatprep.mubr.f32.mxu0 0.0
      %5298 = vmatmul.mubr.f32.gmra.mxu0 %v5075
      %v5299 = vpop.f32.mrf.mxu0
      %v5300 = vadd.f32 0.0, %v5299
      %v5301 = vpop.f32.mrf.mxu0
      %5302 = vmatprep.mubr.f32.mxu0 0.0
      %5303 = vmatmul.mubr.f32.gmra.mxu0 %v5078
      %v5304 = vpop.f32.mrf.mxu0
      %v5305 = vadd.f32 0.0, %v5304
      %v5306 = vpop.f32.mrf.mxu0
      %5307 = vdwg.mxu0
      %v5308 = vadd.f32 %v4792, %v5150
      %v5309 = vadd.f32 %v4797, %v5155
      %v5310 = vadd.f32 %v4802, %v5160
      %v5311 = vadd.f32 %v4807, %v5165
      %v5312 = vadd.f32 %v4812, %v5170
      %v5313 = vadd.f32 %v4817, %v5175
      %v5314 = vadd.f32 %v4822, %v5180
      %v5315 = vadd.f32 %v4827, %v5185
      %v5316 = vadd.f32 %v4832, %v5190
      %v5317 = vadd.f32 %v4837, %v5195
      %v5318 = vadd.f32 %v4842, %v5200
      %v5319 = vadd.f32 %v4847, %v5205
      %v5320 = vadd.f32 %v4852, %v5210
      %v5321 = vadd.f32 %v4857, %v5215
      %v5322 = vadd.f32 %v4862, %v5220
      %v5323 = vadd.f32 %v4867, %v5225
      %v5324 = vadd.f32 %v4872, %v5230
      %v5325 = vadd.f32 %v4877, %v5235
      %v5326 = vadd.f32 %v4882, %v5240
      %v5327 = vadd.f32 %v4887, %v5245
      %v5328 = vadd.f32 %v4892, %v5250
      %v5329 = vadd.f32 %v4897, %v5255
      %v5330 = vadd.f32 %v4902, %v5260
      %v5331 = vadd.f32 %v4907, %v5265
      %v5332 = vadd.f32 %v4912, %v5270
      %v5333 = vadd.f32 %v4917, %v5275
      %v5334 = vadd.f32 %v4922, %v5280
      %v5335 = vadd.f32 %v4927, %v5285
      %v5336 = vadd.f32 %v4932, %v5290
      %v5337 = vadd.f32 %v4937, %v5295
      %v5338 = vadd.f32 %v4942, %v5300
      %v5339 = vadd.f32 %v4947, %v5305
      %v5340 = vld [vmem:[%s257] sm:$0xff]
      %v5341 = vld [vmem:[%s257 + $0x8] sm:$0xff]
      %v5342 = vld [vmem:[%s257 + $0x18] sm:$0xff]
      %v5343 = vld [vmem:[%s257 + $0x20] sm:$0xff]
      %v5344 = vld [vmem:[%s257 + $0x30] sm:$0xff]
      %v5345 = vld [vmem:[%s257 + $0x38] sm:$0xff]
      %v5346 = vld [vmem:[%s257 + $0x48] sm:$0xff]
      %v5347 = vld [vmem:[%s257 + $0x50] sm:$0xff]
      %v5348 = vld [vmem:[%s257 + $0x60] sm:$0xff]
      %v5349 = vld [vmem:[%s257 + $0x68] sm:$0xff]
      %v5350 = vld [vmem:[%s257 + $0x78] sm:$0xff]
      %v5351 = vld [vmem:[%s257 + $0x80] sm:$0xff]
      %v5352 = vld [vmem:[%s257 + $0x90] sm:$0xff]
      %v5353 = vld [vmem:[%s257 + $0x98] sm:$0xff]
      %v5354 = vld [vmem:[%s257 + $0xa8] sm:$0xff]
      %v5355 = vld [vmem:[%s257 + $0xb0] sm:$0xff]
      %v5356 = vld [vmem:[%s257 + $0xc0] sm:$0xff]
      %v5357 = vld [vmem:[%s257 + $0xc8] sm:$0xff]
      %v5358 = vld [vmem:[%s257 + $0xd8] sm:$0xff]
      %v5359 = vld [vmem:[%s257 + $0xe0] sm:$0xff]
      %v5360 = vld [vmem:[%s257 + $0xf0] sm:$0xff]
      %v5361 = vld [vmem:[%s257 + $0xf8] sm:$0xff]
      %v5362 = vld [vmem:[%s257 + $0x108] sm:$0xff]
      %v5363 = vld [vmem:[%s257 + $0x110] sm:$0xff]
      %v5364 = vld [vmem:[%s257 + $0x120] sm:$0xff]
      %v5365 = vld [vmem:[%s257 + $0x128] sm:$0xff]
      %v5366 = vld [vmem:[%s257 + $0x138] sm:$0xff]
      %v5367 = vld [vmem:[%s257 + $0x140] sm:$0xff]
      %v5368 = vld [vmem:[%s257 + $0x150] sm:$0xff]
      %v5369 = vld [vmem:[%s257 + $0x158] sm:$0xff]
      %v5370 = vld [vmem:[%s257 + $0x168] sm:$0xff]
      %v5371 = vld [vmem:[%s257 + $0x170] sm:$0xff]
      %s5372 = scalar_lea.vmem %s3, 12
      %v5373 = vld [vmem:[%s5372] sm:$0xf]
      %v5375 = vsel %vm258, %v5340, 0
      %v5378 = vsel %vm258, %v5341, 0
      %v5381 = vsel %vm258, %v5342, 0
      %v5384 = vsel %vm258, %v5343, 0
      %v5387 = vsel %vm258, %v5344, 0
      %v5390 = vsel %vm258, %v5345, 0
      %v5393 = vsel %vm258, %v5346, 0
      %v5396 = vsel %vm258, %v5347, 0
      %v5399 = vsel %vm258, %v5348, 0
      %v5402 = vsel %vm258, %v5349, 0
      %v5405 = vsel %vm258, %v5350, 0
      %v5408 = vsel %vm258, %v5351, 0
      %v5411 = vsel %vm258, %v5352, 0
      %v5414 = vsel %vm258, %v5353, 0
      %v5417 = vsel %vm258, %v5354, 0
      %v5420 = vsel %vm258, %v5355, 0
      %v5423 = vsel %vm258, %v5356, 0
      %v5426 = vsel %vm258, %v5357, 0
      %v5429 = vsel %vm258, %v5358, 0
      %v5432 = vsel %vm258, %v5359, 0
      %v5435 = vsel %vm258, %v5360, 0
      %v5438 = vsel %vm258, %v5361, 0
      %v5441 = vsel %vm258, %v5362, 0
      %v5444 = vsel %vm258, %v5363, 0
      %v5447 = vsel %vm258, %v5364, 0
      %v5450 = vsel %vm258, %v5365, 0
      %v5453 = vsel %vm258, %v5366, 0
      %v5456 = vsel %vm258, %v5367, 0
      %v5459 = vsel %vm258, %v5368, 0
      %v5462 = vsel %vm258, %v5369, 0
      %v5465 = vsel %vm258, %v5370, 0
      %v5468 = vsel %vm258, %v5371, 0
      %v5471 = vsel %vm532, %v5373, 0
      %5473 = vmatprep.subr.mxu0 0.0
      %5474 = vmatpush1.msra.mxu0 0.0
      %5475 = vmatprep.subr.mxu0 0.0
      %5476 = vmatpush1.msra.mxu0 0.0
      %5477 = vmatprep.subr.mxu0 0.0
      %5478 = vmatpush1.msra.mxu0 0.0
      %5479 = vmatprep.subr.mxu0 0.0
      %5480 = vmatpush1.msra.mxu0 0.0
      %5481 = vmatprep.subr.mxu0 0.0
      %5482 = vmatpush1.msra.mxu0 0.0
      %5483 = vmatprep.subr.mxu0 0.0
      %5484 = vmatpush1.msra.mxu0 0.0
      %5485 = vmatprep.subr.mxu0 0.0
      %5486 = vmatpush1.msra.mxu0 0.0
      %5487 = vmatprep.subr.mxu0 0.0
      %5488 = vmatpush1.msra.mxu0 0.0
      %5489 = vmatprep.subr.mxu0 0.0
      %5490 = vmatpush1.msra.mxu0 0.0
      %5491 = vmatprep.subr.mxu0 0.0
      %5492 = vmatpush1.msra.mxu0 0.0
      %5493 = vmatprep.subr.mxu0 0.0
      %5494 = vmatpush1.msra.mxu0 0.0
      %5495 = vmatprep.subr.mxu0 0.0
      %5496 = vmatpush1.msra.mxu0 0.0
      %5497 = vmatprep.subr.mxu0 0.0
      %5498 = vmatpush1.msra.mxu0 0.0
      %5499 = vmatprep.subr.mxu0 0.0
      %5500 = vmatpush1.msra.mxu0 0.0
      %5501 = vmatprep.subr.mxu0 0.0
      %5502 = vmatpush1.msra.mxu0 0.0
      %5503 = vmatprep.subr.mxu0 0.0
      %5504 = vmatpush1.msra.mxu0 %v5471
      %5505 = vmatprep.subr.mxu0 0.0
      %5506 = vmatpush2.msra.mxu0 0.0
      %5507 = vmatprep.subr.mxu0 0.0
      %5508 = vmatpush2.msra.mxu0 0.0
      %5509 = vmatprep.subr.mxu0 0.0
      %5510 = vmatpush2.msra.mxu0 0.0
      %5511 = vmatprep.subr.mxu0 0.0
      %5512 = vmatpush2.msra.mxu0 0.0
      %5513 = vmatprep.subr.mxu0 0.0
      %5514 = vmatpush2.msra.mxu0 0.0
      %5515 = vmatprep.subr.mxu0 0.0
      %5516 = vmatpush2.msra.mxu0 0.0
      %5517 = vmatprep.subr.mxu0 0.0
      %5518 = vmatpush2.msra.mxu0 0.0
      %5519 = vmatprep.subr.mxu0 0.0
      %5520 = vmatpush2.msra.mxu0 0.0
      %5521 = vmatprep.subr.mxu0 0.0
      %5522 = vmatpush2.msra.mxu0 0.0
      %5523 = vmatprep.subr.mxu0 0.0
      %5524 = vmatpush2.msra.mxu0 0.0
      %5525 = vmatprep.subr.mxu0 0.0
      %5526 = vmatpush2.msra.mxu0 0.0
      %5527 = vmatprep.subr.mxu0 0.0
      %5528 = vmatpush2.msra.mxu0 0.0
      %5529 = vmatprep.subr.mxu0 0.0
      %5530 = vmatpush2.msra.mxu0 0.0
      %5531 = vmatprep.subr.mxu0 0.0
      %5532 = vmatpush2.msra.mxu0 0.0
      %5533 = vmatprep.subr.mxu0 0.0
      %5534 = vmatpush2.msra.mxu0 0.0
      %5535 = vmatprep.subr.mxu0 0.0
      %5536 = vmatpush2.msra.mxu0 0.0
      %5537 = vmatprep.mubr.f32.mxu0 0.0
      %5538 = vmatmul.mubr.f32.gmra.mxu0 %v5375
      %v5539 = vpop.f32.mrf.mxu0
      %v5540 = vadd.f32 0.0, %v5539
      %v5541 = vpop.f32.mrf.mxu0
      %5542 = vmatprep.mubr.f32.mxu0 0.0
      %5543 = vmatmul.mubr.f32.gmra.mxu0 %v5378
      %v5544 = vpop.f32.mrf.mxu0
      %v5545 = vadd.f32 0.0, %v5544
      %v5546 = vpop.f32.mrf.mxu0
      %5547 = vmatprep.mubr.f32.mxu0 0.0
      %5548 = vmatmul.mubr.f32.gmra.mxu0 %v5381
      %v5549 = vpop.f32.mrf.mxu0
      %v5550 = vadd.f32 0.0, %v5549
      %v5551 = vpop.f32.mrf.mxu0
      %5552 = vmatprep.mubr.f32.mxu0 0.0
      %5553 = vmatmul.mubr.f32.gmra.mxu0 %v5384
      %v5554 = vpop.f32.mrf.mxu0
      %v5555 = vadd.f32 0.0, %v5554
      %v5556 = vpop.f32.mrf.mxu0
      %5557 = vmatprep.mubr.f32.mxu0 0.0
      %5558 = vmatmul.mubr.f32.gmra.mxu0 %v5387
      %v5559 = vpop.f32.mrf.mxu0
      %v5560 = vadd.f32 0.0, %v5559
      %v5561 = vpop.f32.mrf.mxu0
      %5562 = vmatprep.mubr.f32.mxu0 0.0
      %5563 = vmatmul.mubr.f32.gmra.mxu0 %v5390
      %v5564 = vpop.f32.mrf.mxu0
      %v5565 = vadd.f32 0.0, %v5564
      %v5566 = vpop.f32.mrf.mxu0
      %5567 = vmatprep.mubr.f32.mxu0 0.0
      %5568 = vmatmul.mubr.f32.gmra.mxu0 %v5393
      %v5569 = vpop.f32.mrf.mxu0
      %v5570 = vadd.f32 0.0, %v5569
      %v5571 = vpop.f32.mrf.mxu0
      %5572 = vmatprep.mubr.f32.mxu0 0.0
      %5573 = vmatmul.mubr.f32.gmra.mxu0 %v5396
      %v5574 = vpop.f32.mrf.mxu0
      %v5575 = vadd.f32 0.0, %v5574
      %v5576 = vpop.f32.mrf.mxu0
      %5577 = vmatprep.mubr.f32.mxu0 0.0
      %5578 = vmatmul.mubr.f32.gmra.mxu0 %v5399
      %v5579 = vpop.f32.mrf.mxu0
      %v5580 = vadd.f32 0.0, %v5579
      %v5581 = vpop.f32.mrf.mxu0
      %5582 = vmatprep.mubr.f32.mxu0 0.0
      %5583 = vmatmul.mubr.f32.gmra.mxu0 %v5402
      %v5584 = vpop.f32.mrf.mxu0
      %v5585 = vadd.f32 0.0, %v5584
      %v5586 = vpop.f32.mrf.mxu0
      %5587 = vmatprep.mubr.f32.mxu0 0.0
      %5588 = vmatmul.mubr.f32.gmra.mxu0 %v5405
      %v5589 = vpop.f32.mrf.mxu0
      %v5590 = vadd.f32 0.0, %v5589
      %v5591 = vpop.f32.mrf.mxu0
      %5592 = vmatprep.mubr.f32.mxu0 0.0
      %5593 = vmatmul.mubr.f32.gmra.mxu0 %v5408
      %v5594 = vpop.f32.mrf.mxu0
      %v5595 = vadd.f32 0.0, %v5594
      %v5596 = vpop.f32.mrf.mxu0
      %5597 = vmatprep.mubr.f32.mxu0 0.0
      %5598 = vmatmul.mubr.f32.gmra.mxu0 %v5411
      %v5599 = vpop.f32.mrf.mxu0
      %v5600 = vadd.f32 0.0, %v5599
      %v5601 = vpop.f32.mrf.mxu0
      %5602 = vmatprep.mubr.f32.mxu0 0.0
      %5603 = vmatmul.mubr.f32.gmra.mxu0 %v5414
      %v5604 = vpop.f32.mrf.mxu0
      %v5605 = vadd.f32 0.0, %v5604
      %v5606 = vpop.f32.mrf.mxu0
      %5607 = vmatprep.mubr.f32.mxu0 0.0
      %5608 = vmatmul.mubr.f32.gmra.mxu0 %v5417
      %v5609 = vpop.f32.mrf.mxu0
      %v5610 = vadd.f32 0.0, %v5609
      %v5611 = vpop.f32.mrf.mxu0
      %5612 = vmatprep.mubr.f32.mxu0 0.0
      %5613 = vmatmul.mubr.f32.gmra.mxu0 %v5420
      %v5614 = vpop.f32.mrf.mxu0
      %v5615 = vadd.f32 0.0, %v5614
      %v5616 = vpop.f32.mrf.mxu0
      %5617 = vmatprep.mubr.f32.mxu0 0.0
      %5618 = vmatmul.mubr.f32.gmra.mxu0 %v5423
      %v5619 = vpop.f32.mrf.mxu0
      %v5620 = vadd.f32 0.0, %v5619
      %v5621 = vpop.f32.mrf.mxu0
      %5622 = vmatprep.mubr.f32.mxu0 0.0
      %5623 = vmatmul.mubr.f32.gmra.mxu0 %v5426
      %v5624 = vpop.f32.mrf.mxu0
      %v5625 = vadd.f32 0.0, %v5624
      %v5626 = vpop.f32.mrf.mxu0
      %5627 = vmatprep.mubr.f32.mxu0 0.0
      %5628 = vmatmul.mubr.f32.gmra.mxu0 %v5429
      %v5629 = vpop.f32.mrf.mxu0
      %v5630 = vadd.f32 0.0, %v5629
      %v5631 = vpop.f32.mrf.mxu0
      %5632 = vmatprep.mubr.f32.mxu0 0.0
      %5633 = vmatmul.mubr.f32.gmra.mxu0 %v5432
      %v5634 = vpop.f32.mrf.mxu0
      %v5635 = vadd.f32 0.0, %v5634
      %v5636 = vpop.f32.mrf.mxu0
      %5637 = vmatprep.mubr.f32.mxu0 0.0
      %5638 = vmatmul.mubr.f32.gmra.mxu0 %v5435
      %v5639 = vpop.f32.mrf.mxu0
      %v5640 = vadd.f32 0.0, %v5639
      %v5641 = vpop.f32.mrf.mxu0
      %5642 = vmatprep.mubr.f32.mxu0 0.0
      %5643 = vmatmul.mubr.f32.gmra.mxu0 %v5438
      %v5644 = vpop.f32.mrf.mxu0
      %v5645 = vadd.f32 0.0, %v5644
      %v5646 = vpop.f32.mrf.mxu0
      %5647 = vmatprep.mubr.f32.mxu0 0.0
      %5648 = vmatmul.mubr.f32.gmra.mxu0 %v5441
      %v5649 = vpop.f32.mrf.mxu0
      %v5650 = vadd.f32 0.0, %v5649
      %v5651 = vpop.f32.mrf.mxu0
      %5652 = vmatprep.mubr.f32.mxu0 0.0
      %5653 = vmatmul.mubr.f32.gmra.mxu0 %v5444
      %v5654 = vpop.f32.mrf.mxu0
      %v5655 = vadd.f32 0.0, %v5654
      %v5656 = vpop.f32.mrf.mxu0
      %5657 = vmatprep.mubr.f32.mxu0 0.0
      %5658 = vmatmul.mubr.f32.gmra.mxu0 %v5447
      %v5659 = vpop.f32.mrf.mxu0
      %v5660 = vadd.f32 0.0, %v5659
      %v5661 = vpop.f32.mrf.mxu0
      %5662 = vmatprep.mubr.f32.mxu0 0.0
      %5663 = vmatmul.mubr.f32.gmra.mxu0 %v5450
      %v5664 = vpop.f32.mrf.mxu0
      %v5665 = vadd.f32 0.0, %v5664
      %v5666 = vpop.f32.mrf.mxu0
      %5667 = vmatprep.mubr.f32.mxu0 0.0
      %5668 = vmatmul.mubr.f32.gmra.mxu0 %v5453
      %v5669 = vpop.f32.mrf.mxu0
      %v5670 = vadd.f32 0.0, %v5669
      %v5671 = vpop.f32.mrf.mxu0
      %5672 = vmatprep.mubr.f32.mxu0 0.0
      %5673 = vmatmul.mubr.f32.gmra.mxu0 %v5456
      %v5674 = vpop.f32.mrf.mxu0
      %v5675 = vadd.f32 0.0, %v5674
      %v5676 = vpop.f32.mrf.mxu0
      %5677 = vmatprep.mubr.f32.mxu0 0.0
      %5678 = vmatmul.mubr.f32.gmra.mxu0 %v5459
      %v5679 = vpop.f32.mrf.mxu0
      %v5680 = vadd.f32 0.0, %v5679
      %v5681 = vpop.f32.mrf.mxu0
      %5682 = vmatprep.mubr.f32.mxu0 0.0
      %5683 = vmatmul.mubr.f32.gmra.mxu0 %v5462
      %v5684 = vpop.f32.mrf.mxu0
      %v5685 = vadd.f32 0.0, %v5684
      %v5686 = vpop.f32.mrf.mxu0
      %5687 = vmatprep.mubr.f32.mxu0 0.0
      %5688 = vmatmul.mubr.f32.gmra.mxu0 %v5465
      %v5689 = vpop.f32.mrf.mxu0
      %v5690 = vadd.f32 0.0, %v5689
      %v5691 = vpop.f32.mrf.mxu0
      %5692 = vmatprep.mubr.f32.mxu0 0.0
      %5693 = vmatmul.mubr.f32.gmra.mxu0 %v5468
      %v5694 = vpop.f32.mrf.mxu0
      %v5695 = vadd.f32 0.0, %v5694
      %v5696 = vpop.f32.mrf.mxu0
      %5697 = vdwg.mxu0
      %v5698 = vadd.f32 %v5308, %v5540
      %v5699 = vadd.f32 %v5309, %v5545
      %v5700 = vadd.f32 %v5310, %v5550
      %v5701 = vadd.f32 %v5311, %v5555
      %v5702 = vadd.f32 %v5312, %v5560
      %v5703 = vadd.f32 %v5313, %v5565
      %v5704 = vadd.f32 %v5314, %v5570
      %v5705 = vadd.f32 %v5315, %v5575
      %v5706 = vadd.f32 %v5316, %v5580
      %v5707 = vadd.f32 %v5317, %v5585
      %v5708 = vadd.f32 %v5318, %v5590
      %v5709 = vadd.f32 %v5319, %v5595
      %v5710 = vadd.f32 %v5320, %v5600
      %v5711 = vadd.f32 %v5321, %v5605
      %v5712 = vadd.f32 %v5322, %v5610
      %v5713 = vadd.f32 %v5323, %v5615
      %v5714 = vadd.f32 %v5324, %v5620
      %v5715 = vadd.f32 %v5325, %v5625
      %v5716 = vadd.f32 %v5326, %v5630
      %v5717 = vadd.f32 %v5327, %v5635
      %v5718 = vadd.f32 %v5328, %v5640
      %v5719 = vadd.f32 %v5329, %v5645
      %v5720 = vadd.f32 %v5330, %v5650
      %v5721 = vadd.f32 %v5331, %v5655
      %v5722 = vadd.f32 %v5332, %v5660
      %v5723 = vadd.f32 %v5333, %v5665
      %v5724 = vadd.f32 %v5334, %v5670
      %v5725 = vadd.f32 %v5335, %v5675
      %v5726 = vadd.f32 %v5336, %v5680
      %v5727 = vadd.f32 %v5337, %v5685
      %v5728 = vadd.f32 %v5338, %v5690
      %v5729 = vadd.f32 %v5339, %v5695
      %v5730 = vld [vmem:[%s257 + $0x1] sm:$0xff]
      %v5731 = vld [vmem:[%s257 + $0x9] sm:$0xff]
      %v5732 = vld [vmem:[%s257 + $0x19] sm:$0xff]
      %v5733 = vld [vmem:[%s257 + $0x21] sm:$0xff]
      %v5734 = vld [vmem:[%s257 + $0x31] sm:$0xff]
      %v5735 = vld [vmem:[%s257 + $0x39] sm:$0xff]
      %v5736 = vld [vmem:[%s257 + $0x49] sm:$0xff]
      %v5737 = vld [vmem:[%s257 + $0x51] sm:$0xff]
      %v5738 = vld [vmem:[%s257 + $0x61] sm:$0xff]
      %v5739 = vld [vmem:[%s257 + $0x69] sm:$0xff]
      %v5740 = vld [vmem:[%s257 + $0x79] sm:$0xff]
      %v5741 = vld [vmem:[%s257 + $0x81] sm:$0xff]
      %v5742 = vld [vmem:[%s257 + $0x91] sm:$0xff]
      %v5743 = vld [vmem:[%s257 + $0x99] sm:$0xff]
      %v5744 = vld [vmem:[%s257 + $0xa9] sm:$0xff]
      %v5745 = vld [vmem:[%s257 + $0xb1] sm:$0xff]
      %v5746 = vld [vmem:[%s257 + $0xc1] sm:$0xff]
      %v5747 = vld [vmem:[%s257 + $0xc9] sm:$0xff]
      %v5748 = vld [vmem:[%s257 + $0xd9] sm:$0xff]
      %v5749 = vld [vmem:[%s257 + $0xe1] sm:$0xff]
      %v5750 = vld [vmem:[%s257 + $0xf1] sm:$0xff]
      %v5751 = vld [vmem:[%s257 + $0xf9] sm:$0xff]
      %v5752 = vld [vmem:[%s257 + $0x109] sm:$0xff]
      %v5753 = vld [vmem:[%s257 + $0x111] sm:$0xff]
      %v5754 = vld [vmem:[%s257 + $0x121] sm:$0xff]
      %v5755 = vld [vmem:[%s257 + $0x129] sm:$0xff]
      %v5756 = vld [vmem:[%s257 + $0x139] sm:$0xff]
      %v5757 = vld [vmem:[%s257 + $0x141] sm:$0xff]
      %v5758 = vld [vmem:[%s257 + $0x151] sm:$0xff]
      %v5759 = vld [vmem:[%s257 + $0x159] sm:$0xff]
      %v5760 = vld [vmem:[%s257 + $0x169] sm:$0xff]
      %v5761 = vld [vmem:[%s257 + $0x171] sm:$0xff]
      %s5762 = scalar_lea.vmem %s3, 16
      %v5763 = vld [vmem:[%s5762] sm:$0xf]
      %v5765 = vsel %vm258, %v5730, 0
      %v5768 = vsel %vm258, %v5731, 0
      %v5771 = vsel %vm258, %v5732, 0
      %v5774 = vsel %vm258, %v5733, 0
      %v5777 = vsel %vm258, %v5734, 0
      %v5780 = vsel %vm258, %v5735, 0
      %v5783 = vsel %vm258, %v5736, 0
      %v5786 = vsel %vm258, %v5737, 0
      %v5789 = vsel %vm258, %v5738, 0
      %v5792 = vsel %vm258, %v5739, 0
      %v5795 = vsel %vm258, %v5740, 0
      %v5798 = vsel %vm258, %v5741, 0
      %v5801 = vsel %vm258, %v5742, 0
      %v5804 = vsel %vm258, %v5743, 0
      %v5807 = vsel %vm258, %v5744, 0
      %v5810 = vsel %vm258, %v5745, 0
      %v5813 = vsel %vm258, %v5746, 0
      %v5816 = vsel %vm258, %v5747, 0
      %v5819 = vsel %vm258, %v5748, 0
      %v5822 = vsel %vm258, %v5749, 0
      %v5825 = vsel %vm258, %v5750, 0
      %v5828 = vsel %vm258, %v5751, 0
      %v5831 = vsel %vm258, %v5752, 0
      %v5834 = vsel %vm258, %v5753, 0
      %v5837 = vsel %vm258, %v5754, 0
      %v5840 = vsel %vm258, %v5755, 0
      %v5843 = vsel %vm258, %v5756, 0
      %v5846 = vsel %vm258, %v5757, 0
      %v5849 = vsel %vm258, %v5758, 0
      %v5852 = vsel %vm258, %v5759, 0
      %v5855 = vsel %vm258, %v5760, 0
      %v5858 = vsel %vm258, %v5761, 0
      %v5861 = vsel %vm532, %v5763, 0
      %5863 = vmatprep.subr.mxu0 0.0
      %5864 = vmatpush1.msra.mxu0 0.0
      %5865 = vmatprep.subr.mxu0 0.0
      %5866 = vmatpush1.msra.mxu0 0.0
      %5867 = vmatprep.subr.mxu0 0.0
      %5868 = vmatpush1.msra.mxu0 0.0
      %5869 = vmatprep.subr.mxu0 0.0
      %5870 = vmatpush1.msra.mxu0 0.0
      %5871 = vmatprep.subr.mxu0 0.0
      %5872 = vmatpush1.msra.mxu0 0.0
      %5873 = vmatprep.subr.mxu0 0.0
      %5874 = vmatpush1.msra.mxu0 0.0
      %5875 = vmatprep.subr.mxu0 0.0
      %5876 = vmatpush1.msra.mxu0 0.0
      %5877 = vmatprep.subr.mxu0 0.0
      %5878 = vmatpush1.msra.mxu0 0.0
      %5879 = vmatprep.subr.mxu0 0.0
      %5880 = vmatpush1.msra.mxu0 0.0
      %5881 = vmatprep.subr.mxu0 0.0
      %5882 = vmatpush1.msra.mxu0 0.0
      %5883 = vmatprep.subr.mxu0 0.0
      %5884 = vmatpush1.msra.mxu0 0.0
      %5885 = vmatprep.subr.mxu0 0.0
      %5886 = vmatpush1.msra.mxu0 0.0
      %5887 = vmatprep.subr.mxu0 0.0
      %5888 = vmatpush1.msra.mxu0 0.0
      %5889 = vmatprep.subr.mxu0 0.0
      %5890 = vmatpush1.msra.mxu0 0.0
      %5891 = vmatprep.subr.mxu0 0.0
      %5892 = vmatpush1.msra.mxu0 0.0
      %5893 = vmatprep.subr.mxu0 0.0
      %5894 = vmatpush1.msra.mxu0 %v5861
      %5895 = vmatprep.subr.mxu0 0.0
      %5896 = vmatpush2.msra.mxu0 0.0
      %5897 = vmatprep.subr.mxu0 0.0
      %5898 = vmatpush2.msra.mxu0 0.0
      %5899 = vmatprep.subr.mxu0 0.0
      %5900 = vmatpush2.msra.mxu0 0.0
      %5901 = vmatprep.subr.mxu0 0.0
      %5902 = vmatpush2.msra.mxu0 0.0
      %5903 = vmatprep.subr.mxu0 0.0
      %5904 = vmatpush2.msra.mxu0 0.0
      %5905 = vmatprep.subr.mxu0 0.0
      %5906 = vmatpush2.msra.mxu0 0.0
      %5907 = vmatprep.subr.mxu0 0.0
      %5908 = vmatpush2.msra.mxu0 0.0
      %5909 = vmatprep.subr.mxu0 0.0
      %5910 = vmatpush2.msra.mxu0 0.0
      %5911 = vmatprep.subr.mxu0 0.0
      %5912 = vmatpush2.msra.mxu0 0.0
      %5913 = vmatprep.subr.mxu0 0.0
      %5914 = vmatpush2.msra.mxu0 0.0
      %5915 = vmatprep.subr.mxu0 0.0
      %5916 = vmatpush2.msra.mxu0 0.0
      %5917 = vmatprep.subr.mxu0 0.0
      %5918 = vmatpush2.msra.mxu0 0.0
      %5919 = vmatprep.subr.mxu0 0.0
      %5920 = vmatpush2.msra.mxu0 0.0
      %5921 = vmatprep.subr.mxu0 0.0
      %5922 = vmatpush2.msra.mxu0 0.0
      %5923 = vmatprep.subr.mxu0 0.0
      %5924 = vmatpush2.msra.mxu0 0.0
      %5925 = vmatprep.subr.mxu0 0.0
      %5926 = vmatpush2.msra.mxu0 0.0
      %5927 = vmatprep.mubr.f32.mxu0 0.0
      %5928 = vmatmul.mubr.f32.gmra.mxu0 %v5765
      %v5929 = vpop.f32.mrf.mxu0
      %v5930 = vadd.f32 0.0, %v5929
      %v5931 = vpop.f32.mrf.mxu0
      %5932 = vmatprep.mubr.f32.mxu0 0.0
      %5933 = vmatmul.mubr.f32.gmra.mxu0 %v5768
      %v5934 = vpop.f32.mrf.mxu0
      %v5935 = vadd.f32 0.0, %v5934
      %v5936 = vpop.f32.mrf.mxu0
      %5937 = vmatprep.mubr.f32.mxu0 0.0
      %5938 = vmatmul.mubr.f32.gmra.mxu0 %v5771
      %v5939 = vpop.f32.mrf.mxu0
      %v5940 = vadd.f32 0.0, %v5939
      %v5941 = vpop.f32.mrf.mxu0
      %5942 = vmatprep.mubr.f32.mxu0 0.0
      %5943 = vmatmul.mubr.f32.gmra.mxu0 %v5774
      %v5944 = vpop.f32.mrf.mxu0
      %v5945 = vadd.f32 0.0, %v5944
      %v5946 = vpop.f32.mrf.mxu0
      %5947 = vmatprep.mubr.f32.mxu0 0.0
      %5948 = vmatmul.mubr.f32.gmra.mxu0 %v5777
      %v5949 = vpop.f32.mrf.mxu0
      %v5950 = vadd.f32 0.0, %v5949
      %v5951 = vpop.f32.mrf.mxu0
      %5952 = vmatprep.mubr.f32.mxu0 0.0
      %5953 = vmatmul.mubr.f32.gmra.mxu0 %v5780
      %v5954 = vpop.f32.mrf.mxu0
      %v5955 = vadd.f32 0.0, %v5954
      %v5956 = vpop.f32.mrf.mxu0
      %5957 = vmatprep.mubr.f32.mxu0 0.0
      %5958 = vmatmul.mubr.f32.gmra.mxu0 %v5783
      %v5959 = vpop.f32.mrf.mxu0
      %v5960 = vadd.f32 0.0, %v5959
      %v5961 = vpop.f32.mrf.mxu0
      %5962 = vmatprep.mubr.f32.mxu0 0.0
      %5963 = vmatmul.mubr.f32.gmra.mxu0 %v5786
      %v5964 = vpop.f32.mrf.mxu0
      %v5965 = vadd.f32 0.0, %v5964
      %v5966 = vpop.f32.mrf.mxu0
      %5967 = vmatprep.mubr.f32.mxu0 0.0
      %5968 = vmatmul.mubr.f32.gmra.mxu0 %v5789
      %v5969 = vpop.f32.mrf.mxu0
      %v5970 = vadd.f32 0.0, %v5969
      %v5971 = vpop.f32.mrf.mxu0
      %5972 = vmatprep.mubr.f32.mxu0 0.0
      %5973 = vmatmul.mubr.f32.gmra.mxu0 %v5792
      %v5974 = vpop.f32.mrf.mxu0
      %v5975 = vadd.f32 0.0, %v5974
      %v5976 = vpop.f32.mrf.mxu0
      %5977 = vmatprep.mubr.f32.mxu0 0.0
      %5978 = vmatmul.mubr.f32.gmra.mxu0 %v5795
      %v5979 = vpop.f32.mrf.mxu0
      %v5980 = vadd.f32 0.0, %v5979
      %v5981 = vpop.f32.mrf.mxu0
      %5982 = vmatprep.mubr.f32.mxu0 0.0
      %5983 = vmatmul.mubr.f32.gmra.mxu0 %v5798
      %v5984 = vpop.f32.mrf.mxu0
      %v5985 = vadd.f32 0.0, %v5984
      %v5986 = vpop.f32.mrf.mxu0
      %5987 = vmatprep.mubr.f32.mxu0 0.0
      %5988 = vmatmul.mubr.f32.gmra.mxu0 %v5801
      %v5989 = vpop.f32.mrf.mxu0
      %v5990 = vadd.f32 0.0, %v5989
      %v5991 = vpop.f32.mrf.mxu0
      %5992 = vmatprep.mubr.f32.mxu0 0.0
      %5993 = vmatmul.mubr.f32.gmra.mxu0 %v5804
      %v5994 = vpop.f32.mrf.mxu0
      %v5995 = vadd.f32 0.0, %v5994
      %v5996 = vpop.f32.mrf.mxu0
      %5997 = vmatprep.mubr.f32.mxu0 0.0
      %5998 = vmatmul.mubr.f32.gmra.mxu0 %v5807
      %v5999 = vpop.f32.mrf.mxu0
      %v6000 = vadd.f32 0.0, %v5999
      %v6001 = vpop.f32.mrf.mxu0
      %6002 = vmatprep.mubr.f32.mxu0 0.0
      %6003 = vmatmul.mubr.f32.gmra.mxu0 %v5810
      %v6004 = vpop.f32.mrf.mxu0
      %v6005 = vadd.f32 0.0, %v6004
      %v6006 = vpop.f32.mrf.mxu0
      %6007 = vmatprep.mubr.f32.mxu0 0.0
      %6008 = vmatmul.mubr.f32.gmra.mxu0 %v5813
      %v6009 = vpop.f32.mrf.mxu0
      %v6010 = vadd.f32 0.0, %v6009
      %v6011 = vpop.f32.mrf.mxu0
      %6012 = vmatprep.mubr.f32.mxu0 0.0
      %6013 = vmatmul.mubr.f32.gmra.mxu0 %v5816
      %v6014 = vpop.f32.mrf.mxu0
      %v6015 = vadd.f32 0.0, %v6014
      %v6016 = vpop.f32.mrf.mxu0
      %6017 = vmatprep.mubr.f32.mxu0 0.0
      %6018 = vmatmul.mubr.f32.gmra.mxu0 %v5819
      %v6019 = vpop.f32.mrf.mxu0
      %v6020 = vadd.f32 0.0, %v6019
      %v6021 = vpop.f32.mrf.mxu0
      %6022 = vmatprep.mubr.f32.mxu0 0.0
      %6023 = vmatmul.mubr.f32.gmra.mxu0 %v5822
      %v6024 = vpop.f32.mrf.mxu0
      %v6025 = vadd.f32 0.0, %v6024
      %v6026 = vpop.f32.mrf.mxu0
      %6027 = vmatprep.mubr.f32.mxu0 0.0
      %6028 = vmatmul.mubr.f32.gmra.mxu0 %v5825
      %v6029 = vpop.f32.mrf.mxu0
      %v6030 = vadd.f32 0.0, %v6029
      %v6031 = vpop.f32.mrf.mxu0
      %6032 = vmatprep.mubr.f32.mxu0 0.0
      %6033 = vmatmul.mubr.f32.gmra.mxu0 %v5828
      %v6034 = vpop.f32.mrf.mxu0
      %v6035 = vadd.f32 0.0, %v6034
      %v6036 = vpop.f32.mrf.mxu0
      %6037 = vmatprep.mubr.f32.mxu0 0.0
      %6038 = vmatmul.mubr.f32.gmra.mxu0 %v5831
      %v6039 = vpop.f32.mrf.mxu0
      %v6040 = vadd.f32 0.0, %v6039
      %v6041 = vpop.f32.mrf.mxu0
      %6042 = vmatprep.mubr.f32.mxu0 0.0
      %6043 = vmatmul.mubr.f32.gmra.mxu0 %v5834
      %v6044 = vpop.f32.mrf.mxu0
      %v6045 = vadd.f32 0.0, %v6044
      %v6046 = vpop.f32.mrf.mxu0
      %6047 = vmatprep.mubr.f32.mxu0 0.0
      %6048 = vmatmul.mubr.f32.gmra.mxu0 %v5837
      %v6049 = vpop.f32.mrf.mxu0
      %v6050 = vadd.f32 0.0, %v6049
      %v6051 = vpop.f32.mrf.mxu0
      %6052 = vmatprep.mubr.f32.mxu0 0.0
      %6053 = vmatmul.mubr.f32.gmra.mxu0 %v5840
      %v6054 = vpop.f32.mrf.mxu0
      %v6055 = vadd.f32 0.0, %v6054
      %v6056 = vpop.f32.mrf.mxu0
      %6057 = vmatprep.mubr.f32.mxu0 0.0
      %6058 = vmatmul.mubr.f32.gmra.mxu0 %v5843
      %v6059 = vpop.f32.mrf.mxu0
      %v6060 = vadd.f32 0.0, %v6059
      %v6061 = vpop.f32.mrf.mxu0
      %6062 = vmatprep.mubr.f32.mxu0 0.0
      %6063 = vmatmul.mubr.f32.gmra.mxu0 %v5846
      %v6064 = vpop.f32.mrf.mxu0
      %v6065 = vadd.f32 0.0, %v6064
      %v6066 = vpop.f32.mrf.mxu0
      %6067 = vmatprep.mubr.f32.mxu0 0.0
      %6068 = vmatmul.mubr.f32.gmra.mxu0 %v5849
      %v6069 = vpop.f32.mrf.mxu0
      %v6070 = vadd.f32 0.0, %v6069
      %v6071 = vpop.f32.mrf.mxu0
      %6072 = vmatprep.mubr.f32.mxu0 0.0
      %6073 = vmatmul.mubr.f32.gmra.mxu0 %v5852
      %v6074 = vpop.f32.mrf.mxu0
      %v6075 = vadd.f32 0.0, %v6074
      %v6076 = vpop.f32.mrf.mxu0
      %6077 = vmatprep.mubr.f32.mxu0 0.0
      %6078 = vmatmul.mubr.f32.gmra.mxu0 %v5855
      %v6079 = vpop.f32.mrf.mxu0
      %v6080 = vadd.f32 0.0, %v6079
      %v6081 = vpop.f32.mrf.mxu0
      %6082 = vmatprep.mubr.f32.mxu0 0.0
      %6083 = vmatmul.mubr.f32.gmra.mxu0 %v5858
      %v6084 = vpop.f32.mrf.mxu0
      %v6085 = vadd.f32 0.0, %v6084
      %v6086 = vpop.f32.mrf.mxu0
      %6087 = vdwg.mxu0
      %v6088 = vadd.f32 %v5698, %v5930
      %v6089 = vadd.f32 %v5699, %v5935
      %v6090 = vadd.f32 %v5700, %v5940
      %v6091 = vadd.f32 %v5701, %v5945
      %v6092 = vadd.f32 %v5702, %v5950
      %v6093 = vadd.f32 %v5703, %v5955
      %v6094 = vadd.f32 %v5704, %v5960
      %v6095 = vadd.f32 %v5705, %v5965
      %v6096 = vadd.f32 %v5706, %v5970
      %v6097 = vadd.f32 %v5707, %v5975
      %v6098 = vadd.f32 %v5708, %v5980
      %v6099 = vadd.f32 %v5709, %v5985
      %v6100 = vadd.f32 %v5710, %v5990
      %v6101 = vadd.f32 %v5711, %v5995
      %v6102 = vadd.f32 %v5712, %v6000
      %v6103 = vadd.f32 %v5713, %v6005
      %v6104 = vadd.f32 %v5714, %v6010
      %v6105 = vadd.f32 %v5715, %v6015
      %v6106 = vadd.f32 %v5716, %v6020
      %v6107 = vadd.f32 %v5717, %v6025
      %v6108 = vadd.f32 %v5718, %v6030
      %v6109 = vadd.f32 %v5719, %v6035
      %v6110 = vadd.f32 %v5720, %v6040
      %v6111 = vadd.f32 %v5721, %v6045
      %v6112 = vadd.f32 %v5722, %v6050
      %v6113 = vadd.f32 %v5723, %v6055
      %v6114 = vadd.f32 %v5724, %v6060
      %v6115 = vadd.f32 %v5725, %v6065
      %v6116 = vadd.f32 %v5726, %v6070
      %v6117 = vadd.f32 %v5727, %v6075
      %v6118 = vadd.f32 %v5728, %v6080
      %v6119 = vadd.f32 %v5729, %v6085
      %v6120 = vld [vmem:[%s257 + $0x2] sm:$0xff]
      %v6121 = vld [vmem:[%s257 + $0xa] sm:$0xff]
      %v6122 = vld [vmem:[%s257 + $0x1a] sm:$0xff]
      %v6123 = vld [vmem:[%s257 + $0x22] sm:$0xff]
      %v6124 = vld [vmem:[%s257 + $0x32] sm:$0xff]
      %v6125 = vld [vmem:[%s257 + $0x3a] sm:$0xff]
      %v6126 = vld [vmem:[%s257 + $0x4a] sm:$0xff]
      %v6127 = vld [vmem:[%s257 + $0x52] sm:$0xff]
      %v6128 = vld [vmem:[%s257 + $0x62] sm:$0xff]
      %v6129 = vld [vmem:[%s257 + $0x6a] sm:$0xff]
      %v6130 = vld [vmem:[%s257 + $0x7a] sm:$0xff]
      %v6131 = vld [vmem:[%s257 + $0x82] sm:$0xff]
      %v6132 = vld [vmem:[%s257 + $0x92] sm:$0xff]
      %v6133 = vld [vmem:[%s257 + $0x9a] sm:$0xff]
      %v6134 = vld [vmem:[%s257 + $0xaa] sm:$0xff]
      %v6135 = vld [vmem:[%s257 + $0xb2] sm:$0xff]
      %v6136 = vld [vmem:[%s257 + $0xc2] sm:$0xff]
      %v6137 = vld [vmem:[%s257 + $0xca] sm:$0xff]
      %v6138 = vld [vmem:[%s257 + $0xda] sm:$0xff]
      %v6139 = vld [vmem:[%s257 + $0xe2] sm:$0xff]
      %v6140 = vld [vmem:[%s257 + $0xf2] sm:$0xff]
      %v6141 = vld [vmem:[%s257 + $0xfa] sm:$0xff]
      %v6142 = vld [vmem:[%s257 + $0x10a] sm:$0xff]
      %v6143 = vld [vmem:[%s257 + $0x112] sm:$0xff]
      %v6144 = vld [vmem:[%s257 + $0x122] sm:$0xff]
      %v6145 = vld [vmem:[%s257 + $0x12a] sm:$0xff]
      %v6146 = vld [vmem:[%s257 + $0x13a] sm:$0xff]
      %v6147 = vld [vmem:[%s257 + $0x142] sm:$0xff]
      %v6148 = vld [vmem:[%s257 + $0x152] sm:$0xff]
      %v6149 = vld [vmem:[%s257 + $0x15a] sm:$0xff]
      %v6150 = vld [vmem:[%s257 + $0x16a] sm:$0xff]
      %v6151 = vld [vmem:[%s257 + $0x172] sm:$0xff]
      %s6152 = scalar_lea.vmem %s3, 20
      %v6153 = vld [vmem:[%s6152] sm:$0xf]
      %v6155 = vsel %vm258, %v6120, 0
      %v6158 = vsel %vm258, %v6121, 0
      %v6161 = vsel %vm258, %v6122, 0
      %v6164 = vsel %vm258, %v6123, 0
      %v6167 = vsel %vm258, %v6124, 0
      %v6170 = vsel %vm258, %v6125, 0
      %v6173 = vsel %vm258, %v6126, 0
      %v6176 = vsel %vm258, %v6127, 0
      %v6179 = vsel %vm258, %v6128, 0
      %v6182 = vsel %vm258, %v6129, 0
      %v6185 = vsel %vm258, %v6130, 0
      %v6188 = vsel %vm258, %v6131, 0
      %v6191 = vsel %vm258, %v6132, 0
      %v6194 = vsel %vm258, %v6133, 0
      %v6197 = vsel %vm258, %v6134, 0
      %v6200 = vsel %vm258, %v6135, 0
      %v6203 = vsel %vm258, %v6136, 0
      %v6206 = vsel %vm258, %v6137, 0
      %v6209 = vsel %vm258, %v6138, 0
      %v6212 = vsel %vm258, %v6139, 0
      %v6215 = vsel %vm258, %v6140, 0
      %v6218 = vsel %vm258, %v6141, 0
      %v6221 = vsel %vm258, %v6142, 0
      %v6224 = vsel %vm258, %v6143, 0
      %v6227 = vsel %vm258, %v6144, 0
      %v6230 = vsel %vm258, %v6145, 0
      %v6233 = vsel %vm258, %v6146, 0
      %v6236 = vsel %vm258, %v6147, 0
      %v6239 = vsel %vm258, %v6148, 0
      %v6242 = vsel %vm258, %v6149, 0
      %v6245 = vsel %vm258, %v6150, 0
      %v6248 = vsel %vm258, %v6151, 0
      %v6251 = vsel %vm532, %v6153, 0
      %6253 = vmatprep.subr.mxu0 0.0
      %6254 = vmatpush1.msra.mxu0 0.0
      %6255 = vmatprep.subr.mxu0 0.0
      %6256 = vmatpush1.msra.mxu0 0.0
      %6257 = vmatprep.subr.mxu0 0.0
      %6258 = vmatpush1.msra.mxu0 0.0
      %6259 = vmatprep.subr.mxu0 0.0
      %6260 = vmatpush1.msra.mxu0 0.0
      %6261 = vmatprep.subr.mxu0 0.0
      %6262 = vmatpush1.msra.mxu0 0.0
      %6263 = vmatprep.subr.mxu0 0.0
      %6264 = vmatpush1.msra.mxu0 0.0
      %6265 = vmatprep.subr.mxu0 0.0
      %6266 = vmatpush1.msra.mxu0 0.0
      %6267 = vmatprep.subr.mxu0 0.0
      %6268 = vmatpush1.msra.mxu0 0.0
      %6269 = vmatprep.subr.mxu0 0.0
      %6270 = vmatpush1.msra.mxu0 0.0
      %6271 = vmatprep.subr.mxu0 0.0
      %6272 = vmatpush1.msra.mxu0 0.0
      %6273 = vmatprep.subr.mxu0 0.0
      %6274 = vmatpush1.msra.mxu0 0.0
      %6275 = vmatprep.subr.mxu0 0.0
      %6276 = vmatpush1.msra.mxu0 0.0
      %6277 = vmatprep.subr.mxu0 0.0
      %6278 = vmatpush1.msra.mxu0 0.0
      %6279 = vmatprep.subr.mxu0 0.0
      %6280 = vmatpush1.msra.mxu0 0.0
      %6281 = vmatprep.subr.mxu0 0.0
      %6282 = vmatpush1.msra.mxu0 0.0
      %6283 = vmatprep.subr.mxu0 0.0
      %6284 = vmatpush1.msra.mxu0 %v6251
      %6285 = vmatprep.subr.mxu0 0.0
      %6286 = vmatpush2.msra.mxu0 0.0
      %6287 = vmatprep.subr.mxu0 0.0
      %6288 = vmatpush2.msra.mxu0 0.0
      %6289 = vmatprep.subr.mxu0 0.0
      %6290 = vmatpush2.msra.mxu0 0.0
      %6291 = vmatprep.subr.mxu0 0.0
      %6292 = vmatpush2.msra.mxu0 0.0
      %6293 = vmatprep.subr.mxu0 0.0
      %6294 = vmatpush2.msra.mxu0 0.0
      %6295 = vmatprep.subr.mxu0 0.0
      %6296 = vmatpush2.msra.mxu0 0.0
      %6297 = vmatprep.subr.mxu0 0.0
      %6298 = vmatpush2.msra.mxu0 0.0
      %6299 = vmatprep.subr.mxu0 0.0
      %6300 = vmatpush2.msra.mxu0 0.0
      %6301 = vmatprep.subr.mxu0 0.0
      %6302 = vmatpush2.msra.mxu0 0.0
      %6303 = vmatprep.subr.mxu0 0.0
      %6304 = vmatpush2.msra.mxu0 0.0
      %6305 = vmatprep.subr.mxu0 0.0
      %6306 = vmatpush2.msra.mxu0 0.0
      %6307 = vmatprep.subr.mxu0 0.0
      %6308 = vmatpush2.msra.mxu0 0.0
      %6309 = vmatprep.subr.mxu0 0.0
      %6310 = vmatpush2.msra.mxu0 0.0
      %6311 = vmatprep.subr.mxu0 0.0
      %6312 = vmatpush2.msra.mxu0 0.0
      %6313 = vmatprep.subr.mxu0 0.0
      %6314 = vmatpush2.msra.mxu0 0.0
      %6315 = vmatprep.subr.mxu0 0.0
      %6316 = vmatpush2.msra.mxu0 0.0
      %6317 = vmatprep.mubr.f32.mxu0 0.0
      %6318 = vmatmul.mubr.f32.gmra.mxu0 %v6155
      %v6319 = vpop.f32.mrf.mxu0
      %v6320 = vadd.f32 0.0, %v6319
      %v6321 = vpop.f32.mrf.mxu0
      %6322 = vmatprep.mubr.f32.mxu0 0.0
      %6323 = vmatmul.mubr.f32.gmra.mxu0 %v6158
      %v6324 = vpop.f32.mrf.mxu0
      %v6325 = vadd.f32 0.0, %v6324
      %v6326 = vpop.f32.mrf.mxu0
      %6327 = vmatprep.mubr.f32.mxu0 0.0
      %6328 = vmatmul.mubr.f32.gmra.mxu0 %v6161
      %v6329 = vpop.f32.mrf.mxu0
      %v6330 = vadd.f32 0.0, %v6329
      %v6331 = vpop.f32.mrf.mxu0
      %6332 = vmatprep.mubr.f32.mxu0 0.0
      %6333 = vmatmul.mubr.f32.gmra.mxu0 %v6164
      %v6334 = vpop.f32.mrf.mxu0
      %v6335 = vadd.f32 0.0, %v6334
      %v6336 = vpop.f32.mrf.mxu0
      %6337 = vmatprep.mubr.f32.mxu0 0.0
      %6338 = vmatmul.mubr.f32.gmra.mxu0 %v6167
      %v6339 = vpop.f32.mrf.mxu0
      %v6340 = vadd.f32 0.0, %v6339
      %v6341 = vpop.f32.mrf.mxu0
      %6342 = vmatprep.mubr.f32.mxu0 0.0
      %6343 = vmatmul.mubr.f32.gmra.mxu0 %v6170
      %v6344 = vpop.f32.mrf.mxu0
      %v6345 = vadd.f32 0.0, %v6344
      %v6346 = vpop.f32.mrf.mxu0
      %6347 = vmatprep.mubr.f32.mxu0 0.0
      %6348 = vmatmul.mubr.f32.gmra.mxu0 %v6173
      %v6349 = vpop.f32.mrf.mxu0
      %v6350 = vadd.f32 0.0, %v6349
      %v6351 = vpop.f32.mrf.mxu0
      %6352 = vmatprep.mubr.f32.mxu0 0.0
      %6353 = vmatmul.mubr.f32.gmra.mxu0 %v6176
      %v6354 = vpop.f32.mrf.mxu0
      %v6355 = vadd.f32 0.0, %v6354
      %v6356 = vpop.f32.mrf.mxu0
      %6357 = vmatprep.mubr.f32.mxu0 0.0
      %6358 = vmatmul.mubr.f32.gmra.mxu0 %v6179
      %v6359 = vpop.f32.mrf.mxu0
      %v6360 = vadd.f32 0.0, %v6359
      %v6361 = vpop.f32.mrf.mxu0
      %6362 = vmatprep.mubr.f32.mxu0 0.0
      %6363 = vmatmul.mubr.f32.gmra.mxu0 %v6182
      %v6364 = vpop.f32.mrf.mxu0
      %v6365 = vadd.f32 0.0, %v6364
      %v6366 = vpop.f32.mrf.mxu0
      %6367 = vmatprep.mubr.f32.mxu0 0.0
      %6368 = vmatmul.mubr.f32.gmra.mxu0 %v6185
      %v6369 = vpop.f32.mrf.mxu0
      %v6370 = vadd.f32 0.0, %v6369
      %v6371 = vpop.f32.mrf.mxu0
      %6372 = vmatprep.mubr.f32.mxu0 0.0
      %6373 = vmatmul.mubr.f32.gmra.mxu0 %v6188
      %v6374 = vpop.f32.mrf.mxu0
      %v6375 = vadd.f32 0.0, %v6374
      %v6376 = vpop.f32.mrf.mxu0
      %6377 = vmatprep.mubr.f32.mxu0 0.0
      %6378 = vmatmul.mubr.f32.gmra.mxu0 %v6191
      %v6379 = vpop.f32.mrf.mxu0
      %v6380 = vadd.f32 0.0, %v6379
      %v6381 = vpop.f32.mrf.mxu0
      %6382 = vmatprep.mubr.f32.mxu0 0.0
      %6383 = vmatmul.mubr.f32.gmra.mxu0 %v6194
      %v6384 = vpop.f32.mrf.mxu0
      %v6385 = vadd.f32 0.0, %v6384
      %v6386 = vpop.f32.mrf.mxu0
      %6387 = vmatprep.mubr.f32.mxu0 0.0
      %6388 = vmatmul.mubr.f32.gmra.mxu0 %v6197
      %v6389 = vpop.f32.mrf.mxu0
      %v6390 = vadd.f32 0.0, %v6389
      %v6391 = vpop.f32.mrf.mxu0
      %6392 = vmatprep.mubr.f32.mxu0 0.0
      %6393 = vmatmul.mubr.f32.gmra.mxu0 %v6200
      %v6394 = vpop.f32.mrf.mxu0
      %v6395 = vadd.f32 0.0, %v6394
      %v6396 = vpop.f32.mrf.mxu0
      %6397 = vmatprep.mubr.f32.mxu0 0.0
      %6398 = vmatmul.mubr.f32.gmra.mxu0 %v6203
      %v6399 = vpop.f32.mrf.mxu0
      %v6400 = vadd.f32 0.0, %v6399
      %v6401 = vpop.f32.mrf.mxu0
      %6402 = vmatprep.mubr.f32.mxu0 0.0
      %6403 = vmatmul.mubr.f32.gmra.mxu0 %v6206
      %v6404 = vpop.f32.mrf.mxu0
      %v6405 = vadd.f32 0.0, %v6404
      %v6406 = vpop.f32.mrf.mxu0
      %6407 = vmatprep.mubr.f32.mxu0 0.0
      %6408 = vmatmul.mubr.f32.gmra.mxu0 %v6209
      %v6409 = vpop.f32.mrf.mxu0
      %v6410 = vadd.f32 0.0, %v6409
      %v6411 = vpop.f32.mrf.mxu0
      %6412 = vmatprep.mubr.f32.mxu0 0.0
      %6413 = vmatmul.mubr.f32.gmra.mxu0 %v6212
      %v6414 = vpop.f32.mrf.mxu0
      %v6415 = vadd.f32 0.0, %v6414
      %v6416 = vpop.f32.mrf.mxu0
      %6417 = vmatprep.mubr.f32.mxu0 0.0
      %6418 = vmatmul.mubr.f32.gmra.mxu0 %v6215
      %v6419 = vpop.f32.mrf.mxu0
      %v6420 = vadd.f32 0.0, %v6419
      %v6421 = vpop.f32.mrf.mxu0
      %6422 = vmatprep.mubr.f32.mxu0 0.0
      %6423 = vmatmul.mubr.f32.gmra.mxu0 %v6218
      %v6424 = vpop.f32.mrf.mxu0
      %v6425 = vadd.f32 0.0, %v6424
      %v6426 = vpop.f32.mrf.mxu0
      %6427 = vmatprep.mubr.f32.mxu0 0.0
      %6428 = vmatmul.mubr.f32.gmra.mxu0 %v6221
      %v6429 = vpop.f32.mrf.mxu0
      %v6430 = vadd.f32 0.0, %v6429
      %v6431 = vpop.f32.mrf.mxu0
      %6432 = vmatprep.mubr.f32.mxu0 0.0
      %6433 = vmatmul.mubr.f32.gmra.mxu0 %v6224
      %v6434 = vpop.f32.mrf.mxu0
      %v6435 = vadd.f32 0.0, %v6434
      %v6436 = vpop.f32.mrf.mxu0
      %6437 = vmatprep.mubr.f32.mxu0 0.0
      %6438 = vmatmul.mubr.f32.gmra.mxu0 %v6227
      %v6439 = vpop.f32.mrf.mxu0
      %v6440 = vadd.f32 0.0, %v6439
      %v6441 = vpop.f32.mrf.mxu0
      %6442 = vmatprep.mubr.f32.mxu0 0.0
      %6443 = vmatmul.mubr.f32.gmra.mxu0 %v6230
      %v6444 = vpop.f32.mrf.mxu0
      %v6445 = vadd.f32 0.0, %v6444
      %v6446 = vpop.f32.mrf.mxu0
      %6447 = vmatprep.mubr.f32.mxu0 0.0
      %6448 = vmatmul.mubr.f32.gmra.mxu0 %v6233
      %v6449 = vpop.f32.mrf.mxu0
      %v6450 = vadd.f32 0.0, %v6449
      %v6451 = vpop.f32.mrf.mxu0
      %6452 = vmatprep.mubr.f32.mxu0 0.0
      %6453 = vmatmul.mubr.f32.gmra.mxu0 %v6236
      %v6454 = vpop.f32.mrf.mxu0
      %v6455 = vadd.f32 0.0, %v6454
      %v6456 = vpop.f32.mrf.mxu0
      %6457 = vmatprep.mubr.f32.mxu0 0.0
      %6458 = vmatmul.mubr.f32.gmra.mxu0 %v6239
      %v6459 = vpop.f32.mrf.mxu0
      %v6460 = vadd.f32 0.0, %v6459
      %v6461 = vpop.f32.mrf.mxu0
      %6462 = vmatprep.mubr.f32.mxu0 0.0
      %6463 = vmatmul.mubr.f32.gmra.mxu0 %v6242
      %v6464 = vpop.f32.mrf.mxu0
      %v6465 = vadd.f32 0.0, %v6464
      %v6466 = vpop.f32.mrf.mxu0
      %6467 = vmatprep.mubr.f32.mxu0 0.0
      %6468 = vmatmul.mubr.f32.gmra.mxu0 %v6245
      %v6469 = vpop.f32.mrf.mxu0
      %v6470 = vadd.f32 0.0, %v6469
      %v6471 = vpop.f32.mrf.mxu0
      %6472 = vmatprep.mubr.f32.mxu0 0.0
      %6473 = vmatmul.mubr.f32.gmra.mxu0 %v6248
      %v6474 = vpop.f32.mrf.mxu0
      %v6475 = vadd.f32 0.0, %v6474
      %v6476 = vpop.f32.mrf.mxu0
      %6477 = vdwg.mxu0
      %v6478 = vadd.f32 %v6088, %v6320
      %v6479 = vadd.f32 %v6089, %v6325
      %v6480 = vadd.f32 %v6090, %v6330
      %v6481 = vadd.f32 %v6091, %v6335
      %v6482 = vadd.f32 %v6092, %v6340
      %v6483 = vadd.f32 %v6093, %v6345
      %v6484 = vadd.f32 %v6094, %v6350
      %v6485 = vadd.f32 %v6095, %v6355
      %v6486 = vadd.f32 %v6096, %v6360
      %v6487 = vadd.f32 %v6097, %v6365
      %v6488 = vadd.f32 %v6098, %v6370
      %v6489 = vadd.f32 %v6099, %v6375
      %v6490 = vadd.f32 %v6100, %v6380
      %v6491 = vadd.f32 %v6101, %v6385
      %v6492 = vadd.f32 %v6102, %v6390
      %v6493 = vadd.f32 %v6103, %v6395
      %v6494 = vadd.f32 %v6104, %v6400
      %v6495 = vadd.f32 %v6105, %v6405
      %v6496 = vadd.f32 %v6106, %v6410
      %v6497 = vadd.f32 %v6107, %v6415
      %v6498 = vadd.f32 %v6108, %v6420
      %v6499 = vadd.f32 %v6109, %v6425
      %v6500 = vadd.f32 %v6110, %v6430
      %v6501 = vadd.f32 %v6111, %v6435
      %v6502 = vadd.f32 %v6112, %v6440
      %v6503 = vadd.f32 %v6113, %v6445
      %v6504 = vadd.f32 %v6114, %v6450
      %v6505 = vadd.f32 %v6115, %v6455
      %v6506 = vadd.f32 %v6116, %v6460
      %v6507 = vadd.f32 %v6117, %v6465
      %v6508 = vadd.f32 %v6118, %v6470
      %v6509 = vadd.f32 %v6119, %v6475
      %v6510 = vld [vmem:[%s2645] sm:$0xff]
      %v6511 = vld [vmem:[%s2645 + $0x8] sm:$0xff]
      %v6512 = vld [vmem:[%s2645 + $0x18] sm:$0xff]
      %v6513 = vld [vmem:[%s2645 + $0x20] sm:$0xff]
      %v6514 = vld [vmem:[%s2645 + $0x30] sm:$0xff]
      %v6515 = vld [vmem:[%s2645 + $0x38] sm:$0xff]
      %v6516 = vld [vmem:[%s2645 + $0x48] sm:$0xff]
      %v6517 = vld [vmem:[%s2645 + $0x50] sm:$0xff]
      %v6518 = vld [vmem:[%s2645 + $0x60] sm:$0xff]
      %v6519 = vld [vmem:[%s2645 + $0x68] sm:$0xff]
      %v6520 = vld [vmem:[%s2645 + $0x78] sm:$0xff]
      %v6521 = vld [vmem:[%s2645 + $0x80] sm:$0xff]
      %v6522 = vld [vmem:[%s2645 + $0x90] sm:$0xff]
      %v6523 = vld [vmem:[%s2645 + $0x98] sm:$0xff]
      %v6524 = vld [vmem:[%s2645 + $0xa8] sm:$0xff]
      %v6525 = vld [vmem:[%s2645 + $0xb0] sm:$0xff]
      %v6526 = vld [vmem:[%s2645 + $0xc0] sm:$0xff]
      %v6527 = vld [vmem:[%s2645 + $0xc8] sm:$0xff]
      %v6528 = vld [vmem:[%s2645 + $0xd8] sm:$0xff]
      %v6529 = vld [vmem:[%s2645 + $0xe0] sm:$0xff]
      %v6530 = vld [vmem:[%s2645 + $0xf0] sm:$0xff]
      %v6531 = vld [vmem:[%s2645 + $0xf8] sm:$0xff]
      %v6532 = vld [vmem:[%s2645 + $0x108] sm:$0xff]
      %v6533 = vld [vmem:[%s2645 + $0x110] sm:$0xff]
      %v6534 = vld [vmem:[%s2645 + $0x120] sm:$0xff]
      %v6535 = vld [vmem:[%s2645 + $0x128] sm:$0xff]
      %v6536 = vld [vmem:[%s2645 + $0x138] sm:$0xff]
      %v6537 = vld [vmem:[%s2645 + $0x140] sm:$0xff]
      %v6538 = vld [vmem:[%s2645 + $0x150] sm:$0xff]
      %v6539 = vld [vmem:[%s2645 + $0x158] sm:$0xff]
      %v6540 = vld [vmem:[%s2645 + $0x168] sm:$0xff]
      %v6541 = vld [vmem:[%s2645 + $0x170] sm:$0xff]
      %s6542 = scalar_lea.vmem %s3, 24
      %v6543 = vld [vmem:[%s6542] sm:$0xf]
      %v6545 = vsel %vm258, %v6510, 0
      %v6548 = vsel %vm258, %v6511, 0
      %v6551 = vsel %vm258, %v6512, 0
      %v6554 = vsel %vm258, %v6513, 0
      %v6557 = vsel %vm258, %v6514, 0
      %v6560 = vsel %vm258, %v6515, 0
      %v6563 = vsel %vm258, %v6516, 0
      %v6566 = vsel %vm258, %v6517, 0
      %v6569 = vsel %vm258, %v6518, 0
      %v6572 = vsel %vm258, %v6519, 0
      %v6575 = vsel %vm258, %v6520, 0
      %v6578 = vsel %vm258, %v6521, 0
      %v6581 = vsel %vm258, %v6522, 0
      %v6584 = vsel %vm258, %v6523, 0
      %v6587 = vsel %vm258, %v6524, 0
      %v6590 = vsel %vm258, %v6525, 0
      %v6593 = vsel %vm258, %v6526, 0
      %v6596 = vsel %vm258, %v6527, 0
      %v6599 = vsel %vm258, %v6528, 0
      %v6602 = vsel %vm258, %v6529, 0
      %v6605 = vsel %vm258, %v6530, 0
      %v6608 = vsel %vm258, %v6531, 0
      %v6611 = vsel %vm258, %v6532, 0
      %v6614 = vsel %vm258, %v6533, 0
      %v6617 = vsel %vm258, %v6534, 0
      %v6620 = vsel %vm258, %v6535, 0
      %v6623 = vsel %vm258, %v6536, 0
      %v6626 = vsel %vm258, %v6537, 0
      %v6629 = vsel %vm258, %v6538, 0
      %v6632 = vsel %vm258, %v6539, 0
      %v6635 = vsel %vm258, %v6540, 0
      %v6638 = vsel %vm258, %v6541, 0
      %v6641 = vsel %vm532, %v6543, 0
      %6643 = vmatprep.subr.mxu0 0.0
      %6644 = vmatpush1.msra.mxu0 0.0
      %6645 = vmatprep.subr.mxu0 0.0
      %6646 = vmatpush1.msra.mxu0 0.0
      %6647 = vmatprep.subr.mxu0 0.0
      %6648 = vmatpush1.msra.mxu0 0.0
      %6649 = vmatprep.subr.mxu0 0.0
      %6650 = vmatpush1.msra.mxu0 0.0
      %6651 = vmatprep.subr.mxu0 0.0
      %6652 = vmatpush1.msra.mxu0 0.0
      %6653 = vmatprep.subr.mxu0 0.0
      %6654 = vmatpush1.msra.mxu0 0.0
      %6655 = vmatprep.subr.mxu0 0.0
      %6656 = vmatpush1.msra.mxu0 0.0
      %6657 = vmatprep.subr.mxu0 0.0
      %6658 = vmatpush1.msra.mxu0 0.0
      %6659 = vmatprep.subr.mxu0 0.0
      %6660 = vmatpush1.msra.mxu0 0.0
      %6661 = vmatprep.subr.mxu0 0.0
      %6662 = vmatpush1.msra.mxu0 0.0
      %6663 = vmatprep.subr.mxu0 0.0
      %6664 = vmatpush1.msra.mxu0 0.0
      %6665 = vmatprep.subr.mxu0 0.0
      %6666 = vmatpush1.msra.mxu0 0.0
      %6667 = vmatprep.subr.mxu0 0.0
      %6668 = vmatpush1.msra.mxu0 0.0
      %6669 = vmatprep.subr.mxu0 0.0
      %6670 = vmatpush1.msra.mxu0 0.0
      %6671 = vmatprep.subr.mxu0 0.0
      %6672 = vmatpush1.msra.mxu0 0.0
      %6673 = vmatprep.subr.mxu0 0.0
      %6674 = vmatpush1.msra.mxu0 %v6641
      %6675 = vmatprep.subr.mxu0 0.0
      %6676 = vmatpush2.msra.mxu0 0.0
      %6677 = vmatprep.subr.mxu0 0.0
      %6678 = vmatpush2.msra.mxu0 0.0
      %6679 = vmatprep.subr.mxu0 0.0
      %6680 = vmatpush2.msra.mxu0 0.0
      %6681 = vmatprep.subr.mxu0 0.0
      %6682 = vmatpush2.msra.mxu0 0.0
      %6683 = vmatprep.subr.mxu0 0.0
      %6684 = vmatpush2.msra.mxu0 0.0
      %6685 = vmatprep.subr.mxu0 0.0
      %6686 = vmatpush2.msra.mxu0 0.0
      %6687 = vmatprep.subr.mxu0 0.0
      %6688 = vmatpush2.msra.mxu0 0.0
      %6689 = vmatprep.subr.mxu0 0.0
      %6690 = vmatpush2.msra.mxu0 0.0
      %6691 = vmatprep.subr.mxu0 0.0
      %6692 = vmatpush2.msra.mxu0 0.0
      %6693 = vmatprep.subr.mxu0 0.0
      %6694 = vmatpush2.msra.mxu0 0.0
      %6695 = vmatprep.subr.mxu0 0.0
      %6696 = vmatpush2.msra.mxu0 0.0
      %6697 = vmatprep.subr.mxu0 0.0
      %6698 = vmatpush2.msra.mxu0 0.0
      %6699 = vmatprep.subr.mxu0 0.0
      %6700 = vmatpush2.msra.mxu0 0.0
      %6701 = vmatprep.subr.mxu0 0.0
      %6702 = vmatpush2.msra.mxu0 0.0
      %6703 = vmatprep.subr.mxu0 0.0
      %6704 = vmatpush2.msra.mxu0 0.0
      %6705 = vmatprep.subr.mxu0 0.0
      %6706 = vmatpush2.msra.mxu0 0.0
      %6707 = vmatprep.mubr.f32.mxu0 0.0
      %6708 = vmatmul.mubr.f32.gmra.mxu0 %v6545
      %v6709 = vpop.f32.mrf.mxu0
      %v6710 = vadd.f32 0.0, %v6709
      %v6711 = vpop.f32.mrf.mxu0
      %6712 = vmatprep.mubr.f32.mxu0 0.0
      %6713 = vmatmul.mubr.f32.gmra.mxu0 %v6548
      %v6714 = vpop.f32.mrf.mxu0
      %v6715 = vadd.f32 0.0, %v6714
      %v6716 = vpop.f32.mrf.mxu0
      %6717 = vmatprep.mubr.f32.mxu0 0.0
      %6718 = vmatmul.mubr.f32.gmra.mxu0 %v6551
      %v6719 = vpop.f32.mrf.mxu0
      %v6720 = vadd.f32 0.0, %v6719
      %v6721 = vpop.f32.mrf.mxu0
      %6722 = vmatprep.mubr.f32.mxu0 0.0
      %6723 = vmatmul.mubr.f32.gmra.mxu0 %v6554
      %v6724 = vpop.f32.mrf.mxu0
      %v6725 = vadd.f32 0.0, %v6724
      %v6726 = vpop.f32.mrf.mxu0
      %6727 = vmatprep.mubr.f32.mxu0 0.0
      %6728 = vmatmul.mubr.f32.gmra.mxu0 %v6557
      %v6729 = vpop.f32.mrf.mxu0
      %v6730 = vadd.f32 0.0, %v6729
      %v6731 = vpop.f32.mrf.mxu0
      %6732 = vmatprep.mubr.f32.mxu0 0.0
      %6733 = vmatmul.mubr.f32.gmra.mxu0 %v6560
      %v6734 = vpop.f32.mrf.mxu0
      %v6735 = vadd.f32 0.0, %v6734
      %v6736 = vpop.f32.mrf.mxu0
      %6737 = vmatprep.mubr.f32.mxu0 0.0
      %6738 = vmatmul.mubr.f32.gmra.mxu0 %v6563
      %v6739 = vpop.f32.mrf.mxu0
      %v6740 = vadd.f32 0.0, %v6739
      %v6741 = vpop.f32.mrf.mxu0
      %6742 = vmatprep.mubr.f32.mxu0 0.0
      %6743 = vmatmul.mubr.f32.gmra.mxu0 %v6566
      %v6744 = vpop.f32.mrf.mxu0
      %v6745 = vadd.f32 0.0, %v6744
      %v6746 = vpop.f32.mrf.mxu0
      %6747 = vmatprep.mubr.f32.mxu0 0.0
      %6748 = vmatmul.mubr.f32.gmra.mxu0 %v6569
      %v6749 = vpop.f32.mrf.mxu0
      %v6750 = vadd.f32 0.0, %v6749
      %v6751 = vpop.f32.mrf.mxu0
      %6752 = vmatprep.mubr.f32.mxu0 0.0
      %6753 = vmatmul.mubr.f32.gmra.mxu0 %v6572
      %v6754 = vpop.f32.mrf.mxu0
      %v6755 = vadd.f32 0.0, %v6754
      %v6756 = vpop.f32.mrf.mxu0
      %6757 = vmatprep.mubr.f32.mxu0 0.0
      %6758 = vmatmul.mubr.f32.gmra.mxu0 %v6575
      %v6759 = vpop.f32.mrf.mxu0
      %v6760 = vadd.f32 0.0, %v6759
      %v6761 = vpop.f32.mrf.mxu0
      %6762 = vmatprep.mubr.f32.mxu0 0.0
      %6763 = vmatmul.mubr.f32.gmra.mxu0 %v6578
      %v6764 = vpop.f32.mrf.mxu0
      %v6765 = vadd.f32 0.0, %v6764
      %v6766 = vpop.f32.mrf.mxu0
      %6767 = vmatprep.mubr.f32.mxu0 0.0
      %6768 = vmatmul.mubr.f32.gmra.mxu0 %v6581
      %v6769 = vpop.f32.mrf.mxu0
      %v6770 = vadd.f32 0.0, %v6769
      %v6771 = vpop.f32.mrf.mxu0
      %6772 = vmatprep.mubr.f32.mxu0 0.0
      %6773 = vmatmul.mubr.f32.gmra.mxu0 %v6584
      %v6774 = vpop.f32.mrf.mxu0
      %v6775 = vadd.f32 0.0, %v6774
      %v6776 = vpop.f32.mrf.mxu0
      %6777 = vmatprep.mubr.f32.mxu0 0.0
      %6778 = vmatmul.mubr.f32.gmra.mxu0 %v6587
      %v6779 = vpop.f32.mrf.mxu0
      %v6780 = vadd.f32 0.0, %v6779
      %v6781 = vpop.f32.mrf.mxu0
      %6782 = vmatprep.mubr.f32.mxu0 0.0
      %6783 = vmatmul.mubr.f32.gmra.mxu0 %v6590
      %v6784 = vpop.f32.mrf.mxu0
      %v6785 = vadd.f32 0.0, %v6784
      %v6786 = vpop.f32.mrf.mxu0
      %6787 = vmatprep.mubr.f32.mxu0 0.0
      %6788 = vmatmul.mubr.f32.gmra.mxu0 %v6593
      %v6789 = vpop.f32.mrf.mxu0
      %v6790 = vadd.f32 0.0, %v6789
      %v6791 = vpop.f32.mrf.mxu0
      %6792 = vmatprep.mubr.f32.mxu0 0.0
      %6793 = vmatmul.mubr.f32.gmra.mxu0 %v6596
      %v6794 = vpop.f32.mrf.mxu0
      %v6795 = vadd.f32 0.0, %v6794
      %v6796 = vpop.f32.mrf.mxu0
      %6797 = vmatprep.mubr.f32.mxu0 0.0
      %6798 = vmatmul.mubr.f32.gmra.mxu0 %v6599
      %v6799 = vpop.f32.mrf.mxu0
      %v6800 = vadd.f32 0.0, %v6799
      %v6801 = vpop.f32.mrf.mxu0
      %6802 = vmatprep.mubr.f32.mxu0 0.0
      %6803 = vmatmul.mubr.f32.gmra.mxu0 %v6602
      %v6804 = vpop.f32.mrf.mxu0
      %v6805 = vadd.f32 0.0, %v6804
      %v6806 = vpop.f32.mrf.mxu0
      %6807 = vmatprep.mubr.f32.mxu0 0.0
      %6808 = vmatmul.mubr.f32.gmra.mxu0 %v6605
      %v6809 = vpop.f32.mrf.mxu0
      %v6810 = vadd.f32 0.0, %v6809
      %v6811 = vpop.f32.mrf.mxu0
      %6812 = vmatprep.mubr.f32.mxu0 0.0
      %6813 = vmatmul.mubr.f32.gmra.mxu0 %v6608
      %v6814 = vpop.f32.mrf.mxu0
      %v6815 = vadd.f32 0.0, %v6814
      %v6816 = vpop.f32.mrf.mxu0
      %6817 = vmatprep.mubr.f32.mxu0 0.0
      %6818 = vmatmul.mubr.f32.gmra.mxu0 %v6611
      %v6819 = vpop.f32.mrf.mxu0
      %v6820 = vadd.f32 0.0, %v6819
      %v6821 = vpop.f32.mrf.mxu0
      %6822 = vmatprep.mubr.f32.mxu0 0.0
      %6823 = vmatmul.mubr.f32.gmra.mxu0 %v6614
      %v6824 = vpop.f32.mrf.mxu0
      %v6825 = vadd.f32 0.0, %v6824
      %v6826 = vpop.f32.mrf.mxu0
      %6827 = vmatprep.mubr.f32.mxu0 0.0
      %6828 = vmatmul.mubr.f32.gmra.mxu0 %v6617
      %v6829 = vpop.f32.mrf.mxu0
      %v6830 = vadd.f32 0.0, %v6829
      %v6831 = vpop.f32.mrf.mxu0
      %6832 = vmatprep.mubr.f32.mxu0 0.0
      %6833 = vmatmul.mubr.f32.gmra.mxu0 %v6620
      %v6834 = vpop.f32.mrf.mxu0
      %v6835 = vadd.f32 0.0, %v6834
      %v6836 = vpop.f32.mrf.mxu0
      %6837 = vmatprep.mubr.f32.mxu0 0.0
      %6838 = vmatmul.mubr.f32.gmra.mxu0 %v6623
      %v6839 = vpop.f32.mrf.mxu0
      %v6840 = vadd.f32 0.0, %v6839
      %v6841 = vpop.f32.mrf.mxu0
      %6842 = vmatprep.mubr.f32.mxu0 0.0
      %6843 = vmatmul.mubr.f32.gmra.mxu0 %v6626
      %v6844 = vpop.f32.mrf.mxu0
      %v6845 = vadd.f32 0.0, %v6844
      %v6846 = vpop.f32.mrf.mxu0
      %6847 = vmatprep.mubr.f32.mxu0 0.0
      %6848 = vmatmul.mubr.f32.gmra.mxu0 %v6629
      %v6849 = vpop.f32.mrf.mxu0
      %v6850 = vadd.f32 0.0, %v6849
      %v6851 = vpop.f32.mrf.mxu0
      %6852 = vmatprep.mubr.f32.mxu0 0.0
      %6853 = vmatmul.mubr.f32.gmra.mxu0 %v6632
      %v6854 = vpop.f32.mrf.mxu0
      %v6855 = vadd.f32 0.0, %v6854
      %v6856 = vpop.f32.mrf.mxu0
      %6857 = vmatprep.mubr.f32.mxu0 0.0
      %6858 = vmatmul.mubr.f32.gmra.mxu0 %v6635
      %v6859 = vpop.f32.mrf.mxu0
      %v6860 = vadd.f32 0.0, %v6859
      %v6861 = vpop.f32.mrf.mxu0
      %6862 = vmatprep.mubr.f32.mxu0 0.0
      %6863 = vmatmul.mubr.f32.gmra.mxu0 %v6638
      %v6864 = vpop.f32.mrf.mxu0
      %v6865 = vadd.f32 0.0, %v6864
      %v6866 = vpop.f32.mrf.mxu0
      %6867 = vdwg.mxu0
      %v6868 = vadd.f32 %v6478, %v6710
      %v6869 = vadd.f32 %v6479, %v6715
      %v6870 = vadd.f32 %v6480, %v6720
      %v6871 = vadd.f32 %v6481, %v6725
      %v6872 = vadd.f32 %v6482, %v6730
      %v6873 = vadd.f32 %v6483, %v6735
      %v6874 = vadd.f32 %v6484, %v6740
      %v6875 = vadd.f32 %v6485, %v6745
      %v6876 = vadd.f32 %v6486, %v6750
      %v6877 = vadd.f32 %v6487, %v6755
      %v6878 = vadd.f32 %v6488, %v6760
      %v6879 = vadd.f32 %v6489, %v6765
      %v6880 = vadd.f32 %v6490, %v6770
      %v6881 = vadd.f32 %v6491, %v6775
      %v6882 = vadd.f32 %v6492, %v6780
      %v6883 = vadd.f32 %v6493, %v6785
      %v6884 = vadd.f32 %v6494, %v6790
      %v6885 = vadd.f32 %v6495, %v6795
      %v6886 = vadd.f32 %v6496, %v6800
      %v6887 = vadd.f32 %v6497, %v6805
      %v6888 = vadd.f32 %v6498, %v6810
      %v6889 = vadd.f32 %v6499, %v6815
      %v6890 = vadd.f32 %v6500, %v6820
      %v6891 = vadd.f32 %v6501, %v6825
      %v6892 = vadd.f32 %v6502, %v6830
      %v6893 = vadd.f32 %v6503, %v6835
      %v6894 = vadd.f32 %v6504, %v6840
      %v6895 = vadd.f32 %v6505, %v6845
      %v6896 = vadd.f32 %v6506, %v6850
      %v6897 = vadd.f32 %v6507, %v6855
      %v6898 = vadd.f32 %v6508, %v6860
      %v6899 = vadd.f32 %v6509, %v6865
      %v6900 = vld [vmem:[%s2645 + $0x1] sm:$0xff]
      %v6901 = vld [vmem:[%s2645 + $0x9] sm:$0xff]
      %v6902 = vld [vmem:[%s2645 + $0x19] sm:$0xff]
      %v6903 = vld [vmem:[%s2645 + $0x21] sm:$0xff]
      %v6904 = vld [vmem:[%s2645 + $0x31] sm:$0xff]
      %v6905 = vld [vmem:[%s2645 + $0x39] sm:$0xff]
      %v6906 = vld [vmem:[%s2645 + $0x49] sm:$0xff]
      %v6907 = vld [vmem:[%s2645 + $0x51] sm:$0xff]
      %v6908 = vld [vmem:[%s2645 + $0x61] sm:$0xff]
      %v6909 = vld [vmem:[%s2645 + $0x69] sm:$0xff]
      %v6910 = vld [vmem:[%s2645 + $0x79] sm:$0xff]
      %v6911 = vld [vmem:[%s2645 + $0x81] sm:$0xff]
      %v6912 = vld [vmem:[%s2645 + $0x91] sm:$0xff]
      %v6913 = vld [vmem:[%s2645 + $0x99] sm:$0xff]
      %v6914 = vld [vmem:[%s2645 + $0xa9] sm:$0xff]
      %v6915 = vld [vmem:[%s2645 + $0xb1] sm:$0xff]
      %v6916 = vld [vmem:[%s2645 + $0xc1] sm:$0xff]
      %v6917 = vld [vmem:[%s2645 + $0xc9] sm:$0xff]
      %v6918 = vld [vmem:[%s2645 + $0xd9] sm:$0xff]
      %v6919 = vld [vmem:[%s2645 + $0xe1] sm:$0xff]
      %v6920 = vld [vmem:[%s2645 + $0xf1] sm:$0xff]
      %v6921 = vld [vmem:[%s2645 + $0xf9] sm:$0xff]
      %v6922 = vld [vmem:[%s2645 + $0x109] sm:$0xff]
      %v6923 = vld [vmem:[%s2645 + $0x111] sm:$0xff]
      %v6924 = vld [vmem:[%s2645 + $0x121] sm:$0xff]
      %v6925 = vld [vmem:[%s2645 + $0x129] sm:$0xff]
      %v6926 = vld [vmem:[%s2645 + $0x139] sm:$0xff]
      %v6927 = vld [vmem:[%s2645 + $0x141] sm:$0xff]
      %v6928 = vld [vmem:[%s2645 + $0x151] sm:$0xff]
      %v6929 = vld [vmem:[%s2645 + $0x159] sm:$0xff]
      %v6930 = vld [vmem:[%s2645 + $0x169] sm:$0xff]
      %v6931 = vld [vmem:[%s2645 + $0x171] sm:$0xff]
      %s6932 = scalar_lea.vmem %s3, 28
      %v6933 = vld [vmem:[%s6932] sm:$0xf]
      %v6935 = vsel %vm258, %v6900, 0
      %v6938 = vsel %vm258, %v6901, 0
      %v6941 = vsel %vm258, %v6902, 0
      %v6944 = vsel %vm258, %v6903, 0
      %v6947 = vsel %vm258, %v6904, 0
      %v6950 = vsel %vm258, %v6905, 0
      %v6953 = vsel %vm258, %v6906, 0
      %v6956 = vsel %vm258, %v6907, 0
      %v6959 = vsel %vm258, %v6908, 0
      %v6962 = vsel %vm258, %v6909, 0
      %v6965 = vsel %vm258, %v6910, 0
      %v6968 = vsel %vm258, %v6911, 0
      %v6971 = vsel %vm258, %v6912, 0
      %v6974 = vsel %vm258, %v6913, 0
      %v6977 = vsel %vm258, %v6914, 0
      %v6980 = vsel %vm258, %v6915, 0
      %v6983 = vsel %vm258, %v6916, 0
      %v6986 = vsel %vm258, %v6917, 0
      %v6989 = vsel %vm258, %v6918, 0
      %v6992 = vsel %vm258, %v6919, 0
      %v6995 = vsel %vm258, %v6920, 0
      %v6998 = vsel %vm258, %v6921, 0
      %v7001 = vsel %vm258, %v6922, 0
      %v7004 = vsel %vm258, %v6923, 0
      %v7007 = vsel %vm258, %v6924, 0
      %v7010 = vsel %vm258, %v6925, 0
      %v7013 = vsel %vm258, %v6926, 0
      %v7016 = vsel %vm258, %v6927, 0
      %v7019 = vsel %vm258, %v6928, 0
      %v7022 = vsel %vm258, %v6929, 0
      %v7025 = vsel %vm258, %v6930, 0
      %v7028 = vsel %vm258, %v6931, 0
      %v7031 = vsel %vm532, %v6933, 0
      %7033 = vmatprep.subr.mxu0 0.0
      %7034 = vmatpush1.msra.mxu0 0.0
      %7035 = vmatprep.subr.mxu0 0.0
      %7036 = vmatpush1.msra.mxu0 0.0
      %7037 = vmatprep.subr.mxu0 0.0
      %7038 = vmatpush1.msra.mxu0 0.0
      %7039 = vmatprep.subr.mxu0 0.0
      %7040 = vmatpush1.msra.mxu0 0.0
      %7041 = vmatprep.subr.mxu0 0.0
      %7042 = vmatpush1.msra.mxu0 0.0
      %7043 = vmatprep.subr.mxu0 0.0
      %7044 = vmatpush1.msra.mxu0 0.0
      %7045 = vmatprep.subr.mxu0 0.0
      %7046 = vmatpush1.msra.mxu0 0.0
      %7047 = vmatprep.subr.mxu0 0.0
      %7048 = vmatpush1.msra.mxu0 0.0
      %7049 = vmatprep.subr.mxu0 0.0
      %7050 = vmatpush1.msra.mxu0 0.0
      %7051 = vmatprep.subr.mxu0 0.0
      %7052 = vmatpush1.msra.mxu0 0.0
      %7053 = vmatprep.subr.mxu0 0.0
      %7054 = vmatpush1.msra.mxu0 0.0
      %7055 = vmatprep.subr.mxu0 0.0
      %7056 = vmatpush1.msra.mxu0 0.0
      %7057 = vmatprep.subr.mxu0 0.0
      %7058 = vmatpush1.msra.mxu0 0.0
      %7059 = vmatprep.subr.mxu0 0.0
      %7060 = vmatpush1.msra.mxu0 0.0
      %7061 = vmatprep.subr.mxu0 0.0
      %7062 = vmatpush1.msra.mxu0 0.0
      %7063 = vmatprep.subr.mxu0 0.0
      %7064 = vmatpush1.msra.mxu0 %v7031
      %7065 = vmatprep.subr.mxu0 0.0
      %7066 = vmatpush2.msra.mxu0 0.0
      %7067 = vmatprep.subr.mxu0 0.0
      %7068 = vmatpush2.msra.mxu0 0.0
      %7069 = vmatprep.subr.mxu0 0.0
      %7070 = vmatpush2.msra.mxu0 0.0
      %7071 = vmatprep.subr.mxu0 0.0
      %7072 = vmatpush2.msra.mxu0 0.0
      %7073 = vmatprep.subr.mxu0 0.0
      %7074 = vmatpush2.msra.mxu0 0.0
      %7075 = vmatprep.subr.mxu0 0.0
      %7076 = vmatpush2.msra.mxu0 0.0
      %7077 = vmatprep.subr.mxu0 0.0
      %7078 = vmatpush2.msra.mxu0 0.0
      %7079 = vmatprep.subr.mxu0 0.0
      %7080 = vmatpush2.msra.mxu0 0.0
      %7081 = vmatprep.subr.mxu0 0.0
      %7082 = vmatpush2.msra.mxu0 0.0
      %7083 = vmatprep.subr.mxu0 0.0
      %7084 = vmatpush2.msra.mxu0 0.0
      %7085 = vmatprep.subr.mxu0 0.0
      %7086 = vmatpush2.msra.mxu0 0.0
      %7087 = vmatprep.subr.mxu0 0.0
      %7088 = vmatpush2.msra.mxu0 0.0
      %7089 = vmatprep.subr.mxu0 0.0
      %7090 = vmatpush2.msra.mxu0 0.0
      %7091 = vmatprep.subr.mxu0 0.0
      %7092 = vmatpush2.msra.mxu0 0.0
      %7093 = vmatprep.subr.mxu0 0.0
      %7094 = vmatpush2.msra.mxu0 0.0
      %7095 = vmatprep.subr.mxu0 0.0
      %7096 = vmatpush2.msra.mxu0 0.0
      %7097 = vmatprep.mubr.f32.mxu0 0.0
      %7098 = vmatmul.mubr.f32.gmra.mxu0 %v6935
      %v7099 = vpop.f32.mrf.mxu0
      %v7100 = vadd.f32 0.0, %v7099
      %v7101 = vpop.f32.mrf.mxu0
      %7102 = vmatprep.mubr.f32.mxu0 0.0
      %7103 = vmatmul.mubr.f32.gmra.mxu0 %v6938
      %v7104 = vpop.f32.mrf.mxu0
      %v7105 = vadd.f32 0.0, %v7104
      %v7106 = vpop.f32.mrf.mxu0
      %7107 = vmatprep.mubr.f32.mxu0 0.0
      %7108 = vmatmul.mubr.f32.gmra.mxu0 %v6941
      %v7109 = vpop.f32.mrf.mxu0
      %v7110 = vadd.f32 0.0, %v7109
      %v7111 = vpop.f32.mrf.mxu0
      %7112 = vmatprep.mubr.f32.mxu0 0.0
      %7113 = vmatmul.mubr.f32.gmra.mxu0 %v6944
      %v7114 = vpop.f32.mrf.mxu0
      %v7115 = vadd.f32 0.0, %v7114
      %v7116 = vpop.f32.mrf.mxu0
      %7117 = vmatprep.mubr.f32.mxu0 0.0
      %7118 = vmatmul.mubr.f32.gmra.mxu0 %v6947
      %v7119 = vpop.f32.mrf.mxu0
      %v7120 = vadd.f32 0.0, %v7119
      %v7121 = vpop.f32.mrf.mxu0
      %7122 = vmatprep.mubr.f32.mxu0 0.0
      %7123 = vmatmul.mubr.f32.gmra.mxu0 %v6950
      %v7124 = vpop.f32.mrf.mxu0
      %v7125 = vadd.f32 0.0, %v7124
      %v7126 = vpop.f32.mrf.mxu0
      %7127 = vmatprep.mubr.f32.mxu0 0.0
      %7128 = vmatmul.mubr.f32.gmra.mxu0 %v6953
      %v7129 = vpop.f32.mrf.mxu0
      %v7130 = vadd.f32 0.0, %v7129
      %v7131 = vpop.f32.mrf.mxu0
      %7132 = vmatprep.mubr.f32.mxu0 0.0
      %7133 = vmatmul.mubr.f32.gmra.mxu0 %v6956
      %v7134 = vpop.f32.mrf.mxu0
      %v7135 = vadd.f32 0.0, %v7134
      %v7136 = vpop.f32.mrf.mxu0
      %7137 = vmatprep.mubr.f32.mxu0 0.0
      %7138 = vmatmul.mubr.f32.gmra.mxu0 %v6959
      %v7139 = vpop.f32.mrf.mxu0
      %v7140 = vadd.f32 0.0, %v7139
      %v7141 = vpop.f32.mrf.mxu0
      %7142 = vmatprep.mubr.f32.mxu0 0.0
      %7143 = vmatmul.mubr.f32.gmra.mxu0 %v6962
      %v7144 = vpop.f32.mrf.mxu0
      %v7145 = vadd.f32 0.0, %v7144
      %v7146 = vpop.f32.mrf.mxu0
      %7147 = vmatprep.mubr.f32.mxu0 0.0
      %7148 = vmatmul.mubr.f32.gmra.mxu0 %v6965
      %v7149 = vpop.f32.mrf.mxu0
      %v7150 = vadd.f32 0.0, %v7149
      %v7151 = vpop.f32.mrf.mxu0
      %7152 = vmatprep.mubr.f32.mxu0 0.0
      %7153 = vmatmul.mubr.f32.gmra.mxu0 %v6968
      %v7154 = vpop.f32.mrf.mxu0
      %v7155 = vadd.f32 0.0, %v7154
      %v7156 = vpop.f32.mrf.mxu0
      %7157 = vmatprep.mubr.f32.mxu0 0.0
      %7158 = vmatmul.mubr.f32.gmra.mxu0 %v6971
      %v7159 = vpop.f32.mrf.mxu0
      %v7160 = vadd.f32 0.0, %v7159
      %v7161 = vpop.f32.mrf.mxu0
      %7162 = vmatprep.mubr.f32.mxu0 0.0
      %7163 = vmatmul.mubr.f32.gmra.mxu0 %v6974
      %v7164 = vpop.f32.mrf.mxu0
      %v7165 = vadd.f32 0.0, %v7164
      %v7166 = vpop.f32.mrf.mxu0
      %7167 = vmatprep.mubr.f32.mxu0 0.0
      %7168 = vmatmul.mubr.f32.gmra.mxu0 %v6977
      %v7169 = vpop.f32.mrf.mxu0
      %v7170 = vadd.f32 0.0, %v7169
      %v7171 = vpop.f32.mrf.mxu0
      %7172 = vmatprep.mubr.f32.mxu0 0.0
      %7173 = vmatmul.mubr.f32.gmra.mxu0 %v6980
      %v7174 = vpop.f32.mrf.mxu0
      %v7175 = vadd.f32 0.0, %v7174
      %v7176 = vpop.f32.mrf.mxu0
      %7177 = vmatprep.mubr.f32.mxu0 0.0
      %7178 = vmatmul.mubr.f32.gmra.mxu0 %v6983
      %v7179 = vpop.f32.mrf.mxu0
      %v7180 = vadd.f32 0.0, %v7179
      %v7181 = vpop.f32.mrf.mxu0
      %7182 = vmatprep.mubr.f32.mxu0 0.0
      %7183 = vmatmul.mubr.f32.gmra.mxu0 %v6986
      %v7184 = vpop.f32.mrf.mxu0
      %v7185 = vadd.f32 0.0, %v7184
      %v7186 = vpop.f32.mrf.mxu0
      %7187 = vmatprep.mubr.f32.mxu0 0.0
      %7188 = vmatmul.mubr.f32.gmra.mxu0 %v6989
      %v7189 = vpop.f32.mrf.mxu0
      %v7190 = vadd.f32 0.0, %v7189
      %v7191 = vpop.f32.mrf.mxu0
      %7192 = vmatprep.mubr.f32.mxu0 0.0
      %7193 = vmatmul.mubr.f32.gmra.mxu0 %v6992
      %v7194 = vpop.f32.mrf.mxu0
      %v7195 = vadd.f32 0.0, %v7194
      %v7196 = vpop.f32.mrf.mxu0
      %7197 = vmatprep.mubr.f32.mxu0 0.0
      %7198 = vmatmul.mubr.f32.gmra.mxu0 %v6995
      %v7199 = vpop.f32.mrf.mxu0
      %v7200 = vadd.f32 0.0, %v7199
      %v7201 = vpop.f32.mrf.mxu0
      %7202 = vmatprep.mubr.f32.mxu0 0.0
      %7203 = vmatmul.mubr.f32.gmra.mxu0 %v6998
      %v7204 = vpop.f32.mrf.mxu0
      %v7205 = vadd.f32 0.0, %v7204
      %v7206 = vpop.f32.mrf.mxu0
      %7207 = vmatprep.mubr.f32.mxu0 0.0
      %7208 = vmatmul.mubr.f32.gmra.mxu0 %v7001
      %v7209 = vpop.f32.mrf.mxu0
      %v7210 = vadd.f32 0.0, %v7209
      %v7211 = vpop.f32.mrf.mxu0
      %7212 = vmatprep.mubr.f32.mxu0 0.0
      %7213 = vmatmul.mubr.f32.gmra.mxu0 %v7004
      %v7214 = vpop.f32.mrf.mxu0
      %v7215 = vadd.f32 0.0, %v7214
      %v7216 = vpop.f32.mrf.mxu0
      %7217 = vmatprep.mubr.f32.mxu0 0.0
      %7218 = vmatmul.mubr.f32.gmra.mxu0 %v7007
      %v7219 = vpop.f32.mrf.mxu0
      %v7220 = vadd.f32 0.0, %v7219
      %v7221 = vpop.f32.mrf.mxu0
      %7222 = vmatprep.mubr.f32.mxu0 0.0
      %7223 = vmatmul.mubr.f32.gmra.mxu0 %v7010
      %v7224 = vpop.f32.mrf.mxu0
      %v7225 = vadd.f32 0.0, %v7224
      %v7226 = vpop.f32.mrf.mxu0
      %7227 = vmatprep.mubr.f32.mxu0 0.0
      %7228 = vmatmul.mubr.f32.gmra.mxu0 %v7013
      %v7229 = vpop.f32.mrf.mxu0
      %v7230 = vadd.f32 0.0, %v7229
      %v7231 = vpop.f32.mrf.mxu0
      %7232 = vmatprep.mubr.f32.mxu0 0.0
      %7233 = vmatmul.mubr.f32.gmra.mxu0 %v7016
      %v7234 = vpop.f32.mrf.mxu0
      %v7235 = vadd.f32 0.0, %v7234
      %v7236 = vpop.f32.mrf.mxu0
      %7237 = vmatprep.mubr.f32.mxu0 0.0
      %7238 = vmatmul.mubr.f32.gmra.mxu0 %v7019
      %v7239 = vpop.f32.mrf.mxu0
      %v7240 = vadd.f32 0.0, %v7239
      %v7241 = vpop.f32.mrf.mxu0
      %7242 = vmatprep.mubr.f32.mxu0 0.0
      %7243 = vmatmul.mubr.f32.gmra.mxu0 %v7022
      %v7244 = vpop.f32.mrf.mxu0
      %v7245 = vadd.f32 0.0, %v7244
      %v7246 = vpop.f32.mrf.mxu0
      %7247 = vmatprep.mubr.f32.mxu0 0.0
      %7248 = vmatmul.mubr.f32.gmra.mxu0 %v7025
      %v7249 = vpop.f32.mrf.mxu0
      %v7250 = vadd.f32 0.0, %v7249
      %v7251 = vpop.f32.mrf.mxu0
      %7252 = vmatprep.mubr.f32.mxu0 0.0
      %7253 = vmatmul.mubr.f32.gmra.mxu0 %v7028
      %v7254 = vpop.f32.mrf.mxu0
      %v7255 = vadd.f32 0.0, %v7254
      %v7256 = vpop.f32.mrf.mxu0
      %7257 = vdwg.mxu0
      %v7258 = vadd.f32 %v6868, %v7100
      %v7259 = vadd.f32 %v6869, %v7105
      %v7260 = vadd.f32 %v6870, %v7110
      %v7261 = vadd.f32 %v6871, %v7115
      %v7262 = vadd.f32 %v6872, %v7120
      %v7263 = vadd.f32 %v6873, %v7125
      %v7264 = vadd.f32 %v6874, %v7130
      %v7265 = vadd.f32 %v6875, %v7135
      %v7266 = vadd.f32 %v6876, %v7140
      %v7267 = vadd.f32 %v6877, %v7145
      %v7268 = vadd.f32 %v6878, %v7150
      %v7269 = vadd.f32 %v6879, %v7155
      %v7270 = vadd.f32 %v6880, %v7160
      %v7271 = vadd.f32 %v6881, %v7165
      %v7272 = vadd.f32 %v6882, %v7170
      %v7273 = vadd.f32 %v6883, %v7175
      %v7274 = vadd.f32 %v6884, %v7180
      %v7275 = vadd.f32 %v6885, %v7185
      %v7276 = vadd.f32 %v6886, %v7190
      %v7277 = vadd.f32 %v6887, %v7195
      %v7278 = vadd.f32 %v6888, %v7200
      %v7279 = vadd.f32 %v6889, %v7205
      %v7280 = vadd.f32 %v6890, %v7210
      %v7281 = vadd.f32 %v6891, %v7215
      %v7282 = vadd.f32 %v6892, %v7220
      %v7283 = vadd.f32 %v6893, %v7225
      %v7284 = vadd.f32 %v6894, %v7230
      %v7285 = vadd.f32 %v6895, %v7235
      %v7286 = vadd.f32 %v6896, %v7240
      %v7287 = vadd.f32 %v6897, %v7245
      %v7288 = vadd.f32 %v6898, %v7250
      %v7289 = vadd.f32 %v6899, %v7255
      %v7290 = vld [vmem:[%s2645 + $0x2] sm:$0xff]
      %v7291 = vld [vmem:[%s2645 + $0xa] sm:$0xff]
      %v7292 = vld [vmem:[%s2645 + $0x1a] sm:$0xff]
      %v7293 = vld [vmem:[%s2645 + $0x22] sm:$0xff]
      %v7294 = vld [vmem:[%s2645 + $0x32] sm:$0xff]
      %v7295 = vld [vmem:[%s2645 + $0x3a] sm:$0xff]
      %v7296 = vld [vmem:[%s2645 + $0x4a] sm:$0xff]
      %v7297 = vld [vmem:[%s2645 + $0x52] sm:$0xff]
      %v7298 = vld [vmem:[%s2645 + $0x62] sm:$0xff]
      %v7299 = vld [vmem:[%s2645 + $0x6a] sm:$0xff]
      %v7300 = vld [vmem:[%s2645 + $0x7a] sm:$0xff]
      %v7301 = vld [vmem:[%s2645 + $0x82] sm:$0xff]
      %v7302 = vld [vmem:[%s2645 + $0x92] sm:$0xff]
      %v7303 = vld [vmem:[%s2645 + $0x9a] sm:$0xff]
      %v7304 = vld [vmem:[%s2645 + $0xaa] sm:$0xff]
      %v7305 = vld [vmem:[%s2645 + $0xb2] sm:$0xff]
      %v7306 = vld [vmem:[%s2645 + $0xc2] sm:$0xff]
      %v7307 = vld [vmem:[%s2645 + $0xca] sm:$0xff]
      %v7308 = vld [vmem:[%s2645 + $0xda] sm:$0xff]
      %v7309 = vld [vmem:[%s2645 + $0xe2] sm:$0xff]
      %v7310 = vld [vmem:[%s2645 + $0xf2] sm:$0xff]
      %v7311 = vld [vmem:[%s2645 + $0xfa] sm:$0xff]
      %v7312 = vld [vmem:[%s2645 + $0x10a] sm:$0xff]
      %v7313 = vld [vmem:[%s2645 + $0x112] sm:$0xff]
      %v7314 = vld [vmem:[%s2645 + $0x122] sm:$0xff]
      %v7315 = vld [vmem:[%s2645 + $0x12a] sm:$0xff]
      %v7316 = vld [vmem:[%s2645 + $0x13a] sm:$0xff]
      %v7317 = vld [vmem:[%s2645 + $0x142] sm:$0xff]
      %v7318 = vld [vmem:[%s2645 + $0x152] sm:$0xff]
      %v7319 = vld [vmem:[%s2645 + $0x15a] sm:$0xff]
      %v7320 = vld [vmem:[%s2645 + $0x16a] sm:$0xff]
      %v7321 = vld [vmem:[%s2645 + $0x172] sm:$0xff]
      %s7322 = scalar_lea.vmem %s3, 32
      %v7323 = vld [vmem:[%s7322] sm:$0xf]
      %v7325 = vsel %vm258, %v7290, 0
      %v7328 = vsel %vm258, %v7291, 0
      %v7331 = vsel %vm258, %v7292, 0
      %v7334 = vsel %vm258, %v7293, 0
      %v7337 = vsel %vm258, %v7294, 0
      %v7340 = vsel %vm258, %v7295, 0
      %v7343 = vsel %vm258, %v7296, 0
      %v7346 = vsel %vm258, %v7297, 0
      %v7349 = vsel %vm258, %v7298, 0
      %v7352 = vsel %vm258, %v7299, 0
      %v7355 = vsel %vm258, %v7300, 0
      %v7358 = vsel %vm258, %v7301, 0
      %v7361 = vsel %vm258, %v7302, 0
      %v7364 = vsel %vm258, %v7303, 0
      %v7367 = vsel %vm258, %v7304, 0
      %v7370 = vsel %vm258, %v7305, 0
      %v7373 = vsel %vm258, %v7306, 0
      %v7376 = vsel %vm258, %v7307, 0
      %v7379 = vsel %vm258, %v7308, 0
      %v7382 = vsel %vm258, %v7309, 0
      %v7385 = vsel %vm258, %v7310, 0
      %v7388 = vsel %vm258, %v7311, 0
      %v7391 = vsel %vm258, %v7312, 0
      %v7394 = vsel %vm258, %v7313, 0
      %v7397 = vsel %vm258, %v7314, 0
      %v7400 = vsel %vm258, %v7315, 0
      %v7403 = vsel %vm258, %v7316, 0
      %v7406 = vsel %vm258, %v7317, 0
      %v7409 = vsel %vm258, %v7318, 0
      %v7412 = vsel %vm258, %v7319, 0
      %v7415 = vsel %vm258, %v7320, 0
      %v7418 = vsel %vm258, %v7321, 0
      %v7421 = vsel %vm532, %v7323, 0
      %7423 = vmatprep.subr.mxu0 0.0
      %7424 = vmatpush1.msra.mxu0 0.0
      %7425 = vmatprep.subr.mxu0 0.0
      %7426 = vmatpush1.msra.mxu0 0.0
      %7427 = vmatprep.subr.mxu0 0.0
      %7428 = vmatpush1.msra.mxu0 0.0
      %7429 = vmatprep.subr.mxu0 0.0
      %7430 = vmatpush1.msra.mxu0 0.0
      %7431 = vmatprep.subr.mxu0 0.0
      %7432 = vmatpush1.msra.mxu0 0.0
      %7433 = vmatprep.subr.mxu0 0.0
      %7434 = vmatpush1.msra.mxu0 0.0
      %7435 = vmatprep.subr.mxu0 0.0
      %7436 = vmatpush1.msra.mxu0 0.0
      %7437 = vmatprep.subr.mxu0 0.0
      %7438 = vmatpush1.msra.mxu0 0.0
      %7439 = vmatprep.subr.mxu0 0.0
      %7440 = vmatpush1.msra.mxu0 0.0
      %7441 = vmatprep.subr.mxu0 0.0
      %7442 = vmatpush1.msra.mxu0 0.0
      %7443 = vmatprep.subr.mxu0 0.0
      %7444 = vmatpush1.msra.mxu0 0.0
      %7445 = vmatprep.subr.mxu0 0.0
      %7446 = vmatpush1.msra.mxu0 0.0
      %7447 = vmatprep.subr.mxu0 0.0
      %7448 = vmatpush1.msra.mxu0 0.0
      %7449 = vmatprep.subr.mxu0 0.0
      %7450 = vmatpush1.msra.mxu0 0.0
      %7451 = vmatprep.subr.mxu0 0.0
      %7452 = vmatpush1.msra.mxu0 0.0
      %7453 = vmatprep.subr.mxu0 0.0
      %7454 = vmatpush1.msra.mxu0 %v7421
      %7455 = vmatprep.subr.mxu0 0.0
      %7456 = vmatpush2.msra.mxu0 0.0
      %7457 = vmatprep.subr.mxu0 0.0
      %7458 = vmatpush2.msra.mxu0 0.0
      %7459 = vmatprep.subr.mxu0 0.0
      %7460 = vmatpush2.msra.mxu0 0.0
      %7461 = vmatprep.subr.mxu0 0.0
      %7462 = vmatpush2.msra.mxu0 0.0
      %7463 = vmatprep.subr.mxu0 0.0
      %7464 = vmatpush2.msra.mxu0 0.0
      %7465 = vmatprep.subr.mxu0 0.0
      %7466 = vmatpush2.msra.mxu0 0.0
      %7467 = vmatprep.subr.mxu0 0.0
      %7468 = vmatpush2.msra.mxu0 0.0
      %7469 = vmatprep.subr.mxu0 0.0
      %7470 = vmatpush2.msra.mxu0 0.0
      %7471 = vmatprep.subr.mxu0 0.0
      %7472 = vmatpush2.msra.mxu0 0.0
      %7473 = vmatprep.subr.mxu0 0.0
      %7474 = vmatpush2.msra.mxu0 0.0
      %7475 = vmatprep.subr.mxu0 0.0
      %7476 = vmatpush2.msra.mxu0 0.0
      %7477 = vmatprep.subr.mxu0 0.0
      %7478 = vmatpush2.msra.mxu0 0.0
      %7479 = vmatprep.subr.mxu0 0.0
      %7480 = vmatpush2.msra.mxu0 0.0
      %7481 = vmatprep.subr.mxu0 0.0
      %7482 = vmatpush2.msra.mxu0 0.0
      %7483 = vmatprep.subr.mxu0 0.0
      %7484 = vmatpush2.msra.mxu0 0.0
      %7485 = vmatprep.subr.mxu0 0.0
      %7486 = vmatpush2.msra.mxu0 0.0
      %7487 = vmatprep.mubr.f32.mxu0 0.0
      %7488 = vmatmul.mubr.f32.gmra.mxu0 %v7325
      %v7489 = vpop.f32.mrf.mxu0
      %v7490 = vadd.f32 0.0, %v7489
      %v7491 = vpop.f32.mrf.mxu0
      %7492 = vmatprep.mubr.f32.mxu0 0.0
      %7493 = vmatmul.mubr.f32.gmra.mxu0 %v7328
      %v7494 = vpop.f32.mrf.mxu0
      %v7495 = vadd.f32 0.0, %v7494
      %v7496 = vpop.f32.mrf.mxu0
      %7497 = vmatprep.mubr.f32.mxu0 0.0
      %7498 = vmatmul.mubr.f32.gmra.mxu0 %v7331
      %v7499 = vpop.f32.mrf.mxu0
      %v7500 = vadd.f32 0.0, %v7499
      %v7501 = vpop.f32.mrf.mxu0
      %7502 = vmatprep.mubr.f32.mxu0 0.0
      %7503 = vmatmul.mubr.f32.gmra.mxu0 %v7334
      %v7504 = vpop.f32.mrf.mxu0
      %v7505 = vadd.f32 0.0, %v7504
      %v7506 = vpop.f32.mrf.mxu0
      %7507 = vmatprep.mubr.f32.mxu0 0.0
      %7508 = vmatmul.mubr.f32.gmra.mxu0 %v7337
      %v7509 = vpop.f32.mrf.mxu0
      %v7510 = vadd.f32 0.0, %v7509
      %v7511 = vpop.f32.mrf.mxu0
      %7512 = vmatprep.mubr.f32.mxu0 0.0
      %7513 = vmatmul.mubr.f32.gmra.mxu0 %v7340
      %v7514 = vpop.f32.mrf.mxu0
      %v7515 = vadd.f32 0.0, %v7514
      %v7516 = vpop.f32.mrf.mxu0
      %7517 = vmatprep.mubr.f32.mxu0 0.0
      %7518 = vmatmul.mubr.f32.gmra.mxu0 %v7343
      %v7519 = vpop.f32.mrf.mxu0
      %v7520 = vadd.f32 0.0, %v7519
      %v7521 = vpop.f32.mrf.mxu0
      %7522 = vmatprep.mubr.f32.mxu0 0.0
      %7523 = vmatmul.mubr.f32.gmra.mxu0 %v7346
      %v7524 = vpop.f32.mrf.mxu0
      %v7525 = vadd.f32 0.0, %v7524
      %v7526 = vpop.f32.mrf.mxu0
      %7527 = vmatprep.mubr.f32.mxu0 0.0
      %7528 = vmatmul.mubr.f32.gmra.mxu0 %v7349
      %v7529 = vpop.f32.mrf.mxu0
      %v7530 = vadd.f32 0.0, %v7529
      %v7531 = vpop.f32.mrf.mxu0
      %7532 = vmatprep.mubr.f32.mxu0 0.0
      %7533 = vmatmul.mubr.f32.gmra.mxu0 %v7352
      %v7534 = vpop.f32.mrf.mxu0
      %v7535 = vadd.f32 0.0, %v7534
      %v7536 = vpop.f32.mrf.mxu0
      %7537 = vmatprep.mubr.f32.mxu0 0.0
      %7538 = vmatmul.mubr.f32.gmra.mxu0 %v7355
      %v7539 = vpop.f32.mrf.mxu0
      %v7540 = vadd.f32 0.0, %v7539
      %v7541 = vpop.f32.mrf.mxu0
      %7542 = vmatprep.mubr.f32.mxu0 0.0
      %7543 = vmatmul.mubr.f32.gmra.mxu0 %v7358
      %v7544 = vpop.f32.mrf.mxu0
      %v7545 = vadd.f32 0.0, %v7544
      %v7546 = vpop.f32.mrf.mxu0
      %7547 = vmatprep.mubr.f32.mxu0 0.0
      %7548 = vmatmul.mubr.f32.gmra.mxu0 %v7361
      %v7549 = vpop.f32.mrf.mxu0
      %v7550 = vadd.f32 0.0, %v7549
      %v7551 = vpop.f32.mrf.mxu0
      %7552 = vmatprep.mubr.f32.mxu0 0.0
      %7553 = vmatmul.mubr.f32.gmra.mxu0 %v7364
      %v7554 = vpop.f32.mrf.mxu0
      %v7555 = vadd.f32 0.0, %v7554
      %v7556 = vpop.f32.mrf.mxu0
      %7557 = vmatprep.mubr.f32.mxu0 0.0
      %7558 = vmatmul.mubr.f32.gmra.mxu0 %v7367
      %v7559 = vpop.f32.mrf.mxu0
      %v7560 = vadd.f32 0.0, %v7559
      %v7561 = vpop.f32.mrf.mxu0
      %7562 = vmatprep.mubr.f32.mxu0 0.0
      %7563 = vmatmul.mubr.f32.gmra.mxu0 %v7370
      %v7564 = vpop.f32.mrf.mxu0
      %v7565 = vadd.f32 0.0, %v7564
      %v7566 = vpop.f32.mrf.mxu0
      %7567 = vmatprep.mubr.f32.mxu0 0.0
      %7568 = vmatmul.mubr.f32.gmra.mxu0 %v7373
      %v7569 = vpop.f32.mrf.mxu0
      %v7570 = vadd.f32 0.0, %v7569
      %v7571 = vpop.f32.mrf.mxu0
      %7572 = vmatprep.mubr.f32.mxu0 0.0
      %7573 = vmatmul.mubr.f32.gmra.mxu0 %v7376
      %v7574 = vpop.f32.mrf.mxu0
      %v7575 = vadd.f32 0.0, %v7574
      %v7576 = vpop.f32.mrf.mxu0
      %7577 = vmatprep.mubr.f32.mxu0 0.0
      %7578 = vmatmul.mubr.f32.gmra.mxu0 %v7379
      %v7579 = vpop.f32.mrf.mxu0
      %v7580 = vadd.f32 0.0, %v7579
      %v7581 = vpop.f32.mrf.mxu0
      %7582 = vmatprep.mubr.f32.mxu0 0.0
      %7583 = vmatmul.mubr.f32.gmra.mxu0 %v7382
      %v7584 = vpop.f32.mrf.mxu0
      %v7585 = vadd.f32 0.0, %v7584
      %v7586 = vpop.f32.mrf.mxu0
      %7587 = vmatprep.mubr.f32.mxu0 0.0
      %7588 = vmatmul.mubr.f32.gmra.mxu0 %v7385
      %v7589 = vpop.f32.mrf.mxu0
      %v7590 = vadd.f32 0.0, %v7589
      %v7591 = vpop.f32.mrf.mxu0
      %7592 = vmatprep.mubr.f32.mxu0 0.0
      %7593 = vmatmul.mubr.f32.gmra.mxu0 %v7388
      %v7594 = vpop.f32.mrf.mxu0
      %v7595 = vadd.f32 0.0, %v7594
      %v7596 = vpop.f32.mrf.mxu0
      %7597 = vmatprep.mubr.f32.mxu0 0.0
      %7598 = vmatmul.mubr.f32.gmra.mxu0 %v7391
      %v7599 = vpop.f32.mrf.mxu0
      %v7600 = vadd.f32 0.0, %v7599
      %v7601 = vpop.f32.mrf.mxu0
      %7602 = vmatprep.mubr.f32.mxu0 0.0
      %7603 = vmatmul.mubr.f32.gmra.mxu0 %v7394
      %v7604 = vpop.f32.mrf.mxu0
      %v7605 = vadd.f32 0.0, %v7604
      %v7606 = vpop.f32.mrf.mxu0
      %7607 = vmatprep.mubr.f32.mxu0 0.0
      %7608 = vmatmul.mubr.f32.gmra.mxu0 %v7397
      %v7609 = vpop.f32.mrf.mxu0
      %v7610 = vadd.f32 0.0, %v7609
      %v7611 = vpop.f32.mrf.mxu0
      %7612 = vmatprep.mubr.f32.mxu0 0.0
      %7613 = vmatmul.mubr.f32.gmra.mxu0 %v7400
      %v7614 = vpop.f32.mrf.mxu0
      %v7615 = vadd.f32 0.0, %v7614
      %v7616 = vpop.f32.mrf.mxu0
      %7617 = vmatprep.mubr.f32.mxu0 0.0
      %7618 = vmatmul.mubr.f32.gmra.mxu0 %v7403
      %v7619 = vpop.f32.mrf.mxu0
      %v7620 = vadd.f32 0.0, %v7619
      %v7621 = vpop.f32.mrf.mxu0
      %7622 = vmatprep.mubr.f32.mxu0 0.0
      %7623 = vmatmul.mubr.f32.gmra.mxu0 %v7406
      %v7624 = vpop.f32.mrf.mxu0
      %v7625 = vadd.f32 0.0, %v7624
      %v7626 = vpop.f32.mrf.mxu0
      %7627 = vmatprep.mubr.f32.mxu0 0.0
      %7628 = vmatmul.mubr.f32.gmra.mxu0 %v7409
      %v7629 = vpop.f32.mrf.mxu0
      %v7630 = vadd.f32 0.0, %v7629
      %v7631 = vpop.f32.mrf.mxu0
      %7632 = vmatprep.mubr.f32.mxu0 0.0
      %7633 = vmatmul.mubr.f32.gmra.mxu0 %v7412
      %v7634 = vpop.f32.mrf.mxu0
      %v7635 = vadd.f32 0.0, %v7634
      %v7636 = vpop.f32.mrf.mxu0
      %7637 = vmatprep.mubr.f32.mxu0 0.0
      %7638 = vmatmul.mubr.f32.gmra.mxu0 %v7415
      %v7639 = vpop.f32.mrf.mxu0
      %v7640 = vadd.f32 0.0, %v7639
      %v7641 = vpop.f32.mrf.mxu0
      %7642 = vmatprep.mubr.f32.mxu0 0.0
      %7643 = vmatmul.mubr.f32.gmra.mxu0 %v7418
      %v7644 = vpop.f32.mrf.mxu0
      %v7645 = vadd.f32 0.0, %v7644
      %v7646 = vpop.f32.mrf.mxu0
      %7647 = vdwg.mxu0
      %v7648 = vadd.f32 %v7258, %v7490
      %v7649 = vadd.f32 %v7259, %v7495
      %v7650 = vadd.f32 %v7260, %v7500
      %v7651 = vadd.f32 %v7261, %v7505
      %v7652 = vadd.f32 %v7262, %v7510
      %v7653 = vadd.f32 %v7263, %v7515
      %v7654 = vadd.f32 %v7264, %v7520
      %v7655 = vadd.f32 %v7265, %v7525
      %v7656 = vadd.f32 %v7266, %v7530
      %v7657 = vadd.f32 %v7267, %v7535
      %v7658 = vadd.f32 %v7268, %v7540
      %v7659 = vadd.f32 %v7269, %v7545
      %v7660 = vadd.f32 %v7270, %v7550
      %v7661 = vadd.f32 %v7271, %v7555
      %v7662 = vadd.f32 %v7272, %v7560
      %v7663 = vadd.f32 %v7273, %v7565
      %v7664 = vadd.f32 %v7274, %v7570
      %v7665 = vadd.f32 %v7275, %v7575
      %v7666 = vadd.f32 %v7276, %v7580
      %v7667 = vadd.f32 %v7277, %v7585
      %v7668 = vadd.f32 %v7278, %v7590
      %v7669 = vadd.f32 %v7279, %v7595
      %v7670 = vadd.f32 %v7280, %v7600
      %v7671 = vadd.f32 %v7281, %v7605
      %v7672 = vadd.f32 %v7282, %v7610
      %v7673 = vadd.f32 %v7283, %v7615
      %v7674 = vadd.f32 %v7284, %v7620
      %v7675 = vadd.f32 %v7285, %v7625
      %v7676 = vadd.f32 %v7286, %v7630
      %v7677 = vadd.f32 %v7287, %v7635
      %v7678 = vadd.f32 %v7288, %v7640
      %v7679 = vadd.f32 %v7289, %v7645
      %v7680 = vld [vmem:[%s4] sm:$0x1]
      %v7682 = vlaneseq
      %v7683 = vshrl.u32 %v7682, 7
      %v7684 = vsub.s32 0, %v7683
      %v7685 = vrot.slane %v7680, %v7684
      %v7687 = vadd.f32 %v7648, %v7685
      %v7688 = vadd.f32 %v7649, %v7685
      %v7689 = vadd.f32 %v7650, %v7685
      %v7690 = vadd.f32 %v7651, %v7685
      %v7691 = vadd.f32 %v7652, %v7685
      %v7692 = vadd.f32 %v7653, %v7685
      %v7693 = vadd.f32 %v7654, %v7685
      %v7694 = vadd.f32 %v7655, %v7685
      %v7695 = vadd.f32 %v7656, %v7685
      %v7696 = vadd.f32 %v7657, %v7685
      %v7697 = vadd.f32 %v7658, %v7685
      %v7698 = vadd.f32 %v7659, %v7685
      %v7699 = vadd.f32 %v7660, %v7685
      %v7700 = vadd.f32 %v7661, %v7685
      %v7701 = vadd.f32 %v7662, %v7685
      %v7702 = vadd.f32 %v7663, %v7685
      %v7703 = vadd.f32 %v7664, %v7685
      %v7704 = vadd.f32 %v7665, %v7685
      %v7705 = vadd.f32 %v7666, %v7685
      %v7706 = vadd.f32 %v7667, %v7685
      %v7707 = vadd.f32 %v7668, %v7685
      %v7708 = vadd.f32 %v7669, %v7685
      %v7709 = vadd.f32 %v7670, %v7685
      %v7710 = vadd.f32 %v7671, %v7685
      %v7711 = vadd.f32 %v7672, %v7685
      %v7712 = vadd.f32 %v7673, %v7685
      %v7713 = vadd.f32 %v7674, %v7685
      %v7714 = vadd.f32 %v7675, %v7685
      %v7715 = vadd.f32 %v7676, %v7685
      %v7716 = vadd.f32 %v7677, %v7685
      %v7717 = vadd.f32 %v7678, %v7685
      %v7718 = vadd.f32 %v7679, %v7685
      %v7719 = vsel %vm258, %v7687, 0.0
      %v7720 = vsel %vm258, %v7688, 0.0
      %v7721 = vadd.f32 %v7719, %v7720
      %v7722 = vsel %vm258, %v7689, 0.0
      %v7723 = vadd.f32 %v7721, %v7722
      %v7724 = vsel %vm258, %v7690, 0.0
      %v7725 = vadd.f32 %v7723, %v7724
      %v7726 = vsel %vm258, %v7691, 0.0
      %v7727 = vadd.f32 %v7725, %v7726
      %v7728 = vsel %vm258, %v7692, 0.0
      %v7729 = vadd.f32 %v7727, %v7728
      %v7730 = vsel %vm258, %v7693, 0.0
      %v7731 = vadd.f32 %v7729, %v7730
      %v7732 = vsel %vm258, %v7694, 0.0
      %v7733 = vadd.f32 %v7731, %v7732
      %v7734 = vsel %vm258, %v7695, 0.0
      %v7735 = vadd.f32 %v7733, %v7734
      %v7736 = vsel %vm258, %v7696, 0.0
      %v7737 = vadd.f32 %v7735, %v7736
      %v7738 = vsel %vm258, %v7697, 0.0
      %v7739 = vadd.f32 %v7737, %v7738
      %v7740 = vsel %vm258, %v7698, 0.0
      %v7741 = vadd.f32 %v7739, %v7740
      %v7742 = vsel %vm258, %v7699, 0.0
      %v7743 = vadd.f32 %v7741, %v7742
      %v7744 = vsel %vm258, %v7700, 0.0
      %v7745 = vadd.f32 %v7743, %v7744
      %v7746 = vsel %vm258, %v7701, 0.0
      %v7747 = vadd.f32 %v7745, %v7746
      %v7748 = vsel %vm258, %v7702, 0.0
      %v7749 = vadd.f32 %v7747, %v7748
      %v7750 = vsel %vm258, %v7703, 0.0
      %v7751 = vadd.f32 %v7749, %v7750
      %v7752 = vsel %vm258, %v7704, 0.0
      %v7753 = vadd.f32 %v7751, %v7752
      %v7754 = vsel %vm258, %v7705, 0.0
      %v7755 = vadd.f32 %v7753, %v7754
      %v7756 = vsel %vm258, %v7706, 0.0
      %v7757 = vadd.f32 %v7755, %v7756
      %v7758 = vsel %vm258, %v7707, 0.0
      %v7759 = vadd.f32 %v7757, %v7758
      %v7760 = vsel %vm258, %v7708, 0.0
      %v7761 = vadd.f32 %v7759, %v7760
      %v7762 = vsel %vm258, %v7709, 0.0
      %v7763 = vadd.f32 %v7761, %v7762
      %v7764 = vsel %vm258, %v7710, 0.0
      %v7765 = vadd.f32 %v7763, %v7764
      %v7766 = vsel %vm258, %v7711, 0.0
      %v7767 = vadd.f32 %v7765, %v7766
      %v7768 = vsel %vm258, %v7712, 0.0
      %v7769 = vadd.f32 %v7767, %v7768
      %v7770 = vsel %vm258, %v7713, 0.0
      %v7771 = vadd.f32 %v7769, %v7770
      %v7772 = vsel %vm258, %v7714, 0.0
      %v7773 = vadd.f32 %v7771, %v7772
      %v7774 = vsel %vm258, %v7715, 0.0
      %v7775 = vadd.f32 %v7773, %v7774
      %v7776 = vsel %vm258, %v7716, 0.0
      %v7777 = vadd.f32 %v7775, %v7776
      %v7778 = vsel %vm258, %v7717, 0.0
      %v7779 = vadd.f32 %v7777, %v7778
      %v7780 = vsel %vm258, %v7718, 0.0
      %v7781 = vadd.f32 %v7779, %v7780
      %v7782 = vrot.slane %v7781, 4
      %v7783 = vadd.f32 %v7781, %v7782
      %v7784 = vrot.slane %v7783, 2
      %v7785 = vadd.f32 %v7783, %v7784
      %v7786 = vrot.slane %v7785, 1
      %v7787 = vadd.f32 %v7785, %v7786
      %v7788 = vmul.f32 %v7687, %v7687
      %v7789 = vmul.f32 %v7688, %v7688
      %v7790 = vmul.f32 %v7689, %v7689
      %v7791 = vmul.f32 %v7690, %v7690
      %v7792 = vmul.f32 %v7691, %v7691
      %v7793 = vmul.f32 %v7692, %v7692
      %v7794 = vmul.f32 %v7693, %v7693
      %v7795 = vmul.f32 %v7694, %v7694
      %v7796 = vmul.f32 %v7695, %v7695
      %v7797 = vmul.f32 %v7696, %v7696
      %v7798 = vmul.f32 %v7697, %v7697
      %v7799 = vmul.f32 %v7698, %v7698
      %v7800 = vmul.f32 %v7699, %v7699
      %v7801 = vmul.f32 %v7700, %v7700
      %v7802 = vmul.f32 %v7701, %v7701
      %v7803 = vmul.f32 %v7702, %v7702
      %v7804 = vmul.f32 %v7703, %v7703
      %v7805 = vmul.f32 %v7704, %v7704
      %v7806 = vmul.f32 %v7705, %v7705
      %v7807 = vmul.f32 %v7706, %v7706
      %v7808 = vmul.f32 %v7707, %v7707
      %v7809 = vmul.f32 %v7708, %v7708
      %v7810 = vmul.f32 %v7709, %v7709
      %v7811 = vmul.f32 %v7710, %v7710
      %v7812 = vmul.f32 %v7711, %v7711
      %v7813 = vmul.f32 %v7712, %v7712
      %v7814 = vmul.f32 %v7713, %v7713
      %v7815 = vmul.f32 %v7714, %v7714
      %v7816 = vmul.f32 %v7715, %v7715
      %v7817 = vmul.f32 %v7716, %v7716
      %v7818 = vmul.f32 %v7717, %v7717
      %v7819 = vmul.f32 %v7718, %v7718
      %v7820 = vsel %vm258, %v7788, 0.0
      %v7821 = vsel %vm258, %v7789, 0.0
      %v7822 = vadd.f32 %v7820, %v7821
      %v7823 = vsel %vm258, %v7790, 0.0
      %v7824 = vadd.f32 %v7822, %v7823
      %v7825 = vsel %vm258, %v7791, 0.0
      %v7826 = vadd.f32 %v7824, %v7825
      %v7827 = vsel %vm258, %v7792, 0.0
      %v7828 = vadd.f32 %v7826, %v7827
      %v7829 = vsel %vm258, %v7793, 0.0
      %v7830 = vadd.f32 %v7828, %v7829
      %v7831 = vsel %vm258, %v7794, 0.0
      %v7832 = vadd.f32 %v7830, %v7831
      %v7833 = vsel %vm258, %v7795, 0.0
      %v7834 = vadd.f32 %v7832, %v7833
      %v7835 = vsel %vm258, %v7796, 0.0
      %v7836 = vadd.f32 %v7834, %v7835
      %v7837 = vsel %vm258, %v7797, 0.0
      %v7838 = vadd.f32 %v7836, %v7837
      %v7839 = vsel %vm258, %v7798, 0.0
      %v7840 = vadd.f32 %v7838, %v7839
      %v7841 = vsel %vm258, %v7799, 0.0
      %v7842 = vadd.f32 %v7840, %v7841
      %v7843 = vsel %vm258, %v7800, 0.0
      %v7844 = vadd.f32 %v7842, %v7843
      %v7845 = vsel %vm258, %v7801, 0.0
      %v7846 = vadd.f32 %v7844, %v7845
      %v7847 = vsel %vm258, %v7802, 0.0
      %v7848 = vadd.f32 %v7846, %v7847
      %v7849 = vsel %vm258, %v7803, 0.0
      %v7850 = vadd.f32 %v7848, %v7849
      %v7851 = vsel %vm258, %v7804, 0.0
      %v7852 = vadd.f32 %v7850, %v7851
      %v7853 = vsel %vm258, %v7805, 0.0
      %v7854 = vadd.f32 %v7852, %v7853
      %v7855 = vsel %vm258, %v7806, 0.0
      %v7856 = vadd.f32 %v7854, %v7855
      %v7857 = vsel %vm258, %v7807, 0.0
      %v7858 = vadd.f32 %v7856, %v7857
      %v7859 = vsel %vm258, %v7808, 0.0
      %v7860 = vadd.f32 %v7858, %v7859
      %v7861 = vsel %vm258, %v7809, 0.0
      %v7862 = vadd.f32 %v7860, %v7861
      %v7863 = vsel %vm258, %v7810, 0.0
      %v7864 = vadd.f32 %v7862, %v7863
      %v7865 = vsel %vm258, %v7811, 0.0
      %v7866 = vadd.f32 %v7864, %v7865
      %v7867 = vsel %vm258, %v7812, 0.0
      %v7868 = vadd.f32 %v7866, %v7867
      %v7869 = vsel %vm258, %v7813, 0.0
      %v7870 = vadd.f32 %v7868, %v7869
      %v7871 = vsel %vm258, %v7814, 0.0
      %v7872 = vadd.f32 %v7870, %v7871
      %v7873 = vsel %vm258, %v7815, 0.0
      %v7874 = vadd.f32 %v7872, %v7873
      %v7875 = vsel %vm258, %v7816, 0.0
      %v7876 = vadd.f32 %v7874, %v7875
      %v7877 = vsel %vm258, %v7817, 0.0
      %v7878 = vadd.f32 %v7876, %v7877
      %v7879 = vsel %vm258, %v7818, 0.0
      %v7880 = vadd.f32 %v7878, %v7879
      %v7881 = vsel %vm258, %v7819, 0.0
      %v7882 = vadd.f32 %v7880, %v7881
      %v7883 = vrot.slane %v7882, 4
      %v7884 = vadd.f32 %v7882, %v7883
      %v7885 = vrot.slane %v7884, 2
      %v7886 = vadd.f32 %v7884, %v7885
      %v7887 = vrot.slane %v7886, 1
      %v7888 = vadd.f32 %v7886, %v7887
      %v7889 = vmul.f32 %v7787, 0.00390625
      %v7890 = vmul.f32 %v7888, 0.00390625
      %v7891 = vmul.f32 %v7889, %v7889
      %v7892 = vsub.f32 %v7890, %v7891
      %v7893 = vsub.f32 %v7687, %v7889
      %v7894 = vsub.f32 %v7688, %v7889
      %v7895 = vsub.f32 %v7689, %v7889
      %v7896 = vsub.f32 %v7690, %v7889
      %v7897 = vsub.f32 %v7691, %v7889
      %v7898 = vsub.f32 %v7692, %v7889
      %v7899 = vsub.f32 %v7693, %v7889
      %v7900 = vsub.f32 %v7694, %v7889
      %v7901 = vsub.f32 %v7695, %v7889
      %v7902 = vsub.f32 %v7696, %v7889
      %v7903 = vsub.f32 %v7697, %v7889
      %v7904 = vsub.f32 %v7698, %v7889
      %v7905 = vsub.f32 %v7699, %v7889
      %v7906 = vsub.f32 %v7700, %v7889
      %v7907 = vsub.f32 %v7701, %v7889
      %v7908 = vsub.f32 %v7702, %v7889
      %v7909 = vsub.f32 %v7703, %v7889
      %v7910 = vsub.f32 %v7704, %v7889
      %v7911 = vsub.f32 %v7705, %v7889
      %v7912 = vsub.f32 %v7706, %v7889
      %v7913 = vsub.f32 %v7707, %v7889
      %v7914 = vsub.f32 %v7708, %v7889
      %v7915 = vsub.f32 %v7709, %v7889
      %v7916 = vsub.f32 %v7710, %v7889
      %v7917 = vsub.f32 %v7711, %v7889
      %v7918 = vsub.f32 %v7712, %v7889
      %v7919 = vsub.f32 %v7713, %v7889
      %v7920 = vsub.f32 %v7714, %v7889
      %v7921 = vsub.f32 %v7715, %v7889
      %v7922 = vsub.f32 %v7716, %v7889
      %v7923 = vsub.f32 %v7717, %v7889
      %v7924 = vsub.f32 %v7718, %v7889
      %v7925 = vadd.f32 %v7892, 1e-05
      %v7926 = vrsqrt.pop %v7925
      %v7927 = vmul.f32 %v7893, %v7926
      %v7928 = vmul.f32 %v7894, %v7926
      %v7929 = vmul.f32 %v7895, %v7926
      %v7930 = vmul.f32 %v7896, %v7926
      %v7931 = vmul.f32 %v7897, %v7926
      %v7932 = vmul.f32 %v7898, %v7926
      %v7933 = vmul.f32 %v7899, %v7926
      %v7934 = vmul.f32 %v7900, %v7926
      %v7935 = vmul.f32 %v7901, %v7926
      %v7936 = vmul.f32 %v7902, %v7926
      %v7937 = vmul.f32 %v7903, %v7926
      %v7938 = vmul.f32 %v7904, %v7926
      %v7939 = vmul.f32 %v7905, %v7926
      %v7940 = vmul.f32 %v7906, %v7926
      %v7941 = vmul.f32 %v7907, %v7926
      %v7942 = vmul.f32 %v7908, %v7926
      %v7943 = vmul.f32 %v7909, %v7926
      %v7944 = vmul.f32 %v7910, %v7926
      %v7945 = vmul.f32 %v7911, %v7926
      %v7946 = vmul.f32 %v7912, %v7926
      %v7947 = vmul.f32 %v7913, %v7926
      %v7948 = vmul.f32 %v7914, %v7926
      %v7949 = vmul.f32 %v7915, %v7926
      %v7950 = vmul.f32 %v7916, %v7926
      %v7951 = vmul.f32 %v7917, %v7926
      %v7952 = vmul.f32 %v7918, %v7926
      %v7953 = vmul.f32 %v7919, %v7926
      %v7954 = vmul.f32 %v7920, %v7926
      %v7955 = vmul.f32 %v7921, %v7926
      %v7956 = vmul.f32 %v7922, %v7926
      %v7957 = vmul.f32 %v7923, %v7926
      %v7958 = vmul.f32 %v7924, %v7926
      %v7959 = vadd.f32 %v225, %v7927
      %v7960 = vadd.f32 %v226, %v7928
      %v7961 = vadd.f32 %v227, %v7929
      %v7962 = vadd.f32 %v228, %v7930
      %v7963 = vadd.f32 %v229, %v7931
      %v7964 = vadd.f32 %v230, %v7932
      %v7965 = vadd.f32 %v231, %v7933
      %v7966 = vadd.f32 %v232, %v7934
      %v7967 = vadd.f32 %v233, %v7935
      %v7968 = vadd.f32 %v234, %v7936
      %v7969 = vadd.f32 %v235, %v7937
      %v7970 = vadd.f32 %v236, %v7938
      %v7971 = vadd.f32 %v237, %v7939
      %v7972 = vadd.f32 %v238, %v7940
      %v7973 = vadd.f32 %v239, %v7941
      %v7974 = vadd.f32 %v240, %v7942
      %v7975 = vadd.f32 %v241, %v7943
      %v7976 = vadd.f32 %v242, %v7944
      %v7977 = vadd.f32 %v243, %v7945
      %v7978 = vadd.f32 %v244, %v7946
      %v7979 = vadd.f32 %v245, %v7947
      %v7980 = vadd.f32 %v246, %v7948
      %v7981 = vadd.f32 %v247, %v7949
      %v7982 = vadd.f32 %v248, %v7950
      %v7983 = vadd.f32 %v249, %v7951
      %v7984 = vadd.f32 %v250, %v7952
      %v7985 = vadd.f32 %v251, %v7953
      %v7986 = vadd.f32 %v252, %v7954
      %v7987 = vadd.f32 %v253, %v7955
      %v7988 = vadd.f32 %v254, %v7956
      %v7989 = vadd.f32 %v255, %v7957
      %v7990 = vadd.f32 %v256, %v7958
      %7991 = vst.msk [vmem:[%s224] sm:$0xff] %vm258, %v7959
      %7992 = vst.msk [vmem:[%s224 + $0x8] sm:$0xff] %vm258, %v7960
      %7993 = vst.msk [vmem:[%s224 + $0x10] sm:$0xff] %vm258, %v7961
      %7994 = vst.msk [vmem:[%s224 + $0x18] sm:$0xff] %vm258, %v7962
      %7995 = vst.msk [vmem:[%s224 + $0x20] sm:$0xff] %vm258, %v7963
      %7996 = vst.msk [vmem:[%s224 + $0x28] sm:$0xff] %vm258, %v7964
      %7997 = vst.msk [vmem:[%s224 + $0x30] sm:$0xff] %vm258, %v7965
      %7998 = vst.msk [vmem:[%s224 + $0x38] sm:$0xff] %vm258, %v7966
      %7999 = vst.msk [vmem:[%s224 + $0x40] sm:$0xff] %vm258, %v7967
      %8000 = vst.msk [vmem:[%s224 + $0x48] sm:$0xff] %vm258, %v7968
      %8001 = vst.msk [vmem:[%s224 + $0x50] sm:$0xff] %vm258, %v7969
      %8002 = vst.msk [vmem:[%s224 + $0x58] sm:$0xff] %vm258, %v7970
      %8003 = vst.msk [vmem:[%s224 + $0x60] sm:$0xff] %vm258, %v7971
      %8004 = vst.msk [vmem:[%s224 + $0x68] sm:$0xff] %vm258, %v7972
      %8005 = vst.msk [vmem:[%s224 + $0x70] sm:$0xff] %vm258, %v7973
      %8006 = vst.msk [vmem:[%s224 + $0x78] sm:$0xff] %vm258, %v7974
      %8007 = vst.msk [vmem:[%s224 + $0x80] sm:$0xff] %vm258, %v7975
      %8008 = vst.msk [vmem:[%s224 + $0x88] sm:$0xff] %vm258, %v7976
      %8009 = vst.msk [vmem:[%s224 + $0x90] sm:$0xff] %vm258, %v7977
      %8010 = vst.msk [vmem:[%s224 + $0x98] sm:$0xff] %vm258, %v7978
      %8011 = vst.msk [vmem:[%s224 + $0xa0] sm:$0xff] %vm258, %v7979
      %8012 = vst.msk [vmem:[%s224 + $0xa8] sm:$0xff] %vm258, %v7980
      %8013 = vst.msk [vmem:[%s224 + $0xb0] sm:$0xff] %vm258, %v7981
      %8014 = vst.msk [vmem:[%s224 + $0xb8] sm:$0xff] %vm258, %v7982
      %8015 = vst.msk [vmem:[%s224 + $0xc0] sm:$0xff] %vm258, %v7983
      %8016 = vst.msk [vmem:[%s224 + $0xc8] sm:$0xff] %vm258, %v7984
      %8017 = vst.msk [vmem:[%s224 + $0xd0] sm:$0xff] %vm258, %v7985
      %8018 = vst.msk [vmem:[%s224 + $0xd8] sm:$0xff] %vm258, %v7986
      %8019 = vst.msk [vmem:[%s224 + $0xe0] sm:$0xff] %vm258, %v7987
      %8020 = vst.msk [vmem:[%s224 + $0xe8] sm:$0xff] %vm258, %v7988
      %8021 = vst.msk [vmem:[%s224 + $0xf0] sm:$0xff] %vm258, %v7989
      %8022 = vst.msk [vmem:[%s224 + $0xf8] sm:$0xff] %vm258, %v7990
      %p8023 = scmp.lt.s32.totalorder %s16, 1
      %s8024 = scalar_select %p8023, %s16, 1
      %s8025 = smul.addr %s8024, 32
      %s8026 = smul.addr %s8025, 8
      %s8027 = scalar_lea.vmem %s5, %s8026
      // Predicated region
      $region41: #{resnet_block_forward.1} parent=39 // pred_check
        %p8028 = pneg %p144
      $region42: #{resnet_block_forward.1} parent=39 // pred_check_branch
        %8030 = sbr.rel (%p8028) target = $region44
      $region43: #{resnet_block_forward.1} parent=39 // pred_region
        _
      $region44: #{resnet_block_forward.1} parent=39 // pred_fallthru
        _
    $region40: #{resnet_block_forward.1} parent=5 // pred_fallthru
      _
    %p8031 = scmp.le.s32.totalorder 2, %s11
    // Predicated region
    $region45: #{resnet_block_forward.1} parent=5 // pred_check
      %p8032 = pneg %p8031
    $region46: #{resnet_block_forward.1} parent=5 // pred_check_branch
      %8034 = sbr.rel (%p8032) target = $region48
    $region47: #{resnet_block_forward.1} parent=5 // pred_region
      %s8035 = ssub.s32 %s11, 2
      // Predicated region
      $region49: #{resnet_block_forward.1} parent=47 // pred_check
        %p8036 = pneg %p150
      $region50: #{resnet_block_forward.1} parent=47 // pred_check_branch
        %8038 = sbr.rel (%p8036) target = $region52
      $region51: #{resnet_block_forward.1} parent=47 // pred_region
        %p8039 = scmp.lt.s32.totalorder %s17, 1
        %s8040 = scalar_select %p8039, %s17, 1
        %s8041 = smul.addr %s8040, 32
        %s8042 = smul.addr %s8041, 8
        %s8043 = scalar_lea.vmem %s5, %s8042
      $region52: #{resnet_block_forward.1} parent=47 // pred_fallthru
        _
    $region48: #{resnet_block_forward.1} parent=5 // pred_fallthru
      _
  $region6: #{resnet_block_forward.1} parent=0 // loop_footer
    %s15 = sadd.s32 1, %s11
  $region7: #{resnet_block_forward.1} parent=0 // loop_footer_branch
    %10 = sbr.rel target = $region3
  $region8: #{resnet_block_forward.1} parent=0 // loop_exit
    _

</llo_original>
